<compile_context>
chip_gen: v5e
topology: v5e:2x2
jax: 0.10.0
libtpu: 0.0.40
codegen_flags: <defaults>
</compile_context>

<pallas_src>
import jax
import jax.numpy as jnp
from jax import lax
from jax.experimental import pallas as pl
from jax.experimental.pallas import tpu as pltpu

# ----------------------------- configuration --------------------------------
N, C, H, W = 2, 4, 8, 8          # batch, channels, spatial
HW = H * W
L = HW                           # sequence length for SS1D
D_EMBED = 32                     # embed_dim
D_STATE = 16                     # d_state
D_CONV = 3                       # d_conv
EXPAND = 2
D_INNER = EXPAND * D_EMBED       # 64
DT_RANK = max(1, -(-D_EMBED // 16))   # 'auto' -> ceil(D/16) = 2
NUM_SS1D = 8                     # SS1D_MBs_num
GW = C // 2                      # SCPA group width (reduction=2)
EPS_BN = 1e-5
EPS_LN = 1e-5

NDE = N * D_EMBED                # 64  : packed token feature width
NDI = N * D_INNER                # 128 : packed inner width (full vreg lanes)
CHUNK = 8                        # within-chunk length of the two-level scan
NCHUNK = L // CHUNK              # 8 chunks


def _leaky(v, slope=0.2):
    return jnp.where(v >= 0, v, slope * v)


# ============================ fused SpeFEM kernel =============================
def _spe_fem_kernel(
        x_ref, bn1_g_ref, bn1_b_ref, sa_ref, emb_w_ref, emb_b_ref, pool_ref,
        ln_g_ref, ln_b_ref, w_inx_ref, w_inz_ref, conv_w_ref, conv_b_ref,
        w_dt_ref, b_dt_ref, w_B_ref, w_C_ref, a_ref, d_ref, w_out_ref,
        merge_ref, unemb_w_ref, unemb_b_ref, bn2_g_ref, bn2_b_ref,
        m1a_ref, m1b_ref, mk1_ref, mk2_ref, bk2_ref, mk3_ref, mk4_ref, m3_ref,
        o_ref):
    f32 = jnp.float32
    cnt = float(N * HW)

    # -------- stage 1: BN1 (batch stats) + SpatialAttention + patch embed ----
    x = x_ref[...]                                           # (N, C, HW)
    s1 = jnp.sum(jnp.sum(x, axis=2, keepdims=True), axis=0, keepdims=True)
    mu1 = s1 / cnt
    d1 = x - mu1
    v1 = jnp.sum(jnp.sum(d1 * d1, axis=2, keepdims=True), axis=0,
                 keepdims=True) / cnt
    xn1 = d1 * lax.rsqrt(v1 + EPS_BN) * bn1_g_ref[...] + bn1_b_ref[...]

    # channel mean / max (C = 4, explicit unroll), 7x7 conv as one matmul
    ch = [xn1[:, c, :] for c in range(C)]                    # C x (N, HW)
    avg = ch[0]
    mx = ch[0]
    for t in ch[1:]:
        avg = avg + t
        mx = jnp.maximum(mx, t)
    avg = avg * (1.0 / C)
    pooled = jnp.concatenate([avg, mx], axis=1)              # (N, 2*HW)
    att = jax.nn.sigmoid(jnp.dot(pooled, sa_ref[...],
                                 preferred_element_type=f32))  # (N, HW)
    presum = x + xn1 * att[:, None, :]                       # residual + SA(norm1)

    # patch embedding -> packed token layout (L, N*D_EMBED), block-diag weights
    xcat = jnp.transpose(xn1.reshape(N * C, HW))             # (L, N*C)
    seq = jnp.dot(xcat, emb_w_ref[...],
                  preferred_element_type=f32) + emb_b_ref[...]   # (L, NDE)

    pool = pool_ref[...]                                     # (NDE, NDE)

    # -------- stage 2: 8 x SS1D_MB (bidirectional selective scan) ------------
    def ss1d_block(blk, x_blk):
        # LayerNorm per sample feature group via block-diag mean-pool matmuls
        mean = jnp.dot(x_blk, pool, preferred_element_type=f32)
        ex2 = jnp.dot(x_blk * x_blk, pool, preferred_element_type=f32)
        var = ex2 - mean * mean
        xn = ((x_blk - mean) * lax.rsqrt(var + EPS_LN)
              * ln_g_ref[blk] + ln_b_ref[blk])

        # in_proj (block-diagonal -> stays in packed lane layout)
        xh = jnp.dot(xn, w_inx_ref[blk], preferred_element_type=f32)  # (L, NDI)
        z = jnp.dot(xn, w_inz_ref[blk], preferred_element_type=f32)   # (L, NDI)

        # causal depthwise conv1d (k=3) along time + SiLU.  Both samples share
        # the time axis (packed in lanes) -> no cross-sample leakage.
        cw = conv_w_ref[blk]                                  # (3, NDI)
        cbias = conv_b_ref[blk]                               # (1, NDI)
        xpad = jnp.concatenate([jnp.zeros((D_CONV - 1, NDI), f32), xh], axis=0)
        xc = (cw[0:1, :] * xpad[0:L, :] + cw[1:2, :] * xpad[1:L + 1, :]
              + cw[2:3, :] * xh + cbias)
        xc = xc * jax.nn.sigmoid(xc)

        # dt / B / C projections: separate, lane-aligned outputs
        dt = jax.nn.softplus(
            jnp.dot(xc, w_dt_ref[blk], preferred_element_type=f32)
            + b_dt_ref[blk])                                  # (L, NDI)
        Bp = jnp.dot(xc, w_B_ref[blk], preferred_element_type=f32)  # (L, N*DS)
        Cp = jnp.dot(xc, w_C_ref[blk], preferred_element_type=f32)  # (L, N*DS)

        # batched scan-input precompute
        A_T = -jnp.exp(a_ref[blk])                            # (DS, NDI)
        dA = jnp.exp(dt[:, None, :] * A_T[None, :, :])        # (L, DS, NDI)
        u = dt * xc

        def spread(m):   # (L, N*DS) -> (L, DS, NDI): per-sample state coeffs
            parts = []
            for n in range(N):
                mn = m[:, n * D_STATE:(n + 1) * D_STATE]
                parts.append(jnp.broadcast_to(mn[:, :, None],
                                              (L, D_STATE, D_INNER)))
            return jnp.concatenate(parts, axis=2)

        dBx = u[:, None, :] * spread(Bp)                      # (L, DS, NDI)
        Cs = spread(Cp)                                       # (L, DS, NDI)

        # ---- two-level (chunked) bidirectional scan ----
        aR = dA.reshape(NCHUNK, CHUNK, D_STATE, NDI)
        bR = dBx.reshape(NCHUNK, CHUNK, D_STATE, NDI)
        cR = Cs.reshape(NCHUNK, CHUNK, D_STATE, NDI)

        Pf = [None] * CHUNK; Sf = [None] * CHUNK
        Pb = [None] * CHUNK; Sb = [None] * CHUNK
        for jj in range(CHUNK):            # within-chunk, all chunks batched
            jf = jj
            a_f, b_f = aR[:, jf], bR[:, jf]
            if jj == 0:
                Pf[jf], Sf[jf] = a_f, b_f
            else:
                Pf[jf] = Pf[jf - 1] * a_f
                Sf[jf] = a_f * Sf[jf - 1] + b_f
            jb = CHUNK - 1 - jj
            a_b, b_b = aR[:, jb], bR[:, jb]
            if jj == 0:
                Pb[jb], Sb[jb] = a_b, b_b
            else:
                Pb[jb] = Pb[jb + 1] * a_b
                Sb[jb] = a_b * Sb[jb + 1] + b_b

        # serial chunk-boundary combines (8 tiny (DS, NDI) steps per direction)
        h0 = jnp.zeros((D_STATE, NDI), f32)
        carries_f = [None] * NCHUNK
        carry = h0
        for c in range(NCHUNK):
            carries_f[c] = carry
            carry = Pf[CHUNK - 1][c] * carry + Sf[CHUNK - 1][c]
        carries_b = [None] * NCHUNK
        carry = h0
        for c in range(NCHUNK - 1, -1, -1):
            carries_b[c] = carry
            carry = Pb[0][c] * carry + Sb[0][c]
        cf_a = jnp.stack(carries_f, axis=0)                   # (NCHUNK, DS, NDI)
        cb_a = jnp.stack(carries_b, axis=0)

        # apply carries + contract with C (hidden state h never materialized)
        yf_js = []
        yb_js = []
        for j in range(CHUNK):
            cj = cR[:, j]
            yf_js.append(jnp.sum(cj * (Pf[j] * cf_a + Sf[j]), axis=1))
            yb_js.append(jnp.sum(cj * (Pb[j] * cb_a + Sb[j]), axis=1))
        yf = jnp.stack(yf_js, axis=1).reshape(L, NDI)
        yb = jnp.stack(yb_js, axis=1).reshape(L, NDI)

        # skip term, learnable merge, gate, out_proj, residual
        dvec = d_ref[blk]                                     # (1, NDI)
        yf = yf + dvec * xc
        yb = yb + dvec * xc
        mw = merge_ref[blk]                                   # (1, 2)
        y = mw[0:1, 0:1] * yf + mw[0:1, 1:2] * yb
        y = y * (z * jax.nn.sigmoid(z))
        return x_blk + jnp.dot(y, w_out_ref[blk], preferred_element_type=f32)

    seq = lax.fori_loop(0, NUM_SS1D, ss1d_block, seq)

    # -------- stage 3: unembed + residual + BN2 + SCPA + residual ------------
    x2p = jnp.dot(seq, unemb_w_ref[...],
                  preferred_element_type=f32) + unemb_b_ref[...]   # (L, N*C)
    x2 = jnp.transpose(x2p).reshape(N, C, HW)
    xsum = presum + x2                                        # residual2

    s2 = jnp.sum(jnp.sum(xsum, axis=2, keepdims=True), axis=0, keepdims=True)
    mu2 = s2 / cnt
    d2 = xsum - mu2
    v2 = jnp.sum(jnp.sum(d2 * d2, axis=2, keepdims=True), axis=0,
                 keepdims=True) / cnt
    xn2 = d2 * lax.rsqrt(v2 + EPS_BN) * bn2_g_ref[...] + bn2_b_ref[...]

    def flat(t3):        # (N, C, HW) -> lane-dense channel-major (N, C*HW)
        return jnp.concatenate([t3[:, c, :] for c in range(C)], axis=1)

    xnf = flat(xn2)                                           # (N, 256)
    resf = flat(xsum)

    # SCPA: every 1x1 / 3x3 conv as a flat matmul on the MXU
    a1 = _leaky(jnp.dot(xnf, m1a_ref[...], preferred_element_type=f32))
    b1 = _leaky(jnp.dot(xnf, m1b_ref[...], preferred_element_type=f32))
    a1 = _leaky(jnp.dot(a1, mk1_ref[...], preferred_element_type=f32))
    gate = jax.nn.sigmoid(jnp.dot(b1, mk2_ref[...],
                                  preferred_element_type=f32) + bk2_ref[...])
    mixed = jnp.dot(b1, mk3_ref[...], preferred_element_type=f32) * gate
    bb = _leaky(jnp.dot(mixed, mk4_ref[...], preferred_element_type=f32))
    cat = jnp.concatenate([a1, bb], axis=1)                   # (N, 2*GW*HW)
    out = jnp.dot(cat, m3_ref[...], preferred_element_type=f32)
    o_ref[...] = out + xnf + resf                             # SCPA res + residual2


# ----------------------------- forward wrapper --------------------------------
def spe_fem_forward(x, w):
    xf = x.reshape(N, C, HW)                       # free, contiguous reshape
    yflat = pl.pallas_call(
        _spe_fem_kernel,
        out_shape=jax.ShapeDtypeStruct((N, C * HW), jnp.float32),
        compiler_params=pltpu.CompilerParams(
            vmem_limit_bytes=32 * 1024 * 1024),
    )(xf,
      w["bn1_g"], w["bn1_b"], w["sa_mat"], w["embed_w"], w["embed_b"],
      w["ln_pool"],
      w["ln_g"], w["ln_b"], w["w_in_x"], w["w_in_z"], w["conv_w"], w["conv_b"],
      w["w_dt"], w["b_dt"], w["w_B"], w["w_C"], w["a_logT"], w["d"],
      w["w_out"], w["merge"],
      w["unembed_w"], w["unembed_b"], w["bn2_g"], w["bn2_b"],
      w["M1a"], w["M1b"], w["Mk1"], w["Mk2"], w["bk2_flat"], w["Mk3"],
      w["Mk4"], w["M3"])
    return yflat.reshape(N, C, H, W)


# ----------------------------- weight preparation -----------------------------
def _conv_as_matmul(wc):
    """Torch-style conv weight (Cout, Cin, k, k) -> flat matrix (Cin*HW, Cout*HW)
    for 'same' zero padding, so that y_flat = x_flat @ M (channel-major flatten)."""
    cout, cin, k, _ = wc.shape
    eye = jnp.eye(cin * HW, dtype=jnp.float32).reshape(cin * HW, cin, H, W)
    resp = lax.conv_general_dilated(
        eye, wc, window_strides=(1, 1), padding="SAME",
        dimension_numbers=("NCHW", "OIHW", "NCHW"))
    return resp.reshape(cin * HW, cout * HW)


def _tile_lanes(a):
    """Tile the last axis N times: per-feature params shared by all samples."""
    return jnp.concatenate([a] * N, axis=-1)


def _blockdiag(m):
    """(a, b) -> (N*a, N*b) block diagonal (one block per batch sample)."""
    a, b = m.shape
    z = jnp.zeros((N * a, N * b), m.dtype)
    for n in range(N):
        z = z.at[n * a:(n + 1) * a, n * b:(n + 1) * b].set(m)
    return z


def _blockdiag_stack(ws):
    """(nb, a, b) -> (nb, N*a, N*b), block-diagonal per SS1D block."""
    return jnp.stack([_blockdiag(ws[i]) for i in range(ws.shape[0])], axis=0)


def prepare_weights(p):
    """One-time host-side weight prep (outside the Pallas kernel)."""
    w = {}
    w["bn1_g"] = p["bn1_g"].reshape(1, C, 1)
    w["bn1_b"] = p["bn1_b"].reshape(1, C, 1)
    w["bn2_g"] = p["bn2_g"].reshape(1, C, 1)
    w["bn2_b"] = p["bn2_b"].reshape(1, C, 1)
    w["sa_mat"] = _conv_as_matmul(p["sa_w"])                    # (2*HW, HW)

    # patch (un)embedding, packed for the lane-packed (L, N*dim) token layout
    w["embed_w"] = _blockdiag(p["embed_w"])                     # (N*C, N*D)
    w["embed_b"] = _tile_lanes(p["embed_b"].reshape(1, D_EMBED))
    w["unembed_w"] = _blockdiag(p["unembed_w"])                 # (N*D, N*C)
    w["unembed_b"] = _tile_lanes(p["unembed_b"].reshape(1, C))

    # LayerNorm mean-pool matrix (block-diag, per-sample groups of D_EMBED lanes)
    w["ln_pool"] = _blockdiag(
        jnp.full((D_EMBED, D_EMBED), 1.0 / D_EMBED, jnp.float32))

    # SS1D stack, all packed / block-diagonal for the lane-packed layout
    w["ln_g"] = _tile_lanes(p["ln_g"])                          # (nb, 1, NDE)
    w["ln_b"] = _tile_lanes(p["ln_b"])
    w["w_in_x"] = _blockdiag_stack(p["w_in"][:, :, :D_INNER])   # (nb, NDE, NDI)
    w["w_in_z"] = _blockdiag_stack(p["w_in"][:, :, D_INNER:])
    w["conv_w"] = _tile_lanes(p["conv_w"])                      # (nb, 3, NDI)
    w["conv_b"] = _tile_lanes(p["conv_b"])                      # (nb, 1, NDI)
    w_dt_full = jnp.einsum("bir,brj->bij", p["w_dtx"], p["w_dtp"])  # dt_proj folded
    w["w_dt"] = _blockdiag_stack(w_dt_full)                     # (nb, NDI, NDI)
    w["b_dt"] = _tile_lanes(p["b_dt"])                          # (nb, 1, NDI)
    w["w_B"] = _blockdiag_stack(p["w_B"])                       # (nb, NDI, N*DS)
    w["w_C"] = _blockdiag_stack(p["w_C"])
    w["a_logT"] = _tile_lanes(jnp.swapaxes(p["a_log"], 1, 2))   # (nb, DS, NDI)
    w["d"] = _tile_lanes(p["d"])                                # (nb, 1, NDI)
    w["w_out"] = _blockdiag_stack(p["w_out"])                   # (nb, NDI, NDE)
    w["merge"] = p["merge"]                                     # (nb, 1, 2)

    # SCPA convs as flat matmuls (channel-major flatten)
    w["M1a"] = _conv_as_matmul(p["w1a"])                        # (C*HW, GW*HW)
    w["M1b"] = _conv_as_matmul(p["w1b"])
    w["Mk1"] = _conv_as_matmul(p["wk1"])                        # (GW*HW, GW*HW)
    w["Mk2"] = _conv_as_matmul(p["wk2"])
    w["bk2_flat"] = jnp.repeat(p["bk2"], HW).reshape(1, GW * HW)
    w["Mk3"] = _conv_as_matmul(p["wk3"])
    w["Mk4"] = _conv_as_matmul(p["wk4"])
    w["M3"] = _conv_as_matmul(p["w3"])                          # (2*GW*HW, C*HW)
    return w


# ----------------------------- parameters ------------------------------------
def init_params(key):
    keys = iter(jax.random.split(key, 48))

    def nrm(shape, scale=0.02):
        return (scale * jax.random.normal(next(keys), shape)).astype(jnp.float32)

    p = {}
    p["bn1_g"] = jnp.ones((C,), jnp.float32)
    p["bn1_b"] = jnp.zeros((C,), jnp.float32)
    p["bn2_g"] = jnp.ones((C,), jnp.float32)
    p["bn2_b"] = jnp.zeros((C,), jnp.float32)
    p["sa_w"] = nrm((1, 2, 7, 7), 0.05)                    # 7x7 conv, 2->1, no bias
    p["embed_w"] = nrm((C, D_EMBED))
    p["embed_b"] = jnp.zeros((D_EMBED,), jnp.float32)
    p["unembed_w"] = nrm((D_EMBED, C))
    p["unembed_b"] = jnp.zeros((C,), jnp.float32)

    nb = NUM_SS1D
    p["ln_g"] = jnp.ones((nb, 1, D_EMBED), jnp.float32)
    p["ln_b"] = jnp.zeros((nb, 1, D_EMBED), jnp.float32)
    p["w_in"] = nrm((nb, D_EMBED, 2 * D_INNER))
    p["conv_w"] = nrm((nb, D_CONV, D_INNER), 0.1)
    p["conv_b"] = jnp.zeros((nb, 1, D_INNER), jnp.float32)
    p["w_dtx"] = nrm((nb, D_INNER, DT_RANK))
    p["w_B"] = nrm((nb, D_INNER, D_STATE))
    p["w_C"] = nrm((nb, D_INNER, D_STATE))
    p["w_dtp"] = nrm((nb, DT_RANK, D_INNER), DT_RANK ** -0.5)
    dt = jnp.exp(jax.random.uniform(next(keys), (nb, 1, D_INNER))
                 * (jnp.log(0.1) - jnp.log(0.001)) + jnp.log(0.001))
    dt = jnp.clip(dt, 1e-4, None)
    p["b_dt"] = (dt + jnp.log(-jnp.expm1(-dt))).astype(jnp.float32)  # inv softplus
    p["a_log"] = jnp.log(jnp.broadcast_to(
        jnp.arange(1, D_STATE + 1, dtype=jnp.float32), (nb, D_INNER, D_STATE)))
    p["d"] = jnp.ones((nb, 1, D_INNER), jnp.float32)
    p["w_out"] = nrm((nb, D_INNER, D_EMBED))
    p["merge"] = jnp.full((nb, 1, 2), 0.5, jnp.float32)

    p["w1a"] = nrm((GW, C, 1, 1), 0.1)
    p["w1b"] = nrm((GW, C, 1, 1), 0.1)
    p["wk1"] = nrm((GW, GW, 3, 3), 0.1)
    p["wk2"] = nrm((GW, GW, 1, 1), 0.1)
    p["bk2"] = jnp.zeros((GW,), jnp.float32)
    p["wk3"] = nrm((GW, GW, 3, 3), 0.1)
    p["wk4"] = nrm((GW, GW, 3, 3), 0.1)
    p["w3"] = nrm((C, 2 * GW, 1, 1), 0.1)
    return p


# ----------------------------------- main -------------------------------------
if __name__ == "__main__":
    key = jax.random.PRNGKey(0)
    kx, kp = jax.random.split(key)
    x = jax.random.normal(kx, (N, C, H, W), dtype=jnp.float32)
    params = init_params(kp)
    weights = prepare_weights(params)              # one-time host weight prep

    out = jax.jit(spe_fem_forward)(x, weights)
    out = jax.block_until_ready(out)

    assert out.shape == (N, C, H, W), out.shape
    assert bool(jnp.all(jnp.isfinite(out)))
    print("KERNEL_OK")
</pallas_src>

<mosaic_0001>
module attributes {stable_mosaic.version = 11 : i64} {
  func.func @_spe_fem_kernel(%arg0: memref<2x4x64xf32, #tpu.memory_space<vmem>>, %arg1: memref<1x4x1xf32, #tpu.memory_space<vmem>>, %arg2: memref<1x4x1xf32, #tpu.memory_space<vmem>>, %arg3: memref<128x64xf32, #tpu.memory_space<vmem>>, %arg4: memref<8x64xf32, #tpu.memory_space<vmem>>, %arg5: memref<1x64xf32, #tpu.memory_space<vmem>>, %arg6: memref<64x64xf32, #tpu.memory_space<vmem>>, %arg7: memref<8x1x64xf32, #tpu.memory_space<vmem>>, %arg8: memref<8x1x64xf32, #tpu.memory_space<vmem>>, %arg9: memref<8x64x128xf32, #tpu.memory_space<vmem>>, %arg10: memref<8x64x128xf32, #tpu.memory_space<vmem>>, %arg11: memref<8x3x128xf32, #tpu.memory_space<vmem>>, %arg12: memref<8x1x128xf32, #tpu.memory_space<vmem>>, %arg13: memref<8x128x128xf32, #tpu.memory_space<vmem>>, %arg14: memref<8x1x128xf32, #tpu.memory_space<vmem>>, %arg15: memref<8x128x32xf32, #tpu.memory_space<vmem>>, %arg16: memref<8x128x32xf32, #tpu.memory_space<vmem>>, %arg17: memref<8x16x128xf32, #tpu.memory_space<vmem>>, %arg18: memref<8x1x128xf32, #tpu.memory_space<vmem>>, %arg19: memref<8x128x64xf32, #tpu.memory_space<vmem>>, %arg20: memref<8x1x2xf32, #tpu.memory_space<vmem>>, %arg21: memref<64x8xf32, #tpu.memory_space<vmem>>, %arg22: memref<1x8xf32, #tpu.memory_space<vmem>>, %arg23: memref<1x4x1xf32, #tpu.memory_space<vmem>>, %arg24: memref<1x4x1xf32, #tpu.memory_space<vmem>>, %arg25: memref<256x128xf32, #tpu.memory_space<vmem>>, %arg26: memref<256x128xf32, #tpu.memory_space<vmem>>, %arg27: memref<128x128xf32, #tpu.memory_space<vmem>>, %arg28: memref<128x128xf32, #tpu.memory_space<vmem>>, %arg29: memref<1x128xf32, #tpu.memory_space<vmem>>, %arg30: memref<128x128xf32, #tpu.memory_space<vmem>>, %arg31: memref<128x128xf32, #tpu.memory_space<vmem>>, %arg32: memref<256x256xf32, #tpu.memory_space<vmem>>, %arg33: memref<2x256xf32, #tpu.memory_space<vmem>>) attributes {dimension_semantics = [], scalar_prefetch = 0 : i64, scratch_operands = 0 : i64, tpu.core_type = #tpu.core_type<tc>} {
    %c0 = arith.constant 0 : index
    %c0_0 = arith.constant 0 : index
    %c0_1 = arith.constant 0 : index
    %0 = vector.load %arg0[%c0, %c0_0, %c0_1] : memref<2x4x64xf32, #tpu.memory_space<vmem>>, vector<2x4x64xf32>
    %cst = arith.constant dense<0.000000e+00> : vector<2x4xf32>
    %1 = vector.multi_reduction <add>, %0, %cst [2] : vector<2x4x64xf32> to vector<2x4xf32>
    %2 = vector.shape_cast %1 : vector<2x4xf32> to vector<2x4x1xf32>
    %cst_2 = arith.constant dense<0.000000e+00> : vector<4x1xf32>
    %3 = vector.multi_reduction <add>, %2, %cst_2 [0] : vector<2x4x1xf32> to vector<4x1xf32>
    %4 = vector.shape_cast %3 : vector<4x1xf32> to vector<1x4x1xf32>
    %cst_3 = arith.constant 1.280000e+02 : f32
    %5 = vector.broadcast %cst_3 : f32 to vector<1x4x1xf32>
    %6 = arith.divf %4, %5 : vector<1x4x1xf32>
    %7 = vector.broadcast %6 : vector<1x4x1xf32> to vector<2x4x64xf32>
    %8 = arith.subf %0, %7 : vector<2x4x64xf32>
    %9 = arith.mulf %8, %8 : vector<2x4x64xf32>
    %cst_4 = arith.constant dense<0.000000e+00> : vector<2x4xf32>
    %10 = vector.multi_reduction <add>, %9, %cst_4 [2] : vector<2x4x64xf32> to vector<2x4xf32>
    %11 = vector.shape_cast %10 : vector<2x4xf32> to vector<2x4x1xf32>
    %cst_5 = arith.constant dense<0.000000e+00> : vector<4x1xf32>
    %12 = vector.multi_reduction <add>, %11, %cst_5 [0] : vector<2x4x1xf32> to vector<4x1xf32>
    %13 = vector.shape_cast %12 : vector<4x1xf32> to vector<1x4x1xf32>
    %cst_6 = arith.constant 1.280000e+02 : f32
    %14 = vector.broadcast %cst_6 : f32 to vector<1x4x1xf32>
    %15 = arith.divf %13, %14 : vector<1x4x1xf32>
    %cst_7 = arith.constant 9.99999974E-6 : f32
    %16 = vector.broadcast %cst_7 : f32 to vector<1x4x1xf32>
    %17 = arith.addf %15, %16 : vector<1x4x1xf32>
    %18 = math.rsqrt %17 : vector<1x4x1xf32>
    %19 = vector.broadcast %18 : vector<1x4x1xf32> to vector<2x4x64xf32>
    %20 = arith.mulf %8, %19 : vector<2x4x64xf32>
    %c0_8 = arith.constant 0 : index
    %c0_9 = arith.constant 0 : index
    %c0_10 = arith.constant 0 : index
    %21 = vector.load %arg1[%c0_8, %c0_9, %c0_10] : memref<1x4x1xf32, #tpu.memory_space<vmem>>, vector<1x4x1xf32>
    %22 = vector.broadcast %21 : vector<1x4x1xf32> to vector<2x4x64xf32>
    %23 = arith.mulf %20, %22 : vector<2x4x64xf32>
    %c0_11 = arith.constant 0 : index
    %c0_12 = arith.constant 0 : index
    %c0_13 = arith.constant 0 : index
    %24 = vector.load %arg2[%c0_11, %c0_12, %c0_13] : memref<1x4x1xf32, #tpu.memory_space<vmem>>, vector<1x4x1xf32>
    %25 = vector.broadcast %24 : vector<1x4x1xf32> to vector<2x4x64xf32>
    %26 = arith.addf %23, %25 : vector<2x4x64xf32>
    %27 = vector.extract_strided_slice %26 {offsets = [0, 0, 0], sizes = [2, 1, 64], strides = [1, 1, 1]} : vector<2x4x64xf32> to vector<2x1x64xf32>
    %28 = vector.shape_cast %27 : vector<2x1x64xf32> to vector<2x64xf32>
    %29 = vector.extract_strided_slice %26 {offsets = [0, 1, 0], sizes = [2, 1, 64], strides = [1, 1, 1]} : vector<2x4x64xf32> to vector<2x1x64xf32>
    %30 = vector.shape_cast %29 : vector<2x1x64xf32> to vector<2x64xf32>
    %31 = vector.extract_strided_slice %26 {offsets = [0, 2, 0], sizes = [2, 1, 64], strides = [1, 1, 1]} : vector<2x4x64xf32> to vector<2x1x64xf32>
    %32 = vector.shape_cast %31 : vector<2x1x64xf32> to vector<2x64xf32>
    %33 = vector.extract_strided_slice %26 {offsets = [0, 3, 0], sizes = [2, 1, 64], strides = [1, 1, 1]} : vector<2x4x64xf32> to vector<2x1x64xf32>
    %34 = vector.shape_cast %33 : vector<2x1x64xf32> to vector<2x64xf32>
    %35 = arith.addf %28, %30 : vector<2x64xf32>
    %36 = arith.maximumf %28, %30 : vector<2x64xf32>
    %37 = arith.addf %35, %32 : vector<2x64xf32>
    %38 = arith.maximumf %36, %32 : vector<2x64xf32>
    %39 = arith.addf %37, %34 : vector<2x64xf32>
    %40 = arith.maximumf %38, %34 : vector<2x64xf32>
    %cst_14 = arith.constant 2.500000e-01 : f32
    %41 = vector.broadcast %cst_14 : f32 to vector<2x64xf32>
    %42 = arith.mulf %39, %41 : vector<2x64xf32>
    %43 = tpu.concatenate %42, %40 in 1 : vector<2x64xf32>, vector<2x64xf32> -> vector<2x128xf32>
    %c0_15 = arith.constant 0 : index
    %c0_16 = arith.constant 0 : index
    %44 = vector.load %arg3[%c0_15, %c0_16] : memref<128x64xf32, #tpu.memory_space<vmem>>, vector<128x64xf32>
    %cst_17 = arith.constant dense<0.000000e+00> : vector<2x64xf32>
    %45 = tpu.matmul %43, %44, %cst_17 {dimension_numbers = #tpu.dot_dimension_numbers<[1], [0], [0], [1], [0, 0, 1, 1], [], []>} : vector<2x128xf32>, vector<128x64xf32>, vector<2x64xf32> -> vector<2x64xf32>
    %46 = arith.negf %45 : vector<2x64xf32>
    %47 = math.exp %46 : vector<2x64xf32>
    %cst_18 = arith.constant 1.000000e+00 : f32
    %48 = vector.broadcast %cst_18 : f32 to vector<2x64xf32>
    %49 = arith.addf %48, %47 : vector<2x64xf32>
    %50 = arith.divf %48, %49 : vector<2x64xf32>
    %51 = vector.shape_cast %50 : vector<2x64xf32> to vector<2x1x64xf32>
    %52 = vector.broadcast %51 : vector<2x1x64xf32> to vector<2x4x64xf32>
    %53 = arith.mulf %26, %52 : vector<2x4x64xf32>
    %54 = arith.addf %0, %53 : vector<2x4x64xf32>
    %55 = vector.shape_cast %26 : vector<2x4x64xf32> to vector<8x64xf32>
    %56 = tpu.transpose %55, [1, 0] : vector<8x64xf32> -> vector<64x8xf32>
    %c0_19 = arith.constant 0 : index
    %c0_20 = arith.constant 0 : index
    %57 = vector.load %arg4[%c0_19, %c0_20] : memref<8x64xf32, #tpu.memory_space<vmem>>, vector<8x64xf32>
    %cst_21 = arith.constant dense<0.000000e+00> : vector<64x64xf32>
    %58 = tpu.matmul %56, %57, %cst_21 {dimension_numbers = #tpu.dot_dimension_numbers<[1], [0], [0], [1], [0, 0, 1, 1], [], []>} : vector<64x8xf32>, vector<8x64xf32>, vector<64x64xf32> -> vector<64x64xf32>
    %c0_22 = arith.constant 0 : index
    %c0_23 = arith.constant 0 : index
    %59 = vector.load %arg5[%c0_22, %c0_23] : memref<1x64xf32, #tpu.memory_space<vmem>>, vector<1x64xf32>
    %60 = vector.broadcast %59 : vector<1x64xf32> to vector<64x64xf32>
    %61 = arith.addf %58, %60 : vector<64x64xf32>
    %c0_24 = arith.constant 0 : index
    %c0_25 = arith.constant 0 : index
    %62 = vector.load %arg6[%c0_24, %c0_25] : memref<64x64xf32, #tpu.memory_space<vmem>>, vector<64x64xf32>
    %c0_i32 = arith.constant 0 : i32
    %c8_i32 = arith.constant 8 : i32
    %63 = arith.addi %c0_i32, %c8_i32 : i32
    %c1_i32 = arith.constant 1 : i32
    %64 = scf.for %arg34 = %c0_i32 to %63 step %c1_i32 iter_args(%arg35 = %61) -> (vector<64x64xf32>)  : i32 {
      %cst_79 = arith.constant dense<0.000000e+00> : vector<64x64xf32>
      %164 = tpu.matmul %arg35, %62, %cst_79 {dimension_numbers = #tpu.dot_dimension_numbers<[1], [0], [0], [1], [0, 0, 1, 1], [], []>} : vector<64x64xf32>, vector<64x64xf32>, vector<64x64xf32> -> vector<64x64xf32>
      %165 = arith.mulf %arg35, %arg35 : vector<64x64xf32>
      %cst_80 = arith.constant dense<0.000000e+00> : vector<64x64xf32>
      %166 = tpu.matmul %165, %62, %cst_80 {dimension_numbers = #tpu.dot_dimension_numbers<[1], [0], [0], [1], [0, 0, 1, 1], [], []>} : vector<64x64xf32>, vector<64x64xf32>, vector<64x64xf32> -> vector<64x64xf32>
      %167 = arith.mulf %164, %164 : vector<64x64xf32>
      %168 = arith.subf %166, %167 : vector<64x64xf32>
      %169 = arith.subf %arg35, %164 : vector<64x64xf32>
      %cst_81 = arith.constant 9.99999974E-6 : f32
      %170 = vector.broadcast %cst_81 : f32 to vector<64x64xf32>
      %171 = arith.addf %168, %170 : vector<64x64xf32>
      %172 = math.rsqrt %171 : vector<64x64xf32>
      %173 = arith.mulf %169, %172 : vector<64x64xf32>
      %174 = arith.index_cast %arg34 : i32 to index
      %c0_82 = arith.constant 0 : index
      %c0_83 = arith.constant 0 : index
      %175 = vector.load %arg7[%174, %c0_82, %c0_83] : memref<8x1x64xf32, #tpu.memory_space<vmem>>, vector<1x1x64xf32>
      %176 = vector.shape_cast %175 : vector<1x1x64xf32> to vector<1x64xf32>
      %177 = vector.broadcast %176 : vector<1x64xf32> to vector<64x64xf32>
      %178 = arith.mulf %173, %177 : vector<64x64xf32>
      %179 = arith.index_cast %arg34 : i32 to index
      %c0_84 = arith.constant 0 : index
      %c0_85 = arith.constant 0 : index
      %180 = vector.load %arg8[%179, %c0_84, %c0_85] : memref<8x1x64xf32, #tpu.memory_space<vmem>>, vector<1x1x64xf32>
      %181 = vector.shape_cast %180 : vector<1x1x64xf32> to vector<1x64xf32>
      %182 = vector.broadcast %181 : vector<1x64xf32> to vector<64x64xf32>
      %183 = arith.addf %178, %182 : vector<64x64xf32>
      %184 = arith.index_cast %arg34 : i32 to index
      %c0_86 = arith.constant 0 : index
      %c0_87 = arith.constant 0 : index
      %185 = vector.load %arg9[%184, %c0_86, %c0_87] : memref<8x64x128xf32, #tpu.memory_space<vmem>>, vector<1x64x128xf32>
      %186 = vector.shape_cast %185 : vector<1x64x128xf32> to vector<64x128xf32>
      %cst_88 = arith.constant dense<0.000000e+00> : vector<64x128xf32>
      %187 = tpu.matmul %183, %186, %cst_88 {dimension_numbers = #tpu.dot_dimension_numbers<[1], [0], [0], [1], [0, 0, 1, 1], [], []>} : vector<64x64xf32>, vector<64x128xf32>, vector<64x128xf32> -> vector<64x128xf32>
      %188 = arith.index_cast %arg34 : i32 to index
      %c0_89 = arith.constant 0 : index
      %c0_90 = arith.constant 0 : index
      %189 = vector.load %arg10[%188, %c0_89, %c0_90] : memref<8x64x128xf32, #tpu.memory_space<vmem>>, vector<1x64x128xf32>
      %190 = vector.shape_cast %189 : vector<1x64x128xf32> to vector<64x128xf32>
      %cst_91 = arith.constant dense<0.000000e+00> : vector<64x128xf32>
      %191 = tpu.matmul %183, %190, %cst_91 {dimension_numbers = #tpu.dot_dimension_numbers<[1], [0], [0], [1], [0, 0, 1, 1], [], []>} : vector<64x64xf32>, vector<64x128xf32>, vector<64x128xf32> -> vector<64x128xf32>
      %192 = arith.index_cast %arg34 : i32 to index
      %c0_92 = arith.constant 0 : index
      %c0_93 = arith.constant 0 : index
      %193 = vector.load %arg11[%192, %c0_92, %c0_93] : memref<8x3x128xf32, #tpu.memory_space<vmem>>, vector<1x3x128xf32>
      %194 = vector.shape_cast %193 : vector<1x3x128xf32> to vector<3x128xf32>
      %195 = arith.index_cast %arg34 : i32 to index
      %c0_94 = arith.constant 0 : index
      %c0_95 = arith.constant 0 : index
      %196 = vector.load %arg12[%195, %c0_94, %c0_95] : memref<8x1x128xf32, #tpu.memory_space<vmem>>, vector<1x1x128xf32>
      %197 = vector.shape_cast %196 : vector<1x1x128xf32> to vector<1x128xf32>
      %cst_96 = arith.constant 0.000000e+00 : f32
      %198 = vector.broadcast %cst_96 : f32 to vector<2x128xf32>
      %199 = tpu.concatenate %198, %187 in 0 : vector<2x128xf32>, vector<64x128xf32> -> vector<66x128xf32>
      %200 = vector.extract_strided_slice %194 {offsets = [0, 0], sizes = [1, 128], strides = [1, 1]} : vector<3x128xf32> to vector<1x128xf32>
      %201 = vector.extract_strided_slice %199 {offsets = [0, 0], sizes = [64, 128], strides = [1, 1]} : vector<66x128xf32> to vector<64x128xf32>
      %202 = vector.broadcast %200 : vector<1x128xf32> to vector<64x128xf32>
      %203 = arith.mulf %202, %201 : vector<64x128xf32>
      %204 = vector.extract_strided_slice %194 {offsets = [1, 0], sizes = [1, 128], strides = [1, 1]} : vector<3x128xf32> to vector<1x128xf32>
      %205 = vector.extract_strided_slice %199 {offsets = [1, 0], sizes = [64, 128], strides = [1, 1]} : vector<66x128xf32> to vector<64x128xf32>
      %206 = vector.broadcast %204 : vector<1x128xf32> to vector<64x128xf32>
      %207 = arith.mulf %206, %205 : vector<64x128xf32>
      %208 = arith.addf %203, %207 : vector<64x128xf32>
      %209 = vector.extract_strided_slice %194 {offsets = [2, 0], sizes = [1, 128], strides = [1, 1]} : vector<3x128xf32> to vector<1x128xf32>
      %210 = vector.broadcast %209 : vector<1x128xf32> to vector<64x128xf32>
      %211 = arith.mulf %210, %187 : vector<64x128xf32>
      %212 = arith.addf %208, %211 : vector<64x128xf32>
      %213 = vector.broadcast %197 : vector<1x128xf32> to vector<64x128xf32>
      %214 = arith.addf %212, %213 : vector<64x128xf32>
      %215 = arith.negf %214 : vector<64x128xf32>
      %216 = math.exp %215 : vector<64x128xf32>
      %cst_97 = arith.constant 1.000000e+00 : f32
      %217 = vector.broadcast %cst_97 : f32 to vector<64x128xf32>
      %218 = arith.addf %217, %216 : vector<64x128xf32>
      %219 = arith.divf %217, %218 : vector<64x128xf32>
      %220 = arith.mulf %214, %219 : vector<64x128xf32>
      %221 = arith.index_cast %arg34 : i32 to index
      %c0_98 = arith.constant 0 : index
      %c0_99 = arith.constant 0 : index
      %222 = vector.load %arg13[%221, %c0_98, %c0_99] : memref<8x128x128xf32, #tpu.memory_space<vmem>>, vector<1x128x128xf32>
      %223 = vector.shape_cast %222 : vector<1x128x128xf32> to vector<128x128xf32>
      %cst_100 = arith.constant dense<0.000000e+00> : vector<64x128xf32>
      %224 = tpu.matmul %220, %223, %cst_100 {dimension_numbers = #tpu.dot_dimension_numbers<[1], [0], [0], [1], [0, 0, 1, 1], [], []>} : vector<64x128xf32>, vector<128x128xf32>, vector<64x128xf32> -> vector<64x128xf32>
      %225 = arith.index_cast %arg34 : i32 to index
      %c0_101 = arith.constant 0 : index
      %c0_102 = arith.constant 0 : index
      %226 = vector.load %arg14[%225, %c0_101, %c0_102] : memref<8x1x128xf32, #tpu.memory_space<vmem>>, vector<1x1x128xf32>
      %227 = vector.shape_cast %226 : vector<1x1x128xf32> to vector<1x128xf32>
      %228 = vector.broadcast %227 : vector<1x128xf32> to vector<64x128xf32>
      %229 = arith.addf %224, %228 : vector<64x128xf32>
      %cst_103 = arith.constant 0.000000e+00 : f32
      %230 = vector.broadcast %cst_103 : f32 to vector<64x128xf32>
      %231 = arith.maximumf %229, %230 : vector<64x128xf32>
      %232 = vector.broadcast %cst_103 : f32 to vector<64x128xf32>
      %233 = arith.subf %229, %232 : vector<64x128xf32>
      %234 = arith.cmpf one, %233, %233 : vector<64x128xf32>
      %235 = vector.broadcast %cst_103 : f32 to vector<64x128xf32>
      %236 = arith.addf %229, %235 : vector<64x128xf32>
      %237 = math.absf %233 : vector<64x128xf32>
      %cst_104 = arith.constant 0.000000e+00 : f32
      %238 = vector.broadcast %cst_104 : f32 to vector<64x128xf32>
      %239 = arith.subf %238, %237 : vector<64x128xf32>
      %240 = math.exp %239 : vector<64x128xf32>
      %241 = math.log1p %240 : vector<64x128xf32>
      %242 = arith.addf %231, %241 : vector<64x128xf32>
      %243 = arith.select %234, %236, %242 : vector<64x128xi1>, vector<64x128xf32>
      %244 = arith.index_cast %arg34 : i32 to index
      %c0_105 = arith.constant 0 : index
      %c0_106 = arith.constant 0 : index
      %245 = vector.load %arg15[%244, %c0_105, %c0_106] : memref<8x128x32xf32, #tpu.memory_space<vmem>>, vector<1x128x32xf32>
      %246 = vector.shape_cast %245 : vector<1x128x32xf32> to vector<128x32xf32>
      %cst_107 = arith.constant dense<0.000000e+00> : vector<64x32xf32>
      %247 = tpu.matmul %220, %246, %cst_107 {dimension_numbers = #tpu.dot_dimension_numbers<[1], [0], [0], [1], [0, 0, 1, 1], [], []>} : vector<64x128xf32>, vector<128x32xf32>, vector<64x32xf32> -> vector<64x32xf32>
      %248 = arith.index_cast %arg34 : i32 to index
      %c0_108 = arith.constant 0 : index
      %c0_109 = arith.constant 0 : index
      %249 = vector.load %arg16[%248, %c0_108, %c0_109] : memref<8x128x32xf32, #tpu.memory_space<vmem>>, vector<1x128x32xf32>
      %250 = vector.shape_cast %249 : vector<1x128x32xf32> to vector<128x32xf32>
      %cst_110 = arith.constant dense<0.000000e+00> : vector<64x32xf32>
      %251 = tpu.matmul %220, %250, %cst_110 {dimension_numbers = #tpu.dot_dimension_numbers<[1], [0], [0], [1], [0, 0, 1, 1], [], []>} : vector<64x128xf32>, vector<128x32xf32>, vector<64x32xf32> -> vector<64x32xf32>
      %252 = arith.index_cast %arg34 : i32 to index
      %c0_111 = arith.constant 0 : index
      %c0_112 = arith.constant 0 : index
      %253 = vector.load %arg17[%252, %c0_111, %c0_112] : memref<8x16x128xf32, #tpu.memory_space<vmem>>, vector<1x16x128xf32>
      %254 = vector.shape_cast %253 : vector<1x16x128xf32> to vector<16x128xf32>
      %255 = math.exp %254 : vector<16x128xf32>
      %cst_113 = arith.constant 0.000000e+00 : f32
      %256 = vector.broadcast %cst_113 : f32 to vector<16x128xf32>
      %257 = arith.subf %256, %255 : vector<16x128xf32>
      %258 = vector.shape_cast %243 : vector<64x128xf32> to vector<64x1x128xf32>
      %259 = vector.shape_cast %257 : vector<16x128xf32> to vector<1x16x128xf32>
      %260 = vector.broadcast %258 : vector<64x1x128xf32> to vector<64x16x128xf32>
      %261 = vector.broadcast %259 : vector<1x16x128xf32> to vector<64x16x128xf32>
      %262 = arith.mulf %260, %261 : vector<64x16x128xf32>
      %263 = math.exp %262 : vector<64x16x128xf32>
      %264 = arith.mulf %243, %220 : vector<64x128xf32>
      %265 = vector.shape_cast %264 : vector<64x128xf32> to vector<64x1x128xf32>
      %266 = vector.extract_strided_slice %247 {offsets = [0, 0], sizes = [64, 16], strides = [1, 1]} : vector<64x32xf32> to vector<64x16xf32>
      %267 = vector.shape_cast %266 : vector<64x16xf32> to vector<64x16x1xf32>
      %268 = vector.shape_cast %267 : vector<64x16x1xf32> to vector<64x16x1xf32>
      %269 = vector.broadcast %268 : vector<64x16x1xf32> to vector<64x16x64xf32>
      %270 = vector.extract_strided_slice %247 {offsets = [0, 16], sizes = [64, 16], strides = [1, 1]} : vector<64x32xf32> to vector<64x16xf32>
      %271 = vector.shape_cast %270 : vector<64x16xf32> to vector<64x16x1xf32>
      %272 = vector.shape_cast %271 : vector<64x16x1xf32> to vector<64x16x1xf32>
      %273 = vector.broadcast %272 : vector<64x16x1xf32> to vector<64x16x64xf32>
      %274 = tpu.concatenate %269, %273 in 2 : vector<64x16x64xf32>, vector<64x16x64xf32> -> vector<64x16x128xf32>
      %275 = vector.broadcast %265 : vector<64x1x128xf32> to vector<64x16x128xf32>
      %276 = arith.mulf %275, %274 : vector<64x16x128xf32>
      %277 = vector.extract_strided_slice %251 {offsets = [0, 0], sizes = [64, 16], strides = [1, 1]} : vector<64x32xf32> to vector<64x16xf32>
      %278 = vector.shape_cast %277 : vector<64x16xf32> to vector<64x16x1xf32>
      %279 = vector.shape_cast %278 : vector<64x16x1xf32> to vector<64x16x1xf32>
      %280 = vector.broadcast %279 : vector<64x16x1xf32> to vector<64x16x64xf32>
      %281 = vector.extract_strided_slice %251 {offsets = [0, 16], sizes = [64, 16], strides = [1, 1]} : vector<64x32xf32> to vector<64x16xf32>
      %282 = vector.shape_cast %281 : vector<64x16xf32> to vector<64x16x1xf32>
      %283 = vector.shape_cast %282 : vector<64x16x1xf32> to vector<64x16x1xf32>
      %284 = vector.broadcast %283 : vector<64x16x1xf32> to vector<64x16x64xf32>
      %285 = tpu.concatenate %280, %284 in 2 : vector<64x16x64xf32>, vector<64x16x64xf32> -> vector<64x16x128xf32>
      %286 = vector.shape_cast %263 : vector<64x16x128xf32> to vector<8x8x16x128xf32>
      %287 = vector.shape_cast %276 : vector<64x16x128xf32> to vector<8x8x16x128xf32>
      %288 = vector.shape_cast %285 : vector<64x16x128xf32> to vector<8x8x16x128xf32>
      %289 = vector.extract_strided_slice %286 {offsets = [0, 0, 0, 0], sizes = [8, 1, 16, 128], strides = [1, 1, 1, 1]} : vector<8x8x16x128xf32> to vector<8x1x16x128xf32>
      %290 = vector.shape_cast %289 : vector<8x1x16x128xf32> to vector<8x16x128xf32>
      %291 = vector.extract_strided_slice %287 {offsets = [0, 0, 0, 0], sizes = [8, 1, 16, 128], strides = [1, 1, 1, 1]} : vector<8x8x16x128xf32> to vector<8x1x16x128xf32>
      %292 = vector.shape_cast %291 : vector<8x1x16x128xf32> to vector<8x16x128xf32>
      %293 = vector.extract_strided_slice %286 {offsets = [0, 7, 0, 0], sizes = [8, 1, 16, 128], strides = [1, 1, 1, 1]} : vector<8x8x16x128xf32> to vector<8x1x16x128xf32>
      %294 = vector.shape_cast %293 : vector<8x1x16x128xf32> to vector<8x16x128xf32>
      %295 = vector.extract_strided_slice %287 {offsets = [0, 7, 0, 0], sizes = [8, 1, 16, 128], strides = [1, 1, 1, 1]} : vector<8x8x16x128xf32> to vector<8x1x16x128xf32>
      %296 = vector.shape_cast %295 : vector<8x1x16x128xf32> to vector<8x16x128xf32>
      %297 = vector.extract_strided_slice %286 {offsets = [0, 1, 0, 0], sizes = [8, 1, 16, 128], strides = [1, 1, 1, 1]} : vector<8x8x16x128xf32> to vector<8x1x16x128xf32>
      %298 = vector.shape_cast %297 : vector<8x1x16x128xf32> to vector<8x16x128xf32>
      %299 = vector.extract_strided_slice %287 {offsets = [0, 1, 0, 0], sizes = [8, 1, 16, 128], strides = [1, 1, 1, 1]} : vector<8x8x16x128xf32> to vector<8x1x16x128xf32>
      %300 = vector.shape_cast %299 : vector<8x1x16x128xf32> to vector<8x16x128xf32>
      %301 = arith.mulf %290, %298 : vector<8x16x128xf32>
      %302 = arith.mulf %298, %292 : vector<8x16x128xf32>
      %303 = arith.addf %302, %300 : vector<8x16x128xf32>
      %304 = vector.extract_strided_slice %286 {offsets = [0, 6, 0, 0], sizes = [8, 1, 16, 128], strides = [1, 1, 1, 1]} : vector<8x8x16x128xf32> to vector<8x1x16x128xf32>
      %305 = vector.shape_cast %304 : vector<8x1x16x128xf32> to vector<8x16x128xf32>
      %306 = vector.extract_strided_slice %287 {offsets = [0, 6, 0, 0], sizes = [8, 1, 16, 128], strides = [1, 1, 1, 1]} : vector<8x8x16x128xf32> to vector<8x1x16x128xf32>
      %307 = vector.shape_cast %306 : vector<8x1x16x128xf32> to vector<8x16x128xf32>
      %308 = arith.mulf %294, %305 : vector<8x16x128xf32>
      %309 = arith.mulf %305, %296 : vector<8x16x128xf32>
      %310 = arith.addf %309, %307 : vector<8x16x128xf32>
      %311 = vector.extract_strided_slice %286 {offsets = [0, 2, 0, 0], sizes = [8, 1, 16, 128], strides = [1, 1, 1, 1]} : vector<8x8x16x128xf32> to vector<8x1x16x128xf32>
      %312 = vector.shape_cast %311 : vector<8x1x16x128xf32> to vector<8x16x128xf32>
      %313 = vector.extract_strided_slice %287 {offsets = [0, 2, 0, 0], sizes = [8, 1, 16, 128], strides = [1, 1, 1, 1]} : vector<8x8x16x128xf32> to vector<8x1x16x128xf32>
      %314 = vector.shape_cast %313 : vector<8x1x16x128xf32> to vector<8x16x128xf32>
      %315 = arith.mulf %301, %312 : vector<8x16x128xf32>
      %316 = arith.mulf %312, %303 : vector<8x16x128xf32>
      %317 = arith.addf %316, %314 : vector<8x16x128xf32>
      %318 = vector.extract_strided_slice %286 {offsets = [0, 5, 0, 0], sizes = [8, 1, 16, 128], strides = [1, 1, 1, 1]} : vector<8x8x16x128xf32> to vector<8x1x16x128xf32>
      %319 = vector.shape_cast %318 : vector<8x1x16x128xf32> to vector<8x16x128xf32>
      %320 = vector.extract_strided_slice %287 {offsets = [0, 5, 0, 0], sizes = [8, 1, 16, 128], strides = [1, 1, 1, 1]} : vector<8x8x16x128xf32> to vector<8x1x16x128xf32>
      %321 = vector.shape_cast %320 : vector<8x1x16x128xf32> to vector<8x16x128xf32>
      %322 = arith.mulf %308, %319 : vector<8x16x128xf32>
      %323 = arith.mulf %319, %310 : vector<8x16x128xf32>
      %324 = arith.addf %323, %321 : vector<8x16x128xf32>
      %325 = vector.extract_strided_slice %286 {offsets = [0, 3, 0, 0], sizes = [8, 1, 16, 128], strides = [1, 1, 1, 1]} : vector<8x8x16x128xf32> to vector<8x1x16x128xf32>
      %326 = vector.shape_cast %325 : vector<8x1x16x128xf32> to vector<8x16x128xf32>
      %327 = vector.extract_strided_slice %287 {offsets = [0, 3, 0, 0], sizes = [8, 1, 16, 128], strides = [1, 1, 1, 1]} : vector<8x8x16x128xf32> to vector<8x1x16x128xf32>
      %328 = vector.shape_cast %327 : vector<8x1x16x128xf32> to vector<8x16x128xf32>
      %329 = arith.mulf %315, %326 : vector<8x16x128xf32>
      %330 = arith.mulf %326, %317 : vector<8x16x128xf32>
      %331 = arith.addf %330, %328 : vector<8x16x128xf32>
      %332 = vector.extract_strided_slice %286 {offsets = [0, 4, 0, 0], sizes = [8, 1, 16, 128], strides = [1, 1, 1, 1]} : vector<8x8x16x128xf32> to vector<8x1x16x128xf32>
      %333 = vector.shape_cast %332 : vector<8x1x16x128xf32> to vector<8x16x128xf32>
      %334 = vector.extract_strided_slice %287 {offsets = [0, 4, 0, 0], sizes = [8, 1, 16, 128], strides = [1, 1, 1, 1]} : vector<8x8x16x128xf32> to vector<8x1x16x128xf32>
      %335 = vector.shape_cast %334 : vector<8x1x16x128xf32> to vector<8x16x128xf32>
      %336 = arith.mulf %322, %333 : vector<8x16x128xf32>
      %337 = arith.mulf %333, %324 : vector<8x16x128xf32>
      %338 = arith.addf %337, %335 : vector<8x16x128xf32>
      %339 = vector.extract_strided_slice %286 {offsets = [0, 4, 0, 0], sizes = [8, 1, 16, 128], strides = [1, 1, 1, 1]} : vector<8x8x16x128xf32> to vector<8x1x16x128xf32>
      %340 = vector.shape_cast %339 : vector<8x1x16x128xf32> to vector<8x16x128xf32>
      %341 = vector.extract_strided_slice %287 {offsets = [0, 4, 0, 0], sizes = [8, 1, 16, 128], strides = [1, 1, 1, 1]} : vector<8x8x16x128xf32> to vector<8x1x16x128xf32>
      %342 = vector.shape_cast %341 : vector<8x1x16x128xf32> to vector<8x16x128xf32>
      %343 = arith.mulf %329, %340 : vector<8x16x128xf32>
      %344 = arith.mulf %340, %331 : vector<8x16x128xf32>
      %345 = arith.addf %344, %342 : vector<8x16x128xf32>
      %346 = vector.extract_strided_slice %286 {offsets = [0, 3, 0, 0], sizes = [8, 1, 16, 128], strides = [1, 1, 1, 1]} : vector<8x8x16x128xf32> to vector<8x1x16x128xf32>
      %347 = vector.shape_cast %346 : vector<8x1x16x128xf32> to vector<8x16x128xf32>
      %348 = vector.extract_strided_slice %287 {offsets = [0, 3, 0, 0], sizes = [8, 1, 16, 128], strides = [1, 1, 1, 1]} : vector<8x8x16x128xf32> to vector<8x1x16x128xf32>
      %349 = vector.shape_cast %348 : vector<8x1x16x128xf32> to vector<8x16x128xf32>
      %350 = arith.mulf %336, %347 : vector<8x16x128xf32>
      %351 = arith.mulf %347, %338 : vector<8x16x128xf32>
      %352 = arith.addf %351, %349 : vector<8x16x128xf32>
      %353 = vector.extract_strided_slice %286 {offsets = [0, 5, 0, 0], sizes = [8, 1, 16, 128], strides = [1, 1, 1, 1]} : vector<8x8x16x128xf32> to vector<8x1x16x128xf32>
      %354 = vector.shape_cast %353 : vector<8x1x16x128xf32> to vector<8x16x128xf32>
      %355 = vector.extract_strided_slice %287 {offsets = [0, 5, 0, 0], sizes = [8, 1, 16, 128], strides = [1, 1, 1, 1]} : vector<8x8x16x128xf32> to vector<8x1x16x128xf32>
      %356 = vector.shape_cast %355 : vector<8x1x16x128xf32> to vector<8x16x128xf32>
      %357 = arith.mulf %343, %354 : vector<8x16x128xf32>
      %358 = arith.mulf %354, %345 : vector<8x16x128xf32>
      %359 = arith.addf %358, %356 : vector<8x16x128xf32>
      %360 = vector.extract_strided_slice %286 {offsets = [0, 2, 0, 0], sizes = [8, 1, 16, 128], strides = [1, 1, 1, 1]} : vector<8x8x16x128xf32> to vector<8x1x16x128xf32>
      %361 = vector.shape_cast %360 : vector<8x1x16x128xf32> to vector<8x16x128xf32>
      %362 = vector.extract_strided_slice %287 {offsets = [0, 2, 0, 0], sizes = [8, 1, 16, 128], strides = [1, 1, 1, 1]} : vector<8x8x16x128xf32> to vector<8x1x16x128xf32>
      %363 = vector.shape_cast %362 : vector<8x1x16x128xf32> to vector<8x16x128xf32>
      %364 = arith.mulf %350, %361 : vector<8x16x128xf32>
      %365 = arith.mulf %361, %352 : vector<8x16x128xf32>
      %366 = arith.addf %365, %363 : vector<8x16x128xf32>
      %367 = vector.extract_strided_slice %286 {offsets = [0, 6, 0, 0], sizes = [8, 1, 16, 128], strides = [1, 1, 1, 1]} : vector<8x8x16x128xf32> to vector<8x1x16x128xf32>
      %368 = vector.shape_cast %367 : vector<8x1x16x128xf32> to vector<8x16x128xf32>
      %369 = vector.extract_strided_slice %287 {offsets = [0, 6, 0, 0], sizes = [8, 1, 16, 128], strides = [1, 1, 1, 1]} : vector<8x8x16x128xf32> to vector<8x1x16x128xf32>
      %370 = vector.shape_cast %369 : vector<8x1x16x128xf32> to vector<8x16x128xf32>
      %371 = arith.mulf %357, %368 : vector<8x16x128xf32>
      %372 = arith.mulf %368, %359 : vector<8x16x128xf32>
      %373 = arith.addf %372, %370 : vector<8x16x128xf32>
      %374 = vector.extract_strided_slice %286 {offsets = [0, 1, 0, 0], sizes = [8, 1, 16, 128], strides = [1, 1, 1, 1]} : vector<8x8x16x128xf32> to vector<8x1x16x128xf32>
      %375 = vector.shape_cast %374 : vector<8x1x16x128xf32> to vector<8x16x128xf32>
      %376 = vector.extract_strided_slice %287 {offsets = [0, 1, 0, 0], sizes = [8, 1, 16, 128], strides = [1, 1, 1, 1]} : vector<8x8x16x128xf32> to vector<8x1x16x128xf32>
      %377 = vector.shape_cast %376 : vector<8x1x16x128xf32> to vector<8x16x128xf32>
      %378 = arith.mulf %364, %375 : vector<8x16x128xf32>
      %379 = arith.mulf %375, %366 : vector<8x16x128xf32>
      %380 = arith.addf %379, %377 : vector<8x16x128xf32>
      %381 = vector.extract_strided_slice %286 {offsets = [0, 7, 0, 0], sizes = [8, 1, 16, 128], strides = [1, 1, 1, 1]} : vector<8x8x16x128xf32> to vector<8x1x16x128xf32>
      %382 = vector.shape_cast %381 : vector<8x1x16x128xf32> to vector<8x16x128xf32>
      %383 = vector.extract_strided_slice %287 {offsets = [0, 7, 0, 0], sizes = [8, 1, 16, 128], strides = [1, 1, 1, 1]} : vector<8x8x16x128xf32> to vector<8x1x16x128xf32>
      %384 = vector.shape_cast %383 : vector<8x1x16x128xf32> to vector<8x16x128xf32>
      %385 = arith.mulf %371, %382 : vector<8x16x128xf32>
      %386 = arith.mulf %382, %373 : vector<8x16x128xf32>
      %387 = arith.addf %386, %384 : vector<8x16x128xf32>
      %388 = vector.extract_strided_slice %286 {offsets = [0, 0, 0, 0], sizes = [8, 1, 16, 128], strides = [1, 1, 1, 1]} : vector<8x8x16x128xf32> to vector<8x1x16x128xf32>
      %389 = vector.shape_cast %388 : vector<8x1x16x128xf32> to vector<8x16x128xf32>
      %390 = vector.extract_strided_slice %287 {offsets = [0, 0, 0, 0], sizes = [8, 1, 16, 128], strides = [1, 1, 1, 1]} : vector<8x8x16x128xf32> to vector<8x1x16x128xf32>
      %391 = vector.shape_cast %390 : vector<8x1x16x128xf32> to vector<8x16x128xf32>
      %392 = arith.mulf %378, %389 : vector<8x16x128xf32>
      %393 = arith.mulf %389, %380 : vector<8x16x128xf32>
      %394 = arith.addf %393, %391 : vector<8x16x128xf32>
      %cst_114 = arith.constant 0.000000e+00 : f32
      %395 = vector.broadcast %cst_114 : f32 to vector<16x128xf32>
      %396 = vector.extract_strided_slice %385 {offsets = [0, 0, 0], sizes = [1, 16, 128], strides = [1, 1, 1]} : vector<8x16x128xf32> to vector<1x16x128xf32>
      %397 = vector.shape_cast %396 : vector<1x16x128xf32> to vector<16x128xf32>
      %398 = arith.mulf %397, %395 : vector<16x128xf32>
      %399 = vector.extract_strided_slice %387 {offsets = [0, 0, 0], sizes = [1, 16, 128], strides = [1, 1, 1]} : vector<8x16x128xf32> to vector<1x16x128xf32>
      %400 = vector.shape_cast %399 : vector<1x16x128xf32> to vector<16x128xf32>
      %401 = arith.addf %398, %400 : vector<16x128xf32>
      %402 = vector.extract_strided_slice %385 {offsets = [1, 0, 0], sizes = [1, 16, 128], strides = [1, 1, 1]} : vector<8x16x128xf32> to vector<1x16x128xf32>
      %403 = vector.shape_cast %402 : vector<1x16x128xf32> to vector<16x128xf32>
      %404 = arith.mulf %403, %401 : vector<16x128xf32>
      %405 = vector.extract_strided_slice %387 {offsets = [1, 0, 0], sizes = [1, 16, 128], strides = [1, 1, 1]} : vector<8x16x128xf32> to vector<1x16x128xf32>
      %406 = vector.shape_cast %405 : vector<1x16x128xf32> to vector<16x128xf32>
      %407 = arith.addf %404, %406 : vector<16x128xf32>
      %408 = vector.extract_strided_slice %385 {offsets = [2, 0, 0], sizes = [1, 16, 128], strides = [1, 1, 1]} : vector<8x16x128xf32> to vector<1x16x128xf32>
      %409 = vector.shape_cast %408 : vector<1x16x128xf32> to vector<16x128xf32>
      %410 = arith.mulf %409, %407 : vector<16x128xf32>
      %411 = vector.extract_strided_slice %387 {offsets = [2, 0, 0], sizes = [1, 16, 128], strides = [1, 1, 1]} : vector<8x16x128xf32> to vector<1x16x128xf32>
      %412 = vector.shape_cast %411 : vector<1x16x128xf32> to vector<16x128xf32>
      %413 = arith.addf %410, %412 : vector<16x128xf32>
      %414 = vector.extract_strided_slice %385 {offsets = [3, 0, 0], sizes = [1, 16, 128], strides = [1, 1, 1]} : vector<8x16x128xf32> to vector<1x16x128xf32>
      %415 = vector.shape_cast %414 : vector<1x16x128xf32> to vector<16x128xf32>
      %416 = arith.mulf %415, %413 : vector<16x128xf32>
      %417 = vector.extract_strided_slice %387 {offsets = [3, 0, 0], sizes = [1, 16, 128], strides = [1, 1, 1]} : vector<8x16x128xf32> to vector<1x16x128xf32>
      %418 = vector.shape_cast %417 : vector<1x16x128xf32> to vector<16x128xf32>
      %419 = arith.addf %416, %418 : vector<16x128xf32>
      %420 = vector.extract_strided_slice %385 {offsets = [4, 0, 0], sizes = [1, 16, 128], strides = [1, 1, 1]} : vector<8x16x128xf32> to vector<1x16x128xf32>
      %421 = vector.shape_cast %420 : vector<1x16x128xf32> to vector<16x128xf32>
      %422 = arith.mulf %421, %419 : vector<16x128xf32>
      %423 = vector.extract_strided_slice %387 {offsets = [4, 0, 0], sizes = [1, 16, 128], strides = [1, 1, 1]} : vector<8x16x128xf32> to vector<1x16x128xf32>
      %424 = vector.shape_cast %423 : vector<1x16x128xf32> to vector<16x128xf32>
      %425 = arith.addf %422, %424 : vector<16x128xf32>
      %426 = vector.extract_strided_slice %385 {offsets = [5, 0, 0], sizes = [1, 16, 128], strides = [1, 1, 1]} : vector<8x16x128xf32> to vector<1x16x128xf32>
      %427 = vector.shape_cast %426 : vector<1x16x128xf32> to vector<16x128xf32>
      %428 = arith.mulf %427, %425 : vector<16x128xf32>
      %429 = vector.extract_strided_slice %387 {offsets = [5, 0, 0], sizes = [1, 16, 128], strides = [1, 1, 1]} : vector<8x16x128xf32> to vector<1x16x128xf32>
      %430 = vector.shape_cast %429 : vector<1x16x128xf32> to vector<16x128xf32>
      %431 = arith.addf %428, %430 : vector<16x128xf32>
      %432 = vector.extract_strided_slice %385 {offsets = [6, 0, 0], sizes = [1, 16, 128], strides = [1, 1, 1]} : vector<8x16x128xf32> to vector<1x16x128xf32>
      %433 = vector.shape_cast %432 : vector<1x16x128xf32> to vector<16x128xf32>
      %434 = arith.mulf %433, %431 : vector<16x128xf32>
      %435 = vector.extract_strided_slice %387 {offsets = [6, 0, 0], sizes = [1, 16, 128], strides = [1, 1, 1]} : vector<8x16x128xf32> to vector<1x16x128xf32>
      %436 = vector.shape_cast %435 : vector<1x16x128xf32> to vector<16x128xf32>
      %437 = arith.addf %434, %436 : vector<16x128xf32>
      %438 = vector.extract_strided_slice %392 {offsets = [7, 0, 0], sizes = [1, 16, 128], strides = [1, 1, 1]} : vector<8x16x128xf32> to vector<1x16x128xf32>
      %439 = vector.shape_cast %438 : vector<1x16x128xf32> to vector<16x128xf32>
      %440 = arith.mulf %439, %395 : vector<16x128xf32>
      %441 = vector.extract_strided_slice %394 {offsets = [7, 0, 0], sizes = [1, 16, 128], strides = [1, 1, 1]} : vector<8x16x128xf32> to vector<1x16x128xf32>
      %442 = vector.shape_cast %441 : vector<1x16x128xf32> to vector<16x128xf32>
      %443 = arith.addf %440, %442 : vector<16x128xf32>
      %444 = vector.extract_strided_slice %392 {offsets = [6, 0, 0], sizes = [1, 16, 128], strides = [1, 1, 1]} : vector<8x16x128xf32> to vector<1x16x128xf32>
      %445 = vector.shape_cast %444 : vector<1x16x128xf32> to vector<16x128xf32>
      %446 = arith.mulf %445, %443 : vector<16x128xf32>
      %447 = vector.extract_strided_slice %394 {offsets = [6, 0, 0], sizes = [1, 16, 128], strides = [1, 1, 1]} : vector<8x16x128xf32> to vector<1x16x128xf32>
      %448 = vector.shape_cast %447 : vector<1x16x128xf32> to vector<16x128xf32>
      %449 = arith.addf %446, %448 : vector<16x128xf32>
      %450 = vector.extract_strided_slice %392 {offsets = [5, 0, 0], sizes = [1, 16, 128], strides = [1, 1, 1]} : vector<8x16x128xf32> to vector<1x16x128xf32>
      %451 = vector.shape_cast %450 : vector<1x16x128xf32> to vector<16x128xf32>
      %452 = arith.mulf %451, %449 : vector<16x128xf32>
      %453 = vector.extract_strided_slice %394 {offsets = [5, 0, 0], sizes = [1, 16, 128], strides = [1, 1, 1]} : vector<8x16x128xf32> to vector<1x16x128xf32>
      %454 = vector.shape_cast %453 : vector<1x16x128xf32> to vector<16x128xf32>
      %455 = arith.addf %452, %454 : vector<16x128xf32>
      %456 = vector.extract_strided_slice %392 {offsets = [4, 0, 0], sizes = [1, 16, 128], strides = [1, 1, 1]} : vector<8x16x128xf32> to vector<1x16x128xf32>
      %457 = vector.shape_cast %456 : vector<1x16x128xf32> to vector<16x128xf32>
      %458 = arith.mulf %457, %455 : vector<16x128xf32>
      %459 = vector.extract_strided_slice %394 {offsets = [4, 0, 0], sizes = [1, 16, 128], strides = [1, 1, 1]} : vector<8x16x128xf32> to vector<1x16x128xf32>
      %460 = vector.shape_cast %459 : vector<1x16x128xf32> to vector<16x128xf32>
      %461 = arith.addf %458, %460 : vector<16x128xf32>
      %462 = vector.extract_strided_slice %392 {offsets = [3, 0, 0], sizes = [1, 16, 128], strides = [1, 1, 1]} : vector<8x16x128xf32> to vector<1x16x128xf32>
      %463 = vector.shape_cast %462 : vector<1x16x128xf32> to vector<16x128xf32>
      %464 = arith.mulf %463, %461 : vector<16x128xf32>
      %465 = vector.extract_strided_slice %394 {offsets = [3, 0, 0], sizes = [1, 16, 128], strides = [1, 1, 1]} : vector<8x16x128xf32> to vector<1x16x128xf32>
      %466 = vector.shape_cast %465 : vector<1x16x128xf32> to vector<16x128xf32>
      %467 = arith.addf %464, %466 : vector<16x128xf32>
      %468 = vector.extract_strided_slice %392 {offsets = [2, 0, 0], sizes = [1, 16, 128], strides = [1, 1, 1]} : vector<8x16x128xf32> to vector<1x16x128xf32>
      %469 = vector.shape_cast %468 : vector<1x16x128xf32> to vector<16x128xf32>
      %470 = arith.mulf %469, %467 : vector<16x128xf32>
      %471 = vector.extract_strided_slice %394 {offsets = [2, 0, 0], sizes = [1, 16, 128], strides = [1, 1, 1]} : vector<8x16x128xf32> to vector<1x16x128xf32>
      %472 = vector.shape_cast %471 : vector<1x16x128xf32> to vector<16x128xf32>
      %473 = arith.addf %470, %472 : vector<16x128xf32>
      %474 = vector.extract_strided_slice %392 {offsets = [1, 0, 0], sizes = [1, 16, 128], strides = [1, 1, 1]} : vector<8x16x128xf32> to vector<1x16x128xf32>
      %475 = vector.shape_cast %474 : vector<1x16x128xf32> to vector<16x128xf32>
      %476 = arith.mulf %475, %473 : vector<16x128xf32>
      %477 = vector.extract_strided_slice %394 {offsets = [1, 0, 0], sizes = [1, 16, 128], strides = [1, 1, 1]} : vector<8x16x128xf32> to vector<1x16x128xf32>
      %478 = vector.shape_cast %477 : vector<1x16x128xf32> to vector<16x128xf32>
      %479 = arith.addf %476, %478 : vector<16x128xf32>
      %480 = vector.shape_cast %395 : vector<16x128xf32> to vector<1x16x128xf32>
      %481 = vector.shape_cast %401 : vector<16x128xf32> to vector<1x16x128xf32>
      %482 = vector.shape_cast %407 : vector<16x128xf32> to vector<1x16x128xf32>
      %483 = vector.shape_cast %413 : vector<16x128xf32> to vector<1x16x128xf32>
      %484 = vector.shape_cast %419 : vector<16x128xf32> to vector<1x16x128xf32>
      %485 = vector.shape_cast %425 : vector<16x128xf32> to vector<1x16x128xf32>
      %486 = vector.shape_cast %431 : vector<16x128xf32> to vector<1x16x128xf32>
      %487 = vector.shape_cast %437 : vector<16x128xf32> to vector<1x16x128xf32>
      %488 = tpu.concatenate %480, %481, %482, %483, %484, %485, %486, %487 in 0 : vector<1x16x128xf32>, vector<1x16x128xf32>, vector<1x16x128xf32>, vector<1x16x128xf32>, vector<1x16x128xf32>, vector<1x16x128xf32>, vector<1x16x128xf32>, vector<1x16x128xf32> -> vector<8x16x128xf32>
      %489 = vector.shape_cast %479 : vector<16x128xf32> to vector<1x16x128xf32>
      %490 = vector.shape_cast %473 : vector<16x128xf32> to vector<1x16x128xf32>
      %491 = vector.shape_cast %467 : vector<16x128xf32> to vector<1x16x128xf32>
      %492 = vector.shape_cast %461 : vector<16x128xf32> to vector<1x16x128xf32>
      %493 = vector.shape_cast %455 : vector<16x128xf32> to vector<1x16x128xf32>
      %494 = vector.shape_cast %449 : vector<16x128xf32> to vector<1x16x128xf32>
      %495 = vector.shape_cast %443 : vector<16x128xf32> to vector<1x16x128xf32>
      %496 = vector.shape_cast %395 : vector<16x128xf32> to vector<1x16x128xf32>
      %497 = tpu.concatenate %489, %490, %491, %492, %493, %494, %495, %496 in 0 : vector<1x16x128xf32>, vector<1x16x128xf32>, vector<1x16x128xf32>, vector<1x16x128xf32>, vector<1x16x128xf32>, vector<1x16x128xf32>, vector<1x16x128xf32>, vector<1x16x128xf32> -> vector<8x16x128xf32>
      %498 = vector.extract_strided_slice %288 {offsets = [0, 0, 0, 0], sizes = [8, 1, 16, 128], strides = [1, 1, 1, 1]} : vector<8x8x16x128xf32> to vector<8x1x16x128xf32>
      %499 = vector.shape_cast %498 : vector<8x1x16x128xf32> to vector<8x16x128xf32>
      %500 = arith.mulf %290, %488 : vector<8x16x128xf32>
      %501 = arith.addf %500, %292 : vector<8x16x128xf32>
      %502 = arith.mulf %499, %501 : vector<8x16x128xf32>
      %cst_115 = arith.constant dense<0.000000e+00> : vector<8x128xf32>
      %503 = vector.multi_reduction <add>, %502, %cst_115 [1] : vector<8x16x128xf32> to vector<8x128xf32>
      %504 = arith.mulf %392, %497 : vector<8x16x128xf32>
      %505 = arith.addf %504, %394 : vector<8x16x128xf32>
      %506 = arith.mulf %499, %505 : vector<8x16x128xf32>
      %cst_116 = arith.constant dense<0.000000e+00> : vector<8x128xf32>
      %507 = vector.multi_reduction <add>, %506, %cst_116 [1] : vector<8x16x128xf32> to vector<8x128xf32>
      %508 = vector.extract_strided_slice %288 {offsets = [0, 1, 0, 0], sizes = [8, 1, 16, 128], strides = [1, 1, 1, 1]} : vector<8x8x16x128xf32> to vector<8x1x16x128xf32>
      %509 = vector.shape_cast %508 : vector<8x1x16x128xf32> to vector<8x16x128xf32>
      %510 = arith.mulf %301, %488 : vector<8x16x128xf32>
      %511 = arith.addf %510, %303 : vector<8x16x128xf32>
      %512 = arith.mulf %509, %511 : vector<8x16x128xf32>
      %cst_117 = arith.constant dense<0.000000e+00> : vector<8x128xf32>
      %513 = vector.multi_reduction <add>, %512, %cst_117 [1] : vector<8x16x128xf32> to vector<8x128xf32>
      %514 = arith.mulf %378, %497 : vector<8x16x128xf32>
      %515 = arith.addf %514, %380 : vector<8x16x128xf32>
      %516 = arith.mulf %509, %515 : vector<8x16x128xf32>
      %cst_118 = arith.constant dense<0.000000e+00> : vector<8x128xf32>
      %517 = vector.multi_reduction <add>, %516, %cst_118 [1] : vector<8x16x128xf32> to vector<8x128xf32>
      %518 = vector.extract_strided_slice %288 {offsets = [0, 2, 0, 0], sizes = [8, 1, 16, 128], strides = [1, 1, 1, 1]} : vector<8x8x16x128xf32> to vector<8x1x16x128xf32>
      %519 = vector.shape_cast %518 : vector<8x1x16x128xf32> to vector<8x16x128xf32>
      %520 = arith.mulf %315, %488 : vector<8x16x128xf32>
      %521 = arith.addf %520, %317 : vector<8x16x128xf32>
      %522 = arith.mulf %519, %521 : vector<8x16x128xf32>
      %cst_119 = arith.constant dense<0.000000e+00> : vector<8x128xf32>
      %523 = vector.multi_reduction <add>, %522, %cst_119 [1] : vector<8x16x128xf32> to vector<8x128xf32>
      %524 = arith.mulf %364, %497 : vector<8x16x128xf32>
      %525 = arith.addf %524, %366 : vector<8x16x128xf32>
      %526 = arith.mulf %519, %525 : vector<8x16x128xf32>
      %cst_120 = arith.constant dense<0.000000e+00> : vector<8x128xf32>
      %527 = vector.multi_reduction <add>, %526, %cst_120 [1] : vector<8x16x128xf32> to vector<8x128xf32>
      %528 = vector.extract_strided_slice %288 {offsets = [0, 3, 0, 0], sizes = [8, 1, 16, 128], strides = [1, 1, 1, 1]} : vector<8x8x16x128xf32> to vector<8x1x16x128xf32>
      %529 = vector.shape_cast %528 : vector<8x1x16x128xf32> to vector<8x16x128xf32>
      %530 = arith.mulf %329, %488 : vector<8x16x128xf32>
      %531 = arith.addf %530, %331 : vector<8x16x128xf32>
      %532 = arith.mulf %529, %531 : vector<8x16x128xf32>
      %cst_121 = arith.constant dense<0.000000e+00> : vector<8x128xf32>
      %533 = vector.multi_reduction <add>, %532, %cst_121 [1] : vector<8x16x128xf32> to vector<8x128xf32>
      %534 = arith.mulf %350, %497 : vector<8x16x128xf32>
      %535 = arith.addf %534, %352 : vector<8x16x128xf32>
      %536 = arith.mulf %529, %535 : vector<8x16x128xf32>
      %cst_122 = arith.constant dense<0.000000e+00> : vector<8x128xf32>
      %537 = vector.multi_reduction <add>, %536, %cst_122 [1] : vector<8x16x128xf32> to vector<8x128xf32>
      %538 = vector.extract_strided_slice %288 {offsets = [0, 4, 0, 0], sizes = [8, 1, 16, 128], strides = [1, 1, 1, 1]} : vector<8x8x16x128xf32> to vector<8x1x16x128xf32>
      %539 = vector.shape_cast %538 : vector<8x1x16x128xf32> to vector<8x16x128xf32>
      %540 = arith.mulf %343, %488 : vector<8x16x128xf32>
      %541 = arith.addf %540, %345 : vector<8x16x128xf32>
      %542 = arith.mulf %539, %541 : vector<8x16x128xf32>
      %cst_123 = arith.constant dense<0.000000e+00> : vector<8x128xf32>
      %543 = vector.multi_reduction <add>, %542, %cst_123 [1] : vector<8x16x128xf32> to vector<8x128xf32>
      %544 = arith.mulf %336, %497 : vector<8x16x128xf32>
      %545 = arith.addf %544, %338 : vector<8x16x128xf32>
      %546 = arith.mulf %539, %545 : vector<8x16x128xf32>
      %cst_124 = arith.constant dense<0.000000e+00> : vector<8x128xf32>
      %547 = vector.multi_reduction <add>, %546, %cst_124 [1] : vector<8x16x128xf32> to vector<8x128xf32>
      %548 = vector.extract_strided_slice %288 {offsets = [0, 5, 0, 0], sizes = [8, 1, 16, 128], strides = [1, 1, 1, 1]} : vector<8x8x16x128xf32> to vector<8x1x16x128xf32>
      %549 = vector.shape_cast %548 : vector<8x1x16x128xf32> to vector<8x16x128xf32>
      %550 = arith.mulf %357, %488 : vector<8x16x128xf32>
      %551 = arith.addf %550, %359 : vector<8x16x128xf32>
      %552 = arith.mulf %549, %551 : vector<8x16x128xf32>
      %cst_125 = arith.constant dense<0.000000e+00> : vector<8x128xf32>
      %553 = vector.multi_reduction <add>, %552, %cst_125 [1] : vector<8x16x128xf32> to vector<8x128xf32>
      %554 = arith.mulf %322, %497 : vector<8x16x128xf32>
      %555 = arith.addf %554, %324 : vector<8x16x128xf32>
      %556 = arith.mulf %549, %555 : vector<8x16x128xf32>
      %cst_126 = arith.constant dense<0.000000e+00> : vector<8x128xf32>
      %557 = vector.multi_reduction <add>, %556, %cst_126 [1] : vector<8x16x128xf32> to vector<8x128xf32>
      %558 = vector.extract_strided_slice %288 {offsets = [0, 6, 0, 0], sizes = [8, 1, 16, 128], strides = [1, 1, 1, 1]} : vector<8x8x16x128xf32> to vector<8x1x16x128xf32>
      %559 = vector.shape_cast %558 : vector<8x1x16x128xf32> to vector<8x16x128xf32>
      %560 = arith.mulf %371, %488 : vector<8x16x128xf32>
      %561 = arith.addf %560, %373 : vector<8x16x128xf32>
      %562 = arith.mulf %559, %561 : vector<8x16x128xf32>
      %cst_127 = arith.constant dense<0.000000e+00> : vector<8x128xf32>
      %563 = vector.multi_reduction <add>, %562, %cst_127 [1] : vector<8x16x128xf32> to vector<8x128xf32>
      %564 = arith.mulf %308, %497 : vector<8x16x128xf32>
      %565 = arith.addf %564, %310 : vector<8x16x128xf32>
      %566 = arith.mulf %559, %565 : vector<8x16x128xf32>
      %cst_128 = arith.constant dense<0.000000e+00> : vector<8x128xf32>
      %567 = vector.multi_reduction <add>, %566, %cst_128 [1] : vector<8x16x128xf32> to vector<8x128xf32>
      %568 = vector.extract_strided_slice %288 {offsets = [0, 7, 0, 0], sizes = [8, 1, 16, 128], strides = [1, 1, 1, 1]} : vector<8x8x16x128xf32> to vector<8x1x16x128xf32>
      %569 = vector.shape_cast %568 : vector<8x1x16x128xf32> to vector<8x16x128xf32>
      %570 = arith.mulf %385, %488 : vector<8x16x128xf32>
      %571 = arith.addf %570, %387 : vector<8x16x128xf32>
      %572 = arith.mulf %569, %571 : vector<8x16x128xf32>
      %cst_129 = arith.constant dense<0.000000e+00> : vector<8x128xf32>
      %573 = vector.multi_reduction <add>, %572, %cst_129 [1] : vector<8x16x128xf32> to vector<8x128xf32>
      %574 = arith.mulf %294, %497 : vector<8x16x128xf32>
      %575 = arith.addf %574, %296 : vector<8x16x128xf32>
      %576 = arith.mulf %569, %575 : vector<8x16x128xf32>
      %cst_130 = arith.constant dense<0.000000e+00> : vector<8x128xf32>
      %577 = vector.multi_reduction <add>, %576, %cst_130 [1] : vector<8x16x128xf32> to vector<8x128xf32>
      %578 = vector.shape_cast %503 : vector<8x128xf32> to vector<8x1x128xf32>
      %579 = vector.shape_cast %513 : vector<8x128xf32> to vector<8x1x128xf32>
      %580 = vector.shape_cast %523 : vector<8x128xf32> to vector<8x1x128xf32>
      %581 = vector.shape_cast %533 : vector<8x128xf32> to vector<8x1x128xf32>
      %582 = vector.shape_cast %543 : vector<8x128xf32> to vector<8x1x128xf32>
      %583 = vector.shape_cast %553 : vector<8x128xf32> to vector<8x1x128xf32>
      %584 = vector.shape_cast %563 : vector<8x128xf32> to vector<8x1x128xf32>
      %585 = vector.shape_cast %573 : vector<8x128xf32> to vector<8x1x128xf32>
      %586 = tpu.concatenate %578, %579, %580, %581, %582, %583, %584, %585 in 1 : vector<8x1x128xf32>, vector<8x1x128xf32>, vector<8x1x128xf32>, vector<8x1x128xf32>, vector<8x1x128xf32>, vector<8x1x128xf32>, vector<8x1x128xf32>, vector<8x1x128xf32> -> vector<8x8x128xf32>
      %587 = vector.shape_cast %586 : vector<8x8x128xf32> to vector<64x128xf32>
      %588 = vector.shape_cast %507 : vector<8x128xf32> to vector<8x1x128xf32>
      %589 = vector.shape_cast %517 : vector<8x128xf32> to vector<8x1x128xf32>
      %590 = vector.shape_cast %527 : vector<8x128xf32> to vector<8x1x128xf32>
      %591 = vector.shape_cast %537 : vector<8x128xf32> to vector<8x1x128xf32>
      %592 = vector.shape_cast %547 : vector<8x128xf32> to vector<8x1x128xf32>
      %593 = vector.shape_cast %557 : vector<8x128xf32> to vector<8x1x128xf32>
      %594 = vector.shape_cast %567 : vector<8x128xf32> to vector<8x1x128xf32>
      %595 = vector.shape_cast %577 : vector<8x128xf32> to vector<8x1x128xf32>
      %596 = tpu.concatenate %588, %589, %590, %591, %592, %593, %594, %595 in 1 : vector<8x1x128xf32>, vector<8x1x128xf32>, vector<8x1x128xf32>, vector<8x1x128xf32>, vector<8x1x128xf32>, vector<8x1x128xf32>, vector<8x1x128xf32>, vector<8x1x128xf32> -> vector<8x8x128xf32>
      %597 = vector.shape_cast %596 : vector<8x8x128xf32> to vector<64x128xf32>
      %598 = arith.index_cast %arg34 : i32 to index
      %c0_131 = arith.constant 0 : index
      %c0_132 = arith.constant 0 : index
      %599 = vector.load %arg18[%598, %c0_131, %c0_132] : memref<8x1x128xf32, #tpu.memory_space<vmem>>, vector<1x1x128xf32>
      %600 = vector.shape_cast %599 : vector<1x1x128xf32> to vector<1x128xf32>
      %601 = vector.broadcast %600 : vector<1x128xf32> to vector<64x128xf32>
      %602 = arith.mulf %601, %220 : vector<64x128xf32>
      %603 = arith.addf %587, %602 : vector<64x128xf32>
      %604 = vector.broadcast %600 : vector<1x128xf32> to vector<64x128xf32>
      %605 = arith.mulf %604, %220 : vector<64x128xf32>
      %606 = arith.addf %597, %605 : vector<64x128xf32>
      %607 = arith.index_cast %arg34 : i32 to index
      %c0_133 = arith.constant 0 : index
      %c0_134 = arith.constant 0 : index
      %608 = vector.load %arg20[%607, %c0_133, %c0_134] : memref<8x1x2xf32, #tpu.memory_space<vmem>>, vector<1x1x2xf32>
      %609 = vector.shape_cast %608 : vector<1x1x2xf32> to vector<1x2xf32>
      %610 = vector.extract_strided_slice %609 {offsets = [0, 0], sizes = [1, 1], strides = [1, 1]} : vector<1x2xf32> to vector<1x1xf32>
      %611 = vector.broadcast %610 : vector<1x1xf32> to vector<64x128xf32>
      %612 = arith.mulf %611, %603 : vector<64x128xf32>
      %613 = vector.extract_strided_slice %609 {offsets = [0, 1], sizes = [1, 1], strides = [1, 1]} : vector<1x2xf32> to vector<1x1xf32>
      %614 = vector.broadcast %613 : vector<1x1xf32> to vector<64x128xf32>
      %615 = arith.mulf %614, %606 : vector<64x128xf32>
      %616 = arith.addf %612, %615 : vector<64x128xf32>
      %617 = arith.negf %191 : vector<64x128xf32>
      %618 = math.exp %617 : vector<64x128xf32>
      %cst_135 = arith.constant 1.000000e+00 : f32
      %619 = vector.broadcast %cst_135 : f32 to vector<64x128xf32>
      %620 = arith.addf %619, %618 : vector<64x128xf32>
      %621 = arith.divf %619, %620 : vector<64x128xf32>
      %622 = arith.mulf %191, %621 : vector<64x128xf32>
      %623 = arith.mulf %616, %622 : vector<64x128xf32>
      %624 = arith.index_cast %arg34 : i32 to index
      %c0_136 = arith.constant 0 : index
      %c0_137 = arith.constant 0 : index
      %625 = vector.load %arg19[%624, %c0_136, %c0_137] : memref<8x128x64xf32, #tpu.memory_space<vmem>>, vector<1x128x64xf32>
      %626 = vector.shape_cast %625 : vector<1x128x64xf32> to vector<128x64xf32>
      %cst_138 = arith.constant dense<0.000000e+00> : vector<64x64xf32>
      %627 = tpu.matmul %623, %626, %cst_138 {dimension_numbers = #tpu.dot_dimension_numbers<[1], [0], [0], [1], [0, 0, 1, 1], [], []>} : vector<64x128xf32>, vector<128x64xf32>, vector<64x64xf32> -> vector<64x64xf32>
      %628 = arith.addf %arg35, %627 : vector<64x64xf32>
      scf.yield %628 : vector<64x64xf32>
    }
    %c8_i32_26 = arith.constant 8 : i32
    %c0_27 = arith.constant 0 : index
    %c0_28 = arith.constant 0 : index
    %65 = vector.load %arg21[%c0_27, %c0_28] : memref<64x8xf32, #tpu.memory_space<vmem>>, vector<64x8xf32>
    %cst_29 = arith.constant dense<0.000000e+00> : vector<64x8xf32>
    %66 = tpu.matmul %64, %65, %cst_29 {dimension_numbers = #tpu.dot_dimension_numbers<[1], [0], [0], [1], [0, 0, 1, 1], [], []>} : vector<64x64xf32>, vector<64x8xf32>, vector<64x8xf32> -> vector<64x8xf32>
    %c0_30 = arith.constant 0 : index
    %c0_31 = arith.constant 0 : index
    %67 = vector.load %arg22[%c0_30, %c0_31] : memref<1x8xf32, #tpu.memory_space<vmem>>, vector<1x8xf32>
    %68 = vector.broadcast %67 : vector<1x8xf32> to vector<64x8xf32>
    %69 = arith.addf %66, %68 : vector<64x8xf32>
    %70 = tpu.transpose %69, [1, 0] : vector<64x8xf32> -> vector<8x64xf32>
    %71 = vector.shape_cast %70 : vector<8x64xf32> to vector<2x4x64xf32>
    %72 = arith.addf %54, %71 : vector<2x4x64xf32>
    %cst_32 = arith.constant dense<0.000000e+00> : vector<2x4xf32>
    %73 = vector.multi_reduction <add>, %72, %cst_32 [2] : vector<2x4x64xf32> to vector<2x4xf32>
    %74 = vector.shape_cast %73 : vector<2x4xf32> to vector<2x4x1xf32>
    %cst_33 = arith.constant dense<0.000000e+00> : vector<4x1xf32>
    %75 = vector.multi_reduction <add>, %74, %cst_33 [0] : vector<2x4x1xf32> to vector<4x1xf32>
    %76 = vector.shape_cast %75 : vector<4x1xf32> to vector<1x4x1xf32>
    %cst_34 = arith.constant 1.280000e+02 : f32
    %77 = vector.broadcast %cst_34 : f32 to vector<1x4x1xf32>
    %78 = arith.divf %76, %77 : vector<1x4x1xf32>
    %79 = vector.broadcast %78 : vector<1x4x1xf32> to vector<2x4x64xf32>
    %80 = arith.subf %72, %79 : vector<2x4x64xf32>
    %81 = arith.mulf %80, %80 : vector<2x4x64xf32>
    %cst_35 = arith.constant dense<0.000000e+00> : vector<2x4xf32>
    %82 = vector.multi_reduction <add>, %81, %cst_35 [2] : vector<2x4x64xf32> to vector<2x4xf32>
    %83 = vector.shape_cast %82 : vector<2x4xf32> to vector<2x4x1xf32>
    %cst_36 = arith.constant dense<0.000000e+00> : vector<4x1xf32>
    %84 = vector.multi_reduction <add>, %83, %cst_36 [0] : vector<2x4x1xf32> to vector<4x1xf32>
    %85 = vector.shape_cast %84 : vector<4x1xf32> to vector<1x4x1xf32>
    %cst_37 = arith.constant 1.280000e+02 : f32
    %86 = vector.broadcast %cst_37 : f32 to vector<1x4x1xf32>
    %87 = arith.divf %85, %86 : vector<1x4x1xf32>
    %cst_38 = arith.constant 9.99999974E-6 : f32
    %88 = vector.broadcast %cst_38 : f32 to vector<1x4x1xf32>
    %89 = arith.addf %87, %88 : vector<1x4x1xf32>
    %90 = math.rsqrt %89 : vector<1x4x1xf32>
    %91 = vector.broadcast %90 : vector<1x4x1xf32> to vector<2x4x64xf32>
    %92 = arith.mulf %80, %91 : vector<2x4x64xf32>
    %c0_39 = arith.constant 0 : index
    %c0_40 = arith.constant 0 : index
    %c0_41 = arith.constant 0 : index
    %93 = vector.load %arg23[%c0_39, %c0_40, %c0_41] : memref<1x4x1xf32, #tpu.memory_space<vmem>>, vector<1x4x1xf32>
    %94 = vector.broadcast %93 : vector<1x4x1xf32> to vector<2x4x64xf32>
    %95 = arith.mulf %92, %94 : vector<2x4x64xf32>
    %c0_42 = arith.constant 0 : index
    %c0_43 = arith.constant 0 : index
    %c0_44 = arith.constant 0 : index
    %96 = vector.load %arg24[%c0_42, %c0_43, %c0_44] : memref<1x4x1xf32, #tpu.memory_space<vmem>>, vector<1x4x1xf32>
    %97 = vector.broadcast %96 : vector<1x4x1xf32> to vector<2x4x64xf32>
    %98 = arith.addf %95, %97 : vector<2x4x64xf32>
    %99 = vector.extract_strided_slice %98 {offsets = [0, 0, 0], sizes = [2, 1, 64], strides = [1, 1, 1]} : vector<2x4x64xf32> to vector<2x1x64xf32>
    %100 = vector.shape_cast %99 : vector<2x1x64xf32> to vector<2x64xf32>
    %101 = vector.extract_strided_slice %98 {offsets = [0, 1, 0], sizes = [2, 1, 64], strides = [1, 1, 1]} : vector<2x4x64xf32> to vector<2x1x64xf32>
    %102 = vector.shape_cast %101 : vector<2x1x64xf32> to vector<2x64xf32>
    %103 = vector.extract_strided_slice %98 {offsets = [0, 2, 0], sizes = [2, 1, 64], strides = [1, 1, 1]} : vector<2x4x64xf32> to vector<2x1x64xf32>
    %104 = vector.shape_cast %103 : vector<2x1x64xf32> to vector<2x64xf32>
    %105 = vector.extract_strided_slice %98 {offsets = [0, 3, 0], sizes = [2, 1, 64], strides = [1, 1, 1]} : vector<2x4x64xf32> to vector<2x1x64xf32>
    %106 = vector.shape_cast %105 : vector<2x1x64xf32> to vector<2x64xf32>
    %107 = tpu.concatenate %100, %102, %104, %106 in 1 : vector<2x64xf32>, vector<2x64xf32>, vector<2x64xf32>, vector<2x64xf32> -> vector<2x256xf32>
    %108 = vector.extract_strided_slice %72 {offsets = [0, 0, 0], sizes = [2, 1, 64], strides = [1, 1, 1]} : vector<2x4x64xf32> to vector<2x1x64xf32>
    %109 = vector.shape_cast %108 : vector<2x1x64xf32> to vector<2x64xf32>
    %110 = vector.extract_strided_slice %72 {offsets = [0, 1, 0], sizes = [2, 1, 64], strides = [1, 1, 1]} : vector<2x4x64xf32> to vector<2x1x64xf32>
    %111 = vector.shape_cast %110 : vector<2x1x64xf32> to vector<2x64xf32>
    %112 = vector.extract_strided_slice %72 {offsets = [0, 2, 0], sizes = [2, 1, 64], strides = [1, 1, 1]} : vector<2x4x64xf32> to vector<2x1x64xf32>
    %113 = vector.shape_cast %112 : vector<2x1x64xf32> to vector<2x64xf32>
    %114 = vector.extract_strided_slice %72 {offsets = [0, 3, 0], sizes = [2, 1, 64], strides = [1, 1, 1]} : vector<2x4x64xf32> to vector<2x1x64xf32>
    %115 = vector.shape_cast %114 : vector<2x1x64xf32> to vector<2x64xf32>
    %116 = tpu.concatenate %109, %111, %113, %115 in 1 : vector<2x64xf32>, vector<2x64xf32>, vector<2x64xf32>, vector<2x64xf32> -> vector<2x256xf32>
    %c0_45 = arith.constant 0 : index
    %c0_46 = arith.constant 0 : index
    %117 = vector.load %arg25[%c0_45, %c0_46] : memref<256x128xf32, #tpu.memory_space<vmem>>, vector<256x128xf32>
    %cst_47 = arith.constant dense<0.000000e+00> : vector<2x128xf32>
    %118 = tpu.matmul %107, %117, %cst_47 {dimension_numbers = #tpu.dot_dimension_numbers<[1], [0], [0], [1], [0, 0, 1, 1], [], []>} : vector<2x256xf32>, vector<256x128xf32>, vector<2x128xf32> -> vector<2x128xf32>
    %cst_48 = arith.constant 0.000000e+00 : f32
    %119 = vector.broadcast %cst_48 : f32 to vector<2x128xf32>
    %120 = arith.cmpf oge, %118, %119 : vector<2x128xf32>
    %cst_49 = arith.constant 2.000000e-01 : f32
    %121 = vector.broadcast %cst_49 : f32 to vector<2x128xf32>
    %122 = arith.mulf %121, %118 : vector<2x128xf32>
    %123 = arith.select %120, %118, %122 : vector<2x128xi1>, vector<2x128xf32>
    %c0_50 = arith.constant 0 : index
    %c0_51 = arith.constant 0 : index
    %124 = vector.load %arg26[%c0_50, %c0_51] : memref<256x128xf32, #tpu.memory_space<vmem>>, vector<256x128xf32>
    %cst_52 = arith.constant dense<0.000000e+00> : vector<2x128xf32>
    %125 = tpu.matmul %107, %124, %cst_52 {dimension_numbers = #tpu.dot_dimension_numbers<[1], [0], [0], [1], [0, 0, 1, 1], [], []>} : vector<2x256xf32>, vector<256x128xf32>, vector<2x128xf32> -> vector<2x128xf32>
    %cst_53 = arith.constant 0.000000e+00 : f32
    %126 = vector.broadcast %cst_53 : f32 to vector<2x128xf32>
    %127 = arith.cmpf oge, %125, %126 : vector<2x128xf32>
    %cst_54 = arith.constant 2.000000e-01 : f32
    %128 = vector.broadcast %cst_54 : f32 to vector<2x128xf32>
    %129 = arith.mulf %128, %125 : vector<2x128xf32>
    %130 = arith.select %127, %125, %129 : vector<2x128xi1>, vector<2x128xf32>
    %c0_55 = arith.constant 0 : index
    %c0_56 = arith.constant 0 : index
    %131 = vector.load %arg27[%c0_55, %c0_56] : memref<128x128xf32, #tpu.memory_space<vmem>>, vector<128x128xf32>
    %cst_57 = arith.constant dense<0.000000e+00> : vector<2x128xf32>
    %132 = tpu.matmul %123, %131, %cst_57 {dimension_numbers = #tpu.dot_dimension_numbers<[1], [0], [0], [1], [0, 0, 1, 1], [], []>} : vector<2x128xf32>, vector<128x128xf32>, vector<2x128xf32> -> vector<2x128xf32>
    %cst_58 = arith.constant 0.000000e+00 : f32
    %133 = vector.broadcast %cst_58 : f32 to vector<2x128xf32>
    %134 = arith.cmpf oge, %132, %133 : vector<2x128xf32>
    %cst_59 = arith.constant 2.000000e-01 : f32
    %135 = vector.broadcast %cst_59 : f32 to vector<2x128xf32>
    %136 = arith.mulf %135, %132 : vector<2x128xf32>
    %137 = arith.select %134, %132, %136 : vector<2x128xi1>, vector<2x128xf32>
    %c0_60 = arith.constant 0 : index
    %c0_61 = arith.constant 0 : index
    %138 = vector.load %arg28[%c0_60, %c0_61] : memref<128x128xf32, #tpu.memory_space<vmem>>, vector<128x128xf32>
    %cst_62 = arith.constant dense<0.000000e+00> : vector<2x128xf32>
    %139 = tpu.matmul %130, %138, %cst_62 {dimension_numbers = #tpu.dot_dimension_numbers<[1], [0], [0], [1], [0, 0, 1, 1], [], []>} : vector<2x128xf32>, vector<128x128xf32>, vector<2x128xf32> -> vector<2x128xf32>
    %c0_63 = arith.constant 0 : index
    %c0_64 = arith.constant 0 : index
    %140 = vector.load %arg29[%c0_63, %c0_64] : memref<1x128xf32, #tpu.memory_space<vmem>>, vector<1x128xf32>
    %141 = vector.broadcast %140 : vector<1x128xf32> to vector<2x128xf32>
    %142 = arith.addf %139, %141 : vector<2x128xf32>
    %143 = arith.negf %142 : vector<2x128xf32>
    %144 = math.exp %143 : vector<2x128xf32>
    %cst_65 = arith.constant 1.000000e+00 : f32
    %145 = vector.broadcast %cst_65 : f32 to vector<2x128xf32>
    %146 = arith.addf %145, %144 : vector<2x128xf32>
    %147 = arith.divf %145, %146 : vector<2x128xf32>
    %c0_66 = arith.constant 0 : index
    %c0_67 = arith.constant 0 : index
    %148 = vector.load %arg30[%c0_66, %c0_67] : memref<128x128xf32, #tpu.memory_space<vmem>>, vector<128x128xf32>
    %cst_68 = arith.constant dense<0.000000e+00> : vector<2x128xf32>
    %149 = tpu.matmul %130, %148, %cst_68 {dimension_numbers = #tpu.dot_dimension_numbers<[1], [0], [0], [1], [0, 0, 1, 1], [], []>} : vector<2x128xf32>, vector<128x128xf32>, vector<2x128xf32> -> vector<2x128xf32>
    %150 = arith.mulf %149, %147 : vector<2x128xf32>
    %c0_69 = arith.constant 0 : index
    %c0_70 = arith.constant 0 : index
    %151 = vector.load %arg31[%c0_69, %c0_70] : memref<128x128xf32, #tpu.memory_space<vmem>>, vector<128x128xf32>
    %cst_71 = arith.constant dense<0.000000e+00> : vector<2x128xf32>
    %152 = tpu.matmul %150, %151, %cst_71 {dimension_numbers = #tpu.dot_dimension_numbers<[1], [0], [0], [1], [0, 0, 1, 1], [], []>} : vector<2x128xf32>, vector<128x128xf32>, vector<2x128xf32> -> vector<2x128xf32>
    %cst_72 = arith.constant 0.000000e+00 : f32
    %153 = vector.broadcast %cst_72 : f32 to vector<2x128xf32>
    %154 = arith.cmpf oge, %152, %153 : vector<2x128xf32>
    %cst_73 = arith.constant 2.000000e-01 : f32
    %155 = vector.broadcast %cst_73 : f32 to vector<2x128xf32>
    %156 = arith.mulf %155, %152 : vector<2x128xf32>
    %157 = arith.select %154, %152, %156 : vector<2x128xi1>, vector<2x128xf32>
    %158 = tpu.concatenate %137, %157 in 1 : vector<2x128xf32>, vector<2x128xf32> -> vector<2x256xf32>
    %c0_74 = arith.constant 0 : index
    %c0_75 = arith.constant 0 : index
    %159 = vector.load %arg32[%c0_74, %c0_75] : memref<256x256xf32, #tpu.memory_space<vmem>>, vector<256x256xf32>
    %cst_76 = arith.constant dense<0.000000e+00> : vector<2x256xf32>
    %160 = tpu.matmul %158, %159, %cst_76 {dimension_numbers = #tpu.dot_dimension_numbers<[1], [0], [0], [1], [0, 0, 1, 1], [], []>} : vector<2x256xf32>, vector<256x256xf32>, vector<2x256xf32> -> vector<2x256xf32>
    %161 = arith.addf %160, %107 : vector<2x256xf32>
    %162 = arith.addf %161, %116 : vector<2x256xf32>
    %c0_77 = arith.constant 0 : index
    %c0_78 = arith.constant 0 : index
    %163 = vector.load %arg33[%c0_77, %c0_78] : memref<2x256xf32, #tpu.memory_space<vmem>>, vector<2x256xf32>
    tpu.vector_store %arg33[%c0_77, %c0_78], %162 {strides = array<i32>} : memref<2x256xf32, #tpu.memory_space<vmem>>, vector<2x256xf32>,
    return
  }
}

</mosaic_0001>

<llo_original>
// kernel: spe_fem_forward.1
$region0: #{spe_fem_forward.1}
  #allocation0 [shape = 'u32[]', space=smem, size = 0x4, offset = 0x4, fixed_abs, tag = 'smem constant byte address 0x4 - core index']
  #allocation1 [shape = 'u32[72,128]{1,0:T(1,128)}', space=vmem, size = 0x9000, scoped, tag = 'internal scratch']
  %s0 = inlined_call_operand.smem [shape: u32[34], index: -1, kind: input, shape index: {}]
  %s1 = sld [smem:[%s0]]
  %s2 = scalar_lea.smem %s0, 1
  %s3 = sld [smem:[%s2]]
  %s4 = scalar_lea.smem %s0, 2
  %s5 = sld [smem:[%s4]]
  %s6 = scalar_lea.smem %s0, 3
  %s7 = sld [smem:[%s6]]
  %s8 = scalar_lea.smem %s0, 4
  %s9 = sld [smem:[%s8]]
  %s10 = scalar_lea.smem %s0, 5
  %s11 = sld [smem:[%s10]]
  %s12 = scalar_lea.smem %s0, 6
  %s13 = sld [smem:[%s12]]
  %s14 = scalar_lea.smem %s0, 7
  %s15 = sld [smem:[%s14]]
  %s16 = scalar_lea.smem %s0, 8
  %s17 = sld [smem:[%s16]]
  %s18 = scalar_lea.smem %s0, 9
  %s19 = sld [smem:[%s18]]
  %s20 = scalar_lea.smem %s0, 10
  %s21 = sld [smem:[%s20]]
  %s22 = scalar_lea.smem %s0, 11
  %s23 = sld [smem:[%s22]]
  %s24 = scalar_lea.smem %s0, 12
  %s25 = sld [smem:[%s24]]
  %s26 = scalar_lea.smem %s0, 13
  %s27 = sld [smem:[%s26]]
  %s28 = scalar_lea.smem %s0, 14
  %s29 = sld [smem:[%s28]]
  %s30 = scalar_lea.smem %s0, 15
  %s31 = sld [smem:[%s30]]
  %s32 = scalar_lea.smem %s0, 16
  %s33 = sld [smem:[%s32]]
  %s34 = scalar_lea.smem %s0, 17
  %s35 = sld [smem:[%s34]]
  %s36 = scalar_lea.smem %s0, 18
  %s37 = sld [smem:[%s36]]
  %s38 = scalar_lea.smem %s0, 19
  %s39 = sld [smem:[%s38]]
  %s40 = scalar_lea.smem %s0, 20
  %s41 = sld [smem:[%s40]]
  %s42 = scalar_lea.smem %s0, 21
  %s43 = sld [smem:[%s42]]
  %s44 = scalar_lea.smem %s0, 22
  %s45 = sld [smem:[%s44]]
  %s46 = scalar_lea.smem %s0, 23
  %s47 = sld [smem:[%s46]]
  %s48 = scalar_lea.smem %s0, 24
  %s49 = sld [smem:[%s48]]
  %s50 = scalar_lea.smem %s0, 25
  %s51 = sld [smem:[%s50]]
  %s52 = scalar_lea.smem %s0, 26
  %s53 = sld [smem:[%s52]]
  %s54 = scalar_lea.smem %s0, 27
  %s55 = sld [smem:[%s54]]
  %s56 = scalar_lea.smem %s0, 28
  %s57 = sld [smem:[%s56]]
  %s58 = scalar_lea.smem %s0, 29
  %s59 = sld [smem:[%s58]]
  %s60 = scalar_lea.smem %s0, 30
  %s61 = sld [smem:[%s60]]
  %s62 = scalar_lea.smem %s0, 31
  %s63 = sld [smem:[%s62]]
  %s64 = scalar_lea.smem %s0, 32
  %s65 = sld [smem:[%s64]]
  %s66 = scalar_lea.smem %s0, 33
  %s67 = sld [smem:[%s66]]
  %s68 = sld [smem:[#allocation0]]
  $region161: #{spe_fem_forward.1} parent=0
    _
  %s70 = ssub.s32 1, %s68
  %s71 = scalar_select 0, %s70, %s68
  $region1: #{spe_fem_forward.1} parent=0
    #allocation2 [shape = 'u8[32768]{0}', space=vmem, size = 0x8000, scoped, tag = 'input window, operand 6, single buffered']
    #allocation3 [shape = 's32[1]{0}', space=sflag, size = 0x4, scoped, tag = 'scoped memory for spe_fem_forward.1']
    #allocation4 [shape = 'u8[65536]{0}', space=vmem, size = 0x10000, scoped, tag = 'input window, operand 30, single buffered']
    #allocation5 [shape = 's32[1]{0}', space=sflag, size = 0x4, scoped, tag = 'scoped memory for spe_fem_forward.1']
    #allocation6 [shape = 'u8[65536]{0}', space=vmem, size = 0x10000, scoped, tag = 'input window, operand 31, single buffered']
    %72 = vsyncpa [#allocation3], 0
    %73 = vsyncpa [#allocation5], 0
    // Predicated region
    $region2: #{spe_fem_forward.1} parent=1 // pred_check
      _
    $region3: #{spe_fem_forward.1} parent=1 // pred_check_branch
      %75 = sbr.rel (0) target = $region5
    $region4: #{spe_fem_forward.1} parent=1 // pred_region
      _
    $region5: #{spe_fem_forward.1} parent=1 // pred_fallthru
      _
    // Predicated region
    $region6: #{spe_fem_forward.1} parent=1 // pred_check
      _
    $region7: #{spe_fem_forward.1} parent=1 // pred_check_branch
      %77 = sbr.rel (0) target = $region9
    $region8: #{spe_fem_forward.1} parent=1 // pred_region
      _
    $region9: #{spe_fem_forward.1} parent=1 // pred_fallthru
      _
    // Predicated region
    $region10: #{spe_fem_forward.1} parent=1 // pred_check
      _
    $region11: #{spe_fem_forward.1} parent=1 // pred_check_branch
      %79 = sbr.rel (0) target = $region13
    $region12: #{spe_fem_forward.1} parent=1 // pred_region
      _
    $region13: #{spe_fem_forward.1} parent=1 // pred_fallthru
      _
    // Predicated region
    $region14: #{spe_fem_forward.1} parent=1 // pred_check
      _
    $region15: #{spe_fem_forward.1} parent=1 // pred_check_branch
      %81 = sbr.rel (0) target = $region17
    $region16: #{spe_fem_forward.1} parent=1 // pred_region
      _
    $region17: #{spe_fem_forward.1} parent=1 // pred_fallthru
      _
    // Predicated region
    $region18: #{spe_fem_forward.1} parent=1 // pred_check
      _
    $region19: #{spe_fem_forward.1} parent=1 // pred_check_branch
      %83 = sbr.rel (0) target = $region21
    $region20: #{spe_fem_forward.1} parent=1 // pred_region
      _
    $region21: #{spe_fem_forward.1} parent=1 // pred_fallthru
      _
    // Predicated region
    $region22: #{spe_fem_forward.1} parent=1 // pred_check
      _
    $region23: #{spe_fem_forward.1} parent=1 // pred_check_branch
      %85 = sbr.rel (0) target = $region25
    $region24: #{spe_fem_forward.1} parent=1 // pred_region
      _
    $region25: #{spe_fem_forward.1} parent=1 // pred_fallthru
      _
    // Predicated region
    $region26: #{spe_fem_forward.1} parent=1 // pred_check
      _
    $region27: #{spe_fem_forward.1} parent=1 // pred_check_branch
      %87 = sbr.rel (0) target = $region29
    $region28: #{spe_fem_forward.1} parent=1 // pred_region
      %89 = vsyncadd [#allocation3], 0
      %s90 = sshll.u32 %s13, 4
      %s91 = int_to_ptr.hbm [resolvable:$true] %s90
      %s92 = sshll.u32 [#allocation2], 4
      %s93 = int_to_ptr.vmem [resolvable:$true] %s92
      %98 = dma.hbm_to_vmem [thread:$0]  %s91, 1024, %s93, [#allocation3], 128, 128, 8
    $region29: #{spe_fem_forward.1} parent=1 // pred_fallthru
      _
    // Predicated region
    $region30: #{spe_fem_forward.1} parent=1 // pred_check
      _
    $region31: #{spe_fem_forward.1} parent=1 // pred_check_branch
      %100 = sbr.rel (0) target = $region33
    $region32: #{spe_fem_forward.1} parent=1 // pred_region
      _
    $region33: #{spe_fem_forward.1} parent=1 // pred_fallthru
      _
    // Predicated region
    $region34: #{spe_fem_forward.1} parent=1 // pred_check
      _
    $region35: #{spe_fem_forward.1} parent=1 // pred_check_branch
      %102 = sbr.rel (0) target = $region37
    $region36: #{spe_fem_forward.1} parent=1 // pred_region
      _
    $region37: #{spe_fem_forward.1} parent=1 // pred_fallthru
      _
    // Predicated region
    $region38: #{spe_fem_forward.1} parent=1 // pred_check
      _
    $region39: #{spe_fem_forward.1} parent=1 // pred_check_branch
      %104 = sbr.rel (0) target = $region41
    $region40: #{spe_fem_forward.1} parent=1 // pred_region
      _
    $region41: #{spe_fem_forward.1} parent=1 // pred_fallthru
      _
    // Predicated region
    $region42: #{spe_fem_forward.1} parent=1 // pred_check
      _
    $region43: #{spe_fem_forward.1} parent=1 // pred_check_branch
      %106 = sbr.rel (0) target = $region45
    $region44: #{spe_fem_forward.1} parent=1 // pred_region
      _
    $region45: #{spe_fem_forward.1} parent=1 // pred_fallthru
      _
    // Predicated region
    $region46: #{spe_fem_forward.1} parent=1 // pred_check
      _
    $region47: #{spe_fem_forward.1} parent=1 // pred_check_branch
      %108 = sbr.rel (0) target = $region49
    $region48: #{spe_fem_forward.1} parent=1 // pred_region
      _
    $region49: #{spe_fem_forward.1} parent=1 // pred_fallthru
      _
    // Predicated region
    $region50: #{spe_fem_forward.1} parent=1 // pred_check
      _
    $region51: #{spe_fem_forward.1} parent=1 // pred_check_branch
      %110 = sbr.rel (0) target = $region53
    $region52: #{spe_fem_forward.1} parent=1 // pred_region
      _
    $region53: #{spe_fem_forward.1} parent=1 // pred_fallthru
      _
    // Predicated region
    $region54: #{spe_fem_forward.1} parent=1 // pred_check
      _
    $region55: #{spe_fem_forward.1} parent=1 // pred_check_branch
      %112 = sbr.rel (0) target = $region57
    $region56: #{spe_fem_forward.1} parent=1 // pred_region
      _
    $region57: #{spe_fem_forward.1} parent=1 // pred_fallthru
      _
    // Predicated region
    $region58: #{spe_fem_forward.1} parent=1 // pred_check
      _
    $region59: #{spe_fem_forward.1} parent=1 // pred_check_branch
      %114 = sbr.rel (0) target = $region61
    $region60: #{spe_fem_forward.1} parent=1 // pred_region
      _
    $region61: #{spe_fem_forward.1} parent=1 // pred_fallthru
      _
    // Predicated region
    $region62: #{spe_fem_forward.1} parent=1 // pred_check
      _
    $region63: #{spe_fem_forward.1} parent=1 // pred_check_branch
      %116 = sbr.rel (0) target = $region65
    $region64: #{spe_fem_forward.1} parent=1 // pred_region
      _
    $region65: #{spe_fem_forward.1} parent=1 // pred_fallthru
      _
    // Predicated region
    $region66: #{spe_fem_forward.1} parent=1 // pred_check
      _
    $region67: #{spe_fem_forward.1} parent=1 // pred_check_branch
      %118 = sbr.rel (0) target = $region69
    $region68: #{spe_fem_forward.1} parent=1 // pred_region
      _
    $region69: #{spe_fem_forward.1} parent=1 // pred_fallthru
      _
    // Predicated region
    $region70: #{spe_fem_forward.1} parent=1 // pred_check
      _
    $region71: #{spe_fem_forward.1} parent=1 // pred_check_branch
      %120 = sbr.rel (0) target = $region73
    $region72: #{spe_fem_forward.1} parent=1 // pred_region
      _
    $region73: #{spe_fem_forward.1} parent=1 // pred_fallthru
      _
    // Predicated region
    $region74: #{spe_fem_forward.1} parent=1 // pred_check
      _
    $region75: #{spe_fem_forward.1} parent=1 // pred_check_branch
      %122 = sbr.rel (0) target = $region77
    $region76: #{spe_fem_forward.1} parent=1 // pred_region
      _
    $region77: #{spe_fem_forward.1} parent=1 // pred_fallthru
      _
    // Predicated region
    $region78: #{spe_fem_forward.1} parent=1 // pred_check
      _
    $region79: #{spe_fem_forward.1} parent=1 // pred_check_branch
      %124 = sbr.rel (0) target = $region81
    $region80: #{spe_fem_forward.1} parent=1 // pred_region
      _
    $region81: #{spe_fem_forward.1} parent=1 // pred_fallthru
      _
    // Predicated region
    $region82: #{spe_fem_forward.1} parent=1 // pred_check
      _
    $region83: #{spe_fem_forward.1} parent=1 // pred_check_branch
      %126 = sbr.rel (0) target = $region85
    $region84: #{spe_fem_forward.1} parent=1 // pred_region
      _
    $region85: #{spe_fem_forward.1} parent=1 // pred_fallthru
      _
    // Predicated region
    $region86: #{spe_fem_forward.1} parent=1 // pred_check
      _
    $region87: #{spe_fem_forward.1} parent=1 // pred_check_branch
      %128 = sbr.rel (0) target = $region89
    $region88: #{spe_fem_forward.1} parent=1 // pred_region
      _
    $region89: #{spe_fem_forward.1} parent=1 // pred_fallthru
      _
    // Predicated region
    $region90: #{spe_fem_forward.1} parent=1 // pred_check
      _
    $region91: #{spe_fem_forward.1} parent=1 // pred_check_branch
      %130 = sbr.rel (0) target = $region93
    $region92: #{spe_fem_forward.1} parent=1 // pred_region
      _
    $region93: #{spe_fem_forward.1} parent=1 // pred_fallthru
      _
    // Predicated region
    $region94: #{spe_fem_forward.1} parent=1 // pred_check
      _
    $region95: #{spe_fem_forward.1} parent=1 // pred_check_branch
      %132 = sbr.rel (0) target = $region97
    $region96: #{spe_fem_forward.1} parent=1 // pred_region
      _
    $region97: #{spe_fem_forward.1} parent=1 // pred_fallthru
      _
    // Predicated region
    $region98: #{spe_fem_forward.1} parent=1 // pred_check
      _
    $region99: #{spe_fem_forward.1} parent=1 // pred_check_branch
      %134 = sbr.rel (0) target = $region101
    $region100: #{spe_fem_forward.1} parent=1 // pred_region
      _
    $region101: #{spe_fem_forward.1} parent=1 // pred_fallthru
      _
    // Predicated region
    $region102: #{spe_fem_forward.1} parent=1 // pred_check
      _
    $region103: #{spe_fem_forward.1} parent=1 // pred_check_branch
      %136 = sbr.rel (0) target = $region105
    $region104: #{spe_fem_forward.1} parent=1 // pred_region
      _
    $region105: #{spe_fem_forward.1} parent=1 // pred_fallthru
      _
    // Predicated region
    $region106: #{spe_fem_forward.1} parent=1 // pred_check
      _
    $region107: #{spe_fem_forward.1} parent=1 // pred_check_branch
      %138 = sbr.rel (0) target = $region109
    $region108: #{spe_fem_forward.1} parent=1 // pred_region
      _
    $region109: #{spe_fem_forward.1} parent=1 // pred_fallthru
      _
    // Predicated region
    $region110: #{spe_fem_forward.1} parent=1 // pred_check
      _
    $region111: #{spe_fem_forward.1} parent=1 // pred_check_branch
      %140 = sbr.rel (0) target = $region113
    $region112: #{spe_fem_forward.1} parent=1 // pred_region
      _
    $region113: #{spe_fem_forward.1} parent=1 // pred_fallthru
      _
    // Predicated region
    $region114: #{spe_fem_forward.1} parent=1 // pred_check
      _
    $region115: #{spe_fem_forward.1} parent=1 // pred_check_branch
      %142 = sbr.rel (0) target = $region117
    $region116: #{spe_fem_forward.1} parent=1 // pred_region
      _
    $region117: #{spe_fem_forward.1} parent=1 // pred_fallthru
      _
    // Predicated region
    $region118: #{spe_fem_forward.1} parent=1 // pred_check
      _
    $region119: #{spe_fem_forward.1} parent=1 // pred_check_branch
      %144 = sbr.rel (0) target = $region121
    $region120: #{spe_fem_forward.1} parent=1 // pred_region
      _
    $region121: #{spe_fem_forward.1} parent=1 // pred_fallthru
      _
    // Predicated region
    $region122: #{spe_fem_forward.1} parent=1 // pred_check
      _
    $region123: #{spe_fem_forward.1} parent=1 // pred_check_branch
      %146 = sbr.rel (0) target = $region125
    $region124: #{spe_fem_forward.1} parent=1 // pred_region
      %148 = vsyncadd [#allocation5], 0
      %s149 = sshll.u32 %s61, 4
      %s150 = int_to_ptr.hbm [resolvable:$true] %s149
      %s151 = sshll.u32 [#allocation4], 4
      %s152 = int_to_ptr.vmem [resolvable:$true] %s151
      %157 = dma.hbm_to_vmem [thread:$0]  %s150, 2048, %s152, [#allocation5], 128, 128, 8
    $region125: #{spe_fem_forward.1} parent=1 // pred_fallthru
      _
    // Predicated region
    $region126: #{spe_fem_forward.1} parent=1 // pred_check
      _
    $region127: #{spe_fem_forward.1} parent=1 // pred_check_branch
      %159 = sbr.rel (0) target = $region129
    $region128: #{spe_fem_forward.1} parent=1 // pred_region
      %161 = vsyncadd [#allocation5], 0
      %s162 = sshll.u32 %s63, 4
      %s163 = int_to_ptr.hbm [resolvable:$true] %s162
      %s164 = sshll.u32 [#allocation6], 4
      %s165 = int_to_ptr.vmem [resolvable:$true] %s164
      %170 = dma.hbm_to_vmem [thread:$0]  %s163, 2048, %s165, [#allocation5], 128, 128, 8
    $region129: #{spe_fem_forward.1} parent=1 // pred_fallthru
      _
    // Predicated region
    $region130: #{spe_fem_forward.1} parent=1 // pred_check
      _
    $region131: #{spe_fem_forward.1} parent=1 // pred_check_branch
      %172 = sbr.rel (0) target = $region133
    $region132: #{spe_fem_forward.1} parent=1 // pred_region
      _
    $region133: #{spe_fem_forward.1} parent=1 // pred_fallthru
      _
    // Predicated region
    $region134: #{spe_fem_forward.1} parent=1 // pred_check
      _
    $region135: #{spe_fem_forward.1} parent=1 // pred_check_branch
      %174 = sbr.rel (0) target = $region137
    $region136: #{spe_fem_forward.1} parent=1 // pred_region
      %176 = dma.done [#allocation3], 1024
    $region137: #{spe_fem_forward.1} parent=1 // pred_fallthru
      _
    // Predicated region
    $region138: #{spe_fem_forward.1} parent=1 // pred_check
      _
    $region139: #{spe_fem_forward.1} parent=1 // pred_check_branch
      %178 = sbr.rel (0) target = $region141
    $region140: #{spe_fem_forward.1} parent=1 // pred_region
      %180 = dma.done [#allocation5], 2048
    $region141: #{spe_fem_forward.1} parent=1 // pred_fallthru
      _
    // Predicated region
    $region142: #{spe_fem_forward.1} parent=1 // pred_check
      _
    $region143: #{spe_fem_forward.1} parent=1 // pred_check_branch
      %182 = sbr.rel (0) target = $region145
    $region144: #{spe_fem_forward.1} parent=1 // pred_region
      %184 = dma.done [#allocation5], 2048
    $region145: #{spe_fem_forward.1} parent=1 // pred_fallthru
      _
    %v185 = vld [vmem:[%s1] sm:$0xf]
    %v186 = vld [vmem:[%s1 + $0x4] sm:$0xf]
    %vm187 = vcmask 519168
    %v188 = vsel %vm187, %v185, 0.0
    %189 = vadd.xlane.f32.xlu0 %v188
    %v190 = vpop.xlane.xlu0 %189
    %v191 = vsel %vm187, %v186, 0.0
    %192 = vadd.xlane.f32.xlu0 %v191
    %v193 = vpop.xlane.xlu0 %192
    %vm194 = vcmask 1043456
    %v195 = vsel %vm194, %v190, 0.0
    %v196 = vsel %vm194, %v193, 0.0
    %v197 = vadd.f32 %v195, %v196
    %v198 = vrcp.pop 128.0
    %v199 = vmul.f32 128.0, %v198
    %v200 = vsub.f32 1.0, %v199
    %v201 = vmul.f32 %v198, %v200
    %v202 = vadd.f32 %v198, %v201
    %vm203 = vweird.f32 %v198
    %v204 = vsel %vm203, %v198, %v202
    %v205 = vmul.f32 %v197, %v204
    %v206 = vsub.f32 %v185, %v205
    %v207 = vsub.f32 %v186, %v205
    %v208 = vmul.f32 %v206, %v206
    %v209 = vmul.f32 %v207, %v207
    %v210 = vsel %vm187, %v208, 0.0
    %211 = vadd.xlane.f32.xlu0 %v210
    %v212 = vpop.xlane.xlu0 %211
    %v213 = vsel %vm187, %v209, 0.0
    %214 = vadd.xlane.f32.xlu0 %v213
    %v215 = vpop.xlane.xlu0 %214
    %v216 = vsel %vm194, %v212, 0.0
    %v217 = vsel %vm194, %v215, 0.0
    %v218 = vadd.f32 %v216, %v217
    %v219 = vmul.f32 %v218, %v204
    %v220 = vadd.f32 %v219, 1e-05
    %v221 = vrsqrt.pop %v220
    %v222 = vmul.f32 %v221, %v220
    %v223 = vmul.f32 %v222, %v221
    %v224 = vmul.f32 0.5, %v223
    %v225 = vsub.f32 1.5, %v224
    %v226 = vmul.f32 %v221, %v225
    %vm227 = vweird.f32 %v220
    %vm228 = vweird.f32 %v221
    %vm229 = vmor %vm227, %vm228
    %v230 = vsel %vm229, %v221, %v226
    %v231 = vmul.f32 %v206, %v230
    %v232 = vmul.f32 %v207, %v230
    %v233 = vld [vmem:[%s3] sm:$0xf]
    %235 = vset.pattern.permute.xlu0 0
    %236 = vperm.xlu0 %235, %v233
    %v237 = vpop.permute.xlu0 %236
    %v239 = vmul.f32 %v231, %v237
    %v240 = vmul.f32 %v232, %v237
    %v241 = vld [vmem:[%s5] sm:$0xf]
    %243 = vset.pattern.permute.xlu0 0
    %244 = vperm.xlu0 %243, %v241
    %v245 = vpop.permute.xlu0 %244
    %v247 = vadd.f32 %v239, %v245
    %v248 = vadd.f32 %v240, %v245
    %v251 = vrot.slane %v247, 1
    %v252 = vrot.slane %v248, 1
    %v255 = vadd.f32 %v247, %v251
    %v256 = vadd.f32 %v248, %v252
    %v257 = vmax.f32 %v247, %v251
    %v258 = vmax.f32 %v248, %v252
    %v259 = vrot.slane %v247, 2
    %v260 = vrot.slane %v248, 2
    %v263 = vadd.f32 %v255, %v259
    %v264 = vadd.f32 %v256, %v260
    %v265 = vmax.f32 %v257, %v259
    %v266 = vmax.f32 %v258, %v260
    %v267 = vrot.slane %v247, 3
    %v268 = vrot.slane %v248, 3
    %v271 = vadd.f32 %v263, %v267
    %v272 = vadd.f32 %v264, %v268
    %v273 = vmax.f32 %v265, %v267
    %v274 = vmax.f32 %v266, %v268
    %v275 = vmul.f32 %v271, 0.25
    %v276 = vmul.f32 %v272, 0.25
    %v279 = vrot.slane %v276, 7
    %vm280 = vcmask 1041409
    %v281 = vsel %vm280, %v279, %v275
    %v285 = vrot.slane %v274, 7
    %v286 = vsel %vm280, %v285, %v273
    %287 = vrot.lane.b32.xlu0 %v286, 64
    %v288 = vpop.permute.xlu0 %287
    %vm290 = vcmask 523264
    %v291 = vsel %vm290, %v281, %v288
    %v292 = vld [vmem:[%s7] sm:$0xff]
    %v293 = vld [vmem:[%s7 + $0x8] sm:$0xff]
    %v294 = vld [vmem:[%s7 + $0x10] sm:$0xff]
    %v295 = vld [vmem:[%s7 + $0x18] sm:$0xff]
    %v296 = vld [vmem:[%s7 + $0x20] sm:$0xff]
    %v297 = vld [vmem:[%s7 + $0x28] sm:$0xff]
    %v298 = vld [vmem:[%s7 + $0x30] sm:$0xff]
    %v299 = vld [vmem:[%s7 + $0x38] sm:$0xff]
    %v300 = vld [vmem:[%s7 + $0x40] sm:$0xff]
    %v301 = vld [vmem:[%s7 + $0x48] sm:$0xff]
    %v302 = vld [vmem:[%s7 + $0x50] sm:$0xff]
    %v303 = vld [vmem:[%s7 + $0x58] sm:$0xff]
    %v304 = vld [vmem:[%s7 + $0x60] sm:$0xff]
    %v305 = vld [vmem:[%s7 + $0x68] sm:$0xff]
    %v306 = vld [vmem:[%s7 + $0x70] sm:$0xff]
    %v307 = vld [vmem:[%s7 + $0x78] sm:$0xff]
    %308 = vmatpush.msra.mxu0 %v307
    %309 = vmatpush.msra.mxu0 %v306
    %310 = vmatpush.msra.mxu0 %v305
    %311 = vmatpush.msra.mxu0 %v304
    %312 = vmatpush.msra.mxu0 %v303
    %313 = vmatpush.msra.mxu0 %v302
    %314 = vmatpush.msra.mxu0 %v301
    %315 = vmatpush.msra.mxu0 %v300
    %316 = vmatpush.msra.mxu0 %v299
    %317 = vmatpush.msra.mxu0 %v298
    %318 = vmatpush.msra.mxu0 %v297
    %319 = vmatpush.msra.mxu0 %v296
    %320 = vmatpush.msra.mxu0 %v295
    %321 = vmatpush.msra.mxu0 %v294
    %322 = vmatpush.msra.mxu0 %v293
    %323 = vmatpush.msra.mxu0 %v292
    %324 = vmatmul.f32.gmra.mxu0 %v291
    %v325 = vpop.f32.mrf.mxu0
    %v326 = vadd.f32 0.0, %v325
    %327 = vdwg.mxu0
    %v328 = vxor.u32 %v326, 2147483648
    %v329 = vmul.f32 %v328, 1.442695
    %v330 = vpow.pop %v329
    %v331 = vadd.f32 %v330, 1.0
    %v332 = vrcp.pop %v331
    %v333 = vmul.f32 %v331, %v332
    %v334 = vsub.f32 1.0, %v333
    %v335 = vmul.f32 %v332, %v334
    %v336 = vadd.f32 %v332, %v335
    %vm337 = vweird.f32 %v331
    %vm338 = vweird.f32 %v332
    %vm339 = vmor %vm337, %vm338
    %v340 = vsel %vm339, %v332, %v336
    %v341 = vand.u32 2147483647, %v331
    %vm342 = vcmp.eq.f32.partialorder %v341, 8.507059e+37
    %v343 = vand.u32 %v331, 2147483648
    %v344 = vor.u32 1.1754944e-38, %v343
    %v345 = vsel %vm342, %v344, %v340
    %v346 = vmul.f32 1.0, %v345
    %v348 = vrot.slane %v346, 1
    %v349 = vperm.slane %v346, 0
    %v350 = vperm.slane %v348, 0
    %v353 = vmul.f32 %v247, %v349
    %v354 = vmul.f32 %v248, %v350
    %v355 = vadd.f32 %v185, %v353
    %v356 = vadd.f32 %v186, %v354
    %357 = vst [vmem:[#allocation1] ss:$2 sm:$0xff] %v247
    %s358 = scalar_lea.vmem [#allocation1], 1
    %359 = vst [vmem:[%s358] ss:$2 sm:$0xff] %v248
    %v360 = vld.sshfl [vmem:[#allocation1] sm:$0xff pattern:$0x75316420]
    %362 = vxpose.xlu0.b32.start [1/16] %v360, 128
    %363 = vxpose.xlu0.b32.cont [2/16] 0.0, 128
    %364 = vxpose.xlu0.b32.cont [3/16] 0.0, 128
    %365 = vxpose.xlu0.b32.cont [4/16] 0.0, 128
    %366 = vxpose.xlu0.b32.cont [5/16] 0.0, 128
    %367 = vxpose.xlu0.b32.cont [6/16] 0.0, 128
    %368 = vxpose.xlu0.b32.cont [7/16] 0.0, 128
    %369 = vxpose.xlu0.b32.cont [8/16] 0.0, 128
    %370 = vxpose.xlu0.b32.cont [9/16] 0.0, 128
    %371 = vxpose.xlu0.b32.cont [10/16] 0.0, 128
    %372 = vxpose.xlu0.b32.cont [11/16] 0.0, 128
    %373 = vxpose.xlu0.b32.cont [12/16] 0.0, 128
    %374 = vxpose.xlu0.b32.cont [13/16] 0.0, 128
    %375 = vxpose.xlu0.b32.cont [14/16] 0.0, 128
    %376 = vxpose.xlu0.b32.cont [15/16] 0.0, 128
    %377 = vxpose.xlu0.b32.end [16/16] 0.0, 128
    %v378 = vpop.trf.xlu0
    %v379 = vpop.trf.xlu0
    %v380 = vpop.trf.xlu0
    %v381 = vpop.trf.xlu0
    %v382 = vpop.trf.xlu0
    %v383 = vpop.trf.xlu0
    %v384 = vpop.trf.xlu0
    %v385 = vpop.trf.xlu0
    %v386 = vpop.trf.xlu0
    %v387 = vpop.trf.xlu0
    %v388 = vpop.trf.xlu0
    %v389 = vpop.trf.xlu0
    %v390 = vpop.trf.xlu0
    %v391 = vpop.trf.xlu0
    %v392 = vpop.trf.xlu0
    %v393 = vpop.trf.xlu0
    %v394 = vld [vmem:[%s9] sm:$0xff]
    %v395 = vld [vmem:[%s11] sm:$0x1]
    %v397 = vperm.slane %v395, 0
    %vm399 = vcmask 64512
    %v401 = vsel %vm399, %v378, 0
    %v404 = vsel %vm399, %v379, 0
    %v407 = vsel %vm399, %v380, 0
    %v410 = vsel %vm399, %v381, 0
    %v413 = vsel %vm399, %v382, 0
    %v416 = vsel %vm399, %v383, 0
    %v419 = vsel %vm399, %v384, 0
    %v422 = vsel %vm399, %v385, 0
    %424 = vmatpush.msra.mxu0 0.0
    %425 = vmatpush.msra.mxu0 0.0
    %426 = vmatpush.msra.mxu0 0.0
    %427 = vmatpush.msra.mxu0 0.0
    %428 = vmatpush.msra.mxu0 0.0
    %429 = vmatpush.msra.mxu0 0.0
    %430 = vmatpush.msra.mxu0 0.0
    %431 = vmatpush.msra.mxu0 0.0
    %432 = vmatpush.msra.mxu0 0.0
    %433 = vmatpush.msra.mxu0 0.0
    %434 = vmatpush.msra.mxu0 0.0
    %435 = vmatpush.msra.mxu0 0.0
    %436 = vmatpush.msra.mxu0 0.0
    %437 = vmatpush.msra.mxu0 0.0
    %438 = vmatpush.msra.mxu0 0.0
    %439 = vmatpush.msra.mxu0 %v394
    %440 = vmatmul.f32.gmra.mxu0 %v401
    %v441 = vpop.f32.mrf.mxu0
    %v442 = vadd.f32 %v397, %v441
    %443 = vmatmul.f32.gmra.mxu0 %v404
    %v444 = vpop.f32.mrf.mxu0
    %v445 = vadd.f32 %v397, %v444
    %446 = vmatmul.f32.gmra.mxu0 %v407
    %v447 = vpop.f32.mrf.mxu0
    %v448 = vadd.f32 %v397, %v447
    %449 = vmatmul.f32.gmra.mxu0 %v410
    %v450 = vpop.f32.mrf.mxu0
    %v451 = vadd.f32 %v397, %v450
    %452 = vmatmul.f32.gmra.mxu0 %v413
    %v453 = vpop.f32.mrf.mxu0
    %v454 = vadd.f32 %v397, %v453
    %455 = vmatmul.f32.gmra.mxu0 %v416
    %v456 = vpop.f32.mrf.mxu0
    %v457 = vadd.f32 %v397, %v456
    %458 = vmatmul.f32.gmra.mxu0 %v419
    %v459 = vpop.f32.mrf.mxu0
    %v460 = vadd.f32 %v397, %v459
    %461 = vmatmul.f32.gmra.mxu0 %v422
    %v462 = vpop.f32.mrf.mxu0
    %v463 = vadd.f32 %v397, %v462
    %464 = vdwg.mxu0
    %v465 = vld [vmem:[#allocation2] sm:$0xff]
    %v466 = vld [vmem:[#allocation2 + $0x8] sm:$0xff]
    %v467 = vld [vmem:[#allocation2 + $0x10] sm:$0xff]
    %v468 = vld [vmem:[#allocation2 + $0x18] sm:$0xff]
    %v469 = vld [vmem:[#allocation2 + $0x20] sm:$0xff]
    %v470 = vld [vmem:[#allocation2 + $0x28] sm:$0xff]
    %v471 = vld [vmem:[#allocation2 + $0x30] sm:$0xff]
    %v472 = vld [vmem:[#allocation2 + $0x38] sm:$0xff]
    loop: start=0, step=1, limit=8
    $region146: #{spe_fem_forward.1} parent=1 // loop_pre_header
      _
    $region147: #{spe_fem_forward.1} parent=1 // loop_header
      %s474 = sphi 0, %s478
      %p475 = scmp.ge.s32.totalorder %s474, 8
      %v479 = vphi %v442, %v8622
      %v480 = vphi %v445, %v8623
      %v481 = vphi %v448, %v8624
      %v482 = vphi %v451, %v8625
      %v483 = vphi %v454, %v8626
      %v484 = vphi %v457, %v8627
      %v485 = vphi %v460, %v8628
      %v486 = vphi %v463, %v8629
    $region148: #{spe_fem_forward.1} parent=1 // loop_header_branch
      %477 = sbr.rel (%p475) target = $region152
    $region149: #{spe_fem_forward.1} parent=1 // loop_body
      %v488 = vsel %vm290, %v479, 0
      %v491 = vsel %vm290, %v480, 0
      %v494 = vsel %vm290, %v481, 0
      %v497 = vsel %vm290, %v482, 0
      %v500 = vsel %vm290, %v483, 0
      %v503 = vsel %vm290, %v484, 0
      %v506 = vsel %vm290, %v485, 0
      %v509 = vsel %vm290, %v486, 0
      %511 = vmatpush.msra.mxu0 0.0
      %512 = vmatpush.msra.mxu0 0.0
      %513 = vmatpush.msra.mxu0 0.0
      %514 = vmatpush.msra.mxu0 0.0
      %515 = vmatpush.msra.mxu0 0.0
      %516 = vmatpush.msra.mxu0 0.0
      %517 = vmatpush.msra.mxu0 0.0
      %518 = vmatpush.msra.mxu0 0.0
      %519 = vmatpush.msra.mxu0 %v472
      %520 = vmatpush.msra.mxu0 %v471
      %521 = vmatpush.msra.mxu0 %v470
      %522 = vmatpush.msra.mxu0 %v469
      %523 = vmatpush.msra.mxu0 %v468
      %524 = vmatpush.msra.mxu0 %v467
      %525 = vmatpush.msra.mxu0 %v466
      %526 = vmatpush.msra.mxu0 %v465
      %527 = vmatmul.f32.gmra.mxu0 %v488
      %v528 = vpop.f32.mrf.mxu0
      %v529 = vadd.f32 0.0, %v528
      %530 = vmatmul.f32.gmra.mxu0 %v491
      %v531 = vpop.f32.mrf.mxu0
      %v532 = vadd.f32 0.0, %v531
      %533 = vmatmul.f32.gmra.mxu0 %v494
      %v534 = vpop.f32.mrf.mxu0
      %v535 = vadd.f32 0.0, %v534
      %536 = vmatmul.f32.gmra.mxu0 %v497
      %v537 = vpop.f32.mrf.mxu0
      %v538 = vadd.f32 0.0, %v537
      %539 = vmatmul.f32.gmra.mxu0 %v500
      %v540 = vpop.f32.mrf.mxu0
      %v541 = vadd.f32 0.0, %v540
      %542 = vmatmul.f32.gmra.mxu0 %v503
      %v543 = vpop.f32.mrf.mxu0
      %v544 = vadd.f32 0.0, %v543
      %545 = vmatmul.f32.gmra.mxu0 %v506
      %v546 = vpop.f32.mrf.mxu0
      %v547 = vadd.f32 0.0, %v546
      %548 = vmatmul.f32.gmra.mxu0 %v509
      %v549 = vpop.f32.mrf.mxu0
      %v550 = vadd.f32 0.0, %v549
      %551 = vdwg.mxu0
      %v552 = vmul.f32 %v479, %v479
      %v553 = vmul.f32 %v480, %v480
      %v554 = vmul.f32 %v481, %v481
      %v555 = vmul.f32 %v482, %v482
      %v556 = vmul.f32 %v483, %v483
      %v557 = vmul.f32 %v484, %v484
      %v558 = vmul.f32 %v485, %v485
      %v559 = vmul.f32 %v486, %v486
      %v561 = vsel %vm290, %v552, 0
      %v564 = vsel %vm290, %v553, 0
      %v567 = vsel %vm290, %v554, 0
      %v570 = vsel %vm290, %v555, 0
      %v573 = vsel %vm290, %v556, 0
      %v576 = vsel %vm290, %v557, 0
      %v579 = vsel %vm290, %v558, 0
      %v582 = vsel %vm290, %v559, 0
      %584 = vmatpush.msra.mxu0 0.0
      %585 = vmatpush.msra.mxu0 0.0
      %586 = vmatpush.msra.mxu0 0.0
      %587 = vmatpush.msra.mxu0 0.0
      %588 = vmatpush.msra.mxu0 0.0
      %589 = vmatpush.msra.mxu0 0.0
      %590 = vmatpush.msra.mxu0 0.0
      %591 = vmatpush.msra.mxu0 0.0
      %592 = vmatpush.msra.mxu0 %v472
      %593 = vmatpush.msra.mxu0 %v471
      %594 = vmatpush.msra.mxu0 %v470
      %595 = vmatpush.msra.mxu0 %v469
      %596 = vmatpush.msra.mxu0 %v468
      %597 = vmatpush.msra.mxu0 %v467
      %598 = vmatpush.msra.mxu0 %v466
      %599 = vmatpush.msra.mxu0 %v465
      %600 = vmatmul.f32.gmra.mxu0 %v561
      %v601 = vpop.f32.mrf.mxu0
      %v602 = vadd.f32 0.0, %v601
      %603 = vmatmul.f32.gmra.mxu0 %v564
      %v604 = vpop.f32.mrf.mxu0
      %v605 = vadd.f32 0.0, %v604
      %606 = vmatmul.f32.gmra.mxu0 %v567
      %v607 = vpop.f32.mrf.mxu0
      %v608 = vadd.f32 0.0, %v607
      %609 = vmatmul.f32.gmra.mxu0 %v570
      %v610 = vpop.f32.mrf.mxu0
      %v611 = vadd.f32 0.0, %v610
      %612 = vmatmul.f32.gmra.mxu0 %v573
      %v613 = vpop.f32.mrf.mxu0
      %v614 = vadd.f32 0.0, %v613
      %615 = vmatmul.f32.gmra.mxu0 %v576
      %v616 = vpop.f32.mrf.mxu0
      %v617 = vadd.f32 0.0, %v616
      %618 = vmatmul.f32.gmra.mxu0 %v579
      %v619 = vpop.f32.mrf.mxu0
      %v620 = vadd.f32 0.0, %v619
      %621 = vmatmul.f32.gmra.mxu0 %v582
      %v622 = vpop.f32.mrf.mxu0
      %v623 = vadd.f32 0.0, %v622
      %624 = vdwg.mxu0
      %v625 = vmul.f32 %v529, %v529
      %v626 = vmul.f32 %v532, %v532
      %v627 = vmul.f32 %v535, %v535
      %v628 = vmul.f32 %v538, %v538
      %v629 = vmul.f32 %v541, %v541
      %v630 = vmul.f32 %v544, %v544
      %v631 = vmul.f32 %v547, %v547
      %v632 = vmul.f32 %v550, %v550
      %v633 = vsub.f32 %v602, %v625
      %v634 = vsub.f32 %v605, %v626
      %v635 = vsub.f32 %v608, %v627
      %v636 = vsub.f32 %v611, %v628
      %v637 = vsub.f32 %v614, %v629
      %v638 = vsub.f32 %v617, %v630
      %v639 = vsub.f32 %v620, %v631
      %v640 = vsub.f32 %v623, %v632
      %v641 = vsub.f32 %v479, %v529
      %v642 = vsub.f32 %v480, %v532
      %v643 = vsub.f32 %v481, %v535
      %v644 = vsub.f32 %v482, %v538
      %v645 = vsub.f32 %v483, %v541
      %v646 = vsub.f32 %v484, %v544
      %v647 = vsub.f32 %v485, %v547
      %v648 = vsub.f32 %v486, %v550
      %v649 = vadd.f32 %v633, 1e-05
      %v650 = vadd.f32 %v634, 1e-05
      %v651 = vadd.f32 %v635, 1e-05
      %v652 = vadd.f32 %v636, 1e-05
      %v653 = vadd.f32 %v637, 1e-05
      %v654 = vadd.f32 %v638, 1e-05
      %v655 = vadd.f32 %v639, 1e-05
      %v656 = vadd.f32 %v640, 1e-05
      %v657 = vrsqrt.pop %v649
      %v658 = vmul.f32 %v657, %v649
      %v659 = vmul.f32 %v658, %v657
      %v660 = vmul.f32 0.5, %v659
      %v661 = vsub.f32 1.5, %v660
      %v662 = vmul.f32 %v657, %v661
      %vm663 = vweird.f32 %v649
      %vm664 = vweird.f32 %v657
      %vm665 = vmor %vm663, %vm664
      %v666 = vsel %vm665, %v657, %v662
      %v667 = vrsqrt.pop %v650
      %v668 = vmul.f32 %v667, %v650
      %v669 = vmul.f32 %v668, %v667
      %v670 = vmul.f32 0.5, %v669
      %v671 = vsub.f32 1.5, %v670
      %v672 = vmul.f32 %v667, %v671
      %vm673 = vweird.f32 %v650
      %vm674 = vweird.f32 %v667
      %vm675 = vmor %vm673, %vm674
      %v676 = vsel %vm675, %v667, %v672
      %v677 = vrsqrt.pop %v651
      %v678 = vmul.f32 %v677, %v651
      %v679 = vmul.f32 %v678, %v677
      %v680 = vmul.f32 0.5, %v679
      %v681 = vsub.f32 1.5, %v680
      %v682 = vmul.f32 %v677, %v681
      %vm683 = vweird.f32 %v651
      %vm684 = vweird.f32 %v677
      %vm685 = vmor %vm683, %vm684
      %v686 = vsel %vm685, %v677, %v682
      %v687 = vrsqrt.pop %v652
      %v688 = vmul.f32 %v687, %v652
      %v689 = vmul.f32 %v688, %v687
      %v690 = vmul.f32 0.5, %v689
      %v691 = vsub.f32 1.5, %v690
      %v692 = vmul.f32 %v687, %v691
      %vm693 = vweird.f32 %v652
      %vm694 = vweird.f32 %v687
      %vm695 = vmor %vm693, %vm694
      %v696 = vsel %vm695, %v687, %v692
      %v697 = vrsqrt.pop %v653
      %v698 = vmul.f32 %v697, %v653
      %v699 = vmul.f32 %v698, %v697
      %v700 = vmul.f32 0.5, %v699
      %v701 = vsub.f32 1.5, %v700
      %v702 = vmul.f32 %v697, %v701
      %vm703 = vweird.f32 %v653
      %vm704 = vweird.f32 %v697
      %vm705 = vmor %vm703, %vm704
      %v706 = vsel %vm705, %v697, %v702
      %v707 = vrsqrt.pop %v654
      %v708 = vmul.f32 %v707, %v654
      %v709 = vmul.f32 %v708, %v707
      %v710 = vmul.f32 0.5, %v709
      %v711 = vsub.f32 1.5, %v710
      %v712 = vmul.f32 %v707, %v711
      %vm713 = vweird.f32 %v654
      %vm714 = vweird.f32 %v707
      %vm715 = vmor %vm713, %vm714
      %v716 = vsel %vm715, %v707, %v712
      %v717 = vrsqrt.pop %v655
      %v718 = vmul.f32 %v717, %v655
      %v719 = vmul.f32 %v718, %v717
      %v720 = vmul.f32 0.5, %v719
      %v721 = vsub.f32 1.5, %v720
      %v722 = vmul.f32 %v717, %v721
      %vm723 = vweird.f32 %v655
      %vm724 = vweird.f32 %v717
      %vm725 = vmor %vm723, %vm724
      %v726 = vsel %vm725, %v717, %v722
      %v727 = vrsqrt.pop %v656
      %v728 = vmul.f32 %v727, %v656
      %v729 = vmul.f32 %v728, %v727
      %v730 = vmul.f32 0.5, %v729
      %v731 = vsub.f32 1.5, %v730
      %v732 = vmul.f32 %v727, %v731
      %vm733 = vweird.f32 %v656
      %vm734 = vweird.f32 %v727
      %vm735 = vmor %vm733, %vm734
      %v736 = vsel %vm735, %v727, %v732
      %v737 = vmul.f32 %v641, %v666
      %v738 = vmul.f32 %v642, %v676
      %v739 = vmul.f32 %v643, %v686
      %v740 = vmul.f32 %v644, %v696
      %v741 = vmul.f32 %v645, %v706
      %v742 = vmul.f32 %v646, %v716
      %v743 = vmul.f32 %v647, %v726
      %v744 = vmul.f32 %v648, %v736
      %s745 = scalar_lea.vmem %s15, %s474
      %v746 = vld [vmem:[%s745] sm:$0x1]
      %v748 = vperm.slane %v746, 0
      %v750 = vmul.f32 %v737, %v748
      %v751 = vmul.f32 %v738, %v748
      %v752 = vmul.f32 %v739, %v748
      %v753 = vmul.f32 %v740, %v748
      %v754 = vmul.f32 %v741, %v748
      %v755 = vmul.f32 %v742, %v748
      %v756 = vmul.f32 %v743, %v748
      %v757 = vmul.f32 %v744, %v748
      %s758 = scalar_lea.vmem %s17, %s474
      %v759 = vld [vmem:[%s758] sm:$0x1]
      %v761 = vperm.slane %v759, 0
      %v763 = vadd.f32 %v750, %v761
      %v764 = vadd.f32 %v751, %v761
      %v765 = vadd.f32 %v752, %v761
      %v766 = vadd.f32 %v753, %v761
      %v767 = vadd.f32 %v754, %v761
      %v768 = vadd.f32 %v755, %v761
      %v769 = vadd.f32 %v756, %v761
      %v770 = vadd.f32 %v757, %v761
      %s771 = smul.u32 %s474, 64
      %s772 = scalar_lea.vmem %s19, %s771
      %v773 = vld [vmem:[%s772] sm:$0xff]
      %v774 = vld [vmem:[%s772 + $0x8] sm:$0xff]
      %v775 = vld [vmem:[%s772 + $0x10] sm:$0xff]
      %v776 = vld [vmem:[%s772 + $0x18] sm:$0xff]
      %v777 = vld [vmem:[%s772 + $0x20] sm:$0xff]
      %v778 = vld [vmem:[%s772 + $0x28] sm:$0xff]
      %v779 = vld [vmem:[%s772 + $0x30] sm:$0xff]
      %v780 = vld [vmem:[%s772 + $0x38] sm:$0xff]
      %v782 = vsel %vm290, %v763, 0
      %v785 = vsel %vm290, %v764, 0
      %v788 = vsel %vm290, %v765, 0
      %v791 = vsel %vm290, %v766, 0
      %v794 = vsel %vm290, %v767, 0
      %v797 = vsel %vm290, %v768, 0
      %v800 = vsel %vm290, %v769, 0
      %v803 = vsel %vm290, %v770, 0
      %805 = vmatpush.msra.mxu0 0.0
      %806 = vmatpush.msra.mxu0 0.0
      %807 = vmatpush.msra.mxu0 0.0
      %808 = vmatpush.msra.mxu0 0.0
      %809 = vmatpush.msra.mxu0 0.0
      %810 = vmatpush.msra.mxu0 0.0
      %811 = vmatpush.msra.mxu0 0.0
      %812 = vmatpush.msra.mxu0 0.0
      %813 = vmatpush.msra.mxu0 %v780
      %814 = vmatpush.msra.mxu0 %v779
      %815 = vmatpush.msra.mxu0 %v778
      %816 = vmatpush.msra.mxu0 %v777
      %817 = vmatpush.msra.mxu0 %v776
      %818 = vmatpush.msra.mxu0 %v775
      %819 = vmatpush.msra.mxu0 %v774
      %820 = vmatpush.msra.mxu0 %v773
      %821 = vmatmul.f32.gmra.mxu0 %v782
      %v822 = vpop.f32.mrf.mxu0
      %v823 = vadd.f32 0.0, %v822
      %824 = vmatmul.f32.gmra.mxu0 %v785
      %v825 = vpop.f32.mrf.mxu0
      %v826 = vadd.f32 0.0, %v825
      %827 = vmatmul.f32.gmra.mxu0 %v788
      %v828 = vpop.f32.mrf.mxu0
      %v829 = vadd.f32 0.0, %v828
      %830 = vmatmul.f32.gmra.mxu0 %v791
      %v831 = vpop.f32.mrf.mxu0
      %v832 = vadd.f32 0.0, %v831
      %833 = vmatmul.f32.gmra.mxu0 %v794
      %v834 = vpop.f32.mrf.mxu0
      %v835 = vadd.f32 0.0, %v834
      %836 = vmatmul.f32.gmra.mxu0 %v797
      %v837 = vpop.f32.mrf.mxu0
      %v838 = vadd.f32 0.0, %v837
      %839 = vmatmul.f32.gmra.mxu0 %v800
      %v840 = vpop.f32.mrf.mxu0
      %v841 = vadd.f32 0.0, %v840
      %842 = vmatmul.f32.gmra.mxu0 %v803
      %v843 = vpop.f32.mrf.mxu0
      %v844 = vadd.f32 0.0, %v843
      %845 = vdwg.mxu0
      %s846 = scalar_lea.vmem %s21, %s771
      %v847 = vld [vmem:[%s846] sm:$0xff]
      %v848 = vld [vmem:[%s846 + $0x8] sm:$0xff]
      %v849 = vld [vmem:[%s846 + $0x10] sm:$0xff]
      %v850 = vld [vmem:[%s846 + $0x18] sm:$0xff]
      %v851 = vld [vmem:[%s846 + $0x20] sm:$0xff]
      %v852 = vld [vmem:[%s846 + $0x28] sm:$0xff]
      %v853 = vld [vmem:[%s846 + $0x30] sm:$0xff]
      %v854 = vld [vmem:[%s846 + $0x38] sm:$0xff]
      %855 = vmatpush.msra.mxu0 0.0
      %856 = vmatpush.msra.mxu0 0.0
      %857 = vmatpush.msra.mxu0 0.0
      %858 = vmatpush.msra.mxu0 0.0
      %859 = vmatpush.msra.mxu0 0.0
      %860 = vmatpush.msra.mxu0 0.0
      %861 = vmatpush.msra.mxu0 0.0
      %862 = vmatpush.msra.mxu0 0.0
      %863 = vmatpush.msra.mxu0 %v854
      %864 = vmatpush.msra.mxu0 %v853
      %865 = vmatpush.msra.mxu0 %v852
      %866 = vmatpush.msra.mxu0 %v851
      %867 = vmatpush.msra.mxu0 %v850
      %868 = vmatpush.msra.mxu0 %v849
      %869 = vmatpush.msra.mxu0 %v848
      %870 = vmatpush.msra.mxu0 %v847
      %871 = vmatmul.f32.gmra.mxu0 %v782
      %v872 = vpop.f32.mrf.mxu0
      %v873 = vadd.f32 0.0, %v872
      %874 = vmatmul.f32.gmra.mxu0 %v785
      %v875 = vpop.f32.mrf.mxu0
      %v876 = vadd.f32 0.0, %v875
      %877 = vmatmul.f32.gmra.mxu0 %v788
      %v878 = vpop.f32.mrf.mxu0
      %v879 = vadd.f32 0.0, %v878
      %880 = vmatmul.f32.gmra.mxu0 %v791
      %v881 = vpop.f32.mrf.mxu0
      %v882 = vadd.f32 0.0, %v881
      %883 = vmatmul.f32.gmra.mxu0 %v794
      %v884 = vpop.f32.mrf.mxu0
      %v885 = vadd.f32 0.0, %v884
      %886 = vmatmul.f32.gmra.mxu0 %v797
      %v887 = vpop.f32.mrf.mxu0
      %v888 = vadd.f32 0.0, %v887
      %889 = vmatmul.f32.gmra.mxu0 %v800
      %v890 = vpop.f32.mrf.mxu0
      %v891 = vadd.f32 0.0, %v890
      %892 = vmatmul.f32.gmra.mxu0 %v803
      %v893 = vpop.f32.mrf.mxu0
      %v894 = vadd.f32 0.0, %v893
      %895 = vdwg.mxu0
      %s896 = smul.u32 %s474, 4
      %s897 = scalar_lea.vmem %s23, %s896
      %v898 = vld [vmem:[%s897] sm:$0x7]
      %s899 = scalar_lea.vmem %s25, %s474
      %v900 = vld [vmem:[%s899] sm:$0x1]
      %vm909 = vcmask 1041408
      %v910 = vrot.slane %v823, 6
      %v911 = vrot.slane %v826, 6
      %v912 = vsel %vm909, %v910, %v911
      %v913 = vrot.slane %v829, 6
      %v914 = vsel %vm909, %v911, %v913
      %v915 = vrot.slane %v832, 6
      %v916 = vsel %vm909, %v913, %v915
      %v917 = vrot.slane %v835, 6
      %v918 = vsel %vm909, %v915, %v917
      %v919 = vrot.slane %v838, 6
      %v920 = vsel %vm909, %v917, %v919
      %v921 = vrot.slane %v841, 6
      %v922 = vsel %vm909, %v919, %v921
      %v923 = vrot.slane %v844, 6
      %v924 = vsel %vm909, %v921, %v923
      %v934 = vsel %vm909, 0.0, %v910
      %v935 = vperm.slane %v898, 0
      %v936 = vmul.f32 %v935, %v934
      %v937 = vmul.f32 %v935, %v912
      %v938 = vmul.f32 %v935, %v914
      %v939 = vmul.f32 %v935, %v916
      %v940 = vmul.f32 %v935, %v918
      %v941 = vmul.f32 %v935, %v920
      %v942 = vmul.f32 %v935, %v922
      %v943 = vmul.f32 %v935, %v924
      %v944 = vperm.slane %v898, 1
      %v945 = vmul.f32 %v944, %v934
      %v946 = vmul.f32 %v944, %v912
      %v947 = vmul.f32 %v944, %v914
      %v948 = vmul.f32 %v944, %v916
      %v949 = vmul.f32 %v944, %v918
      %v950 = vmul.f32 %v944, %v920
      %v951 = vmul.f32 %v944, %v922
      %v952 = vmul.f32 %v944, %v924
      %v953 = vmul.f32 %v944, %v923
      %vm963 = vcmask 1046528
      %v964 = vrot.slane %v945, 1
      %v965 = vrot.slane %v946, 1
      %v966 = vsel %vm963, %v964, %v965
      %v967 = vrot.slane %v947, 1
      %v968 = vsel %vm963, %v965, %v967
      %v969 = vrot.slane %v948, 1
      %v970 = vsel %vm963, %v967, %v969
      %v971 = vrot.slane %v949, 1
      %v972 = vsel %vm963, %v969, %v971
      %v973 = vrot.slane %v950, 1
      %v974 = vsel %vm963, %v971, %v973
      %v975 = vrot.slane %v951, 1
      %v976 = vsel %vm963, %v973, %v975
      %v977 = vrot.slane %v952, 1
      %v978 = vsel %vm963, %v975, %v977
      %v979 = vrot.slane %v953, 1
      %v980 = vsel %vm963, %v977, %v979
      %v989 = vadd.f32 %v936, %v966
      %v990 = vadd.f32 %v937, %v968
      %v991 = vadd.f32 %v938, %v970
      %v992 = vadd.f32 %v939, %v972
      %v993 = vadd.f32 %v940, %v974
      %v994 = vadd.f32 %v941, %v976
      %v995 = vadd.f32 %v942, %v978
      %v996 = vadd.f32 %v943, %v980
      %v997 = vperm.slane %v898, 2
      %v998 = vmul.f32 %v997, %v823
      %v999 = vmul.f32 %v997, %v826
      %v1000 = vmul.f32 %v997, %v829
      %v1001 = vmul.f32 %v997, %v832
      %v1002 = vmul.f32 %v997, %v835
      %v1003 = vmul.f32 %v997, %v838
      %v1004 = vmul.f32 %v997, %v841
      %v1005 = vmul.f32 %v997, %v844
      %v1006 = vadd.f32 %v989, %v998
      %v1007 = vadd.f32 %v990, %v999
      %v1008 = vadd.f32 %v991, %v1000
      %v1009 = vadd.f32 %v992, %v1001
      %v1010 = vadd.f32 %v993, %v1002
      %v1011 = vadd.f32 %v994, %v1003
      %v1012 = vadd.f32 %v995, %v1004
      %v1013 = vadd.f32 %v996, %v1005
      %v1015 = vperm.slane %v900, 0
      %v1017 = vadd.f32 %v1006, %v1015
      %v1018 = vadd.f32 %v1007, %v1015
      %v1019 = vadd.f32 %v1008, %v1015
      %v1020 = vadd.f32 %v1009, %v1015
      %v1021 = vadd.f32 %v1010, %v1015
      %v1022 = vadd.f32 %v1011, %v1015
      %v1023 = vadd.f32 %v1012, %v1015
      %v1024 = vadd.f32 %v1013, %v1015
      %v1025 = vxor.u32 %v1017, 2147483648
      %v1026 = vxor.u32 %v1018, 2147483648
      %v1027 = vxor.u32 %v1019, 2147483648
      %v1028 = vxor.u32 %v1020, 2147483648
      %v1029 = vxor.u32 %v1021, 2147483648
      %v1030 = vxor.u32 %v1022, 2147483648
      %v1031 = vxor.u32 %v1023, 2147483648
      %v1032 = vxor.u32 %v1024, 2147483648
      %v1033 = vmul.f32 %v1025, 1.442695
      %v1034 = vpow.pop %v1033
      %v1035 = vmul.f32 %v1026, 1.442695
      %v1036 = vpow.pop %v1035
      %v1037 = vmul.f32 %v1027, 1.442695
      %v1038 = vpow.pop %v1037
      %v1039 = vmul.f32 %v1028, 1.442695
      %v1040 = vpow.pop %v1039
      %v1041 = vmul.f32 %v1029, 1.442695
      %v1042 = vpow.pop %v1041
      %v1043 = vmul.f32 %v1030, 1.442695
      %v1044 = vpow.pop %v1043
      %v1045 = vmul.f32 %v1031, 1.442695
      %v1046 = vpow.pop %v1045
      %v1047 = vmul.f32 %v1032, 1.442695
      %v1048 = vpow.pop %v1047
      %v1049 = vadd.f32 %v1034, 1.0
      %v1050 = vadd.f32 %v1036, 1.0
      %v1051 = vadd.f32 %v1038, 1.0
      %v1052 = vadd.f32 %v1040, 1.0
      %v1053 = vadd.f32 %v1042, 1.0
      %v1054 = vadd.f32 %v1044, 1.0
      %v1055 = vadd.f32 %v1046, 1.0
      %v1056 = vadd.f32 %v1048, 1.0
      %v1057 = vrcp.pop %v1049
      %v1058 = vmul.f32 %v1049, %v1057
      %v1059 = vsub.f32 1.0, %v1058
      %v1060 = vmul.f32 %v1057, %v1059
      %v1061 = vadd.f32 %v1057, %v1060
      %vm1062 = vweird.f32 %v1049
      %vm1063 = vweird.f32 %v1057
      %vm1064 = vmor %vm1062, %vm1063
      %v1065 = vsel %vm1064, %v1057, %v1061
      %v1066 = vand.u32 2147483647, %v1049
      %vm1067 = vcmp.eq.f32.partialorder %v1066, 8.507059e+37
      %v1068 = vand.u32 %v1049, 2147483648
      %v1069 = vor.u32 1.1754944e-38, %v1068
      %v1070 = vsel %vm1067, %v1069, %v1065
      %v1071 = vmul.f32 1.0, %v1070
      %v1072 = vrcp.pop %v1050
      %v1073 = vmul.f32 %v1050, %v1072
      %v1074 = vsub.f32 1.0, %v1073
      %v1075 = vmul.f32 %v1072, %v1074
      %v1076 = vadd.f32 %v1072, %v1075
      %vm1077 = vweird.f32 %v1050
      %vm1078 = vweird.f32 %v1072
      %vm1079 = vmor %vm1077, %vm1078
      %v1080 = vsel %vm1079, %v1072, %v1076
      %v1081 = vand.u32 2147483647, %v1050
      %vm1082 = vcmp.eq.f32.partialorder %v1081, 8.507059e+37
      %v1083 = vand.u32 %v1050, 2147483648
      %v1084 = vor.u32 1.1754944e-38, %v1083
      %v1085 = vsel %vm1082, %v1084, %v1080
      %v1086 = vmul.f32 1.0, %v1085
      %v1087 = vrcp.pop %v1051
      %v1088 = vmul.f32 %v1051, %v1087
      %v1089 = vsub.f32 1.0, %v1088
      %v1090 = vmul.f32 %v1087, %v1089
      %v1091 = vadd.f32 %v1087, %v1090
      %vm1092 = vweird.f32 %v1051
      %vm1093 = vweird.f32 %v1087
      %vm1094 = vmor %vm1092, %vm1093
      %v1095 = vsel %vm1094, %v1087, %v1091
      %v1096 = vand.u32 2147483647, %v1051
      %vm1097 = vcmp.eq.f32.partialorder %v1096, 8.507059e+37
      %v1098 = vand.u32 %v1051, 2147483648
      %v1099 = vor.u32 1.1754944e-38, %v1098
      %v1100 = vsel %vm1097, %v1099, %v1095
      %v1101 = vmul.f32 1.0, %v1100
      %v1102 = vrcp.pop %v1052
      %v1103 = vmul.f32 %v1052, %v1102
      %v1104 = vsub.f32 1.0, %v1103
      %v1105 = vmul.f32 %v1102, %v1104
      %v1106 = vadd.f32 %v1102, %v1105
      %vm1107 = vweird.f32 %v1052
      %vm1108 = vweird.f32 %v1102
      %vm1109 = vmor %vm1107, %vm1108
      %v1110 = vsel %vm1109, %v1102, %v1106
      %v1111 = vand.u32 2147483647, %v1052
      %vm1112 = vcmp.eq.f32.partialorder %v1111, 8.507059e+37
      %v1113 = vand.u32 %v1052, 2147483648
      %v1114 = vor.u32 1.1754944e-38, %v1113
      %v1115 = vsel %vm1112, %v1114, %v1110
      %v1116 = vmul.f32 1.0, %v1115
      %v1117 = vrcp.pop %v1053
      %v1118 = vmul.f32 %v1053, %v1117
      %v1119 = vsub.f32 1.0, %v1118
      %v1120 = vmul.f32 %v1117, %v1119
      %v1121 = vadd.f32 %v1117, %v1120
      %vm1122 = vweird.f32 %v1053
      %vm1123 = vweird.f32 %v1117
      %vm1124 = vmor %vm1122, %vm1123
      %v1125 = vsel %vm1124, %v1117, %v1121
      %v1126 = vand.u32 2147483647, %v1053
      %vm1127 = vcmp.eq.f32.partialorder %v1126, 8.507059e+37
      %v1128 = vand.u32 %v1053, 2147483648
      %v1129 = vor.u32 1.1754944e-38, %v1128
      %v1130 = vsel %vm1127, %v1129, %v1125
      %v1131 = vmul.f32 1.0, %v1130
      %v1132 = vrcp.pop %v1054
      %v1133 = vmul.f32 %v1054, %v1132
      %v1134 = vsub.f32 1.0, %v1133
      %v1135 = vmul.f32 %v1132, %v1134
      %v1136 = vadd.f32 %v1132, %v1135
      %vm1137 = vweird.f32 %v1054
      %vm1138 = vweird.f32 %v1132
      %vm1139 = vmor %vm1137, %vm1138
      %v1140 = vsel %vm1139, %v1132, %v1136
      %v1141 = vand.u32 2147483647, %v1054
      %vm1142 = vcmp.eq.f32.partialorder %v1141, 8.507059e+37
      %v1143 = vand.u32 %v1054, 2147483648
      %v1144 = vor.u32 1.1754944e-38, %v1143
      %v1145 = vsel %vm1142, %v1144, %v1140
      %v1146 = vmul.f32 1.0, %v1145
      %v1147 = vrcp.pop %v1055
      %v1148 = vmul.f32 %v1055, %v1147
      %v1149 = vsub.f32 1.0, %v1148
      %v1150 = vmul.f32 %v1147, %v1149
      %v1151 = vadd.f32 %v1147, %v1150
      %vm1152 = vweird.f32 %v1055
      %vm1153 = vweird.f32 %v1147
      %vm1154 = vmor %vm1152, %vm1153
      %v1155 = vsel %vm1154, %v1147, %v1151
      %v1156 = vand.u32 2147483647, %v1055
      %vm1157 = vcmp.eq.f32.partialorder %v1156, 8.507059e+37
      %v1158 = vand.u32 %v1055, 2147483648
      %v1159 = vor.u32 1.1754944e-38, %v1158
      %v1160 = vsel %vm1157, %v1159, %v1155
      %v1161 = vmul.f32 1.0, %v1160
      %v1162 = vrcp.pop %v1056
      %v1163 = vmul.f32 %v1056, %v1162
      %v1164 = vsub.f32 1.0, %v1163
      %v1165 = vmul.f32 %v1162, %v1164
      %v1166 = vadd.f32 %v1162, %v1165
      %vm1167 = vweird.f32 %v1056
      %vm1168 = vweird.f32 %v1162
      %vm1169 = vmor %vm1167, %vm1168
      %v1170 = vsel %vm1169, %v1162, %v1166
      %v1171 = vand.u32 2147483647, %v1056
      %vm1172 = vcmp.eq.f32.partialorder %v1171, 8.507059e+37
      %v1173 = vand.u32 %v1056, 2147483648
      %v1174 = vor.u32 1.1754944e-38, %v1173
      %v1175 = vsel %vm1172, %v1174, %v1170
      %v1176 = vmul.f32 1.0, %v1175
      %v1177 = vmul.f32 %v1017, %v1071
      %v1178 = vmul.f32 %v1018, %v1086
      %v1179 = vmul.f32 %v1019, %v1101
      %v1180 = vmul.f32 %v1020, %v1116
      %v1181 = vmul.f32 %v1021, %v1131
      %v1182 = vmul.f32 %v1022, %v1146
      %v1183 = vmul.f32 %v1023, %v1161
      %v1184 = vmul.f32 %v1024, %v1176
      %s1185 = smul.u32 %s474, 128
      %s1186 = scalar_lea.vmem %s27, %s1185
      %v1187 = vld [vmem:[%s1186] sm:$0xff]
      %v1188 = vld [vmem:[%s1186 + $0x8] sm:$0xff]
      %v1189 = vld [vmem:[%s1186 + $0x10] sm:$0xff]
      %v1190 = vld [vmem:[%s1186 + $0x18] sm:$0xff]
      %v1191 = vld [vmem:[%s1186 + $0x20] sm:$0xff]
      %v1192 = vld [vmem:[%s1186 + $0x28] sm:$0xff]
      %v1193 = vld [vmem:[%s1186 + $0x30] sm:$0xff]
      %v1194 = vld [vmem:[%s1186 + $0x38] sm:$0xff]
      %v1195 = vld [vmem:[%s1186 + $0x40] sm:$0xff]
      %v1196 = vld [vmem:[%s1186 + $0x48] sm:$0xff]
      %v1197 = vld [vmem:[%s1186 + $0x50] sm:$0xff]
      %v1198 = vld [vmem:[%s1186 + $0x58] sm:$0xff]
      %v1199 = vld [vmem:[%s1186 + $0x60] sm:$0xff]
      %v1200 = vld [vmem:[%s1186 + $0x68] sm:$0xff]
      %v1201 = vld [vmem:[%s1186 + $0x70] sm:$0xff]
      %v1202 = vld [vmem:[%s1186 + $0x78] sm:$0xff]
      %s1203 = scalar_lea.vmem %s29, %s474
      %v1204 = vld [vmem:[%s1203] sm:$0x1]
      %v1206 = vperm.slane %v1204, 0
      %1208 = vmatpush.msra.mxu0 %v1202
      %1209 = vmatpush.msra.mxu0 %v1201
      %1210 = vmatpush.msra.mxu0 %v1200
      %1211 = vmatpush.msra.mxu0 %v1199
      %1212 = vmatpush.msra.mxu0 %v1198
      %1213 = vmatpush.msra.mxu0 %v1197
      %1214 = vmatpush.msra.mxu0 %v1196
      %1215 = vmatpush.msra.mxu0 %v1195
      %1216 = vmatpush.msra.mxu0 %v1194
      %1217 = vmatpush.msra.mxu0 %v1193
      %1218 = vmatpush.msra.mxu0 %v1192
      %1219 = vmatpush.msra.mxu0 %v1191
      %1220 = vmatpush.msra.mxu0 %v1190
      %1221 = vmatpush.msra.mxu0 %v1189
      %1222 = vmatpush.msra.mxu0 %v1188
      %1223 = vmatpush.msra.mxu0 %v1187
      %1224 = vmatmul.f32.gmra.mxu0 %v1177
      %v1225 = vpop.f32.mrf.mxu0
      %v1226 = vadd.f32 %v1206, %v1225
      %1227 = vmatmul.f32.gmra.mxu0 %v1178
      %v1228 = vpop.f32.mrf.mxu0
      %v1229 = vadd.f32 %v1206, %v1228
      %1230 = vmatmul.f32.gmra.mxu0 %v1179
      %v1231 = vpop.f32.mrf.mxu0
      %v1232 = vadd.f32 %v1206, %v1231
      %1233 = vmatmul.f32.gmra.mxu0 %v1180
      %v1234 = vpop.f32.mrf.mxu0
      %v1235 = vadd.f32 %v1206, %v1234
      %1236 = vmatmul.f32.gmra.mxu0 %v1181
      %v1237 = vpop.f32.mrf.mxu0
      %v1238 = vadd.f32 %v1206, %v1237
      %1239 = vmatmul.f32.gmra.mxu0 %v1182
      %v1240 = vpop.f32.mrf.mxu0
      %v1241 = vadd.f32 %v1206, %v1240
      %1242 = vmatmul.f32.gmra.mxu0 %v1183
      %v1243 = vpop.f32.mrf.mxu0
      %v1244 = vadd.f32 %v1206, %v1243
      %1245 = vmatmul.f32.gmra.mxu0 %v1184
      %v1246 = vpop.f32.mrf.mxu0
      %v1247 = vadd.f32 %v1206, %v1246
      %1248 = vdwg.mxu0
      %v1249 = vmax.f32 %v1226, 0.0
      %v1250 = vmax.f32 %v1229, 0.0
      %v1251 = vmax.f32 %v1232, 0.0
      %v1252 = vmax.f32 %v1235, 0.0
      %v1253 = vmax.f32 %v1238, 0.0
      %v1254 = vmax.f32 %v1241, 0.0
      %v1255 = vmax.f32 %v1244, 0.0
      %v1256 = vmax.f32 %v1247, 0.0
      %vm1257 = vcmp.ne.f32.partialorder %v1226, %v1226
      %vm1258 = vcmp.ne.f32.partialorder %v1229, %v1229
      %vm1259 = vcmp.ne.f32.partialorder %v1232, %v1232
      %vm1260 = vcmp.ne.f32.partialorder %v1235, %v1235
      %vm1261 = vcmp.ne.f32.partialorder %v1238, %v1238
      %vm1262 = vcmp.ne.f32.partialorder %v1241, %v1241
      %vm1263 = vcmp.ne.f32.partialorder %v1244, %v1244
      %vm1264 = vcmp.ne.f32.partialorder %v1247, %v1247
      %v1265 = vadd.f32 %v1226, 0.0
      %v1266 = vadd.f32 %v1229, 0.0
      %v1267 = vadd.f32 %v1232, 0.0
      %v1268 = vadd.f32 %v1235, 0.0
      %v1269 = vadd.f32 %v1238, 0.0
      %v1270 = vadd.f32 %v1241, 0.0
      %v1271 = vadd.f32 %v1244, 0.0
      %v1272 = vadd.f32 %v1247, 0.0
      %v1273 = vand.u32 2147483647, %v1226
      %v1274 = vand.u32 2147483647, %v1229
      %v1275 = vand.u32 2147483647, %v1232
      %v1276 = vand.u32 2147483647, %v1235
      %v1277 = vand.u32 2147483647, %v1238
      %v1278 = vand.u32 2147483647, %v1241
      %v1279 = vand.u32 2147483647, %v1244
      %v1280 = vand.u32 2147483647, %v1247
      %v1281 = vsub.f32 0.0, %v1273
      %v1282 = vsub.f32 0.0, %v1274
      %v1283 = vsub.f32 0.0, %v1275
      %v1284 = vsub.f32 0.0, %v1276
      %v1285 = vsub.f32 0.0, %v1277
      %v1286 = vsub.f32 0.0, %v1278
      %v1287 = vsub.f32 0.0, %v1279
      %v1288 = vsub.f32 0.0, %v1280
      %v1289 = vmul.f32 %v1281, 1.442695
      %v1290 = vpow.pop %v1289
      %v1291 = vmul.f32 %v1282, 1.442695
      %v1292 = vpow.pop %v1291
      %v1293 = vmul.f32 %v1283, 1.442695
      %v1294 = vpow.pop %v1293
      %v1295 = vmul.f32 %v1284, 1.442695
      %v1296 = vpow.pop %v1295
      %v1297 = vmul.f32 %v1285, 1.442695
      %v1298 = vpow.pop %v1297
      %v1299 = vmul.f32 %v1286, 1.442695
      %v1300 = vpow.pop %v1299
      %v1301 = vmul.f32 %v1287, 1.442695
      %v1302 = vpow.pop %v1301
      %v1303 = vmul.f32 %v1288, 1.442695
      %v1304 = vpow.pop %v1303
      %v1305 = vadd.f32 %v1290, 1.0
      %v1306 = vlog2.pop %v1305
      %v1307 = vmul.f32 %v1306, 0.6931472
      %v1308 = vmul.f32 -0.5, %v1290
      %v1309 = vadd.f32 %v1308, 1.0
      %v1310 = vmul.f32 %v1309, %v1290
      %v1311 = vand.u32 2147483647, %v1290
      %vm1312 = vcmp.lt.f32.partialorder %v1311, 0.0004427343
      %v1313 = vsel %vm1312, %v1310, %v1307
      %v1314 = vadd.f32 %v1292, 1.0
      %v1315 = vlog2.pop %v1314
      %v1316 = vmul.f32 %v1315, 0.6931472
      %v1317 = vmul.f32 -0.5, %v1292
      %v1318 = vadd.f32 %v1317, 1.0
      %v1319 = vmul.f32 %v1318, %v1292
      %v1320 = vand.u32 2147483647, %v1292
      %vm1321 = vcmp.lt.f32.partialorder %v1320, 0.0004427343
      %v1322 = vsel %vm1321, %v1319, %v1316
      %v1323 = vadd.f32 %v1294, 1.0
      %v1324 = vlog2.pop %v1323
      %v1325 = vmul.f32 %v1324, 0.6931472
      %v1326 = vmul.f32 -0.5, %v1294
      %v1327 = vadd.f32 %v1326, 1.0
      %v1328 = vmul.f32 %v1327, %v1294
      %v1329 = vand.u32 2147483647, %v1294
      %vm1330 = vcmp.lt.f32.partialorder %v1329, 0.0004427343
      %v1331 = vsel %vm1330, %v1328, %v1325
      %v1332 = vadd.f32 %v1296, 1.0
      %v1333 = vlog2.pop %v1332
      %v1334 = vmul.f32 %v1333, 0.6931472
      %v1335 = vmul.f32 -0.5, %v1296
      %v1336 = vadd.f32 %v1335, 1.0
      %v1337 = vmul.f32 %v1336, %v1296
      %v1338 = vand.u32 2147483647, %v1296
      %vm1339 = vcmp.lt.f32.partialorder %v1338, 0.0004427343
      %v1340 = vsel %vm1339, %v1337, %v1334
      %v1341 = vadd.f32 %v1298, 1.0
      %v1342 = vlog2.pop %v1341
      %v1343 = vmul.f32 %v1342, 0.6931472
      %v1344 = vmul.f32 -0.5, %v1298
      %v1345 = vadd.f32 %v1344, 1.0
      %v1346 = vmul.f32 %v1345, %v1298
      %v1347 = vand.u32 2147483647, %v1298
      %vm1348 = vcmp.lt.f32.partialorder %v1347, 0.0004427343
      %v1349 = vsel %vm1348, %v1346, %v1343
      %v1350 = vadd.f32 %v1300, 1.0
      %v1351 = vlog2.pop %v1350
      %v1352 = vmul.f32 %v1351, 0.6931472
      %v1353 = vmul.f32 -0.5, %v1300
      %v1354 = vadd.f32 %v1353, 1.0
      %v1355 = vmul.f32 %v1354, %v1300
      %v1356 = vand.u32 2147483647, %v1300
      %vm1357 = vcmp.lt.f32.partialorder %v1356, 0.0004427343
      %v1358 = vsel %vm1357, %v1355, %v1352
      %v1359 = vadd.f32 %v1302, 1.0
      %v1360 = vlog2.pop %v1359
      %v1361 = vmul.f32 %v1360, 0.6931472
      %v1362 = vmul.f32 -0.5, %v1302
      %v1363 = vadd.f32 %v1362, 1.0
      %v1364 = vmul.f32 %v1363, %v1302
      %v1365 = vand.u32 2147483647, %v1302
      %vm1366 = vcmp.lt.f32.partialorder %v1365, 0.0004427343
      %v1367 = vsel %vm1366, %v1364, %v1361
      %v1368 = vadd.f32 %v1304, 1.0
      %v1369 = vlog2.pop %v1368
      %v1370 = vmul.f32 %v1369, 0.6931472
      %v1371 = vmul.f32 -0.5, %v1304
      %v1372 = vadd.f32 %v1371, 1.0
      %v1373 = vmul.f32 %v1372, %v1304
      %v1374 = vand.u32 2147483647, %v1304
      %vm1375 = vcmp.lt.f32.partialorder %v1374, 0.0004427343
      %v1376 = vsel %vm1375, %v1373, %v1370
      %v1377 = vadd.f32 %v1249, %v1313
      %v1378 = vadd.f32 %v1250, %v1322
      %v1379 = vadd.f32 %v1251, %v1331
      %v1380 = vadd.f32 %v1252, %v1340
      %v1381 = vadd.f32 %v1253, %v1349
      %v1382 = vadd.f32 %v1254, %v1358
      %v1383 = vadd.f32 %v1255, %v1367
      %v1384 = vadd.f32 %v1256, %v1376
      %v1385 = vsel %vm1257, %v1265, %v1377
      %v1386 = vsel %vm1258, %v1266, %v1378
      %v1387 = vsel %vm1259, %v1267, %v1379
      %v1388 = vsel %vm1260, %v1268, %v1380
      %v1389 = vsel %vm1261, %v1269, %v1381
      %v1390 = vsel %vm1262, %v1270, %v1382
      %v1391 = vsel %vm1263, %v1271, %v1383
      %v1392 = vsel %vm1264, %v1272, %v1384
      %s1393 = scalar_lea.vmem %s31, %s1185
      %v1394 = vld [vmem:[%s1393] sm:$0xff]
      %v1395 = vld [vmem:[%s1393 + $0x8] sm:$0xff]
      %v1396 = vld [vmem:[%s1393 + $0x10] sm:$0xff]
      %v1397 = vld [vmem:[%s1393 + $0x18] sm:$0xff]
      %v1398 = vld [vmem:[%s1393 + $0x20] sm:$0xff]
      %v1399 = vld [vmem:[%s1393 + $0x28] sm:$0xff]
      %v1400 = vld [vmem:[%s1393 + $0x30] sm:$0xff]
      %v1401 = vld [vmem:[%s1393 + $0x38] sm:$0xff]
      %v1402 = vld [vmem:[%s1393 + $0x40] sm:$0xff]
      %v1403 = vld [vmem:[%s1393 + $0x48] sm:$0xff]
      %v1404 = vld [vmem:[%s1393 + $0x50] sm:$0xff]
      %v1405 = vld [vmem:[%s1393 + $0x58] sm:$0xff]
      %v1406 = vld [vmem:[%s1393 + $0x60] sm:$0xff]
      %v1407 = vld [vmem:[%s1393 + $0x68] sm:$0xff]
      %v1408 = vld [vmem:[%s1393 + $0x70] sm:$0xff]
      %v1409 = vld [vmem:[%s1393 + $0x78] sm:$0xff]
      %1410 = vmatpush.msra.mxu0 %v1409
      %1411 = vmatpush.msra.mxu0 %v1408
      %1412 = vmatpush.msra.mxu0 %v1407
      %1413 = vmatpush.msra.mxu0 %v1406
      %1414 = vmatpush.msra.mxu0 %v1405
      %1415 = vmatpush.msra.mxu0 %v1404
      %1416 = vmatpush.msra.mxu0 %v1403
      %1417 = vmatpush.msra.mxu0 %v1402
      %1418 = vmatpush.msra.mxu0 %v1401
      %1419 = vmatpush.msra.mxu0 %v1400
      %1420 = vmatpush.msra.mxu0 %v1399
      %1421 = vmatpush.msra.mxu0 %v1398
      %1422 = vmatpush.msra.mxu0 %v1397
      %1423 = vmatpush.msra.mxu0 %v1396
      %1424 = vmatpush.msra.mxu0 %v1395
      %1425 = vmatpush.msra.mxu0 %v1394
      %1426 = vmatmul.f32.gmra.mxu0 %v1177
      %v1427 = vpop.f32.mrf.mxu0
      %v1428 = vadd.f32 0.0, %v1427
      %1429 = vmatmul.f32.gmra.mxu0 %v1178
      %v1430 = vpop.f32.mrf.mxu0
      %v1431 = vadd.f32 0.0, %v1430
      %1432 = vmatmul.f32.gmra.mxu0 %v1179
      %v1433 = vpop.f32.mrf.mxu0
      %v1434 = vadd.f32 0.0, %v1433
      %1435 = vmatmul.f32.gmra.mxu0 %v1180
      %v1436 = vpop.f32.mrf.mxu0
      %v1437 = vadd.f32 0.0, %v1436
      %1438 = vmatmul.f32.gmra.mxu0 %v1181
      %v1439 = vpop.f32.mrf.mxu0
      %v1440 = vadd.f32 0.0, %v1439
      %1441 = vmatmul.f32.gmra.mxu0 %v1182
      %v1442 = vpop.f32.mrf.mxu0
      %v1443 = vadd.f32 0.0, %v1442
      %1444 = vmatmul.f32.gmra.mxu0 %v1183
      %v1445 = vpop.f32.mrf.mxu0
      %v1446 = vadd.f32 0.0, %v1445
      %1447 = vmatmul.f32.gmra.mxu0 %v1184
      %v1448 = vpop.f32.mrf.mxu0
      %v1449 = vadd.f32 0.0, %v1448
      %1450 = vdwg.mxu0
      %s1451 = scalar_lea.vmem %s33, %s1185
      %v1452 = vld [vmem:[%s1451] sm:$0xff]
      %v1453 = vld [vmem:[%s1451 + $0x8] sm:$0xff]
      %v1454 = vld [vmem:[%s1451 + $0x10] sm:$0xff]
      %v1455 = vld [vmem:[%s1451 + $0x18] sm:$0xff]
      %v1456 = vld [vmem:[%s1451 + $0x20] sm:$0xff]
      %v1457 = vld [vmem:[%s1451 + $0x28] sm:$0xff]
      %v1458 = vld [vmem:[%s1451 + $0x30] sm:$0xff]
      %v1459 = vld [vmem:[%s1451 + $0x38] sm:$0xff]
      %v1460 = vld [vmem:[%s1451 + $0x40] sm:$0xff]
      %v1461 = vld [vmem:[%s1451 + $0x48] sm:$0xff]
      %v1462 = vld [vmem:[%s1451 + $0x50] sm:$0xff]
      %v1463 = vld [vmem:[%s1451 + $0x58] sm:$0xff]
      %v1464 = vld [vmem:[%s1451 + $0x60] sm:$0xff]
      %v1465 = vld [vmem:[%s1451 + $0x68] sm:$0xff]
      %v1466 = vld [vmem:[%s1451 + $0x70] sm:$0xff]
      %v1467 = vld [vmem:[%s1451 + $0x78] sm:$0xff]
      %1468 = vmatpush.msra.mxu0 %v1467
      %1469 = vmatpush.msra.mxu0 %v1466
      %1470 = vmatpush.msra.mxu0 %v1465
      %1471 = vmatpush.msra.mxu0 %v1464
      %1472 = vmatpush.msra.mxu0 %v1463
      %1473 = vmatpush.msra.mxu0 %v1462
      %1474 = vmatpush.msra.mxu0 %v1461
      %1475 = vmatpush.msra.mxu0 %v1460
      %1476 = vmatpush.msra.mxu0 %v1459
      %1477 = vmatpush.msra.mxu0 %v1458
      %1478 = vmatpush.msra.mxu0 %v1457
      %1479 = vmatpush.msra.mxu0 %v1456
      %1480 = vmatpush.msra.mxu0 %v1455
      %1481 = vmatpush.msra.mxu0 %v1454
      %1482 = vmatpush.msra.mxu0 %v1453
      %1483 = vmatpush.msra.mxu0 %v1452
      %1484 = vmatmul.f32.gmra.mxu0 %v1177
      %v1485 = vpop.f32.mrf.mxu0
      %v1486 = vadd.f32 0.0, %v1485
      %1487 = vmatmul.f32.gmra.mxu0 %v1178
      %v1488 = vpop.f32.mrf.mxu0
      %v1489 = vadd.f32 0.0, %v1488
      %1490 = vmatmul.f32.gmra.mxu0 %v1179
      %v1491 = vpop.f32.mrf.mxu0
      %v1492 = vadd.f32 0.0, %v1491
      %1493 = vmatmul.f32.gmra.mxu0 %v1180
      %v1494 = vpop.f32.mrf.mxu0
      %v1495 = vadd.f32 0.0, %v1494
      %1496 = vmatmul.f32.gmra.mxu0 %v1181
      %v1497 = vpop.f32.mrf.mxu0
      %v1498 = vadd.f32 0.0, %v1497
      %1499 = vmatmul.f32.gmra.mxu0 %v1182
      %v1500 = vpop.f32.mrf.mxu0
      %v1501 = vadd.f32 0.0, %v1500
      %1502 = vmatmul.f32.gmra.mxu0 %v1183
      %v1503 = vpop.f32.mrf.mxu0
      %v1504 = vadd.f32 0.0, %v1503
      %1505 = vmatmul.f32.gmra.mxu0 %v1184
      %v1506 = vpop.f32.mrf.mxu0
      %v1507 = vadd.f32 0.0, %v1506
      %1508 = vdwg.mxu0
      %s1509 = smul.u32 %s474, 16
      %s1510 = scalar_lea.vmem %s35, %s1509
      %v1511 = vld [vmem:[%s1510] sm:$0xff]
      %v1512 = vld [vmem:[%s1510 + $0x8] sm:$0xff]
      %v1513 = vmul.f32 %v1511, 1.442695
      %v1514 = vpow.pop %v1513
      %v1515 = vmul.f32 %v1512, 1.442695
      %v1516 = vpow.pop %v1515
      %v1517 = vsub.f32 0.0, %v1514
      %v1518 = vsub.f32 0.0, %v1516
      %v1527 = vrot.slane %v1385, 1
      %v1528 = vrot.slane %v1385, 2
      %v1529 = vrot.slane %v1385, 3
      %v1530 = vrot.slane %v1385, 4
      %v1531 = vrot.slane %v1385, 5
      %v1532 = vrot.slane %v1385, 6
      %v1533 = vrot.slane %v1385, 7
      %v1534 = vrot.slane %v1386, 1
      %v1535 = vrot.slane %v1386, 2
      %v1536 = vrot.slane %v1386, 3
      %v1537 = vrot.slane %v1386, 4
      %v1538 = vrot.slane %v1386, 5
      %v1539 = vrot.slane %v1386, 6
      %v1540 = vrot.slane %v1386, 7
      %v1541 = vrot.slane %v1387, 1
      %v1542 = vrot.slane %v1387, 2
      %v1543 = vrot.slane %v1387, 3
      %v1544 = vrot.slane %v1387, 4
      %v1545 = vrot.slane %v1387, 5
      %v1546 = vrot.slane %v1387, 6
      %v1547 = vrot.slane %v1387, 7
      %v1548 = vrot.slane %v1388, 1
      %v1549 = vrot.slane %v1388, 2
      %v1550 = vrot.slane %v1388, 3
      %v1551 = vrot.slane %v1388, 4
      %v1552 = vrot.slane %v1388, 5
      %v1553 = vrot.slane %v1388, 6
      %v1554 = vrot.slane %v1388, 7
      %v1555 = vrot.slane %v1389, 1
      %v1556 = vrot.slane %v1389, 2
      %v1557 = vrot.slane %v1389, 3
      %v1558 = vrot.slane %v1389, 4
      %v1559 = vrot.slane %v1389, 5
      %v1560 = vrot.slane %v1389, 6
      %v1561 = vrot.slane %v1389, 7
      %v1562 = vrot.slane %v1390, 1
      %v1563 = vrot.slane %v1390, 2
      %v1564 = vrot.slane %v1390, 3
      %v1565 = vrot.slane %v1390, 4
      %v1566 = vrot.slane %v1390, 5
      %v1567 = vrot.slane %v1390, 6
      %v1568 = vrot.slane %v1390, 7
      %v1569 = vrot.slane %v1391, 1
      %v1570 = vrot.slane %v1391, 2
      %v1571 = vrot.slane %v1391, 3
      %v1572 = vrot.slane %v1391, 4
      %v1573 = vrot.slane %v1391, 5
      %v1574 = vrot.slane %v1391, 6
      %v1575 = vrot.slane %v1391, 7
      %v1576 = vrot.slane %v1392, 1
      %v1577 = vrot.slane %v1392, 2
      %v1578 = vrot.slane %v1392, 3
      %v1579 = vrot.slane %v1392, 4
      %v1580 = vrot.slane %v1392, 5
      %v1581 = vrot.slane %v1392, 6
      %v1582 = vrot.slane %v1392, 7
      %v1583 = vperm.slane %v1385, 0
      %v1584 = vperm.slane %v1527, 0
      %v1585 = vperm.slane %v1528, 0
      %v1586 = vperm.slane %v1529, 0
      %v1587 = vperm.slane %v1530, 0
      %v1588 = vperm.slane %v1531, 0
      %v1589 = vperm.slane %v1532, 0
      %v1590 = vperm.slane %v1533, 0
      %v1591 = vperm.slane %v1386, 0
      %v1592 = vperm.slane %v1534, 0
      %v1593 = vperm.slane %v1535, 0
      %v1594 = vperm.slane %v1536, 0
      %v1595 = vperm.slane %v1537, 0
      %v1596 = vperm.slane %v1538, 0
      %v1597 = vperm.slane %v1539, 0
      %v1598 = vperm.slane %v1540, 0
      %v1599 = vperm.slane %v1387, 0
      %v1600 = vperm.slane %v1541, 0
      %v1601 = vperm.slane %v1542, 0
      %v1602 = vperm.slane %v1543, 0
      %v1603 = vperm.slane %v1544, 0
      %v1604 = vperm.slane %v1545, 0
      %v1605 = vperm.slane %v1546, 0
      %v1606 = vperm.slane %v1547, 0
      %v1607 = vperm.slane %v1388, 0
      %v1608 = vperm.slane %v1548, 0
      %v1609 = vperm.slane %v1549, 0
      %v1610 = vperm.slane %v1550, 0
      %v1611 = vperm.slane %v1551, 0
      %v1612 = vperm.slane %v1552, 0
      %v1613 = vperm.slane %v1553, 0
      %v1614 = vperm.slane %v1554, 0
      %v1615 = vperm.slane %v1389, 0
      %v1616 = vperm.slane %v1555, 0
      %v1617 = vperm.slane %v1556, 0
      %v1618 = vperm.slane %v1557, 0
      %v1619 = vperm.slane %v1558, 0
      %v1620 = vperm.slane %v1559, 0
      %v1621 = vperm.slane %v1560, 0
      %v1622 = vperm.slane %v1561, 0
      %v1623 = vperm.slane %v1390, 0
      %v1624 = vperm.slane %v1562, 0
      %v1625 = vperm.slane %v1563, 0
      %v1626 = vperm.slane %v1564, 0
      %v1627 = vperm.slane %v1565, 0
      %v1628 = vperm.slane %v1566, 0
      %v1629 = vperm.slane %v1567, 0
      %v1630 = vperm.slane %v1568, 0
      %v1631 = vperm.slane %v1391, 0
      %v1632 = vperm.slane %v1569, 0
      %v1633 = vperm.slane %v1570, 0
      %v1634 = vperm.slane %v1571, 0
      %v1635 = vperm.slane %v1572, 0
      %v1636 = vperm.slane %v1573, 0
      %v1637 = vperm.slane %v1574, 0
      %v1638 = vperm.slane %v1575, 0
      %v1639 = vperm.slane %v1392, 0
      %v1640 = vperm.slane %v1576, 0
      %v1641 = vperm.slane %v1577, 0
      %v1642 = vperm.slane %v1578, 0
      %v1643 = vperm.slane %v1579, 0
      %v1644 = vperm.slane %v1580, 0
      %v1645 = vperm.slane %v1581, 0
      %v1646 = vperm.slane %v1582, 0
      %v1711 = vmul.f32 %v1583, %v1517
      %v1712 = vmul.f32 %v1583, %v1518
      %v1713 = vmul.f32 %v1584, %v1517
      %v1714 = vmul.f32 %v1584, %v1518
      %v1715 = vmul.f32 %v1585, %v1517
      %v1716 = vmul.f32 %v1585, %v1518
      %v1717 = vmul.f32 %v1586, %v1517
      %v1718 = vmul.f32 %v1586, %v1518
      %v1719 = vmul.f32 %v1587, %v1517
      %v1720 = vmul.f32 %v1587, %v1518
      %v1721 = vmul.f32 %v1588, %v1517
      %v1722 = vmul.f32 %v1588, %v1518
      %v1723 = vmul.f32 %v1589, %v1517
      %v1724 = vmul.f32 %v1589, %v1518
      %v1725 = vmul.f32 %v1590, %v1517
      %v1726 = vmul.f32 %v1590, %v1518
      %v1727 = vmul.f32 %v1591, %v1517
      %v1728 = vmul.f32 %v1591, %v1518
      %v1729 = vmul.f32 %v1592, %v1517
      %v1730 = vmul.f32 %v1592, %v1518
      %v1731 = vmul.f32 %v1593, %v1517
      %v1732 = vmul.f32 %v1593, %v1518
      %v1733 = vmul.f32 %v1594, %v1517
      %v1734 = vmul.f32 %v1594, %v1518
      %v1735 = vmul.f32 %v1595, %v1517
      %v1736 = vmul.f32 %v1595, %v1518
      %v1737 = vmul.f32 %v1596, %v1517
      %v1738 = vmul.f32 %v1596, %v1518
      %v1739 = vmul.f32 %v1597, %v1517
      %v1740 = vmul.f32 %v1597, %v1518
      %v1741 = vmul.f32 %v1598, %v1517
      %v1742 = vmul.f32 %v1598, %v1518
      %v1743 = vmul.f32 %v1599, %v1517
      %v1744 = vmul.f32 %v1599, %v1518
      %v1745 = vmul.f32 %v1600, %v1517
      %v1746 = vmul.f32 %v1600, %v1518
      %v1747 = vmul.f32 %v1601, %v1517
      %v1748 = vmul.f32 %v1601, %v1518
      %v1749 = vmul.f32 %v1602, %v1517
      %v1750 = vmul.f32 %v1602, %v1518
      %v1751 = vmul.f32 %v1603, %v1517
      %v1752 = vmul.f32 %v1603, %v1518
      %v1753 = vmul.f32 %v1604, %v1517
      %v1754 = vmul.f32 %v1604, %v1518
      %v1755 = vmul.f32 %v1605, %v1517
      %v1756 = vmul.f32 %v1605, %v1518
      %v1757 = vmul.f32 %v1606, %v1517
      %v1758 = vmul.f32 %v1606, %v1518
      %v1759 = vmul.f32 %v1607, %v1517
      %v1760 = vmul.f32 %v1607, %v1518
      %v1761 = vmul.f32 %v1608, %v1517
      %v1762 = vmul.f32 %v1608, %v1518
      %v1763 = vmul.f32 %v1609, %v1517
      %v1764 = vmul.f32 %v1609, %v1518
      %v1765 = vmul.f32 %v1610, %v1517
      %v1766 = vmul.f32 %v1610, %v1518
      %v1767 = vmul.f32 %v1611, %v1517
      %v1768 = vmul.f32 %v1611, %v1518
      %v1769 = vmul.f32 %v1612, %v1517
      %v1770 = vmul.f32 %v1612, %v1518
      %v1771 = vmul.f32 %v1613, %v1517
      %v1772 = vmul.f32 %v1613, %v1518
      %v1773 = vmul.f32 %v1614, %v1517
      %v1774 = vmul.f32 %v1614, %v1518
      %v1775 = vmul.f32 %v1615, %v1517
      %v1776 = vmul.f32 %v1615, %v1518
      %v1777 = vmul.f32 %v1616, %v1517
      %v1778 = vmul.f32 %v1616, %v1518
      %v1779 = vmul.f32 %v1617, %v1517
      %v1780 = vmul.f32 %v1617, %v1518
      %v1781 = vmul.f32 %v1618, %v1517
      %v1782 = vmul.f32 %v1618, %v1518
      %v1783 = vmul.f32 %v1619, %v1517
      %v1784 = vmul.f32 %v1619, %v1518
      %v1785 = vmul.f32 %v1620, %v1517
      %v1786 = vmul.f32 %v1620, %v1518
      %v1787 = vmul.f32 %v1621, %v1517
      %v1788 = vmul.f32 %v1621, %v1518
      %v1789 = vmul.f32 %v1622, %v1517
      %v1790 = vmul.f32 %v1622, %v1518
      %v1791 = vmul.f32 %v1623, %v1517
      %v1792 = vmul.f32 %v1623, %v1518
      %v1793 = vmul.f32 %v1624, %v1517
      %v1794 = vmul.f32 %v1624, %v1518
      %v1795 = vmul.f32 %v1625, %v1517
      %v1796 = vmul.f32 %v1625, %v1518
      %v1797 = vmul.f32 %v1626, %v1517
      %v1798 = vmul.f32 %v1626, %v1518
      %v1799 = vmul.f32 %v1627, %v1517
      %v1800 = vmul.f32 %v1627, %v1518
      %v1801 = vmul.f32 %v1628, %v1517
      %v1802 = vmul.f32 %v1628, %v1518
      %v1803 = vmul.f32 %v1629, %v1517
      %v1804 = vmul.f32 %v1629, %v1518
      %v1805 = vmul.f32 %v1630, %v1517
      %v1806 = vmul.f32 %v1630, %v1518
      %v1807 = vmul.f32 %v1631, %v1517
      %v1808 = vmul.f32 %v1631, %v1518
      %v1809 = vmul.f32 %v1632, %v1517
      %v1810 = vmul.f32 %v1632, %v1518
      %v1811 = vmul.f32 %v1633, %v1517
      %v1812 = vmul.f32 %v1633, %v1518
      %v1813 = vmul.f32 %v1634, %v1517
      %v1814 = vmul.f32 %v1634, %v1518
      %v1815 = vmul.f32 %v1635, %v1517
      %v1816 = vmul.f32 %v1635, %v1518
      %v1817 = vmul.f32 %v1636, %v1517
      %v1818 = vmul.f32 %v1636, %v1518
      %v1819 = vmul.f32 %v1637, %v1517
      %v1820 = vmul.f32 %v1637, %v1518
      %v1821 = vmul.f32 %v1638, %v1517
      %v1822 = vmul.f32 %v1638, %v1518
      %v1823 = vmul.f32 %v1639, %v1517
      %v1824 = vmul.f32 %v1639, %v1518
      %v1825 = vmul.f32 %v1640, %v1517
      %v1826 = vmul.f32 %v1640, %v1518
      %v1827 = vmul.f32 %v1641, %v1517
      %v1828 = vmul.f32 %v1641, %v1518
      %v1829 = vmul.f32 %v1642, %v1517
      %v1830 = vmul.f32 %v1642, %v1518
      %v1831 = vmul.f32 %v1643, %v1517
      %v1832 = vmul.f32 %v1643, %v1518
      %v1833 = vmul.f32 %v1644, %v1517
      %v1834 = vmul.f32 %v1644, %v1518
      %v1835 = vmul.f32 %v1645, %v1517
      %v1836 = vmul.f32 %v1645, %v1518
      %v1837 = vmul.f32 %v1646, %v1517
      %v1838 = vmul.f32 %v1646, %v1518
      %v1839 = vmul.f32 %v1711, 1.442695
      %v1840 = vpow.pop %v1839
      %v1841 = vmul.f32 %v1712, 1.442695
      %v1842 = vpow.pop %v1841
      %v1843 = vmul.f32 %v1713, 1.442695
      %v1844 = vpow.pop %v1843
      %v1845 = vmul.f32 %v1714, 1.442695
      %v1846 = vpow.pop %v1845
      %v1847 = vmul.f32 %v1715, 1.442695
      %v1848 = vpow.pop %v1847
      %v1849 = vmul.f32 %v1716, 1.442695
      %v1850 = vpow.pop %v1849
      %v1851 = vmul.f32 %v1717, 1.442695
      %v1852 = vpow.pop %v1851
      %v1853 = vmul.f32 %v1718, 1.442695
      %v1854 = vpow.pop %v1853
      %v1855 = vmul.f32 %v1719, 1.442695
      %v1856 = vpow.pop %v1855
      %v1857 = vmul.f32 %v1720, 1.442695
      %v1858 = vpow.pop %v1857
      %v1859 = vmul.f32 %v1721, 1.442695
      %v1860 = vpow.pop %v1859
      %v1861 = vmul.f32 %v1722, 1.442695
      %v1862 = vpow.pop %v1861
      %v1863 = vmul.f32 %v1723, 1.442695
      %v1864 = vpow.pop %v1863
      %v1865 = vmul.f32 %v1724, 1.442695
      %v1866 = vpow.pop %v1865
      %v1867 = vmul.f32 %v1725, 1.442695
      %v1868 = vpow.pop %v1867
      %v1869 = vmul.f32 %v1726, 1.442695
      %v1870 = vpow.pop %v1869
      %v1871 = vmul.f32 %v1727, 1.442695
      %v1872 = vpow.pop %v1871
      %v1873 = vmul.f32 %v1728, 1.442695
      %v1874 = vpow.pop %v1873
      %v1875 = vmul.f32 %v1729, 1.442695
      %v1876 = vpow.pop %v1875
      %v1877 = vmul.f32 %v1730, 1.442695
      %v1878 = vpow.pop %v1877
      %v1879 = vmul.f32 %v1731, 1.442695
      %v1880 = vpow.pop %v1879
      %v1881 = vmul.f32 %v1732, 1.442695
      %v1882 = vpow.pop %v1881
      %v1883 = vmul.f32 %v1733, 1.442695
      %v1884 = vpow.pop %v1883
      %v1885 = vmul.f32 %v1734, 1.442695
      %v1886 = vpow.pop %v1885
      %v1887 = vmul.f32 %v1735, 1.442695
      %v1888 = vpow.pop %v1887
      %v1889 = vmul.f32 %v1736, 1.442695
      %v1890 = vpow.pop %v1889
      %v1891 = vmul.f32 %v1737, 1.442695
      %v1892 = vpow.pop %v1891
      %v1893 = vmul.f32 %v1738, 1.442695
      %v1894 = vpow.pop %v1893
      %v1895 = vmul.f32 %v1739, 1.442695
      %v1896 = vpow.pop %v1895
      %v1897 = vmul.f32 %v1740, 1.442695
      %v1898 = vpow.pop %v1897
      %v1899 = vmul.f32 %v1741, 1.442695
      %v1900 = vpow.pop %v1899
      %v1901 = vmul.f32 %v1742, 1.442695
      %v1902 = vpow.pop %v1901
      %v1903 = vmul.f32 %v1743, 1.442695
      %v1904 = vpow.pop %v1903
      %v1905 = vmul.f32 %v1744, 1.442695
      %v1906 = vpow.pop %v1905
      %v1907 = vmul.f32 %v1745, 1.442695
      %v1908 = vpow.pop %v1907
      %v1909 = vmul.f32 %v1746, 1.442695
      %v1910 = vpow.pop %v1909
      %v1911 = vmul.f32 %v1747, 1.442695
      %v1912 = vpow.pop %v1911
      %v1913 = vmul.f32 %v1748, 1.442695
      %v1914 = vpow.pop %v1913
      %v1915 = vmul.f32 %v1749, 1.442695
      %v1916 = vpow.pop %v1915
      %v1917 = vmul.f32 %v1750, 1.442695
      %v1918 = vpow.pop %v1917
      %v1919 = vmul.f32 %v1751, 1.442695
      %v1920 = vpow.pop %v1919
      %v1921 = vmul.f32 %v1752, 1.442695
      %v1922 = vpow.pop %v1921
      %v1923 = vmul.f32 %v1753, 1.442695
      %v1924 = vpow.pop %v1923
      %v1925 = vmul.f32 %v1754, 1.442695
      %v1926 = vpow.pop %v1925
      %v1927 = vmul.f32 %v1755, 1.442695
      %v1928 = vpow.pop %v1927
      %v1929 = vmul.f32 %v1756, 1.442695
      %v1930 = vpow.pop %v1929
      %v1931 = vmul.f32 %v1757, 1.442695
      %v1932 = vpow.pop %v1931
      %v1933 = vmul.f32 %v1758, 1.442695
      %v1934 = vpow.pop %v1933
      %v1935 = vmul.f32 %v1759, 1.442695
      %v1936 = vpow.pop %v1935
      %v1937 = vmul.f32 %v1760, 1.442695
      %v1938 = vpow.pop %v1937
      %v1939 = vmul.f32 %v1761, 1.442695
      %v1940 = vpow.pop %v1939
      %v1941 = vmul.f32 %v1762, 1.442695
      %v1942 = vpow.pop %v1941
      %v1943 = vmul.f32 %v1763, 1.442695
      %v1944 = vpow.pop %v1943
      %v1945 = vmul.f32 %v1764, 1.442695
      %v1946 = vpow.pop %v1945
      %v1947 = vmul.f32 %v1765, 1.442695
      %v1948 = vpow.pop %v1947
      %v1949 = vmul.f32 %v1766, 1.442695
      %v1950 = vpow.pop %v1949
      %v1951 = vmul.f32 %v1767, 1.442695
      %v1952 = vpow.pop %v1951
      %v1953 = vmul.f32 %v1768, 1.442695
      %v1954 = vpow.pop %v1953
      %v1955 = vmul.f32 %v1769, 1.442695
      %v1956 = vpow.pop %v1955
      %v1957 = vmul.f32 %v1770, 1.442695
      %v1958 = vpow.pop %v1957
      %v1959 = vmul.f32 %v1771, 1.442695
      %v1960 = vpow.pop %v1959
      %v1961 = vmul.f32 %v1772, 1.442695
      %v1962 = vpow.pop %v1961
      %v1963 = vmul.f32 %v1773, 1.442695
      %v1964 = vpow.pop %v1963
      %v1965 = vmul.f32 %v1774, 1.442695
      %v1966 = vpow.pop %v1965
      %v1967 = vmul.f32 %v1775, 1.442695
      %v1968 = vpow.pop %v1967
      %v1969 = vmul.f32 %v1776, 1.442695
      %v1970 = vpow.pop %v1969
      %v1971 = vmul.f32 %v1777, 1.442695
      %v1972 = vpow.pop %v1971
      %v1973 = vmul.f32 %v1778, 1.442695
      %v1974 = vpow.pop %v1973
      %v1975 = vmul.f32 %v1779, 1.442695
      %v1976 = vpow.pop %v1975
      %v1977 = vmul.f32 %v1780, 1.442695
      %v1978 = vpow.pop %v1977
      %v1979 = vmul.f32 %v1781, 1.442695
      %v1980 = vpow.pop %v1979
      %v1981 = vmul.f32 %v1782, 1.442695
      %v1982 = vpow.pop %v1981
      %v1983 = vmul.f32 %v1783, 1.442695
      %v1984 = vpow.pop %v1983
      %v1985 = vmul.f32 %v1784, 1.442695
      %v1986 = vpow.pop %v1985
      %v1987 = vmul.f32 %v1785, 1.442695
      %v1988 = vpow.pop %v1987
      %v1989 = vmul.f32 %v1786, 1.442695
      %v1990 = vpow.pop %v1989
      %v1991 = vmul.f32 %v1787, 1.442695
      %v1992 = vpow.pop %v1991
      %v1993 = vmul.f32 %v1788, 1.442695
      %v1994 = vpow.pop %v1993
      %v1995 = vmul.f32 %v1789, 1.442695
      %v1996 = vpow.pop %v1995
      %v1997 = vmul.f32 %v1790, 1.442695
      %v1998 = vpow.pop %v1997
      %v1999 = vmul.f32 %v1791, 1.442695
      %v2000 = vpow.pop %v1999
      %v2001 = vmul.f32 %v1792, 1.442695
      %v2002 = vpow.pop %v2001
      %v2003 = vmul.f32 %v1793, 1.442695
      %v2004 = vpow.pop %v2003
      %v2005 = vmul.f32 %v1794, 1.442695
      %v2006 = vpow.pop %v2005
      %v2007 = vmul.f32 %v1795, 1.442695
      %v2008 = vpow.pop %v2007
      %v2009 = vmul.f32 %v1796, 1.442695
      %v2010 = vpow.pop %v2009
      %v2011 = vmul.f32 %v1797, 1.442695
      %v2012 = vpow.pop %v2011
      %v2013 = vmul.f32 %v1798, 1.442695
      %v2014 = vpow.pop %v2013
      %v2015 = vmul.f32 %v1799, 1.442695
      %v2016 = vpow.pop %v2015
      %v2017 = vmul.f32 %v1800, 1.442695
      %v2018 = vpow.pop %v2017
      %v2019 = vmul.f32 %v1801, 1.442695
      %v2020 = vpow.pop %v2019
      %v2021 = vmul.f32 %v1802, 1.442695
      %v2022 = vpow.pop %v2021
      %v2023 = vmul.f32 %v1803, 1.442695
      %v2024 = vpow.pop %v2023
      %v2025 = vmul.f32 %v1804, 1.442695
      %v2026 = vpow.pop %v2025
      %v2027 = vmul.f32 %v1805, 1.442695
      %v2028 = vpow.pop %v2027
      %v2029 = vmul.f32 %v1806, 1.442695
      %v2030 = vpow.pop %v2029
      %v2031 = vmul.f32 %v1807, 1.442695
      %v2032 = vpow.pop %v2031
      %v2033 = vmul.f32 %v1808, 1.442695
      %v2034 = vpow.pop %v2033
      %v2035 = vmul.f32 %v1809, 1.442695
      %v2036 = vpow.pop %v2035
      %v2037 = vmul.f32 %v1810, 1.442695
      %v2038 = vpow.pop %v2037
      %v2039 = vmul.f32 %v1811, 1.442695
      %v2040 = vpow.pop %v2039
      %v2041 = vmul.f32 %v1812, 1.442695
      %v2042 = vpow.pop %v2041
      %v2043 = vmul.f32 %v1813, 1.442695
      %v2044 = vpow.pop %v2043
      %v2045 = vmul.f32 %v1814, 1.442695
      %v2046 = vpow.pop %v2045
      %v2047 = vmul.f32 %v1815, 1.442695
      %v2048 = vpow.pop %v2047
      %v2049 = vmul.f32 %v1816, 1.442695
      %v2050 = vpow.pop %v2049
      %v2051 = vmul.f32 %v1817, 1.442695
      %v2052 = vpow.pop %v2051
      %v2053 = vmul.f32 %v1818, 1.442695
      %v2054 = vpow.pop %v2053
      %v2055 = vmul.f32 %v1819, 1.442695
      %v2056 = vpow.pop %v2055
      %v2057 = vmul.f32 %v1820, 1.442695
      %v2058 = vpow.pop %v2057
      %v2059 = vmul.f32 %v1821, 1.442695
      %v2060 = vpow.pop %v2059
      %v2061 = vmul.f32 %v1822, 1.442695
      %v2062 = vpow.pop %v2061
      %v2063 = vmul.f32 %v1823, 1.442695
      %v2064 = vpow.pop %v2063
      %v2065 = vmul.f32 %v1824, 1.442695
      %v2066 = vpow.pop %v2065
      %v2067 = vmul.f32 %v1825, 1.442695
      %v2068 = vpow.pop %v2067
      %v2069 = vmul.f32 %v1826, 1.442695
      %v2070 = vpow.pop %v2069
      %v2071 = vmul.f32 %v1827, 1.442695
      %v2072 = vpow.pop %v2071
      %v2073 = vmul.f32 %v1828, 1.442695
      %v2074 = vpow.pop %v2073
      %v2075 = vmul.f32 %v1829, 1.442695
      %v2076 = vpow.pop %v2075
      %v2077 = vmul.f32 %v1830, 1.442695
      %v2078 = vpow.pop %v2077
      %v2079 = vmul.f32 %v1831, 1.442695
      %v2080 = vpow.pop %v2079
      %v2081 = vmul.f32 %v1832, 1.442695
      %v2082 = vpow.pop %v2081
      %v2083 = vmul.f32 %v1833, 1.442695
      %v2084 = vpow.pop %v2083
      %v2085 = vmul.f32 %v1834, 1.442695
      %v2086 = vpow.pop %v2085
      %v2087 = vmul.f32 %v1835, 1.442695
      %v2088 = vpow.pop %v2087
      %v2089 = vmul.f32 %v1836, 1.442695
      %v2090 = vpow.pop %v2089
      %v2091 = vmul.f32 %v1837, 1.442695
      %v2092 = vpow.pop %v2091
      %v2093 = vmul.f32 %v1838, 1.442695
      %v2094 = vpow.pop %v2093
      %v2095 = vmul.f32 %v1385, %v1177
      %v2096 = vmul.f32 %v1386, %v1178
      %v2097 = vmul.f32 %v1387, %v1179
      %v2098 = vmul.f32 %v1388, %v1180
      %v2099 = vmul.f32 %v1389, %v1181
      %v2100 = vmul.f32 %v1390, %v1182
      %v2101 = vmul.f32 %v1391, %v1183
      %v2102 = vmul.f32 %v1392, %v1184
      %v2111 = vrot.slane %v2095, 1
      %v2112 = vrot.slane %v2095, 2
      %v2113 = vrot.slane %v2095, 3
      %v2114 = vrot.slane %v2095, 4
      %v2115 = vrot.slane %v2095, 5
      %v2116 = vrot.slane %v2095, 6
      %v2117 = vrot.slane %v2095, 7
      %v2118 = vrot.slane %v2096, 1
      %v2119 = vrot.slane %v2096, 2
      %v2120 = vrot.slane %v2096, 3
      %v2121 = vrot.slane %v2096, 4
      %v2122 = vrot.slane %v2096, 5
      %v2123 = vrot.slane %v2096, 6
      %v2124 = vrot.slane %v2096, 7
      %v2125 = vrot.slane %v2097, 1
      %v2126 = vrot.slane %v2097, 2
      %v2127 = vrot.slane %v2097, 3
      %v2128 = vrot.slane %v2097, 4
      %v2129 = vrot.slane %v2097, 5
      %v2130 = vrot.slane %v2097, 6
      %v2131 = vrot.slane %v2097, 7
      %v2132 = vrot.slane %v2098, 1
      %v2133 = vrot.slane %v2098, 2
      %v2134 = vrot.slane %v2098, 3
      %v2135 = vrot.slane %v2098, 4
      %v2136 = vrot.slane %v2098, 5
      %v2137 = vrot.slane %v2098, 6
      %v2138 = vrot.slane %v2098, 7
      %v2139 = vrot.slane %v2099, 1
      %v2140 = vrot.slane %v2099, 2
      %v2141 = vrot.slane %v2099, 3
      %v2142 = vrot.slane %v2099, 4
      %v2143 = vrot.slane %v2099, 5
      %v2144 = vrot.slane %v2099, 6
      %v2145 = vrot.slane %v2099, 7
      %v2146 = vrot.slane %v2100, 1
      %v2147 = vrot.slane %v2100, 2
      %v2148 = vrot.slane %v2100, 3
      %v2149 = vrot.slane %v2100, 4
      %v2150 = vrot.slane %v2100, 5
      %v2151 = vrot.slane %v2100, 6
      %v2152 = vrot.slane %v2100, 7
      %v2153 = vrot.slane %v2101, 1
      %v2154 = vrot.slane %v2101, 2
      %v2155 = vrot.slane %v2101, 3
      %v2156 = vrot.slane %v2101, 4
      %v2157 = vrot.slane %v2101, 5
      %v2158 = vrot.slane %v2101, 6
      %v2159 = vrot.slane %v2101, 7
      %v2160 = vrot.slane %v2102, 1
      %v2161 = vrot.slane %v2102, 2
      %v2162 = vrot.slane %v2102, 3
      %v2163 = vrot.slane %v2102, 4
      %v2164 = vrot.slane %v2102, 5
      %v2165 = vrot.slane %v2102, 6
      %v2166 = vrot.slane %v2102, 7
      %v2167 = vperm.slane %v1428, 0
      %v2168 = vlaneseq
      %v2169 = vshrl.u32 %v2168, 7
      %2171 = vset.pattern.permute.xlu0 %v2169
      %2172 = vperm.xlu0 %2171, %v2167
      %v2173 = vpop.permute.xlu0 %2172
      %v2174 = vlaneseq
      %v2175 = vshrl.u32 %v2174, 7
      %v2176 = vadd.s32 %v2175, 8
      %2177 = vset.pattern.permute.xlu0 %v2176
      %2178 = vperm.xlu0 %2177, %v2167
      %v2179 = vpop.permute.xlu0 %2178
      %v2180 = vperm.slane %v1428, 1
      %v2181 = vlaneseq
      %v2182 = vshrl.u32 %v2181, 7
      %2184 = vset.pattern.permute.xlu0 %v2182
      %2185 = vperm.xlu0 %2184, %v2180
      %v2186 = vpop.permute.xlu0 %2185
      %v2187 = vlaneseq
      %v2188 = vshrl.u32 %v2187, 7
      %v2189 = vadd.s32 %v2188, 8
      %2190 = vset.pattern.permute.xlu0 %v2189
      %2191 = vperm.xlu0 %2190, %v2180
      %v2192 = vpop.permute.xlu0 %2191
      %v2193 = vperm.slane %v1428, 2
      %v2194 = vlaneseq
      %v2195 = vshrl.u32 %v2194, 7
      %2197 = vset.pattern.permute.xlu0 %v2195
      %2198 = vperm.xlu0 %2197, %v2193
      %v2199 = vpop.permute.xlu0 %2198
      %v2200 = vlaneseq
      %v2201 = vshrl.u32 %v2200, 7
      %v2202 = vadd.s32 %v2201, 8
      %2203 = vset.pattern.permute.xlu0 %v2202
      %2204 = vperm.xlu0 %2203, %v2193
      %v2205 = vpop.permute.xlu0 %2204
      %v2206 = vperm.slane %v1428, 3
      %v2207 = vlaneseq
      %v2208 = vshrl.u32 %v2207, 7
      %2210 = vset.pattern.permute.xlu0 %v2208
      %2211 = vperm.xlu0 %2210, %v2206
      %v2212 = vpop.permute.xlu0 %2211
      %v2213 = vlaneseq
      %v2214 = vshrl.u32 %v2213, 7
      %v2215 = vadd.s32 %v2214, 8
      %2216 = vset.pattern.permute.xlu0 %v2215
      %2217 = vperm.xlu0 %2216, %v2206
      %v2218 = vpop.permute.xlu0 %2217
      %v2219 = vperm.slane %v1428, 4
      %v2220 = vlaneseq
      %v2221 = vshrl.u32 %v2220, 7
      %2223 = vset.pattern.permute.xlu0 %v2221
      %2224 = vperm.xlu0 %2223, %v2219
      %v2225 = vpop.permute.xlu0 %2224
      %v2226 = vlaneseq
      %v2227 = vshrl.u32 %v2226, 7
      %v2228 = vadd.s32 %v2227, 8
      %2229 = vset.pattern.permute.xlu0 %v2228
      %2230 = vperm.xlu0 %2229, %v2219
      %v2231 = vpop.permute.xlu0 %2230
      %v2232 = vperm.slane %v1428, 5
      %v2233 = vlaneseq
      %v2234 = vshrl.u32 %v2233, 7
      %2236 = vset.pattern.permute.xlu0 %v2234
      %2237 = vperm.xlu0 %2236, %v2232
      %v2238 = vpop.permute.xlu0 %2237
      %v2239 = vlaneseq
      %v2240 = vshrl.u32 %v2239, 7
      %v2241 = vadd.s32 %v2240, 8
      %2242 = vset.pattern.permute.xlu0 %v2241
      %2243 = vperm.xlu0 %2242, %v2232
      %v2244 = vpop.permute.xlu0 %2243
      %v2245 = vperm.slane %v1428, 6
      %v2246 = vlaneseq
      %v2247 = vshrl.u32 %v2246, 7
      %2249 = vset.pattern.permute.xlu0 %v2247
      %2250 = vperm.xlu0 %2249, %v2245
      %v2251 = vpop.permute.xlu0 %2250
      %v2252 = vlaneseq
      %v2253 = vshrl.u32 %v2252, 7
      %v2254 = vadd.s32 %v2253, 8
      %2255 = vset.pattern.permute.xlu0 %v2254
      %2256 = vperm.xlu0 %2255, %v2245
      %v2257 = vpop.permute.xlu0 %2256
      %v2258 = vperm.slane %v1428, 7
      %v2259 = vlaneseq
      %v2260 = vshrl.u32 %v2259, 7
      %2262 = vset.pattern.permute.xlu0 %v2260
      %2263 = vperm.xlu0 %2262, %v2258
      %v2264 = vpop.permute.xlu0 %2263
      %v2265 = vlaneseq
      %v2266 = vshrl.u32 %v2265, 7
      %v2267 = vadd.s32 %v2266, 8
      %2268 = vset.pattern.permute.xlu0 %v2267
      %2269 = vperm.xlu0 %2268, %v2258
      %v2270 = vpop.permute.xlu0 %2269
      %v2271 = vperm.slane %v1431, 0
      %v2272 = vlaneseq
      %v2273 = vshrl.u32 %v2272, 7
      %2275 = vset.pattern.permute.xlu0 %v2273
      %2276 = vperm.xlu0 %2275, %v2271
      %v2277 = vpop.permute.xlu0 %2276
      %v2278 = vlaneseq
      %v2279 = vshrl.u32 %v2278, 7
      %v2280 = vadd.s32 %v2279, 8
      %2281 = vset.pattern.permute.xlu0 %v2280
      %2282 = vperm.xlu0 %2281, %v2271
      %v2283 = vpop.permute.xlu0 %2282
      %v2284 = vperm.slane %v1431, 1
      %v2285 = vlaneseq
      %v2286 = vshrl.u32 %v2285, 7
      %2288 = vset.pattern.permute.xlu0 %v2286
      %2289 = vperm.xlu0 %2288, %v2284
      %v2290 = vpop.permute.xlu0 %2289
      %v2291 = vlaneseq
      %v2292 = vshrl.u32 %v2291, 7
      %v2293 = vadd.s32 %v2292, 8
      %2294 = vset.pattern.permute.xlu0 %v2293
      %2295 = vperm.xlu0 %2294, %v2284
      %v2296 = vpop.permute.xlu0 %2295
      %v2297 = vperm.slane %v1431, 2
      %v2298 = vlaneseq
      %v2299 = vshrl.u32 %v2298, 7
      %2301 = vset.pattern.permute.xlu0 %v2299
      %2302 = vperm.xlu0 %2301, %v2297
      %v2303 = vpop.permute.xlu0 %2302
      %v2304 = vlaneseq
      %v2305 = vshrl.u32 %v2304, 7
      %v2306 = vadd.s32 %v2305, 8
      %2307 = vset.pattern.permute.xlu0 %v2306
      %2308 = vperm.xlu0 %2307, %v2297
      %v2309 = vpop.permute.xlu0 %2308
      %v2310 = vperm.slane %v1431, 3
      %v2311 = vlaneseq
      %v2312 = vshrl.u32 %v2311, 7
      %2314 = vset.pattern.permute.xlu0 %v2312
      %2315 = vperm.xlu0 %2314, %v2310
      %v2316 = vpop.permute.xlu0 %2315
      %v2317 = vlaneseq
      %v2318 = vshrl.u32 %v2317, 7
      %v2319 = vadd.s32 %v2318, 8
      %2320 = vset.pattern.permute.xlu0 %v2319
      %2321 = vperm.xlu0 %2320, %v2310
      %v2322 = vpop.permute.xlu0 %2321
      %v2323 = vperm.slane %v1431, 4
      %v2324 = vlaneseq
      %v2325 = vshrl.u32 %v2324, 7
      %2327 = vset.pattern.permute.xlu0 %v2325
      %2328 = vperm.xlu0 %2327, %v2323
      %v2329 = vpop.permute.xlu0 %2328
      %v2330 = vlaneseq
      %v2331 = vshrl.u32 %v2330, 7
      %v2332 = vadd.s32 %v2331, 8
      %2333 = vset.pattern.permute.xlu0 %v2332
      %2334 = vperm.xlu0 %2333, %v2323
      %v2335 = vpop.permute.xlu0 %2334
      %v2336 = vperm.slane %v1431, 5
      %v2337 = vlaneseq
      %v2338 = vshrl.u32 %v2337, 7
      %2340 = vset.pattern.permute.xlu0 %v2338
      %2341 = vperm.xlu0 %2340, %v2336
      %v2342 = vpop.permute.xlu0 %2341
      %v2343 = vlaneseq
      %v2344 = vshrl.u32 %v2343, 7
      %v2345 = vadd.s32 %v2344, 8
      %2346 = vset.pattern.permute.xlu0 %v2345
      %2347 = vperm.xlu0 %2346, %v2336
      %v2348 = vpop.permute.xlu0 %2347
      %v2349 = vperm.slane %v1431, 6
      %v2350 = vlaneseq
      %v2351 = vshrl.u32 %v2350, 7
      %2353 = vset.pattern.permute.xlu0 %v2351
      %2354 = vperm.xlu0 %2353, %v2349
      %v2355 = vpop.permute.xlu0 %2354
      %v2356 = vlaneseq
      %v2357 = vshrl.u32 %v2356, 7
      %v2358 = vadd.s32 %v2357, 8
      %2359 = vset.pattern.permute.xlu0 %v2358
      %2360 = vperm.xlu0 %2359, %v2349
      %v2361 = vpop.permute.xlu0 %2360
      %v2362 = vperm.slane %v1431, 7
      %v2363 = vlaneseq
      %v2364 = vshrl.u32 %v2363, 7
      %2366 = vset.pattern.permute.xlu0 %v2364
      %2367 = vperm.xlu0 %2366, %v2362
      %v2368 = vpop.permute.xlu0 %2367
      %v2369 = vlaneseq
      %v2370 = vshrl.u32 %v2369, 7
      %v2371 = vadd.s32 %v2370, 8
      %2372 = vset.pattern.permute.xlu0 %v2371
      %2373 = vperm.xlu0 %2372, %v2362
      %v2374 = vpop.permute.xlu0 %2373
      %v2375 = vperm.slane %v1434, 0
      %v2376 = vlaneseq
      %v2377 = vshrl.u32 %v2376, 7
      %2379 = vset.pattern.permute.xlu0 %v2377
      %2380 = vperm.xlu0 %2379, %v2375
      %v2381 = vpop.permute.xlu0 %2380
      %v2382 = vlaneseq
      %v2383 = vshrl.u32 %v2382, 7
      %v2384 = vadd.s32 %v2383, 8
      %2385 = vset.pattern.permute.xlu0 %v2384
      %2386 = vperm.xlu0 %2385, %v2375
      %v2387 = vpop.permute.xlu0 %2386
      %v2388 = vperm.slane %v1434, 1
      %v2389 = vlaneseq
      %v2390 = vshrl.u32 %v2389, 7
      %2392 = vset.pattern.permute.xlu0 %v2390
      %2393 = vperm.xlu0 %2392, %v2388
      %v2394 = vpop.permute.xlu0 %2393
      %v2395 = vlaneseq
      %v2396 = vshrl.u32 %v2395, 7
      %v2397 = vadd.s32 %v2396, 8
      %2398 = vset.pattern.permute.xlu0 %v2397
      %2399 = vperm.xlu0 %2398, %v2388
      %v2400 = vpop.permute.xlu0 %2399
      %v2401 = vperm.slane %v1434, 2
      %v2402 = vlaneseq
      %v2403 = vshrl.u32 %v2402, 7
      %2405 = vset.pattern.permute.xlu0 %v2403
      %2406 = vperm.xlu0 %2405, %v2401
      %v2407 = vpop.permute.xlu0 %2406
      %v2408 = vlaneseq
      %v2409 = vshrl.u32 %v2408, 7
      %v2410 = vadd.s32 %v2409, 8
      %2411 = vset.pattern.permute.xlu0 %v2410
      %2412 = vperm.xlu0 %2411, %v2401
      %v2413 = vpop.permute.xlu0 %2412
      %v2414 = vperm.slane %v1434, 3
      %v2415 = vlaneseq
      %v2416 = vshrl.u32 %v2415, 7
      %2418 = vset.pattern.permute.xlu0 %v2416
      %2419 = vperm.xlu0 %2418, %v2414
      %v2420 = vpop.permute.xlu0 %2419
      %v2421 = vlaneseq
      %v2422 = vshrl.u32 %v2421, 7
      %v2423 = vadd.s32 %v2422, 8
      %2424 = vset.pattern.permute.xlu0 %v2423
      %2425 = vperm.xlu0 %2424, %v2414
      %v2426 = vpop.permute.xlu0 %2425
      %v2427 = vperm.slane %v1434, 4
      %v2428 = vlaneseq
      %v2429 = vshrl.u32 %v2428, 7
      %2431 = vset.pattern.permute.xlu0 %v2429
      %2432 = vperm.xlu0 %2431, %v2427
      %v2433 = vpop.permute.xlu0 %2432
      %v2434 = vlaneseq
      %v2435 = vshrl.u32 %v2434, 7
      %v2436 = vadd.s32 %v2435, 8
      %2437 = vset.pattern.permute.xlu0 %v2436
      %2438 = vperm.xlu0 %2437, %v2427
      %v2439 = vpop.permute.xlu0 %2438
      %v2440 = vperm.slane %v1434, 5
      %v2441 = vlaneseq
      %v2442 = vshrl.u32 %v2441, 7
      %2444 = vset.pattern.permute.xlu0 %v2442
      %2445 = vperm.xlu0 %2444, %v2440
      %v2446 = vpop.permute.xlu0 %2445
      %v2447 = vlaneseq
      %v2448 = vshrl.u32 %v2447, 7
      %v2449 = vadd.s32 %v2448, 8
      %2450 = vset.pattern.permute.xlu0 %v2449
      %2451 = vperm.xlu0 %2450, %v2440
      %v2452 = vpop.permute.xlu0 %2451
      %v2453 = vperm.slane %v1434, 6
      %v2454 = vlaneseq
      %v2455 = vshrl.u32 %v2454, 7
      %2457 = vset.pattern.permute.xlu0 %v2455
      %2458 = vperm.xlu0 %2457, %v2453
      %v2459 = vpop.permute.xlu0 %2458
      %v2460 = vlaneseq
      %v2461 = vshrl.u32 %v2460, 7
      %v2462 = vadd.s32 %v2461, 8
      %2463 = vset.pattern.permute.xlu0 %v2462
      %2464 = vperm.xlu0 %2463, %v2453
      %v2465 = vpop.permute.xlu0 %2464
      %v2466 = vperm.slane %v1434, 7
      %v2467 = vlaneseq
      %v2468 = vshrl.u32 %v2467, 7
      %2470 = vset.pattern.permute.xlu0 %v2468
      %2471 = vperm.xlu0 %2470, %v2466
      %v2472 = vpop.permute.xlu0 %2471
      %v2473 = vlaneseq
      %v2474 = vshrl.u32 %v2473, 7
      %v2475 = vadd.s32 %v2474, 8
      %2476 = vset.pattern.permute.xlu0 %v2475
      %2477 = vperm.xlu0 %2476, %v2466
      %v2478 = vpop.permute.xlu0 %2477
      %v2479 = vperm.slane %v1437, 0
      %v2480 = vlaneseq
      %v2481 = vshrl.u32 %v2480, 7
      %2483 = vset.pattern.permute.xlu0 %v2481
      %2484 = vperm.xlu0 %2483, %v2479
      %v2485 = vpop.permute.xlu0 %2484
      %v2486 = vlaneseq
      %v2487 = vshrl.u32 %v2486, 7
      %v2488 = vadd.s32 %v2487, 8
      %2489 = vset.pattern.permute.xlu0 %v2488
      %2490 = vperm.xlu0 %2489, %v2479
      %v2491 = vpop.permute.xlu0 %2490
      %v2492 = vperm.slane %v1437, 1
      %v2493 = vlaneseq
      %v2494 = vshrl.u32 %v2493, 7
      %2496 = vset.pattern.permute.xlu0 %v2494
      %2497 = vperm.xlu0 %2496, %v2492
      %v2498 = vpop.permute.xlu0 %2497
      %v2499 = vlaneseq
      %v2500 = vshrl.u32 %v2499, 7
      %v2501 = vadd.s32 %v2500, 8
      %2502 = vset.pattern.permute.xlu0 %v2501
      %2503 = vperm.xlu0 %2502, %v2492
      %v2504 = vpop.permute.xlu0 %2503
      %v2505 = vperm.slane %v1437, 2
      %v2506 = vlaneseq
      %v2507 = vshrl.u32 %v2506, 7
      %2509 = vset.pattern.permute.xlu0 %v2507
      %2510 = vperm.xlu0 %2509, %v2505
      %v2511 = vpop.permute.xlu0 %2510
      %v2512 = vlaneseq
      %v2513 = vshrl.u32 %v2512, 7
      %v2514 = vadd.s32 %v2513, 8
      %2515 = vset.pattern.permute.xlu0 %v2514
      %2516 = vperm.xlu0 %2515, %v2505
      %v2517 = vpop.permute.xlu0 %2516
      %v2518 = vperm.slane %v1437, 3
      %v2519 = vlaneseq
      %v2520 = vshrl.u32 %v2519, 7
      %2522 = vset.pattern.permute.xlu0 %v2520
      %2523 = vperm.xlu0 %2522, %v2518
      %v2524 = vpop.permute.xlu0 %2523
      %v2525 = vlaneseq
      %v2526 = vshrl.u32 %v2525, 7
      %v2527 = vadd.s32 %v2526, 8
      %2528 = vset.pattern.permute.xlu0 %v2527
      %2529 = vperm.xlu0 %2528, %v2518
      %v2530 = vpop.permute.xlu0 %2529
      %v2531 = vperm.slane %v1437, 4
      %v2532 = vlaneseq
      %v2533 = vshrl.u32 %v2532, 7
      %2535 = vset.pattern.permute.xlu0 %v2533
      %2536 = vperm.xlu0 %2535, %v2531
      %v2537 = vpop.permute.xlu0 %2536
      %v2538 = vlaneseq
      %v2539 = vshrl.u32 %v2538, 7
      %v2540 = vadd.s32 %v2539, 8
      %2541 = vset.pattern.permute.xlu0 %v2540
      %2542 = vperm.xlu0 %2541, %v2531
      %v2543 = vpop.permute.xlu0 %2542
      %v2544 = vperm.slane %v1437, 5
      %v2545 = vlaneseq
      %v2546 = vshrl.u32 %v2545, 7
      %2548 = vset.pattern.permute.xlu0 %v2546
      %2549 = vperm.xlu0 %2548, %v2544
      %v2550 = vpop.permute.xlu0 %2549
      %v2551 = vlaneseq
      %v2552 = vshrl.u32 %v2551, 7
      %v2553 = vadd.s32 %v2552, 8
      %2554 = vset.pattern.permute.xlu0 %v2553
      %2555 = vperm.xlu0 %2554, %v2544
      %v2556 = vpop.permute.xlu0 %2555
      %v2557 = vperm.slane %v1437, 6
      %v2558 = vlaneseq
      %v2559 = vshrl.u32 %v2558, 7
      %2561 = vset.pattern.permute.xlu0 %v2559
      %2562 = vperm.xlu0 %2561, %v2557
      %v2563 = vpop.permute.xlu0 %2562
      %v2564 = vlaneseq
      %v2565 = vshrl.u32 %v2564, 7
      %v2566 = vadd.s32 %v2565, 8
      %2567 = vset.pattern.permute.xlu0 %v2566
      %2568 = vperm.xlu0 %2567, %v2557
      %v2569 = vpop.permute.xlu0 %2568
      %v2570 = vperm.slane %v1437, 7
      %v2571 = vlaneseq
      %v2572 = vshrl.u32 %v2571, 7
      %2574 = vset.pattern.permute.xlu0 %v2572
      %2575 = vperm.xlu0 %2574, %v2570
      %v2576 = vpop.permute.xlu0 %2575
      %v2577 = vlaneseq
      %v2578 = vshrl.u32 %v2577, 7
      %v2579 = vadd.s32 %v2578, 8
      %2580 = vset.pattern.permute.xlu0 %v2579
      %2581 = vperm.xlu0 %2580, %v2570
      %v2582 = vpop.permute.xlu0 %2581
      %v2583 = vperm.slane %v1440, 0
      %v2584 = vlaneseq
      %v2585 = vshrl.u32 %v2584, 7
      %2587 = vset.pattern.permute.xlu0 %v2585
      %2588 = vperm.xlu0 %2587, %v2583
      %v2589 = vpop.permute.xlu0 %2588
      %v2590 = vlaneseq
      %v2591 = vshrl.u32 %v2590, 7
      %v2592 = vadd.s32 %v2591, 8
      %2593 = vset.pattern.permute.xlu0 %v2592
      %2594 = vperm.xlu0 %2593, %v2583
      %v2595 = vpop.permute.xlu0 %2594
      %v2596 = vperm.slane %v1440, 1
      %v2597 = vlaneseq
      %v2598 = vshrl.u32 %v2597, 7
      %2600 = vset.pattern.permute.xlu0 %v2598
      %2601 = vperm.xlu0 %2600, %v2596
      %v2602 = vpop.permute.xlu0 %2601
      %v2603 = vlaneseq
      %v2604 = vshrl.u32 %v2603, 7
      %v2605 = vadd.s32 %v2604, 8
      %2606 = vset.pattern.permute.xlu0 %v2605
      %2607 = vperm.xlu0 %2606, %v2596
      %v2608 = vpop.permute.xlu0 %2607
      %v2609 = vperm.slane %v1440, 2
      %v2610 = vlaneseq
      %v2611 = vshrl.u32 %v2610, 7
      %2613 = vset.pattern.permute.xlu0 %v2611
      %2614 = vperm.xlu0 %2613, %v2609
      %v2615 = vpop.permute.xlu0 %2614
      %v2616 = vlaneseq
      %v2617 = vshrl.u32 %v2616, 7
      %v2618 = vadd.s32 %v2617, 8
      %2619 = vset.pattern.permute.xlu0 %v2618
      %2620 = vperm.xlu0 %2619, %v2609
      %v2621 = vpop.permute.xlu0 %2620
      %v2622 = vperm.slane %v1440, 3
      %v2623 = vlaneseq
      %v2624 = vshrl.u32 %v2623, 7
      %2626 = vset.pattern.permute.xlu0 %v2624
      %2627 = vperm.xlu0 %2626, %v2622
      %v2628 = vpop.permute.xlu0 %2627
      %v2629 = vlaneseq
      %v2630 = vshrl.u32 %v2629, 7
      %v2631 = vadd.s32 %v2630, 8
      %2632 = vset.pattern.permute.xlu0 %v2631
      %2633 = vperm.xlu0 %2632, %v2622
      %v2634 = vpop.permute.xlu0 %2633
      %v2635 = vperm.slane %v1440, 4
      %v2636 = vlaneseq
      %v2637 = vshrl.u32 %v2636, 7
      %2639 = vset.pattern.permute.xlu0 %v2637
      %2640 = vperm.xlu0 %2639, %v2635
      %v2641 = vpop.permute.xlu0 %2640
      %v2642 = vlaneseq
      %v2643 = vshrl.u32 %v2642, 7
      %v2644 = vadd.s32 %v2643, 8
      %2645 = vset.pattern.permute.xlu0 %v2644
      %2646 = vperm.xlu0 %2645, %v2635
      %v2647 = vpop.permute.xlu0 %2646
      %v2648 = vperm.slane %v1440, 5
      %v2649 = vlaneseq
      %v2650 = vshrl.u32 %v2649, 7
      %2652 = vset.pattern.permute.xlu0 %v2650
      %2653 = vperm.xlu0 %2652, %v2648
      %v2654 = vpop.permute.xlu0 %2653
      %v2655 = vlaneseq
      %v2656 = vshrl.u32 %v2655, 7
      %v2657 = vadd.s32 %v2656, 8
      %2658 = vset.pattern.permute.xlu0 %v2657
      %2659 = vperm.xlu0 %2658, %v2648
      %v2660 = vpop.permute.xlu0 %2659
      %v2661 = vperm.slane %v1440, 6
      %v2662 = vlaneseq
      %v2663 = vshrl.u32 %v2662, 7
      %2665 = vset.pattern.permute.xlu0 %v2663
      %2666 = vperm.xlu0 %2665, %v2661
      %v2667 = vpop.permute.xlu0 %2666
      %v2668 = vlaneseq
      %v2669 = vshrl.u32 %v2668, 7
      %v2670 = vadd.s32 %v2669, 8
      %2671 = vset.pattern.permute.xlu0 %v2670
      %2672 = vperm.xlu0 %2671, %v2661
      %v2673 = vpop.permute.xlu0 %2672
      %v2674 = vperm.slane %v1440, 7
      %v2675 = vlaneseq
      %v2676 = vshrl.u32 %v2675, 7
      %2678 = vset.pattern.permute.xlu0 %v2676
      %2679 = vperm.xlu0 %2678, %v2674
      %v2680 = vpop.permute.xlu0 %2679
      %v2681 = vlaneseq
      %v2682 = vshrl.u32 %v2681, 7
      %v2683 = vadd.s32 %v2682, 8
      %2684 = vset.pattern.permute.xlu0 %v2683
      %2685 = vperm.xlu0 %2684, %v2674
      %v2686 = vpop.permute.xlu0 %2685
      %v2687 = vperm.slane %v1443, 0
      %v2688 = vlaneseq
      %v2689 = vshrl.u32 %v2688, 7
      %2691 = vset.pattern.permute.xlu0 %v2689
      %2692 = vperm.xlu0 %2691, %v2687
      %v2693 = vpop.permute.xlu0 %2692
      %v2694 = vlaneseq
      %v2695 = vshrl.u32 %v2694, 7
      %v2696 = vadd.s32 %v2695, 8
      %2697 = vset.pattern.permute.xlu0 %v2696
      %2698 = vperm.xlu0 %2697, %v2687
      %v2699 = vpop.permute.xlu0 %2698
      %v2700 = vperm.slane %v1443, 1
      %v2701 = vlaneseq
      %v2702 = vshrl.u32 %v2701, 7
      %2704 = vset.pattern.permute.xlu0 %v2702
      %2705 = vperm.xlu0 %2704, %v2700
      %v2706 = vpop.permute.xlu0 %2705
      %v2707 = vlaneseq
      %v2708 = vshrl.u32 %v2707, 7
      %v2709 = vadd.s32 %v2708, 8
      %2710 = vset.pattern.permute.xlu0 %v2709
      %2711 = vperm.xlu0 %2710, %v2700
      %v2712 = vpop.permute.xlu0 %2711
      %v2713 = vperm.slane %v1443, 2
      %v2714 = vlaneseq
      %v2715 = vshrl.u32 %v2714, 7
      %2717 = vset.pattern.permute.xlu0 %v2715
      %2718 = vperm.xlu0 %2717, %v2713
      %v2719 = vpop.permute.xlu0 %2718
      %v2720 = vlaneseq
      %v2721 = vshrl.u32 %v2720, 7
      %v2722 = vadd.s32 %v2721, 8
      %2723 = vset.pattern.permute.xlu0 %v2722
      %2724 = vperm.xlu0 %2723, %v2713
      %v2725 = vpop.permute.xlu0 %2724
      %v2726 = vperm.slane %v1443, 3
      %v2727 = vlaneseq
      %v2728 = vshrl.u32 %v2727, 7
      %2730 = vset.pattern.permute.xlu0 %v2728
      %2731 = vperm.xlu0 %2730, %v2726
      %v2732 = vpop.permute.xlu0 %2731
      %v2733 = vlaneseq
      %v2734 = vshrl.u32 %v2733, 7
      %v2735 = vadd.s32 %v2734, 8
      %2736 = vset.pattern.permute.xlu0 %v2735
      %2737 = vperm.xlu0 %2736, %v2726
      %v2738 = vpop.permute.xlu0 %2737
      %v2739 = vperm.slane %v1443, 4
      %v2740 = vlaneseq
      %v2741 = vshrl.u32 %v2740, 7
      %2743 = vset.pattern.permute.xlu0 %v2741
      %2744 = vperm.xlu0 %2743, %v2739
      %v2745 = vpop.permute.xlu0 %2744
      %v2746 = vlaneseq
      %v2747 = vshrl.u32 %v2746, 7
      %v2748 = vadd.s32 %v2747, 8
      %2749 = vset.pattern.permute.xlu0 %v2748
      %2750 = vperm.xlu0 %2749, %v2739
      %v2751 = vpop.permute.xlu0 %2750
      %v2752 = vperm.slane %v1443, 5
      %v2753 = vlaneseq
      %v2754 = vshrl.u32 %v2753, 7
      %2756 = vset.pattern.permute.xlu0 %v2754
      %2757 = vperm.xlu0 %2756, %v2752
      %v2758 = vpop.permute.xlu0 %2757
      %v2759 = vlaneseq
      %v2760 = vshrl.u32 %v2759, 7
      %v2761 = vadd.s32 %v2760, 8
      %2762 = vset.pattern.permute.xlu0 %v2761
      %2763 = vperm.xlu0 %2762, %v2752
      %v2764 = vpop.permute.xlu0 %2763
      %v2765 = vperm.slane %v1443, 6
      %v2766 = vlaneseq
      %v2767 = vshrl.u32 %v2766, 7
      %2769 = vset.pattern.permute.xlu0 %v2767
      %2770 = vperm.xlu0 %2769, %v2765
      %v2771 = vpop.permute.xlu0 %2770
      %v2772 = vlaneseq
      %v2773 = vshrl.u32 %v2772, 7
      %v2774 = vadd.s32 %v2773, 8
      %2775 = vset.pattern.permute.xlu0 %v2774
      %2776 = vperm.xlu0 %2775, %v2765
      %v2777 = vpop.permute.xlu0 %2776
      %v2778 = vperm.slane %v1443, 7
      %v2779 = vlaneseq
      %v2780 = vshrl.u32 %v2779, 7
      %2782 = vset.pattern.permute.xlu0 %v2780
      %2783 = vperm.xlu0 %2782, %v2778
      %v2784 = vpop.permute.xlu0 %2783
      %v2785 = vlaneseq
      %v2786 = vshrl.u32 %v2785, 7
      %v2787 = vadd.s32 %v2786, 8
      %2788 = vset.pattern.permute.xlu0 %v2787
      %2789 = vperm.xlu0 %2788, %v2778
      %v2790 = vpop.permute.xlu0 %2789
      %v2791 = vperm.slane %v1446, 0
      %v2792 = vlaneseq
      %v2793 = vshrl.u32 %v2792, 7
      %2795 = vset.pattern.permute.xlu0 %v2793
      %2796 = vperm.xlu0 %2795, %v2791
      %v2797 = vpop.permute.xlu0 %2796
      %v2798 = vlaneseq
      %v2799 = vshrl.u32 %v2798, 7
      %v2800 = vadd.s32 %v2799, 8
      %2801 = vset.pattern.permute.xlu0 %v2800
      %2802 = vperm.xlu0 %2801, %v2791
      %v2803 = vpop.permute.xlu0 %2802
      %v2804 = vperm.slane %v1446, 1
      %v2805 = vlaneseq
      %v2806 = vshrl.u32 %v2805, 7
      %2808 = vset.pattern.permute.xlu0 %v2806
      %2809 = vperm.xlu0 %2808, %v2804
      %v2810 = vpop.permute.xlu0 %2809
      %v2811 = vlaneseq
      %v2812 = vshrl.u32 %v2811, 7
      %v2813 = vadd.s32 %v2812, 8
      %2814 = vset.pattern.permute.xlu0 %v2813
      %2815 = vperm.xlu0 %2814, %v2804
      %v2816 = vpop.permute.xlu0 %2815
      %v2817 = vperm.slane %v1446, 2
      %v2818 = vlaneseq
      %v2819 = vshrl.u32 %v2818, 7
      %2821 = vset.pattern.permute.xlu0 %v2819
      %2822 = vperm.xlu0 %2821, %v2817
      %v2823 = vpop.permute.xlu0 %2822
      %v2824 = vlaneseq
      %v2825 = vshrl.u32 %v2824, 7
      %v2826 = vadd.s32 %v2825, 8
      %2827 = vset.pattern.permute.xlu0 %v2826
      %2828 = vperm.xlu0 %2827, %v2817
      %v2829 = vpop.permute.xlu0 %2828
      %v2830 = vperm.slane %v1446, 3
      %v2831 = vlaneseq
      %v2832 = vshrl.u32 %v2831, 7
      %2834 = vset.pattern.permute.xlu0 %v2832
      %2835 = vperm.xlu0 %2834, %v2830
      %v2836 = vpop.permute.xlu0 %2835
      %v2837 = vlaneseq
      %v2838 = vshrl.u32 %v2837, 7
      %v2839 = vadd.s32 %v2838, 8
      %2840 = vset.pattern.permute.xlu0 %v2839
      %2841 = vperm.xlu0 %2840, %v2830
      %v2842 = vpop.permute.xlu0 %2841
      %v2843 = vperm.slane %v1446, 4
      %v2844 = vlaneseq
      %v2845 = vshrl.u32 %v2844, 7
      %2847 = vset.pattern.permute.xlu0 %v2845
      %2848 = vperm.xlu0 %2847, %v2843
      %v2849 = vpop.permute.xlu0 %2848
      %v2850 = vlaneseq
      %v2851 = vshrl.u32 %v2850, 7
      %v2852 = vadd.s32 %v2851, 8
      %2853 = vset.pattern.permute.xlu0 %v2852
      %2854 = vperm.xlu0 %2853, %v2843
      %v2855 = vpop.permute.xlu0 %2854
      %v2856 = vperm.slane %v1446, 5
      %v2857 = vlaneseq
      %v2858 = vshrl.u32 %v2857, 7
      %2860 = vset.pattern.permute.xlu0 %v2858
      %2861 = vperm.xlu0 %2860, %v2856
      %v2862 = vpop.permute.xlu0 %2861
      %v2863 = vlaneseq
      %v2864 = vshrl.u32 %v2863, 7
      %v2865 = vadd.s32 %v2864, 8
      %2866 = vset.pattern.permute.xlu0 %v2865
      %2867 = vperm.xlu0 %2866, %v2856
      %v2868 = vpop.permute.xlu0 %2867
      %v2869 = vperm.slane %v1446, 6
      %v2870 = vlaneseq
      %v2871 = vshrl.u32 %v2870, 7
      %2873 = vset.pattern.permute.xlu0 %v2871
      %2874 = vperm.xlu0 %2873, %v2869
      %v2875 = vpop.permute.xlu0 %2874
      %v2876 = vlaneseq
      %v2877 = vshrl.u32 %v2876, 7
      %v2878 = vadd.s32 %v2877, 8
      %2879 = vset.pattern.permute.xlu0 %v2878
      %2880 = vperm.xlu0 %2879, %v2869
      %v2881 = vpop.permute.xlu0 %2880
      %v2882 = vperm.slane %v1446, 7
      %v2883 = vlaneseq
      %v2884 = vshrl.u32 %v2883, 7
      %2886 = vset.pattern.permute.xlu0 %v2884
      %2887 = vperm.xlu0 %2886, %v2882
      %v2888 = vpop.permute.xlu0 %2887
      %v2889 = vlaneseq
      %v2890 = vshrl.u32 %v2889, 7
      %v2891 = vadd.s32 %v2890, 8
      %2892 = vset.pattern.permute.xlu0 %v2891
      %2893 = vperm.xlu0 %2892, %v2882
      %v2894 = vpop.permute.xlu0 %2893
      %v2895 = vperm.slane %v1449, 0
      %v2896 = vlaneseq
      %v2897 = vshrl.u32 %v2896, 7
      %2899 = vset.pattern.permute.xlu0 %v2897
      %2900 = vperm.xlu0 %2899, %v2895
      %v2901 = vpop.permute.xlu0 %2900
      %v2902 = vlaneseq
      %v2903 = vshrl.u32 %v2902, 7
      %v2904 = vadd.s32 %v2903, 8
      %2905 = vset.pattern.permute.xlu0 %v2904
      %2906 = vperm.xlu0 %2905, %v2895
      %v2907 = vpop.permute.xlu0 %2906
      %v2908 = vperm.slane %v1449, 1
      %v2909 = vlaneseq
      %v2910 = vshrl.u32 %v2909, 7
      %2912 = vset.pattern.permute.xlu0 %v2910
      %2913 = vperm.xlu0 %2912, %v2908
      %v2914 = vpop.permute.xlu0 %2913
      %v2915 = vlaneseq
      %v2916 = vshrl.u32 %v2915, 7
      %v2917 = vadd.s32 %v2916, 8
      %2918 = vset.pattern.permute.xlu0 %v2917
      %2919 = vperm.xlu0 %2918, %v2908
      %v2920 = vpop.permute.xlu0 %2919
      %v2921 = vperm.slane %v1449, 2
      %v2922 = vlaneseq
      %v2923 = vshrl.u32 %v2922, 7
      %2925 = vset.pattern.permute.xlu0 %v2923
      %2926 = vperm.xlu0 %2925, %v2921
      %v2927 = vpop.permute.xlu0 %2926
      %v2928 = vlaneseq
      %v2929 = vshrl.u32 %v2928, 7
      %v2930 = vadd.s32 %v2929, 8
      %2931 = vset.pattern.permute.xlu0 %v2930
      %2932 = vperm.xlu0 %2931, %v2921
      %v2933 = vpop.permute.xlu0 %2932
      %v2934 = vperm.slane %v1449, 3
      %v2935 = vlaneseq
      %v2936 = vshrl.u32 %v2935, 7
      %2938 = vset.pattern.permute.xlu0 %v2936
      %2939 = vperm.xlu0 %2938, %v2934
      %v2940 = vpop.permute.xlu0 %2939
      %v2941 = vlaneseq
      %v2942 = vshrl.u32 %v2941, 7
      %v2943 = vadd.s32 %v2942, 8
      %2944 = vset.pattern.permute.xlu0 %v2943
      %2945 = vperm.xlu0 %2944, %v2934
      %v2946 = vpop.permute.xlu0 %2945
      %v2947 = vperm.slane %v1449, 4
      %v2948 = vlaneseq
      %v2949 = vshrl.u32 %v2948, 7
      %2951 = vset.pattern.permute.xlu0 %v2949
      %2952 = vperm.xlu0 %2951, %v2947
      %v2953 = vpop.permute.xlu0 %2952
      %v2954 = vlaneseq
      %v2955 = vshrl.u32 %v2954, 7
      %v2956 = vadd.s32 %v2955, 8
      %2957 = vset.pattern.permute.xlu0 %v2956
      %2958 = vperm.xlu0 %2957, %v2947
      %v2959 = vpop.permute.xlu0 %2958
      %v2960 = vperm.slane %v1449, 5
      %v2961 = vlaneseq
      %v2962 = vshrl.u32 %v2961, 7
      %2964 = vset.pattern.permute.xlu0 %v2962
      %2965 = vperm.xlu0 %2964, %v2960
      %v2966 = vpop.permute.xlu0 %2965
      %v2967 = vlaneseq
      %v2968 = vshrl.u32 %v2967, 7
      %v2969 = vadd.s32 %v2968, 8
      %2970 = vset.pattern.permute.xlu0 %v2969
      %2971 = vperm.xlu0 %2970, %v2960
      %v2972 = vpop.permute.xlu0 %2971
      %v2973 = vperm.slane %v1449, 6
      %v2974 = vlaneseq
      %v2975 = vshrl.u32 %v2974, 7
      %2977 = vset.pattern.permute.xlu0 %v2975
      %2978 = vperm.xlu0 %2977, %v2973
      %v2979 = vpop.permute.xlu0 %2978
      %v2980 = vlaneseq
      %v2981 = vshrl.u32 %v2980, 7
      %v2982 = vadd.s32 %v2981, 8
      %2983 = vset.pattern.permute.xlu0 %v2982
      %2984 = vperm.xlu0 %2983, %v2973
      %v2985 = vpop.permute.xlu0 %2984
      %v2986 = vperm.slane %v1449, 7
      %v2987 = vlaneseq
      %v2988 = vshrl.u32 %v2987, 7
      %2990 = vset.pattern.permute.xlu0 %v2988
      %2991 = vperm.xlu0 %2990, %v2986
      %v2992 = vpop.permute.xlu0 %2991
      %v2993 = vlaneseq
      %v2994 = vshrl.u32 %v2993, 7
      %v2995 = vadd.s32 %v2994, 8
      %2996 = vset.pattern.permute.xlu0 %v2995
      %2997 = vperm.xlu0 %2996, %v2986
      %v2998 = vpop.permute.xlu0 %2997
      %v2999 = vlaneseq
      %v3000 = vshrl.u32 %v2999, 7
      %v3001 = vadd.s32 %v3000, 16
      %3002 = vset.pattern.permute.xlu0 %v3001
      %3003 = vperm.xlu0 %3002, %v2167
      %v3004 = vpop.permute.xlu0 %3003
      %v3005 = vlaneseq
      %v3006 = vshrl.u32 %v3005, 7
      %v3007 = vadd.s32 %v3006, 24
      %3008 = vset.pattern.permute.xlu0 %v3007
      %3009 = vperm.xlu0 %3008, %v2167
      %v3010 = vpop.permute.xlu0 %3009
      %v3011 = vlaneseq
      %v3012 = vshrl.u32 %v3011, 7
      %v3013 = vadd.s32 %v3012, 16
      %3014 = vset.pattern.permute.xlu0 %v3013
      %3015 = vperm.xlu0 %3014, %v2180
      %v3016 = vpop.permute.xlu0 %3015
      %v3017 = vlaneseq
      %v3018 = vshrl.u32 %v3017, 7
      %v3019 = vadd.s32 %v3018, 24
      %3020 = vset.pattern.permute.xlu0 %v3019
      %3021 = vperm.xlu0 %3020, %v2180
      %v3022 = vpop.permute.xlu0 %3021
      %v3023 = vlaneseq
      %v3024 = vshrl.u32 %v3023, 7
      %v3025 = vadd.s32 %v3024, 16
      %3026 = vset.pattern.permute.xlu0 %v3025
      %3027 = vperm.xlu0 %3026, %v2193
      %v3028 = vpop.permute.xlu0 %3027
      %v3029 = vlaneseq
      %v3030 = vshrl.u32 %v3029, 7
      %v3031 = vadd.s32 %v3030, 24
      %3032 = vset.pattern.permute.xlu0 %v3031
      %3033 = vperm.xlu0 %3032, %v2193
      %v3034 = vpop.permute.xlu0 %3033
      %v3035 = vlaneseq
      %v3036 = vshrl.u32 %v3035, 7
      %v3037 = vadd.s32 %v3036, 16
      %3038 = vset.pattern.permute.xlu0 %v3037
      %3039 = vperm.xlu0 %3038, %v2206
      %v3040 = vpop.permute.xlu0 %3039
      %v3041 = vlaneseq
      %v3042 = vshrl.u32 %v3041, 7
      %v3043 = vadd.s32 %v3042, 24
      %3044 = vset.pattern.permute.xlu0 %v3043
      %3045 = vperm.xlu0 %3044, %v2206
      %v3046 = vpop.permute.xlu0 %3045
      %v3047 = vlaneseq
      %v3048 = vshrl.u32 %v3047, 7
      %v3049 = vadd.s32 %v3048, 16
      %3050 = vset.pattern.permute.xlu0 %v3049
      %3051 = vperm.xlu0 %3050, %v2219
      %v3052 = vpop.permute.xlu0 %3051
      %v3053 = vlaneseq
      %v3054 = vshrl.u32 %v3053, 7
      %v3055 = vadd.s32 %v3054, 24
      %3056 = vset.pattern.permute.xlu0 %v3055
      %3057 = vperm.xlu0 %3056, %v2219
      %v3058 = vpop.permute.xlu0 %3057
      %v3059 = vlaneseq
      %v3060 = vshrl.u32 %v3059, 7
      %v3061 = vadd.s32 %v3060, 16
      %3062 = vset.pattern.permute.xlu0 %v3061
      %3063 = vperm.xlu0 %3062, %v2232
      %v3064 = vpop.permute.xlu0 %3063
      %v3065 = vlaneseq
      %v3066 = vshrl.u32 %v3065, 7
      %v3067 = vadd.s32 %v3066, 24
      %3068 = vset.pattern.permute.xlu0 %v3067
      %3069 = vperm.xlu0 %3068, %v2232
      %v3070 = vpop.permute.xlu0 %3069
      %v3071 = vlaneseq
      %v3072 = vshrl.u32 %v3071, 7
      %v3073 = vadd.s32 %v3072, 16
      %3074 = vset.pattern.permute.xlu0 %v3073
      %3075 = vperm.xlu0 %3074, %v2245
      %v3076 = vpop.permute.xlu0 %3075
      %v3077 = vlaneseq
      %v3078 = vshrl.u32 %v3077, 7
      %v3079 = vadd.s32 %v3078, 24
      %3080 = vset.pattern.permute.xlu0 %v3079
      %3081 = vperm.xlu0 %3080, %v2245
      %v3082 = vpop.permute.xlu0 %3081
      %v3083 = vlaneseq
      %v3084 = vshrl.u32 %v3083, 7
      %v3085 = vadd.s32 %v3084, 16
      %3086 = vset.pattern.permute.xlu0 %v3085
      %3087 = vperm.xlu0 %3086, %v2258
      %v3088 = vpop.permute.xlu0 %3087
      %v3089 = vlaneseq
      %v3090 = vshrl.u32 %v3089, 7
      %v3091 = vadd.s32 %v3090, 24
      %3092 = vset.pattern.permute.xlu0 %v3091
      %3093 = vperm.xlu0 %3092, %v2258
      %v3094 = vpop.permute.xlu0 %3093
      %v3095 = vlaneseq
      %v3096 = vshrl.u32 %v3095, 7
      %v3097 = vadd.s32 %v3096, 16
      %3098 = vset.pattern.permute.xlu0 %v3097
      %3099 = vperm.xlu0 %3098, %v2271
      %v3100 = vpop.permute.xlu0 %3099
      %v3101 = vlaneseq
      %v3102 = vshrl.u32 %v3101, 7
      %v3103 = vadd.s32 %v3102, 24
      %3104 = vset.pattern.permute.xlu0 %v3103
      %3105 = vperm.xlu0 %3104, %v2271
      %v3106 = vpop.permute.xlu0 %3105
      %v3107 = vlaneseq
      %v3108 = vshrl.u32 %v3107, 7
      %v3109 = vadd.s32 %v3108, 16
      %3110 = vset.pattern.permute.xlu0 %v3109
      %3111 = vperm.xlu0 %3110, %v2284
      %v3112 = vpop.permute.xlu0 %3111
      %v3113 = vlaneseq
      %v3114 = vshrl.u32 %v3113, 7
      %v3115 = vadd.s32 %v3114, 24
      %3116 = vset.pattern.permute.xlu0 %v3115
      %3117 = vperm.xlu0 %3116, %v2284
      %v3118 = vpop.permute.xlu0 %3117
      %v3119 = vlaneseq
      %v3120 = vshrl.u32 %v3119, 7
      %v3121 = vadd.s32 %v3120, 16
      %3122 = vset.pattern.permute.xlu0 %v3121
      %3123 = vperm.xlu0 %3122, %v2297
      %v3124 = vpop.permute.xlu0 %3123
      %v3125 = vlaneseq
      %v3126 = vshrl.u32 %v3125, 7
      %v3127 = vadd.s32 %v3126, 24
      %3128 = vset.pattern.permute.xlu0 %v3127
      %3129 = vperm.xlu0 %3128, %v2297
      %v3130 = vpop.permute.xlu0 %3129
      %v3131 = vlaneseq
      %v3132 = vshrl.u32 %v3131, 7
      %v3133 = vadd.s32 %v3132, 16
      %3134 = vset.pattern.permute.xlu0 %v3133
      %3135 = vperm.xlu0 %3134, %v2310
      %v3136 = vpop.permute.xlu0 %3135
      %v3137 = vlaneseq
      %v3138 = vshrl.u32 %v3137, 7
      %v3139 = vadd.s32 %v3138, 24
      %3140 = vset.pattern.permute.xlu0 %v3139
      %3141 = vperm.xlu0 %3140, %v2310
      %v3142 = vpop.permute.xlu0 %3141
      %v3143 = vlaneseq
      %v3144 = vshrl.u32 %v3143, 7
      %v3145 = vadd.s32 %v3144, 16
      %3146 = vset.pattern.permute.xlu0 %v3145
      %3147 = vperm.xlu0 %3146, %v2323
      %v3148 = vpop.permute.xlu0 %3147
      %v3149 = vlaneseq
      %v3150 = vshrl.u32 %v3149, 7
      %v3151 = vadd.s32 %v3150, 24
      %3152 = vset.pattern.permute.xlu0 %v3151
      %3153 = vperm.xlu0 %3152, %v2323
      %v3154 = vpop.permute.xlu0 %3153
      %v3155 = vlaneseq
      %v3156 = vshrl.u32 %v3155, 7
      %v3157 = vadd.s32 %v3156, 16
      %3158 = vset.pattern.permute.xlu0 %v3157
      %3159 = vperm.xlu0 %3158, %v2336
      %v3160 = vpop.permute.xlu0 %3159
      %v3161 = vlaneseq
      %v3162 = vshrl.u32 %v3161, 7
      %v3163 = vadd.s32 %v3162, 24
      %3164 = vset.pattern.permute.xlu0 %v3163
      %3165 = vperm.xlu0 %3164, %v2336
      %v3166 = vpop.permute.xlu0 %3165
      %v3167 = vlaneseq
      %v3168 = vshrl.u32 %v3167, 7
      %v3169 = vadd.s32 %v3168, 16
      %3170 = vset.pattern.permute.xlu0 %v3169
      %3171 = vperm.xlu0 %3170, %v2349
      %v3172 = vpop.permute.xlu0 %3171
      %v3173 = vlaneseq
      %v3174 = vshrl.u32 %v3173, 7
      %v3175 = vadd.s32 %v3174, 24
      %3176 = vset.pattern.permute.xlu0 %v3175
      %3177 = vperm.xlu0 %3176, %v2349
      %v3178 = vpop.permute.xlu0 %3177
      %v3179 = vlaneseq
      %v3180 = vshrl.u32 %v3179, 7
      %v3181 = vadd.s32 %v3180, 16
      %3182 = vset.pattern.permute.xlu0 %v3181
      %3183 = vperm.xlu0 %3182, %v2362
      %v3184 = vpop.permute.xlu0 %3183
      %v3185 = vlaneseq
      %v3186 = vshrl.u32 %v3185, 7
      %v3187 = vadd.s32 %v3186, 24
      %3188 = vset.pattern.permute.xlu0 %v3187
      %3189 = vperm.xlu0 %3188, %v2362
      %v3190 = vpop.permute.xlu0 %3189
      %v3191 = vlaneseq
      %v3192 = vshrl.u32 %v3191, 7
      %v3193 = vadd.s32 %v3192, 16
      %3194 = vset.pattern.permute.xlu0 %v3193
      %3195 = vperm.xlu0 %3194, %v2375
      %v3196 = vpop.permute.xlu0 %3195
      %v3197 = vlaneseq
      %v3198 = vshrl.u32 %v3197, 7
      %v3199 = vadd.s32 %v3198, 24
      %3200 = vset.pattern.permute.xlu0 %v3199
      %3201 = vperm.xlu0 %3200, %v2375
      %v3202 = vpop.permute.xlu0 %3201
      %v3203 = vlaneseq
      %v3204 = vshrl.u32 %v3203, 7
      %v3205 = vadd.s32 %v3204, 16
      %3206 = vset.pattern.permute.xlu0 %v3205
      %3207 = vperm.xlu0 %3206, %v2388
      %v3208 = vpop.permute.xlu0 %3207
      %v3209 = vlaneseq
      %v3210 = vshrl.u32 %v3209, 7
      %v3211 = vadd.s32 %v3210, 24
      %3212 = vset.pattern.permute.xlu0 %v3211
      %3213 = vperm.xlu0 %3212, %v2388
      %v3214 = vpop.permute.xlu0 %3213
      %v3215 = vlaneseq
      %v3216 = vshrl.u32 %v3215, 7
      %v3217 = vadd.s32 %v3216, 16
      %3218 = vset.pattern.permute.xlu0 %v3217
      %3219 = vperm.xlu0 %3218, %v2401
      %v3220 = vpop.permute.xlu0 %3219
      %v3221 = vlaneseq
      %v3222 = vshrl.u32 %v3221, 7
      %v3223 = vadd.s32 %v3222, 24
      %3224 = vset.pattern.permute.xlu0 %v3223
      %3225 = vperm.xlu0 %3224, %v2401
      %v3226 = vpop.permute.xlu0 %3225
      %v3227 = vlaneseq
      %v3228 = vshrl.u32 %v3227, 7
      %v3229 = vadd.s32 %v3228, 16
      %3230 = vset.pattern.permute.xlu0 %v3229
      %3231 = vperm.xlu0 %3230, %v2414
      %v3232 = vpop.permute.xlu0 %3231
      %v3233 = vlaneseq
      %v3234 = vshrl.u32 %v3233, 7
      %v3235 = vadd.s32 %v3234, 24
      %3236 = vset.pattern.permute.xlu0 %v3235
      %3237 = vperm.xlu0 %3236, %v2414
      %v3238 = vpop.permute.xlu0 %3237
      %v3239 = vlaneseq
      %v3240 = vshrl.u32 %v3239, 7
      %v3241 = vadd.s32 %v3240, 16
      %3242 = vset.pattern.permute.xlu0 %v3241
      %3243 = vperm.xlu0 %3242, %v2427
      %v3244 = vpop.permute.xlu0 %3243
      %v3245 = vlaneseq
      %v3246 = vshrl.u32 %v3245, 7
      %v3247 = vadd.s32 %v3246, 24
      %3248 = vset.pattern.permute.xlu0 %v3247
      %3249 = vperm.xlu0 %3248, %v2427
      %v3250 = vpop.permute.xlu0 %3249
      %v3251 = vlaneseq
      %v3252 = vshrl.u32 %v3251, 7
      %v3253 = vadd.s32 %v3252, 16
      %3254 = vset.pattern.permute.xlu0 %v3253
      %3255 = vperm.xlu0 %3254, %v2440
      %v3256 = vpop.permute.xlu0 %3255
      %v3257 = vlaneseq
      %v3258 = vshrl.u32 %v3257, 7
      %v3259 = vadd.s32 %v3258, 24
      %3260 = vset.pattern.permute.xlu0 %v3259
      %3261 = vperm.xlu0 %3260, %v2440
      %v3262 = vpop.permute.xlu0 %3261
      %v3263 = vlaneseq
      %v3264 = vshrl.u32 %v3263, 7
      %v3265 = vadd.s32 %v3264, 16
      %3266 = vset.pattern.permute.xlu0 %v3265
      %3267 = vperm.xlu0 %3266, %v2453
      %v3268 = vpop.permute.xlu0 %3267
      %v3269 = vlaneseq
      %v3270 = vshrl.u32 %v3269, 7
      %v3271 = vadd.s32 %v3270, 24
      %3272 = vset.pattern.permute.xlu0 %v3271
      %3273 = vperm.xlu0 %3272, %v2453
      %v3274 = vpop.permute.xlu0 %3273
      %v3275 = vlaneseq
      %v3276 = vshrl.u32 %v3275, 7
      %v3277 = vadd.s32 %v3276, 16
      %3278 = vset.pattern.permute.xlu0 %v3277
      %3279 = vperm.xlu0 %3278, %v2466
      %v3280 = vpop.permute.xlu0 %3279
      %v3281 = vlaneseq
      %v3282 = vshrl.u32 %v3281, 7
      %v3283 = vadd.s32 %v3282, 24
      %3284 = vset.pattern.permute.xlu0 %v3283
      %3285 = vperm.xlu0 %3284, %v2466
      %v3286 = vpop.permute.xlu0 %3285
      %v3287 = vlaneseq
      %v3288 = vshrl.u32 %v3287, 7
      %v3289 = vadd.s32 %v3288, 16
      %3290 = vset.pattern.permute.xlu0 %v3289
      %3291 = vperm.xlu0 %3290, %v2479
      %v3292 = vpop.permute.xlu0 %3291
      %v3293 = vlaneseq
      %v3294 = vshrl.u32 %v3293, 7
      %v3295 = vadd.s32 %v3294, 24
      %3296 = vset.pattern.permute.xlu0 %v3295
      %3297 = vperm.xlu0 %3296, %v2479
      %v3298 = vpop.permute.xlu0 %3297
      %v3299 = vlaneseq
      %v3300 = vshrl.u32 %v3299, 7
      %v3301 = vadd.s32 %v3300, 16
      %3302 = vset.pattern.permute.xlu0 %v3301
      %3303 = vperm.xlu0 %3302, %v2492
      %v3304 = vpop.permute.xlu0 %3303
      %v3305 = vlaneseq
      %v3306 = vshrl.u32 %v3305, 7
      %v3307 = vadd.s32 %v3306, 24
      %3308 = vset.pattern.permute.xlu0 %v3307
      %3309 = vperm.xlu0 %3308, %v2492
      %v3310 = vpop.permute.xlu0 %3309
      %v3311 = vlaneseq
      %v3312 = vshrl.u32 %v3311, 7
      %v3313 = vadd.s32 %v3312, 16
      %3314 = vset.pattern.permute.xlu0 %v3313
      %3315 = vperm.xlu0 %3314, %v2505
      %v3316 = vpop.permute.xlu0 %3315
      %v3317 = vlaneseq
      %v3318 = vshrl.u32 %v3317, 7
      %v3319 = vadd.s32 %v3318, 24
      %3320 = vset.pattern.permute.xlu0 %v3319
      %3321 = vperm.xlu0 %3320, %v2505
      %v3322 = vpop.permute.xlu0 %3321
      %v3323 = vlaneseq
      %v3324 = vshrl.u32 %v3323, 7
      %v3325 = vadd.s32 %v3324, 16
      %3326 = vset.pattern.permute.xlu0 %v3325
      %3327 = vperm.xlu0 %3326, %v2518
      %v3328 = vpop.permute.xlu0 %3327
      %v3329 = vlaneseq
      %v3330 = vshrl.u32 %v3329, 7
      %v3331 = vadd.s32 %v3330, 24
      %3332 = vset.pattern.permute.xlu0 %v3331
      %3333 = vperm.xlu0 %3332, %v2518
      %v3334 = vpop.permute.xlu0 %3333
      %v3335 = vlaneseq
      %v3336 = vshrl.u32 %v3335, 7
      %v3337 = vadd.s32 %v3336, 16
      %3338 = vset.pattern.permute.xlu0 %v3337
      %3339 = vperm.xlu0 %3338, %v2531
      %v3340 = vpop.permute.xlu0 %3339
      %v3341 = vlaneseq
      %v3342 = vshrl.u32 %v3341, 7
      %v3343 = vadd.s32 %v3342, 24
      %3344 = vset.pattern.permute.xlu0 %v3343
      %3345 = vperm.xlu0 %3344, %v2531
      %v3346 = vpop.permute.xlu0 %3345
      %v3347 = vlaneseq
      %v3348 = vshrl.u32 %v3347, 7
      %v3349 = vadd.s32 %v3348, 16
      %3350 = vset.pattern.permute.xlu0 %v3349
      %3351 = vperm.xlu0 %3350, %v2544
      %v3352 = vpop.permute.xlu0 %3351
      %v3353 = vlaneseq
      %v3354 = vshrl.u32 %v3353, 7
      %v3355 = vadd.s32 %v3354, 24
      %3356 = vset.pattern.permute.xlu0 %v3355
      %3357 = vperm.xlu0 %3356, %v2544
      %v3358 = vpop.permute.xlu0 %3357
      %v3359 = vlaneseq
      %v3360 = vshrl.u32 %v3359, 7
      %v3361 = vadd.s32 %v3360, 16
      %3362 = vset.pattern.permute.xlu0 %v3361
      %3363 = vperm.xlu0 %3362, %v2557
      %v3364 = vpop.permute.xlu0 %3363
      %v3365 = vlaneseq
      %v3366 = vshrl.u32 %v3365, 7
      %v3367 = vadd.s32 %v3366, 24
      %3368 = vset.pattern.permute.xlu0 %v3367
      %3369 = vperm.xlu0 %3368, %v2557
      %v3370 = vpop.permute.xlu0 %3369
      %v3371 = vlaneseq
      %v3372 = vshrl.u32 %v3371, 7
      %v3373 = vadd.s32 %v3372, 16
      %3374 = vset.pattern.permute.xlu0 %v3373
      %3375 = vperm.xlu0 %3374, %v2570
      %v3376 = vpop.permute.xlu0 %3375
      %v3377 = vlaneseq
      %v3378 = vshrl.u32 %v3377, 7
      %v3379 = vadd.s32 %v3378, 24
      %3380 = vset.pattern.permute.xlu0 %v3379
      %3381 = vperm.xlu0 %3380, %v2570
      %v3382 = vpop.permute.xlu0 %3381
      %v3383 = vlaneseq
      %v3384 = vshrl.u32 %v3383, 7
      %v3385 = vadd.s32 %v3384, 16
      %3386 = vset.pattern.permute.xlu0 %v3385
      %3387 = vperm.xlu0 %3386, %v2583
      %v3388 = vpop.permute.xlu0 %3387
      %v3389 = vlaneseq
      %v3390 = vshrl.u32 %v3389, 7
      %v3391 = vadd.s32 %v3390, 24
      %3392 = vset.pattern.permute.xlu0 %v3391
      %3393 = vperm.xlu0 %3392, %v2583
      %v3394 = vpop.permute.xlu0 %3393
      %v3395 = vlaneseq
      %v3396 = vshrl.u32 %v3395, 7
      %v3397 = vadd.s32 %v3396, 16
      %3398 = vset.pattern.permute.xlu0 %v3397
      %3399 = vperm.xlu0 %3398, %v2596
      %v3400 = vpop.permute.xlu0 %3399
      %v3401 = vlaneseq
      %v3402 = vshrl.u32 %v3401, 7
      %v3403 = vadd.s32 %v3402, 24
      %3404 = vset.pattern.permute.xlu0 %v3403
      %3405 = vperm.xlu0 %3404, %v2596
      %v3406 = vpop.permute.xlu0 %3405
      %v3407 = vlaneseq
      %v3408 = vshrl.u32 %v3407, 7
      %v3409 = vadd.s32 %v3408, 16
      %3410 = vset.pattern.permute.xlu0 %v3409
      %3411 = vperm.xlu0 %3410, %v2609
      %v3412 = vpop.permute.xlu0 %3411
      %v3413 = vlaneseq
      %v3414 = vshrl.u32 %v3413, 7
      %v3415 = vadd.s32 %v3414, 24
      %3416 = vset.pattern.permute.xlu0 %v3415
      %3417 = vperm.xlu0 %3416, %v2609
      %v3418 = vpop.permute.xlu0 %3417
      %v3419 = vlaneseq
      %v3420 = vshrl.u32 %v3419, 7
      %v3421 = vadd.s32 %v3420, 16
      %3422 = vset.pattern.permute.xlu0 %v3421
      %3423 = vperm.xlu0 %3422, %v2622
      %v3424 = vpop.permute.xlu0 %3423
      %v3425 = vlaneseq
      %v3426 = vshrl.u32 %v3425, 7
      %v3427 = vadd.s32 %v3426, 24
      %3428 = vset.pattern.permute.xlu0 %v3427
      %3429 = vperm.xlu0 %3428, %v2622
      %v3430 = vpop.permute.xlu0 %3429
      %v3431 = vlaneseq
      %v3432 = vshrl.u32 %v3431, 7
      %v3433 = vadd.s32 %v3432, 16
      %3434 = vset.pattern.permute.xlu0 %v3433
      %3435 = vperm.xlu0 %3434, %v2635
      %v3436 = vpop.permute.xlu0 %3435
      %v3437 = vlaneseq
      %v3438 = vshrl.u32 %v3437, 7
      %v3439 = vadd.s32 %v3438, 24
      %3440 = vset.pattern.permute.xlu0 %v3439
      %3441 = vperm.xlu0 %3440, %v2635
      %v3442 = vpop.permute.xlu0 %3441
      %v3443 = vlaneseq
      %v3444 = vshrl.u32 %v3443, 7
      %v3445 = vadd.s32 %v3444, 16
      %3446 = vset.pattern.permute.xlu0 %v3445
      %3447 = vperm.xlu0 %3446, %v2648
      %v3448 = vpop.permute.xlu0 %3447
      %v3449 = vlaneseq
      %v3450 = vshrl.u32 %v3449, 7
      %v3451 = vadd.s32 %v3450, 24
      %3452 = vset.pattern.permute.xlu0 %v3451
      %3453 = vperm.xlu0 %3452, %v2648
      %v3454 = vpop.permute.xlu0 %3453
      %v3455 = vlaneseq
      %v3456 = vshrl.u32 %v3455, 7
      %v3457 = vadd.s32 %v3456, 16
      %3458 = vset.pattern.permute.xlu0 %v3457
      %3459 = vperm.xlu0 %3458, %v2661
      %v3460 = vpop.permute.xlu0 %3459
      %v3461 = vlaneseq
      %v3462 = vshrl.u32 %v3461, 7
      %v3463 = vadd.s32 %v3462, 24
      %3464 = vset.pattern.permute.xlu0 %v3463
      %3465 = vperm.xlu0 %3464, %v2661
      %v3466 = vpop.permute.xlu0 %3465
      %v3467 = vlaneseq
      %v3468 = vshrl.u32 %v3467, 7
      %v3469 = vadd.s32 %v3468, 16
      %3470 = vset.pattern.permute.xlu0 %v3469
      %3471 = vperm.xlu0 %3470, %v2674
      %v3472 = vpop.permute.xlu0 %3471
      %v3473 = vlaneseq
      %v3474 = vshrl.u32 %v3473, 7
      %v3475 = vadd.s32 %v3474, 24
      %3476 = vset.pattern.permute.xlu0 %v3475
      %3477 = vperm.xlu0 %3476, %v2674
      %v3478 = vpop.permute.xlu0 %3477
      %v3479 = vlaneseq
      %v3480 = vshrl.u32 %v3479, 7
      %v3481 = vadd.s32 %v3480, 16
      %3482 = vset.pattern.permute.xlu0 %v3481
      %3483 = vperm.xlu0 %3482, %v2687
      %v3484 = vpop.permute.xlu0 %3483
      %v3485 = vlaneseq
      %v3486 = vshrl.u32 %v3485, 7
      %v3487 = vadd.s32 %v3486, 24
      %3488 = vset.pattern.permute.xlu0 %v3487
      %3489 = vperm.xlu0 %3488, %v2687
      %v3490 = vpop.permute.xlu0 %3489
      %v3491 = vlaneseq
      %v3492 = vshrl.u32 %v3491, 7
      %v3493 = vadd.s32 %v3492, 16
      %3494 = vset.pattern.permute.xlu0 %v3493
      %3495 = vperm.xlu0 %3494, %v2700
      %v3496 = vpop.permute.xlu0 %3495
      %v3497 = vlaneseq
      %v3498 = vshrl.u32 %v3497, 7
      %v3499 = vadd.s32 %v3498, 24
      %3500 = vset.pattern.permute.xlu0 %v3499
      %3501 = vperm.xlu0 %3500, %v2700
      %v3502 = vpop.permute.xlu0 %3501
      %v3503 = vlaneseq
      %v3504 = vshrl.u32 %v3503, 7
      %v3505 = vadd.s32 %v3504, 16
      %3506 = vset.pattern.permute.xlu0 %v3505
      %3507 = vperm.xlu0 %3506, %v2713
      %v3508 = vpop.permute.xlu0 %3507
      %v3509 = vlaneseq
      %v3510 = vshrl.u32 %v3509, 7
      %v3511 = vadd.s32 %v3510, 24
      %3512 = vset.pattern.permute.xlu0 %v3511
      %3513 = vperm.xlu0 %3512, %v2713
      %v3514 = vpop.permute.xlu0 %3513
      %v3515 = vlaneseq
      %v3516 = vshrl.u32 %v3515, 7
      %v3517 = vadd.s32 %v3516, 16
      %3518 = vset.pattern.permute.xlu0 %v3517
      %3519 = vperm.xlu0 %3518, %v2726
      %v3520 = vpop.permute.xlu0 %3519
      %v3521 = vlaneseq
      %v3522 = vshrl.u32 %v3521, 7
      %v3523 = vadd.s32 %v3522, 24
      %3524 = vset.pattern.permute.xlu0 %v3523
      %3525 = vperm.xlu0 %3524, %v2726
      %v3526 = vpop.permute.xlu0 %3525
      %v3527 = vlaneseq
      %v3528 = vshrl.u32 %v3527, 7
      %v3529 = vadd.s32 %v3528, 16
      %3530 = vset.pattern.permute.xlu0 %v3529
      %3531 = vperm.xlu0 %3530, %v2739
      %v3532 = vpop.permute.xlu0 %3531
      %v3533 = vlaneseq
      %v3534 = vshrl.u32 %v3533, 7
      %v3535 = vadd.s32 %v3534, 24
      %3536 = vset.pattern.permute.xlu0 %v3535
      %3537 = vperm.xlu0 %3536, %v2739
      %v3538 = vpop.permute.xlu0 %3537
      %v3539 = vlaneseq
      %v3540 = vshrl.u32 %v3539, 7
      %v3541 = vadd.s32 %v3540, 16
      %3542 = vset.pattern.permute.xlu0 %v3541
      %3543 = vperm.xlu0 %3542, %v2752
      %v3544 = vpop.permute.xlu0 %3543
      %v3545 = vlaneseq
      %v3546 = vshrl.u32 %v3545, 7
      %v3547 = vadd.s32 %v3546, 24
      %3548 = vset.pattern.permute.xlu0 %v3547
      %3549 = vperm.xlu0 %3548, %v2752
      %v3550 = vpop.permute.xlu0 %3549
      %v3551 = vlaneseq
      %v3552 = vshrl.u32 %v3551, 7
      %v3553 = vadd.s32 %v3552, 16
      %3554 = vset.pattern.permute.xlu0 %v3553
      %3555 = vperm.xlu0 %3554, %v2765
      %v3556 = vpop.permute.xlu0 %3555
      %v3557 = vlaneseq
      %v3558 = vshrl.u32 %v3557, 7
      %v3559 = vadd.s32 %v3558, 24
      %3560 = vset.pattern.permute.xlu0 %v3559
      %3561 = vperm.xlu0 %3560, %v2765
      %v3562 = vpop.permute.xlu0 %3561
      %v3563 = vlaneseq
      %v3564 = vshrl.u32 %v3563, 7
      %v3565 = vadd.s32 %v3564, 16
      %3566 = vset.pattern.permute.xlu0 %v3565
      %3567 = vperm.xlu0 %3566, %v2778
      %v3568 = vpop.permute.xlu0 %3567
      %v3569 = vlaneseq
      %v3570 = vshrl.u32 %v3569, 7
      %v3571 = vadd.s32 %v3570, 24
      %3572 = vset.pattern.permute.xlu0 %v3571
      %3573 = vperm.xlu0 %3572, %v2778
      %v3574 = vpop.permute.xlu0 %3573
      %v3575 = vlaneseq
      %v3576 = vshrl.u32 %v3575, 7
      %v3577 = vadd.s32 %v3576, 16
      %3578 = vset.pattern.permute.xlu0 %v3577
      %3579 = vperm.xlu0 %3578, %v2791
      %v3580 = vpop.permute.xlu0 %3579
      %v3581 = vlaneseq
      %v3582 = vshrl.u32 %v3581, 7
      %v3583 = vadd.s32 %v3582, 24
      %3584 = vset.pattern.permute.xlu0 %v3583
      %3585 = vperm.xlu0 %3584, %v2791
      %v3586 = vpop.permute.xlu0 %3585
      %v3587 = vlaneseq
      %v3588 = vshrl.u32 %v3587, 7
      %v3589 = vadd.s32 %v3588, 16
      %3590 = vset.pattern.permute.xlu0 %v3589
      %3591 = vperm.xlu0 %3590, %v2804
      %v3592 = vpop.permute.xlu0 %3591
      %v3593 = vlaneseq
      %v3594 = vshrl.u32 %v3593, 7
      %v3595 = vadd.s32 %v3594, 24
      %3596 = vset.pattern.permute.xlu0 %v3595
      %3597 = vperm.xlu0 %3596, %v2804
      %v3598 = vpop.permute.xlu0 %3597
      %v3599 = vlaneseq
      %v3600 = vshrl.u32 %v3599, 7
      %v3601 = vadd.s32 %v3600, 16
      %3602 = vset.pattern.permute.xlu0 %v3601
      %3603 = vperm.xlu0 %3602, %v2817
      %v3604 = vpop.permute.xlu0 %3603
      %v3605 = vlaneseq
      %v3606 = vshrl.u32 %v3605, 7
      %v3607 = vadd.s32 %v3606, 24
      %3608 = vset.pattern.permute.xlu0 %v3607
      %3609 = vperm.xlu0 %3608, %v2817
      %v3610 = vpop.permute.xlu0 %3609
      %v3611 = vlaneseq
      %v3612 = vshrl.u32 %v3611, 7
      %v3613 = vadd.s32 %v3612, 16
      %3614 = vset.pattern.permute.xlu0 %v3613
      %3615 = vperm.xlu0 %3614, %v2830
      %v3616 = vpop.permute.xlu0 %3615
      %v3617 = vlaneseq
      %v3618 = vshrl.u32 %v3617, 7
      %v3619 = vadd.s32 %v3618, 24
      %3620 = vset.pattern.permute.xlu0 %v3619
      %3621 = vperm.xlu0 %3620, %v2830
      %v3622 = vpop.permute.xlu0 %3621
      %v3623 = vlaneseq
      %v3624 = vshrl.u32 %v3623, 7
      %v3625 = vadd.s32 %v3624, 16
      %3626 = vset.pattern.permute.xlu0 %v3625
      %3627 = vperm.xlu0 %3626, %v2843
      %v3628 = vpop.permute.xlu0 %3627
      %v3629 = vlaneseq
      %v3630 = vshrl.u32 %v3629, 7
      %v3631 = vadd.s32 %v3630, 24
      %3632 = vset.pattern.permute.xlu0 %v3631
      %3633 = vperm.xlu0 %3632, %v2843
      %v3634 = vpop.permute.xlu0 %3633
      %v3635 = vlaneseq
      %v3636 = vshrl.u32 %v3635, 7
      %v3637 = vadd.s32 %v3636, 16
      %3638 = vset.pattern.permute.xlu0 %v3637
      %3639 = vperm.xlu0 %3638, %v2856
      %v3640 = vpop.permute.xlu0 %3639
      %v3641 = vlaneseq
      %v3642 = vshrl.u32 %v3641, 7
      %v3643 = vadd.s32 %v3642, 24
      %3644 = vset.pattern.permute.xlu0 %v3643
      %3645 = vperm.xlu0 %3644, %v2856
      %v3646 = vpop.permute.xlu0 %3645
      %v3647 = vlaneseq
      %v3648 = vshrl.u32 %v3647, 7
      %v3649 = vadd.s32 %v3648, 16
      %3650 = vset.pattern.permute.xlu0 %v3649
      %3651 = vperm.xlu0 %3650, %v2869
      %v3652 = vpop.permute.xlu0 %3651
      %v3653 = vlaneseq
      %v3654 = vshrl.u32 %v3653, 7
      %v3655 = vadd.s32 %v3654, 24
      %3656 = vset.pattern.permute.xlu0 %v3655
      %3657 = vperm.xlu0 %3656, %v2869
      %v3658 = vpop.permute.xlu0 %3657
      %v3659 = vlaneseq
      %v3660 = vshrl.u32 %v3659, 7
      %v3661 = vadd.s32 %v3660, 16
      %3662 = vset.pattern.permute.xlu0 %v3661
      %3663 = vperm.xlu0 %3662, %v2882
      %v3664 = vpop.permute.xlu0 %3663
      %v3665 = vlaneseq
      %v3666 = vshrl.u32 %v3665, 7
      %v3667 = vadd.s32 %v3666, 24
      %3668 = vset.pattern.permute.xlu0 %v3667
      %3669 = vperm.xlu0 %3668, %v2882
      %v3670 = vpop.permute.xlu0 %3669
      %v3671 = vlaneseq
      %v3672 = vshrl.u32 %v3671, 7
      %v3673 = vadd.s32 %v3672, 16
      %3674 = vset.pattern.permute.xlu0 %v3673
      %3675 = vperm.xlu0 %3674, %v2895
      %v3676 = vpop.permute.xlu0 %3675
      %v3677 = vlaneseq
      %v3678 = vshrl.u32 %v3677, 7
      %v3679 = vadd.s32 %v3678, 24
      %3680 = vset.pattern.permute.xlu0 %v3679
      %3681 = vperm.xlu0 %3680, %v2895
      %v3682 = vpop.permute.xlu0 %3681
      %v3683 = vlaneseq
      %v3684 = vshrl.u32 %v3683, 7
      %v3685 = vadd.s32 %v3684, 16
      %3686 = vset.pattern.permute.xlu0 %v3685
      %3687 = vperm.xlu0 %3686, %v2908
      %v3688 = vpop.permute.xlu0 %3687
      %v3689 = vlaneseq
      %v3690 = vshrl.u32 %v3689, 7
      %v3691 = vadd.s32 %v3690, 24
      %3692 = vset.pattern.permute.xlu0 %v3691
      %3693 = vperm.xlu0 %3692, %v2908
      %v3694 = vpop.permute.xlu0 %3693
      %v3695 = vlaneseq
      %v3696 = vshrl.u32 %v3695, 7
      %v3697 = vadd.s32 %v3696, 16
      %3698 = vset.pattern.permute.xlu0 %v3697
      %3699 = vperm.xlu0 %3698, %v2921
      %v3700 = vpop.permute.xlu0 %3699
      %v3701 = vlaneseq
      %v3702 = vshrl.u32 %v3701, 7
      %v3703 = vadd.s32 %v3702, 24
      %3704 = vset.pattern.permute.xlu0 %v3703
      %3705 = vperm.xlu0 %3704, %v2921
      %v3706 = vpop.permute.xlu0 %3705
      %v3707 = vlaneseq
      %v3708 = vshrl.u32 %v3707, 7
      %v3709 = vadd.s32 %v3708, 16
      %3710 = vset.pattern.permute.xlu0 %v3709
      %3711 = vperm.xlu0 %3710, %v2934
      %v3712 = vpop.permute.xlu0 %3711
      %v3713 = vlaneseq
      %v3714 = vshrl.u32 %v3713, 7
      %v3715 = vadd.s32 %v3714, 24
      %3716 = vset.pattern.permute.xlu0 %v3715
      %3717 = vperm.xlu0 %3716, %v2934
      %v3718 = vpop.permute.xlu0 %3717
      %v3719 = vlaneseq
      %v3720 = vshrl.u32 %v3719, 7
      %v3721 = vadd.s32 %v3720, 16
      %3722 = vset.pattern.permute.xlu0 %v3721
      %3723 = vperm.xlu0 %3722, %v2947
      %v3724 = vpop.permute.xlu0 %3723
      %v3725 = vlaneseq
      %v3726 = vshrl.u32 %v3725, 7
      %v3727 = vadd.s32 %v3726, 24
      %3728 = vset.pattern.permute.xlu0 %v3727
      %3729 = vperm.xlu0 %3728, %v2947
      %v3730 = vpop.permute.xlu0 %3729
      %v3731 = vlaneseq
      %v3732 = vshrl.u32 %v3731, 7
      %v3733 = vadd.s32 %v3732, 16
      %3734 = vset.pattern.permute.xlu0 %v3733
      %3735 = vperm.xlu0 %3734, %v2960
      %v3736 = vpop.permute.xlu0 %3735
      %v3737 = vlaneseq
      %v3738 = vshrl.u32 %v3737, 7
      %v3739 = vadd.s32 %v3738, 24
      %3740 = vset.pattern.permute.xlu0 %v3739
      %3741 = vperm.xlu0 %3740, %v2960
      %v3742 = vpop.permute.xlu0 %3741
      %v3743 = vlaneseq
      %v3744 = vshrl.u32 %v3743, 7
      %v3745 = vadd.s32 %v3744, 16
      %3746 = vset.pattern.permute.xlu0 %v3745
      %3747 = vperm.xlu0 %3746, %v2973
      %v3748 = vpop.permute.xlu0 %3747
      %v3749 = vlaneseq
      %v3750 = vshrl.u32 %v3749, 7
      %v3751 = vadd.s32 %v3750, 24
      %3752 = vset.pattern.permute.xlu0 %v3751
      %3753 = vperm.xlu0 %3752, %v2973
      %v3754 = vpop.permute.xlu0 %3753
      %v3755 = vlaneseq
      %v3756 = vshrl.u32 %v3755, 7
      %v3757 = vadd.s32 %v3756, 16
      %3758 = vset.pattern.permute.xlu0 %v3757
      %3759 = vperm.xlu0 %3758, %v2986
      %v3760 = vpop.permute.xlu0 %3759
      %v3761 = vlaneseq
      %v3762 = vshrl.u32 %v3761, 7
      %v3763 = vadd.s32 %v3762, 24
      %3764 = vset.pattern.permute.xlu0 %v3763
      %3765 = vperm.xlu0 %3764, %v2986
      %v3766 = vpop.permute.xlu0 %3765
      %v3767 = vsel %vm290, %v2173, %v3004
      %v3768 = vsel %vm290, %v2179, %v3010
      %v3769 = vsel %vm290, %v2186, %v3016
      %v3770 = vsel %vm290, %v2192, %v3022
      %v3771 = vsel %vm290, %v2199, %v3028
      %v3772 = vsel %vm290, %v2205, %v3034
      %v3773 = vsel %vm290, %v2212, %v3040
      %v3774 = vsel %vm290, %v2218, %v3046
      %v3775 = vsel %vm290, %v2225, %v3052
      %v3776 = vsel %vm290, %v2231, %v3058
      %v3777 = vsel %vm290, %v2238, %v3064
      %v3778 = vsel %vm290, %v2244, %v3070
      %v3779 = vsel %vm290, %v2251, %v3076
      %v3780 = vsel %vm290, %v2257, %v3082
      %v3781 = vsel %vm290, %v2264, %v3088
      %v3782 = vsel %vm290, %v2270, %v3094
      %v3783 = vsel %vm290, %v2277, %v3100
      %v3784 = vsel %vm290, %v2283, %v3106
      %v3785 = vsel %vm290, %v2290, %v3112
      %v3786 = vsel %vm290, %v2296, %v3118
      %v3787 = vsel %vm290, %v2303, %v3124
      %v3788 = vsel %vm290, %v2309, %v3130
      %v3789 = vsel %vm290, %v2316, %v3136
      %v3790 = vsel %vm290, %v2322, %v3142
      %v3791 = vsel %vm290, %v2329, %v3148
      %v3792 = vsel %vm290, %v2335, %v3154
      %v3793 = vsel %vm290, %v2342, %v3160
      %v3794 = vsel %vm290, %v2348, %v3166
      %v3795 = vsel %vm290, %v2355, %v3172
      %v3796 = vsel %vm290, %v2361, %v3178
      %v3797 = vsel %vm290, %v2368, %v3184
      %v3798 = vsel %vm290, %v2374, %v3190
      %v3799 = vsel %vm290, %v2381, %v3196
      %v3800 = vsel %vm290, %v2387, %v3202
      %v3801 = vsel %vm290, %v2394, %v3208
      %v3802 = vsel %vm290, %v2400, %v3214
      %v3803 = vsel %vm290, %v2407, %v3220
      %v3804 = vsel %vm290, %v2413, %v3226
      %v3805 = vsel %vm290, %v2420, %v3232
      %v3806 = vsel %vm290, %v2426, %v3238
      %v3807 = vsel %vm290, %v2433, %v3244
      %v3808 = vsel %vm290, %v2439, %v3250
      %v3809 = vsel %vm290, %v2446, %v3256
      %v3810 = vsel %vm290, %v2452, %v3262
      %v3811 = vsel %vm290, %v2459, %v3268
      %v3812 = vsel %vm290, %v2465, %v3274
      %v3813 = vsel %vm290, %v2472, %v3280
      %v3814 = vsel %vm290, %v2478, %v3286
      %v3815 = vsel %vm290, %v2485, %v3292
      %v3816 = vsel %vm290, %v2491, %v3298
      %v3817 = vsel %vm290, %v2498, %v3304
      %v3818 = vsel %vm290, %v2504, %v3310
      %v3819 = vsel %vm290, %v2511, %v3316
      %v3820 = vsel %vm290, %v2517, %v3322
      %v3821 = vsel %vm290, %v2524, %v3328
      %v3822 = vsel %vm290, %v2530, %v3334
      %v3823 = vsel %vm290, %v2537, %v3340
      %v3824 = vsel %vm290, %v2543, %v3346
      %v3825 = vsel %vm290, %v2550, %v3352
      %v3826 = vsel %vm290, %v2556, %v3358
      %v3827 = vsel %vm290, %v2563, %v3364
      %v3828 = vsel %vm290, %v2569, %v3370
      %v3829 = vsel %vm290, %v2576, %v3376
      %v3830 = vsel %vm290, %v2582, %v3382
      %v3831 = vsel %vm290, %v2589, %v3388
      %v3832 = vsel %vm290, %v2595, %v3394
      %v3833 = vsel %vm290, %v2602, %v3400
      %v3834 = vsel %vm290, %v2608, %v3406
      %v3835 = vsel %vm290, %v2615, %v3412
      %v3836 = vsel %vm290, %v2621, %v3418
      %v3837 = vsel %vm290, %v2628, %v3424
      %v3838 = vsel %vm290, %v2634, %v3430
      %v3839 = vsel %vm290, %v2641, %v3436
      %v3840 = vsel %vm290, %v2647, %v3442
      %v3841 = vsel %vm290, %v2654, %v3448
      %v3842 = vsel %vm290, %v2660, %v3454
      %v3843 = vsel %vm290, %v2667, %v3460
      %v3844 = vsel %vm290, %v2673, %v3466
      %v3845 = vsel %vm290, %v2680, %v3472
      %v3846 = vsel %vm290, %v2686, %v3478
      %v3847 = vsel %vm290, %v2693, %v3484
      %v3848 = vsel %vm290, %v2699, %v3490
      %v3849 = vsel %vm290, %v2706, %v3496
      %v3850 = vsel %vm290, %v2712, %v3502
      %v3851 = vsel %vm290, %v2719, %v3508
      %v3852 = vsel %vm290, %v2725, %v3514
      %v3853 = vsel %vm290, %v2732, %v3520
      %v3854 = vsel %vm290, %v2738, %v3526
      %v3855 = vsel %vm290, %v2745, %v3532
      %v3856 = vsel %vm290, %v2751, %v3538
      %v3857 = vsel %vm290, %v2758, %v3544
      %v3858 = vsel %vm290, %v2764, %v3550
      %v3859 = vsel %vm290, %v2771, %v3556
      %v3860 = vsel %vm290, %v2777, %v3562
      %v3861 = vsel %vm290, %v2784, %v3568
      %v3862 = vsel %vm290, %v2790, %v3574
      %v3863 = vsel %vm290, %v2797, %v3580
      %v3864 = vsel %vm290, %v2803, %v3586
      %v3865 = vsel %vm290, %v2810, %v3592
      %v3866 = vsel %vm290, %v2816, %v3598
      %v3867 = vsel %vm290, %v2823, %v3604
      %v3868 = vsel %vm290, %v2829, %v3610
      %v3869 = vsel %vm290, %v2836, %v3616
      %v3870 = vsel %vm290, %v2842, %v3622
      %v3871 = vsel %vm290, %v2849, %v3628
      %v3872 = vsel %vm290, %v2855, %v3634
      %v3873 = vsel %vm290, %v2862, %v3640
      %v3874 = vsel %vm290, %v2868, %v3646
      %v3875 = vsel %vm290, %v2875, %v3652
      %v3876 = vsel %vm290, %v2881, %v3658
      %v3877 = vsel %vm290, %v2888, %v3664
      %v3878 = vsel %vm290, %v2894, %v3670
      %v3879 = vsel %vm290, %v2901, %v3676
      %v3880 = vsel %vm290, %v2907, %v3682
      %v3881 = vsel %vm290, %v2914, %v3688
      %v3882 = vsel %vm290, %v2920, %v3694
      %v3883 = vsel %vm290, %v2927, %v3700
      %v3884 = vsel %vm290, %v2933, %v3706
      %v3885 = vsel %vm290, %v2940, %v3712
      %v3886 = vsel %vm290, %v2946, %v3718
      %v3887 = vsel %vm290, %v2953, %v3724
      %v3888 = vsel %vm290, %v2959, %v3730
      %v3889 = vsel %vm290, %v2966, %v3736
      %v3890 = vsel %vm290, %v2972, %v3742
      %v3891 = vsel %vm290, %v2979, %v3748
      %v3892 = vsel %vm290, %v2985, %v3754
      %v3893 = vsel %vm290, %v2992, %v3760
      %v3894 = vsel %vm290, %v2998, %v3766
      %v3895 = vperm.slane %v2095, 0
      %v3896 = vperm.slane %v2111, 0
      %v3897 = vperm.slane %v2112, 0
      %v3898 = vperm.slane %v2113, 0
      %v3899 = vperm.slane %v2114, 0
      %v3900 = vperm.slane %v2115, 0
      %v3901 = vperm.slane %v2116, 0
      %v3902 = vperm.slane %v2117, 0
      %v3903 = vperm.slane %v2096, 0
      %v3904 = vperm.slane %v2118, 0
      %v3905 = vperm.slane %v2119, 0
      %v3906 = vperm.slane %v2120, 0
      %v3907 = vperm.slane %v2121, 0
      %v3908 = vperm.slane %v2122, 0
      %v3909 = vperm.slane %v2123, 0
      %v3910 = vperm.slane %v2124, 0
      %v3911 = vperm.slane %v2097, 0
      %v3912 = vperm.slane %v2125, 0
      %v3913 = vperm.slane %v2126, 0
      %v3914 = vperm.slane %v2127, 0
      %v3915 = vperm.slane %v2128, 0
      %v3916 = vperm.slane %v2129, 0
      %v3917 = vperm.slane %v2130, 0
      %v3918 = vperm.slane %v2131, 0
      %v3919 = vperm.slane %v2098, 0
      %v3920 = vperm.slane %v2132, 0
      %v3921 = vperm.slane %v2133, 0
      %v3922 = vperm.slane %v2134, 0
      %v3923 = vperm.slane %v2135, 0
      %v3924 = vperm.slane %v2136, 0
      %v3925 = vperm.slane %v2137, 0
      %v3926 = vperm.slane %v2138, 0
      %v3927 = vperm.slane %v2099, 0
      %v3928 = vperm.slane %v2139, 0
      %v3929 = vperm.slane %v2140, 0
      %v3930 = vperm.slane %v2141, 0
      %v3931 = vperm.slane %v2142, 0
      %v3932 = vperm.slane %v2143, 0
      %v3933 = vperm.slane %v2144, 0
      %v3934 = vperm.slane %v2145, 0
      %v3935 = vperm.slane %v2100, 0
      %v3936 = vperm.slane %v2146, 0
      %v3937 = vperm.slane %v2147, 0
      %v3938 = vperm.slane %v2148, 0
      %v3939 = vperm.slane %v2149, 0
      %v3940 = vperm.slane %v2150, 0
      %v3941 = vperm.slane %v2151, 0
      %v3942 = vperm.slane %v2152, 0
      %v3943 = vperm.slane %v2101, 0
      %v3944 = vperm.slane %v2153, 0
      %v3945 = vperm.slane %v2154, 0
      %v3946 = vperm.slane %v2155, 0
      %v3947 = vperm.slane %v2156, 0
      %v3948 = vperm.slane %v2157, 0
      %v3949 = vperm.slane %v2158, 0
      %v3950 = vperm.slane %v2159, 0
      %v3951 = vperm.slane %v2102, 0
      %v3952 = vperm.slane %v2160, 0
      %v3953 = vperm.slane %v2161, 0
      %v3954 = vperm.slane %v2162, 0
      %v3955 = vperm.slane %v2163, 0
      %v3956 = vperm.slane %v2164, 0
      %v3957 = vperm.slane %v2165, 0
      %v3958 = vperm.slane %v2166, 0
      %v4023 = vmul.f32 %v3895, %v3767
      %v4024 = vmul.f32 %v3895, %v3768
      %v4025 = vmul.f32 %v3896, %v3769
      %v4026 = vmul.f32 %v3896, %v3770
      %v4027 = vmul.f32 %v3897, %v3771
      %v4028 = vmul.f32 %v3897, %v3772
      %v4029 = vmul.f32 %v3898, %v3773
      %v4030 = vmul.f32 %v3898, %v3774
      %v4031 = vmul.f32 %v3899, %v3775
      %v4032 = vmul.f32 %v3899, %v3776
      %v4033 = vmul.f32 %v3900, %v3777
      %v4034 = vmul.f32 %v3900, %v3778
      %v4035 = vmul.f32 %v3901, %v3779
      %v4036 = vmul.f32 %v3901, %v3780
      %v4037 = vmul.f32 %v3902, %v3781
      %v4038 = vmul.f32 %v3902, %v3782
      %v4039 = vmul.f32 %v3903, %v3783
      %v4040 = vmul.f32 %v3903, %v3784
      %v4041 = vmul.f32 %v3904, %v3785
      %v4042 = vmul.f32 %v3904, %v3786
      %v4043 = vmul.f32 %v3905, %v3787
      %v4044 = vmul.f32 %v3905, %v3788
      %v4045 = vmul.f32 %v3906, %v3789
      %v4046 = vmul.f32 %v3906, %v3790
      %v4047 = vmul.f32 %v3907, %v3791
      %v4048 = vmul.f32 %v3907, %v3792
      %v4049 = vmul.f32 %v3908, %v3793
      %v4050 = vmul.f32 %v3908, %v3794
      %v4051 = vmul.f32 %v3909, %v3795
      %v4052 = vmul.f32 %v3909, %v3796
      %v4053 = vmul.f32 %v3910, %v3797
      %v4054 = vmul.f32 %v3910, %v3798
      %v4055 = vmul.f32 %v3911, %v3799
      %v4056 = vmul.f32 %v3911, %v3800
      %v4057 = vmul.f32 %v3912, %v3801
      %v4058 = vmul.f32 %v3912, %v3802
      %v4059 = vmul.f32 %v3913, %v3803
      %v4060 = vmul.f32 %v3913, %v3804
      %v4061 = vmul.f32 %v3914, %v3805
      %v4062 = vmul.f32 %v3914, %v3806
      %v4063 = vmul.f32 %v3915, %v3807
      %v4064 = vmul.f32 %v3915, %v3808
      %v4065 = vmul.f32 %v3916, %v3809
      %v4066 = vmul.f32 %v3916, %v3810
      %v4067 = vmul.f32 %v3917, %v3811
      %v4068 = vmul.f32 %v3917, %v3812
      %v4069 = vmul.f32 %v3918, %v3813
      %v4070 = vmul.f32 %v3918, %v3814
      %v4071 = vmul.f32 %v3919, %v3815
      %v4072 = vmul.f32 %v3919, %v3816
      %v4073 = vmul.f32 %v3920, %v3817
      %v4074 = vmul.f32 %v3920, %v3818
      %v4075 = vmul.f32 %v3921, %v3819
      %v4076 = vmul.f32 %v3921, %v3820
      %v4077 = vmul.f32 %v3922, %v3821
      %v4078 = vmul.f32 %v3922, %v3822
      %v4079 = vmul.f32 %v3923, %v3823
      %v4080 = vmul.f32 %v3923, %v3824
      %v4081 = vmul.f32 %v3924, %v3825
      %v4082 = vmul.f32 %v3924, %v3826
      %v4083 = vmul.f32 %v3925, %v3827
      %v4084 = vmul.f32 %v3925, %v3828
      %v4085 = vmul.f32 %v3926, %v3829
      %v4086 = vmul.f32 %v3926, %v3830
      %v4087 = vmul.f32 %v3927, %v3831
      %v4088 = vmul.f32 %v3927, %v3832
      %v4089 = vmul.f32 %v3928, %v3833
      %v4090 = vmul.f32 %v3928, %v3834
      %v4091 = vmul.f32 %v3929, %v3835
      %v4092 = vmul.f32 %v3929, %v3836
      %v4093 = vmul.f32 %v3930, %v3837
      %v4094 = vmul.f32 %v3930, %v3838
      %v4095 = vmul.f32 %v3931, %v3839
      %v4096 = vmul.f32 %v3931, %v3840
      %v4097 = vmul.f32 %v3932, %v3841
      %v4098 = vmul.f32 %v3932, %v3842
      %v4099 = vmul.f32 %v3933, %v3843
      %v4100 = vmul.f32 %v3933, %v3844
      %v4101 = vmul.f32 %v3934, %v3845
      %v4102 = vmul.f32 %v3934, %v3846
      %v4103 = vmul.f32 %v3935, %v3847
      %v4104 = vmul.f32 %v3935, %v3848
      %v4105 = vmul.f32 %v3936, %v3849
      %v4106 = vmul.f32 %v3936, %v3850
      %v4107 = vmul.f32 %v3937, %v3851
      %v4108 = vmul.f32 %v3937, %v3852
      %v4109 = vmul.f32 %v3938, %v3853
      %v4110 = vmul.f32 %v3938, %v3854
      %v4111 = vmul.f32 %v3939, %v3855
      %v4112 = vmul.f32 %v3939, %v3856
      %v4113 = vmul.f32 %v3940, %v3857
      %v4114 = vmul.f32 %v3940, %v3858
      %v4115 = vmul.f32 %v3941, %v3859
      %v4116 = vmul.f32 %v3941, %v3860
      %v4117 = vmul.f32 %v3942, %v3861
      %v4118 = vmul.f32 %v3942, %v3862
      %v4119 = vmul.f32 %v3943, %v3863
      %v4120 = vmul.f32 %v3943, %v3864
      %v4121 = vmul.f32 %v3944, %v3865
      %v4122 = vmul.f32 %v3944, %v3866
      %v4123 = vmul.f32 %v3945, %v3867
      %v4124 = vmul.f32 %v3945, %v3868
      %v4125 = vmul.f32 %v3946, %v3869
      %v4126 = vmul.f32 %v3946, %v3870
      %v4127 = vmul.f32 %v3947, %v3871
      %v4128 = vmul.f32 %v3947, %v3872
      %v4129 = vmul.f32 %v3948, %v3873
      %v4130 = vmul.f32 %v3948, %v3874
      %v4131 = vmul.f32 %v3949, %v3875
      %v4132 = vmul.f32 %v3949, %v3876
      %v4133 = vmul.f32 %v3950, %v3877
      %v4134 = vmul.f32 %v3950, %v3878
      %v4135 = vmul.f32 %v3951, %v3879
      %v4136 = vmul.f32 %v3951, %v3880
      %v4137 = vmul.f32 %v3952, %v3881
      %v4138 = vmul.f32 %v3952, %v3882
      %v4139 = vmul.f32 %v3953, %v3883
      %v4140 = vmul.f32 %v3953, %v3884
      %v4141 = vmul.f32 %v3954, %v3885
      %v4142 = vmul.f32 %v3954, %v3886
      %v4143 = vmul.f32 %v3955, %v3887
      %v4144 = vmul.f32 %v3955, %v3888
      %v4145 = vmul.f32 %v3956, %v3889
      %v4146 = vmul.f32 %v3956, %v3890
      %v4147 = vmul.f32 %v3957, %v3891
      %v4148 = vmul.f32 %v3957, %v3892
      %v4149 = vmul.f32 %v3958, %v3893
      %v4150 = vmul.f32 %v3958, %v3894
      %v4151 = vperm.slane %v1486, 0
      %v4152 = vlaneseq
      %v4153 = vshrl.u32 %v4152, 7
      %4155 = vset.pattern.permute.xlu0 %v4153
      %4156 = vperm.xlu0 %4155, %v4151
      %v4157 = vpop.permute.xlu0 %4156
      %v4158 = vlaneseq
      %v4159 = vshrl.u32 %v4158, 7
      %v4160 = vadd.s32 %v4159, 8
      %4161 = vset.pattern.permute.xlu0 %v4160
      %4162 = vperm.xlu0 %4161, %v4151
      %v4163 = vpop.permute.xlu0 %4162
      %v4164 = vperm.slane %v1486, 1
      %v4165 = vlaneseq
      %v4166 = vshrl.u32 %v4165, 7
      %4168 = vset.pattern.permute.xlu0 %v4166
      %4169 = vperm.xlu0 %4168, %v4164
      %v4170 = vpop.permute.xlu0 %4169
      %v4171 = vlaneseq
      %v4172 = vshrl.u32 %v4171, 7
      %v4173 = vadd.s32 %v4172, 8
      %4174 = vset.pattern.permute.xlu0 %v4173
      %4175 = vperm.xlu0 %4174, %v4164
      %v4176 = vpop.permute.xlu0 %4175
      %v4177 = vperm.slane %v1486, 2
      %v4178 = vlaneseq
      %v4179 = vshrl.u32 %v4178, 7
      %4181 = vset.pattern.permute.xlu0 %v4179
      %4182 = vperm.xlu0 %4181, %v4177
      %v4183 = vpop.permute.xlu0 %4182
      %v4184 = vlaneseq
      %v4185 = vshrl.u32 %v4184, 7
      %v4186 = vadd.s32 %v4185, 8
      %4187 = vset.pattern.permute.xlu0 %v4186
      %4188 = vperm.xlu0 %4187, %v4177
      %v4189 = vpop.permute.xlu0 %4188
      %v4190 = vperm.slane %v1486, 3
      %v4191 = vlaneseq
      %v4192 = vshrl.u32 %v4191, 7
      %4194 = vset.pattern.permute.xlu0 %v4192
      %4195 = vperm.xlu0 %4194, %v4190
      %v4196 = vpop.permute.xlu0 %4195
      %v4197 = vlaneseq
      %v4198 = vshrl.u32 %v4197, 7
      %v4199 = vadd.s32 %v4198, 8
      %4200 = vset.pattern.permute.xlu0 %v4199
      %4201 = vperm.xlu0 %4200, %v4190
      %v4202 = vpop.permute.xlu0 %4201
      %v4203 = vperm.slane %v1486, 4
      %v4204 = vlaneseq
      %v4205 = vshrl.u32 %v4204, 7
      %4207 = vset.pattern.permute.xlu0 %v4205
      %4208 = vperm.xlu0 %4207, %v4203
      %v4209 = vpop.permute.xlu0 %4208
      %v4210 = vlaneseq
      %v4211 = vshrl.u32 %v4210, 7
      %v4212 = vadd.s32 %v4211, 8
      %4213 = vset.pattern.permute.xlu0 %v4212
      %4214 = vperm.xlu0 %4213, %v4203
      %v4215 = vpop.permute.xlu0 %4214
      %v4216 = vperm.slane %v1486, 5
      %v4217 = vlaneseq
      %v4218 = vshrl.u32 %v4217, 7
      %4220 = vset.pattern.permute.xlu0 %v4218
      %4221 = vperm.xlu0 %4220, %v4216
      %v4222 = vpop.permute.xlu0 %4221
      %v4223 = vlaneseq
      %v4224 = vshrl.u32 %v4223, 7
      %v4225 = vadd.s32 %v4224, 8
      %4226 = vset.pattern.permute.xlu0 %v4225
      %4227 = vperm.xlu0 %4226, %v4216
      %v4228 = vpop.permute.xlu0 %4227
      %v4229 = vperm.slane %v1486, 6
      %v4230 = vlaneseq
      %v4231 = vshrl.u32 %v4230, 7
      %4233 = vset.pattern.permute.xlu0 %v4231
      %4234 = vperm.xlu0 %4233, %v4229
      %v4235 = vpop.permute.xlu0 %4234
      %v4236 = vlaneseq
      %v4237 = vshrl.u32 %v4236, 7
      %v4238 = vadd.s32 %v4237, 8
      %4239 = vset.pattern.permute.xlu0 %v4238
      %4240 = vperm.xlu0 %4239, %v4229
      %v4241 = vpop.permute.xlu0 %4240
      %v4242 = vperm.slane %v1486, 7
      %v4243 = vlaneseq
      %v4244 = vshrl.u32 %v4243, 7
      %4246 = vset.pattern.permute.xlu0 %v4244
      %4247 = vperm.xlu0 %4246, %v4242
      %v4248 = vpop.permute.xlu0 %4247
      %v4249 = vlaneseq
      %v4250 = vshrl.u32 %v4249, 7
      %v4251 = vadd.s32 %v4250, 8
      %4252 = vset.pattern.permute.xlu0 %v4251
      %4253 = vperm.xlu0 %4252, %v4242
      %v4254 = vpop.permute.xlu0 %4253
      %v4255 = vperm.slane %v1489, 0
      %v4256 = vlaneseq
      %v4257 = vshrl.u32 %v4256, 7
      %4259 = vset.pattern.permute.xlu0 %v4257
      %4260 = vperm.xlu0 %4259, %v4255
      %v4261 = vpop.permute.xlu0 %4260
      %v4262 = vlaneseq
      %v4263 = vshrl.u32 %v4262, 7
      %v4264 = vadd.s32 %v4263, 8
      %4265 = vset.pattern.permute.xlu0 %v4264
      %4266 = vperm.xlu0 %4265, %v4255
      %v4267 = vpop.permute.xlu0 %4266
      %v4268 = vperm.slane %v1489, 1
      %v4269 = vlaneseq
      %v4270 = vshrl.u32 %v4269, 7
      %4272 = vset.pattern.permute.xlu0 %v4270
      %4273 = vperm.xlu0 %4272, %v4268
      %v4274 = vpop.permute.xlu0 %4273
      %v4275 = vlaneseq
      %v4276 = vshrl.u32 %v4275, 7
      %v4277 = vadd.s32 %v4276, 8
      %4278 = vset.pattern.permute.xlu0 %v4277
      %4279 = vperm.xlu0 %4278, %v4268
      %v4280 = vpop.permute.xlu0 %4279
      %v4281 = vperm.slane %v1489, 2
      %v4282 = vlaneseq
      %v4283 = vshrl.u32 %v4282, 7
      %4285 = vset.pattern.permute.xlu0 %v4283
      %4286 = vperm.xlu0 %4285, %v4281
      %v4287 = vpop.permute.xlu0 %4286
      %v4288 = vlaneseq
      %v4289 = vshrl.u32 %v4288, 7
      %v4290 = vadd.s32 %v4289, 8
      %4291 = vset.pattern.permute.xlu0 %v4290
      %4292 = vperm.xlu0 %4291, %v4281
      %v4293 = vpop.permute.xlu0 %4292
      %v4294 = vperm.slane %v1489, 3
      %v4295 = vlaneseq
      %v4296 = vshrl.u32 %v4295, 7
      %4298 = vset.pattern.permute.xlu0 %v4296
      %4299 = vperm.xlu0 %4298, %v4294
      %v4300 = vpop.permute.xlu0 %4299
      %v4301 = vlaneseq
      %v4302 = vshrl.u32 %v4301, 7
      %v4303 = vadd.s32 %v4302, 8
      %4304 = vset.pattern.permute.xlu0 %v4303
      %4305 = vperm.xlu0 %4304, %v4294
      %v4306 = vpop.permute.xlu0 %4305
      %v4307 = vperm.slane %v1489, 4
      %v4308 = vlaneseq
      %v4309 = vshrl.u32 %v4308, 7
      %4311 = vset.pattern.permute.xlu0 %v4309
      %4312 = vperm.xlu0 %4311, %v4307
      %v4313 = vpop.permute.xlu0 %4312
      %v4314 = vlaneseq
      %v4315 = vshrl.u32 %v4314, 7
      %v4316 = vadd.s32 %v4315, 8
      %4317 = vset.pattern.permute.xlu0 %v4316
      %4318 = vperm.xlu0 %4317, %v4307
      %v4319 = vpop.permute.xlu0 %4318
      %v4320 = vperm.slane %v1489, 5
      %v4321 = vlaneseq
      %v4322 = vshrl.u32 %v4321, 7
      %4324 = vset.pattern.permute.xlu0 %v4322
      %4325 = vperm.xlu0 %4324, %v4320
      %v4326 = vpop.permute.xlu0 %4325
      %v4327 = vlaneseq
      %v4328 = vshrl.u32 %v4327, 7
      %v4329 = vadd.s32 %v4328, 8
      %4330 = vset.pattern.permute.xlu0 %v4329
      %4331 = vperm.xlu0 %4330, %v4320
      %v4332 = vpop.permute.xlu0 %4331
      %v4333 = vperm.slane %v1489, 6
      %v4334 = vlaneseq
      %v4335 = vshrl.u32 %v4334, 7
      %4337 = vset.pattern.permute.xlu0 %v4335
      %4338 = vperm.xlu0 %4337, %v4333
      %v4339 = vpop.permute.xlu0 %4338
      %v4340 = vlaneseq
      %v4341 = vshrl.u32 %v4340, 7
      %v4342 = vadd.s32 %v4341, 8
      %4343 = vset.pattern.permute.xlu0 %v4342
      %4344 = vperm.xlu0 %4343, %v4333
      %v4345 = vpop.permute.xlu0 %4344
      %v4346 = vperm.slane %v1489, 7
      %v4347 = vlaneseq
      %v4348 = vshrl.u32 %v4347, 7
      %4350 = vset.pattern.permute.xlu0 %v4348
      %4351 = vperm.xlu0 %4350, %v4346
      %v4352 = vpop.permute.xlu0 %4351
      %v4353 = vlaneseq
      %v4354 = vshrl.u32 %v4353, 7
      %v4355 = vadd.s32 %v4354, 8
      %4356 = vset.pattern.permute.xlu0 %v4355
      %4357 = vperm.xlu0 %4356, %v4346
      %v4358 = vpop.permute.xlu0 %4357
      %v4359 = vperm.slane %v1492, 0
      %v4360 = vlaneseq
      %v4361 = vshrl.u32 %v4360, 7
      %4363 = vset.pattern.permute.xlu0 %v4361
      %4364 = vperm.xlu0 %4363, %v4359
      %v4365 = vpop.permute.xlu0 %4364
      %v4366 = vlaneseq
      %v4367 = vshrl.u32 %v4366, 7
      %v4368 = vadd.s32 %v4367, 8
      %4369 = vset.pattern.permute.xlu0 %v4368
      %4370 = vperm.xlu0 %4369, %v4359
      %v4371 = vpop.permute.xlu0 %4370
      %v4372 = vperm.slane %v1492, 1
      %v4373 = vlaneseq
      %v4374 = vshrl.u32 %v4373, 7
      %4376 = vset.pattern.permute.xlu0 %v4374
      %4377 = vperm.xlu0 %4376, %v4372
      %v4378 = vpop.permute.xlu0 %4377
      %v4379 = vlaneseq
      %v4380 = vshrl.u32 %v4379, 7
      %v4381 = vadd.s32 %v4380, 8
      %4382 = vset.pattern.permute.xlu0 %v4381
      %4383 = vperm.xlu0 %4382, %v4372
      %v4384 = vpop.permute.xlu0 %4383
      %v4385 = vperm.slane %v1492, 2
      %v4386 = vlaneseq
      %v4387 = vshrl.u32 %v4386, 7
      %4389 = vset.pattern.permute.xlu0 %v4387
      %4390 = vperm.xlu0 %4389, %v4385
      %v4391 = vpop.permute.xlu0 %4390
      %v4392 = vlaneseq
      %v4393 = vshrl.u32 %v4392, 7
      %v4394 = vadd.s32 %v4393, 8
      %4395 = vset.pattern.permute.xlu0 %v4394
      %4396 = vperm.xlu0 %4395, %v4385
      %v4397 = vpop.permute.xlu0 %4396
      %v4398 = vperm.slane %v1492, 3
      %v4399 = vlaneseq
      %v4400 = vshrl.u32 %v4399, 7
      %4402 = vset.pattern.permute.xlu0 %v4400
      %4403 = vperm.xlu0 %4402, %v4398
      %v4404 = vpop.permute.xlu0 %4403
      %v4405 = vlaneseq
      %v4406 = vshrl.u32 %v4405, 7
      %v4407 = vadd.s32 %v4406, 8
      %4408 = vset.pattern.permute.xlu0 %v4407
      %4409 = vperm.xlu0 %4408, %v4398
      %v4410 = vpop.permute.xlu0 %4409
      %v4411 = vperm.slane %v1492, 4
      %v4412 = vlaneseq
      %v4413 = vshrl.u32 %v4412, 7
      %4415 = vset.pattern.permute.xlu0 %v4413
      %4416 = vperm.xlu0 %4415, %v4411
      %v4417 = vpop.permute.xlu0 %4416
      %v4418 = vlaneseq
      %v4419 = vshrl.u32 %v4418, 7
      %v4420 = vadd.s32 %v4419, 8
      %4421 = vset.pattern.permute.xlu0 %v4420
      %4422 = vperm.xlu0 %4421, %v4411
      %v4423 = vpop.permute.xlu0 %4422
      %v4424 = vperm.slane %v1492, 5
      %v4425 = vlaneseq
      %v4426 = vshrl.u32 %v4425, 7
      %4428 = vset.pattern.permute.xlu0 %v4426
      %4429 = vperm.xlu0 %4428, %v4424
      %v4430 = vpop.permute.xlu0 %4429
      %v4431 = vlaneseq
      %v4432 = vshrl.u32 %v4431, 7
      %v4433 = vadd.s32 %v4432, 8
      %4434 = vset.pattern.permute.xlu0 %v4433
      %4435 = vperm.xlu0 %4434, %v4424
      %v4436 = vpop.permute.xlu0 %4435
      %v4437 = vperm.slane %v1492, 6
      %v4438 = vlaneseq
      %v4439 = vshrl.u32 %v4438, 7
      %4441 = vset.pattern.permute.xlu0 %v4439
      %4442 = vperm.xlu0 %4441, %v4437
      %v4443 = vpop.permute.xlu0 %4442
      %v4444 = vlaneseq
      %v4445 = vshrl.u32 %v4444, 7
      %v4446 = vadd.s32 %v4445, 8
      %4447 = vset.pattern.permute.xlu0 %v4446
      %4448 = vperm.xlu0 %4447, %v4437
      %v4449 = vpop.permute.xlu0 %4448
      %v4450 = vperm.slane %v1492, 7
      %v4451 = vlaneseq
      %v4452 = vshrl.u32 %v4451, 7
      %4454 = vset.pattern.permute.xlu0 %v4452
      %4455 = vperm.xlu0 %4454, %v4450
      %v4456 = vpop.permute.xlu0 %4455
      %v4457 = vlaneseq
      %v4458 = vshrl.u32 %v4457, 7
      %v4459 = vadd.s32 %v4458, 8
      %4460 = vset.pattern.permute.xlu0 %v4459
      %4461 = vperm.xlu0 %4460, %v4450
      %v4462 = vpop.permute.xlu0 %4461
      %v4463 = vperm.slane %v1495, 0
      %v4464 = vlaneseq
      %v4465 = vshrl.u32 %v4464, 7
      %4467 = vset.pattern.permute.xlu0 %v4465
      %4468 = vperm.xlu0 %4467, %v4463
      %v4469 = vpop.permute.xlu0 %4468
      %v4470 = vlaneseq
      %v4471 = vshrl.u32 %v4470, 7
      %v4472 = vadd.s32 %v4471, 8
      %4473 = vset.pattern.permute.xlu0 %v4472
      %4474 = vperm.xlu0 %4473, %v4463
      %v4475 = vpop.permute.xlu0 %4474
      %v4476 = vperm.slane %v1495, 1
      %v4477 = vlaneseq
      %v4478 = vshrl.u32 %v4477, 7
      %4480 = vset.pattern.permute.xlu0 %v4478
      %4481 = vperm.xlu0 %4480, %v4476
      %v4482 = vpop.permute.xlu0 %4481
      %v4483 = vlaneseq
      %v4484 = vshrl.u32 %v4483, 7
      %v4485 = vadd.s32 %v4484, 8
      %4486 = vset.pattern.permute.xlu0 %v4485
      %4487 = vperm.xlu0 %4486, %v4476
      %v4488 = vpop.permute.xlu0 %4487
      %v4489 = vperm.slane %v1495, 2
      %v4490 = vlaneseq
      %v4491 = vshrl.u32 %v4490, 7
      %4493 = vset.pattern.permute.xlu0 %v4491
      %4494 = vperm.xlu0 %4493, %v4489
      %v4495 = vpop.permute.xlu0 %4494
      %v4496 = vlaneseq
      %v4497 = vshrl.u32 %v4496, 7
      %v4498 = vadd.s32 %v4497, 8
      %4499 = vset.pattern.permute.xlu0 %v4498
      %4500 = vperm.xlu0 %4499, %v4489
      %v4501 = vpop.permute.xlu0 %4500
      %v4502 = vperm.slane %v1495, 3
      %v4503 = vlaneseq
      %v4504 = vshrl.u32 %v4503, 7
      %4506 = vset.pattern.permute.xlu0 %v4504
      %4507 = vperm.xlu0 %4506, %v4502
      %v4508 = vpop.permute.xlu0 %4507
      %v4509 = vlaneseq
      %v4510 = vshrl.u32 %v4509, 7
      %v4511 = vadd.s32 %v4510, 8
      %4512 = vset.pattern.permute.xlu0 %v4511
      %4513 = vperm.xlu0 %4512, %v4502
      %v4514 = vpop.permute.xlu0 %4513
      %v4515 = vperm.slane %v1495, 4
      %v4516 = vlaneseq
      %v4517 = vshrl.u32 %v4516, 7
      %4519 = vset.pattern.permute.xlu0 %v4517
      %4520 = vperm.xlu0 %4519, %v4515
      %v4521 = vpop.permute.xlu0 %4520
      %v4522 = vlaneseq
      %v4523 = vshrl.u32 %v4522, 7
      %v4524 = vadd.s32 %v4523, 8
      %4525 = vset.pattern.permute.xlu0 %v4524
      %4526 = vperm.xlu0 %4525, %v4515
      %v4527 = vpop.permute.xlu0 %4526
      %v4528 = vperm.slane %v1495, 5
      %v4529 = vlaneseq
      %v4530 = vshrl.u32 %v4529, 7
      %4532 = vset.pattern.permute.xlu0 %v4530
      %4533 = vperm.xlu0 %4532, %v4528
      %v4534 = vpop.permute.xlu0 %4533
      %v4535 = vlaneseq
      %v4536 = vshrl.u32 %v4535, 7
      %v4537 = vadd.s32 %v4536, 8
      %4538 = vset.pattern.permute.xlu0 %v4537
      %4539 = vperm.xlu0 %4538, %v4528
      %v4540 = vpop.permute.xlu0 %4539
      %v4541 = vperm.slane %v1495, 6
      %v4542 = vlaneseq
      %v4543 = vshrl.u32 %v4542, 7
      %4545 = vset.pattern.permute.xlu0 %v4543
      %4546 = vperm.xlu0 %4545, %v4541
      %v4547 = vpop.permute.xlu0 %4546
      %v4548 = vlaneseq
      %v4549 = vshrl.u32 %v4548, 7
      %v4550 = vadd.s32 %v4549, 8
      %4551 = vset.pattern.permute.xlu0 %v4550
      %4552 = vperm.xlu0 %4551, %v4541
      %v4553 = vpop.permute.xlu0 %4552
      %v4554 = vperm.slane %v1495, 7
      %v4555 = vlaneseq
      %v4556 = vshrl.u32 %v4555, 7
      %4558 = vset.pattern.permute.xlu0 %v4556
      %4559 = vperm.xlu0 %4558, %v4554
      %v4560 = vpop.permute.xlu0 %4559
      %v4561 = vlaneseq
      %v4562 = vshrl.u32 %v4561, 7
      %v4563 = vadd.s32 %v4562, 8
      %4564 = vset.pattern.permute.xlu0 %v4563
      %4565 = vperm.xlu0 %4564, %v4554
      %v4566 = vpop.permute.xlu0 %4565
      %v4567 = vperm.slane %v1498, 0
      %v4568 = vlaneseq
      %v4569 = vshrl.u32 %v4568, 7
      %4571 = vset.pattern.permute.xlu0 %v4569
      %4572 = vperm.xlu0 %4571, %v4567
      %v4573 = vpop.permute.xlu0 %4572
      %v4574 = vlaneseq
      %v4575 = vshrl.u32 %v4574, 7
      %v4576 = vadd.s32 %v4575, 8
      %4577 = vset.pattern.permute.xlu0 %v4576
      %4578 = vperm.xlu0 %4577, %v4567
      %v4579 = vpop.permute.xlu0 %4578
      %v4580 = vperm.slane %v1498, 1
      %v4581 = vlaneseq
      %v4582 = vshrl.u32 %v4581, 7
      %4584 = vset.pattern.permute.xlu0 %v4582
      %4585 = vperm.xlu0 %4584, %v4580
      %v4586 = vpop.permute.xlu0 %4585
      %v4587 = vlaneseq
      %v4588 = vshrl.u32 %v4587, 7
      %v4589 = vadd.s32 %v4588, 8
      %4590 = vset.pattern.permute.xlu0 %v4589
      %4591 = vperm.xlu0 %4590, %v4580
      %v4592 = vpop.permute.xlu0 %4591
      %v4593 = vperm.slane %v1498, 2
      %v4594 = vlaneseq
      %v4595 = vshrl.u32 %v4594, 7
      %4597 = vset.pattern.permute.xlu0 %v4595
      %4598 = vperm.xlu0 %4597, %v4593
      %v4599 = vpop.permute.xlu0 %4598
      %v4600 = vlaneseq
      %v4601 = vshrl.u32 %v4600, 7
      %v4602 = vadd.s32 %v4601, 8
      %4603 = vset.pattern.permute.xlu0 %v4602
      %4604 = vperm.xlu0 %4603, %v4593
      %v4605 = vpop.permute.xlu0 %4604
      %v4606 = vperm.slane %v1498, 3
      %v4607 = vlaneseq
      %v4608 = vshrl.u32 %v4607, 7
      %4610 = vset.pattern.permute.xlu0 %v4608
      %4611 = vperm.xlu0 %4610, %v4606
      %v4612 = vpop.permute.xlu0 %4611
      %v4613 = vlaneseq
      %v4614 = vshrl.u32 %v4613, 7
      %v4615 = vadd.s32 %v4614, 8
      %4616 = vset.pattern.permute.xlu0 %v4615
      %4617 = vperm.xlu0 %4616, %v4606
      %v4618 = vpop.permute.xlu0 %4617
      %v4619 = vperm.slane %v1498, 4
      %v4620 = vlaneseq
      %v4621 = vshrl.u32 %v4620, 7
      %4623 = vset.pattern.permute.xlu0 %v4621
      %4624 = vperm.xlu0 %4623, %v4619
      %v4625 = vpop.permute.xlu0 %4624
      %v4626 = vlaneseq
      %v4627 = vshrl.u32 %v4626, 7
      %v4628 = vadd.s32 %v4627, 8
      %4629 = vset.pattern.permute.xlu0 %v4628
      %4630 = vperm.xlu0 %4629, %v4619
      %v4631 = vpop.permute.xlu0 %4630
      %v4632 = vperm.slane %v1498, 5
      %v4633 = vlaneseq
      %v4634 = vshrl.u32 %v4633, 7
      %4636 = vset.pattern.permute.xlu0 %v4634
      %4637 = vperm.xlu0 %4636, %v4632
      %v4638 = vpop.permute.xlu0 %4637
      %v4639 = vlaneseq
      %v4640 = vshrl.u32 %v4639, 7
      %v4641 = vadd.s32 %v4640, 8
      %4642 = vset.pattern.permute.xlu0 %v4641
      %4643 = vperm.xlu0 %4642, %v4632
      %v4644 = vpop.permute.xlu0 %4643
      %v4645 = vperm.slane %v1498, 6
      %v4646 = vlaneseq
      %v4647 = vshrl.u32 %v4646, 7
      %4649 = vset.pattern.permute.xlu0 %v4647
      %4650 = vperm.xlu0 %4649, %v4645
      %v4651 = vpop.permute.xlu0 %4650
      %v4652 = vlaneseq
      %v4653 = vshrl.u32 %v4652, 7
      %v4654 = vadd.s32 %v4653, 8
      %4655 = vset.pattern.permute.xlu0 %v4654
      %4656 = vperm.xlu0 %4655, %v4645
      %v4657 = vpop.permute.xlu0 %4656
      %v4658 = vperm.slane %v1498, 7
      %v4659 = vlaneseq
      %v4660 = vshrl.u32 %v4659, 7
      %4662 = vset.pattern.permute.xlu0 %v4660
      %4663 = vperm.xlu0 %4662, %v4658
      %v4664 = vpop.permute.xlu0 %4663
      %v4665 = vlaneseq
      %v4666 = vshrl.u32 %v4665, 7
      %v4667 = vadd.s32 %v4666, 8
      %4668 = vset.pattern.permute.xlu0 %v4667
      %4669 = vperm.xlu0 %4668, %v4658
      %v4670 = vpop.permute.xlu0 %4669
      %v4671 = vperm.slane %v1501, 0
      %v4672 = vlaneseq
      %v4673 = vshrl.u32 %v4672, 7
      %4675 = vset.pattern.permute.xlu0 %v4673
      %4676 = vperm.xlu0 %4675, %v4671
      %v4677 = vpop.permute.xlu0 %4676
      %v4678 = vlaneseq
      %v4679 = vshrl.u32 %v4678, 7
      %v4680 = vadd.s32 %v4679, 8
      %4681 = vset.pattern.permute.xlu0 %v4680
      %4682 = vperm.xlu0 %4681, %v4671
      %v4683 = vpop.permute.xlu0 %4682
      %v4684 = vperm.slane %v1501, 1
      %v4685 = vlaneseq
      %v4686 = vshrl.u32 %v4685, 7
      %4688 = vset.pattern.permute.xlu0 %v4686
      %4689 = vperm.xlu0 %4688, %v4684
      %v4690 = vpop.permute.xlu0 %4689
      %v4691 = vlaneseq
      %v4692 = vshrl.u32 %v4691, 7
      %v4693 = vadd.s32 %v4692, 8
      %4694 = vset.pattern.permute.xlu0 %v4693
      %4695 = vperm.xlu0 %4694, %v4684
      %v4696 = vpop.permute.xlu0 %4695
      %v4697 = vperm.slane %v1501, 2
      %v4698 = vlaneseq
      %v4699 = vshrl.u32 %v4698, 7
      %4701 = vset.pattern.permute.xlu0 %v4699
      %4702 = vperm.xlu0 %4701, %v4697
      %v4703 = vpop.permute.xlu0 %4702
      %v4704 = vlaneseq
      %v4705 = vshrl.u32 %v4704, 7
      %v4706 = vadd.s32 %v4705, 8
      %4707 = vset.pattern.permute.xlu0 %v4706
      %4708 = vperm.xlu0 %4707, %v4697
      %v4709 = vpop.permute.xlu0 %4708
      %v4710 = vperm.slane %v1501, 3
      %v4711 = vlaneseq
      %v4712 = vshrl.u32 %v4711, 7
      %4714 = vset.pattern.permute.xlu0 %v4712
      %4715 = vperm.xlu0 %4714, %v4710
      %v4716 = vpop.permute.xlu0 %4715
      %v4717 = vlaneseq
      %v4718 = vshrl.u32 %v4717, 7
      %v4719 = vadd.s32 %v4718, 8
      %4720 = vset.pattern.permute.xlu0 %v4719
      %4721 = vperm.xlu0 %4720, %v4710
      %v4722 = vpop.permute.xlu0 %4721
      %v4723 = vperm.slane %v1501, 4
      %v4724 = vlaneseq
      %v4725 = vshrl.u32 %v4724, 7
      %4727 = vset.pattern.permute.xlu0 %v4725
      %4728 = vperm.xlu0 %4727, %v4723
      %v4729 = vpop.permute.xlu0 %4728
      %v4730 = vlaneseq
      %v4731 = vshrl.u32 %v4730, 7
      %v4732 = vadd.s32 %v4731, 8
      %4733 = vset.pattern.permute.xlu0 %v4732
      %4734 = vperm.xlu0 %4733, %v4723
      %v4735 = vpop.permute.xlu0 %4734
      %v4736 = vperm.slane %v1501, 5
      %v4737 = vlaneseq
      %v4738 = vshrl.u32 %v4737, 7
      %4740 = vset.pattern.permute.xlu0 %v4738
      %4741 = vperm.xlu0 %4740, %v4736
      %v4742 = vpop.permute.xlu0 %4741
      %v4743 = vlaneseq
      %v4744 = vshrl.u32 %v4743, 7
      %v4745 = vadd.s32 %v4744, 8
      %4746 = vset.pattern.permute.xlu0 %v4745
      %4747 = vperm.xlu0 %4746, %v4736
      %v4748 = vpop.permute.xlu0 %4747
      %v4749 = vperm.slane %v1501, 6
      %v4750 = vlaneseq
      %v4751 = vshrl.u32 %v4750, 7
      %4753 = vset.pattern.permute.xlu0 %v4751
      %4754 = vperm.xlu0 %4753, %v4749
      %v4755 = vpop.permute.xlu0 %4754
      %v4756 = vlaneseq
      %v4757 = vshrl.u32 %v4756, 7
      %v4758 = vadd.s32 %v4757, 8
      %4759 = vset.pattern.permute.xlu0 %v4758
      %4760 = vperm.xlu0 %4759, %v4749
      %v4761 = vpop.permute.xlu0 %4760
      %v4762 = vperm.slane %v1501, 7
      %v4763 = vlaneseq
      %v4764 = vshrl.u32 %v4763, 7
      %4766 = vset.pattern.permute.xlu0 %v4764
      %4767 = vperm.xlu0 %4766, %v4762
      %v4768 = vpop.permute.xlu0 %4767
      %v4769 = vlaneseq
      %v4770 = vshrl.u32 %v4769, 7
      %v4771 = vadd.s32 %v4770, 8
      %4772 = vset.pattern.permute.xlu0 %v4771
      %4773 = vperm.xlu0 %4772, %v4762
      %v4774 = vpop.permute.xlu0 %4773
      %v4775 = vperm.slane %v1504, 0
      %v4776 = vlaneseq
      %v4777 = vshrl.u32 %v4776, 7
      %4779 = vset.pattern.permute.xlu0 %v4777
      %4780 = vperm.xlu0 %4779, %v4775
      %v4781 = vpop.permute.xlu0 %4780
      %v4782 = vlaneseq
      %v4783 = vshrl.u32 %v4782, 7
      %v4784 = vadd.s32 %v4783, 8
      %4785 = vset.pattern.permute.xlu0 %v4784
      %4786 = vperm.xlu0 %4785, %v4775
      %v4787 = vpop.permute.xlu0 %4786
      %v4788 = vperm.slane %v1504, 1
      %v4789 = vlaneseq
      %v4790 = vshrl.u32 %v4789, 7
      %4792 = vset.pattern.permute.xlu0 %v4790
      %4793 = vperm.xlu0 %4792, %v4788
      %v4794 = vpop.permute.xlu0 %4793
      %v4795 = vlaneseq
      %v4796 = vshrl.u32 %v4795, 7
      %v4797 = vadd.s32 %v4796, 8
      %4798 = vset.pattern.permute.xlu0 %v4797
      %4799 = vperm.xlu0 %4798, %v4788
      %v4800 = vpop.permute.xlu0 %4799
      %v4801 = vperm.slane %v1504, 2
      %v4802 = vlaneseq
      %v4803 = vshrl.u32 %v4802, 7
      %4805 = vset.pattern.permute.xlu0 %v4803
      %4806 = vperm.xlu0 %4805, %v4801
      %v4807 = vpop.permute.xlu0 %4806
      %v4808 = vlaneseq
      %v4809 = vshrl.u32 %v4808, 7
      %v4810 = vadd.s32 %v4809, 8
      %4811 = vset.pattern.permute.xlu0 %v4810
      %4812 = vperm.xlu0 %4811, %v4801
      %v4813 = vpop.permute.xlu0 %4812
      %v4814 = vperm.slane %v1504, 3
      %v4815 = vlaneseq
      %v4816 = vshrl.u32 %v4815, 7
      %4818 = vset.pattern.permute.xlu0 %v4816
      %4819 = vperm.xlu0 %4818, %v4814
      %v4820 = vpop.permute.xlu0 %4819
      %v4821 = vlaneseq
      %v4822 = vshrl.u32 %v4821, 7
      %v4823 = vadd.s32 %v4822, 8
      %4824 = vset.pattern.permute.xlu0 %v4823
      %4825 = vperm.xlu0 %4824, %v4814
      %v4826 = vpop.permute.xlu0 %4825
      %v4827 = vperm.slane %v1504, 4
      %v4828 = vlaneseq
      %v4829 = vshrl.u32 %v4828, 7
      %4831 = vset.pattern.permute.xlu0 %v4829
      %4832 = vperm.xlu0 %4831, %v4827
      %v4833 = vpop.permute.xlu0 %4832
      %v4834 = vlaneseq
      %v4835 = vshrl.u32 %v4834, 7
      %v4836 = vadd.s32 %v4835, 8
      %4837 = vset.pattern.permute.xlu0 %v4836
      %4838 = vperm.xlu0 %4837, %v4827
      %v4839 = vpop.permute.xlu0 %4838
      %v4840 = vperm.slane %v1504, 5
      %v4841 = vlaneseq
      %v4842 = vshrl.u32 %v4841, 7
      %4844 = vset.pattern.permute.xlu0 %v4842
      %4845 = vperm.xlu0 %4844, %v4840
      %v4846 = vpop.permute.xlu0 %4845
      %v4847 = vlaneseq
      %v4848 = vshrl.u32 %v4847, 7
      %v4849 = vadd.s32 %v4848, 8
      %4850 = vset.pattern.permute.xlu0 %v4849
      %4851 = vperm.xlu0 %4850, %v4840
      %v4852 = vpop.permute.xlu0 %4851
      %v4853 = vperm.slane %v1504, 6
      %v4854 = vlaneseq
      %v4855 = vshrl.u32 %v4854, 7
      %4857 = vset.pattern.permute.xlu0 %v4855
      %4858 = vperm.xlu0 %4857, %v4853
      %v4859 = vpop.permute.xlu0 %4858
      %v4860 = vlaneseq
      %v4861 = vshrl.u32 %v4860, 7
      %v4862 = vadd.s32 %v4861, 8
      %4863 = vset.pattern.permute.xlu0 %v4862
      %4864 = vperm.xlu0 %4863, %v4853
      %v4865 = vpop.permute.xlu0 %4864
      %v4866 = vperm.slane %v1504, 7
      %v4867 = vlaneseq
      %v4868 = vshrl.u32 %v4867, 7
      %4870 = vset.pattern.permute.xlu0 %v4868
      %4871 = vperm.xlu0 %4870, %v4866
      %v4872 = vpop.permute.xlu0 %4871
      %v4873 = vlaneseq
      %v4874 = vshrl.u32 %v4873, 7
      %v4875 = vadd.s32 %v4874, 8
      %4876 = vset.pattern.permute.xlu0 %v4875
      %4877 = vperm.xlu0 %4876, %v4866
      %v4878 = vpop.permute.xlu0 %4877
      %v4879 = vperm.slane %v1507, 0
      %v4880 = vlaneseq
      %v4881 = vshrl.u32 %v4880, 7
      %4883 = vset.pattern.permute.xlu0 %v4881
      %4884 = vperm.xlu0 %4883, %v4879
      %v4885 = vpop.permute.xlu0 %4884
      %v4886 = vlaneseq
      %v4887 = vshrl.u32 %v4886, 7
      %v4888 = vadd.s32 %v4887, 8
      %4889 = vset.pattern.permute.xlu0 %v4888
      %4890 = vperm.xlu0 %4889, %v4879
      %v4891 = vpop.permute.xlu0 %4890
      %v4892 = vperm.slane %v1507, 1
      %v4893 = vlaneseq
      %v4894 = vshrl.u32 %v4893, 7
      %4896 = vset.pattern.permute.xlu0 %v4894
      %4897 = vperm.xlu0 %4896, %v4892
      %v4898 = vpop.permute.xlu0 %4897
      %v4899 = vlaneseq
      %v4900 = vshrl.u32 %v4899, 7
      %v4901 = vadd.s32 %v4900, 8
      %4902 = vset.pattern.permute.xlu0 %v4901
      %4903 = vperm.xlu0 %4902, %v4892
      %v4904 = vpop.permute.xlu0 %4903
      %v4905 = vperm.slane %v1507, 2
      %v4906 = vlaneseq
      %v4907 = vshrl.u32 %v4906, 7
      %4909 = vset.pattern.permute.xlu0 %v4907
      %4910 = vperm.xlu0 %4909, %v4905
      %v4911 = vpop.permute.xlu0 %4910
      %v4912 = vlaneseq
      %v4913 = vshrl.u32 %v4912, 7
      %v4914 = vadd.s32 %v4913, 8
      %4915 = vset.pattern.permute.xlu0 %v4914
      %4916 = vperm.xlu0 %4915, %v4905
      %v4917 = vpop.permute.xlu0 %4916
      %v4918 = vperm.slane %v1507, 3
      %v4919 = vlaneseq
      %v4920 = vshrl.u32 %v4919, 7
      %4922 = vset.pattern.permute.xlu0 %v4920
      %4923 = vperm.xlu0 %4922, %v4918
      %v4924 = vpop.permute.xlu0 %4923
      %v4925 = vlaneseq
      %v4926 = vshrl.u32 %v4925, 7
      %v4927 = vadd.s32 %v4926, 8
      %4928 = vset.pattern.permute.xlu0 %v4927
      %4929 = vperm.xlu0 %4928, %v4918
      %v4930 = vpop.permute.xlu0 %4929
      %v4931 = vperm.slane %v1507, 4
      %v4932 = vlaneseq
      %v4933 = vshrl.u32 %v4932, 7
      %4935 = vset.pattern.permute.xlu0 %v4933
      %4936 = vperm.xlu0 %4935, %v4931
      %v4937 = vpop.permute.xlu0 %4936
      %v4938 = vlaneseq
      %v4939 = vshrl.u32 %v4938, 7
      %v4940 = vadd.s32 %v4939, 8
      %4941 = vset.pattern.permute.xlu0 %v4940
      %4942 = vperm.xlu0 %4941, %v4931
      %v4943 = vpop.permute.xlu0 %4942
      %v4944 = vperm.slane %v1507, 5
      %v4945 = vlaneseq
      %v4946 = vshrl.u32 %v4945, 7
      %4948 = vset.pattern.permute.xlu0 %v4946
      %4949 = vperm.xlu0 %4948, %v4944
      %v4950 = vpop.permute.xlu0 %4949
      %v4951 = vlaneseq
      %v4952 = vshrl.u32 %v4951, 7
      %v4953 = vadd.s32 %v4952, 8
      %4954 = vset.pattern.permute.xlu0 %v4953
      %4955 = vperm.xlu0 %4954, %v4944
      %v4956 = vpop.permute.xlu0 %4955
      %v4957 = vperm.slane %v1507, 6
      %v4958 = vlaneseq
      %v4959 = vshrl.u32 %v4958, 7
      %4961 = vset.pattern.permute.xlu0 %v4959
      %4962 = vperm.xlu0 %4961, %v4957
      %v4963 = vpop.permute.xlu0 %4962
      %v4964 = vlaneseq
      %v4965 = vshrl.u32 %v4964, 7
      %v4966 = vadd.s32 %v4965, 8
      %4967 = vset.pattern.permute.xlu0 %v4966
      %4968 = vperm.xlu0 %4967, %v4957
      %v4969 = vpop.permute.xlu0 %4968
      %v4970 = vperm.slane %v1507, 7
      %v4971 = vlaneseq
      %v4972 = vshrl.u32 %v4971, 7
      %4974 = vset.pattern.permute.xlu0 %v4972
      %4975 = vperm.xlu0 %4974, %v4970
      %v4976 = vpop.permute.xlu0 %4975
      %v4977 = vlaneseq
      %v4978 = vshrl.u32 %v4977, 7
      %v4979 = vadd.s32 %v4978, 8
      %4980 = vset.pattern.permute.xlu0 %v4979
      %4981 = vperm.xlu0 %4980, %v4970
      %v4982 = vpop.permute.xlu0 %4981
      %v4983 = vlaneseq
      %v4984 = vshrl.u32 %v4983, 7
      %v4985 = vadd.s32 %v4984, 16
      %4986 = vset.pattern.permute.xlu0 %v4985
      %4987 = vperm.xlu0 %4986, %v4151
      %v4988 = vpop.permute.xlu0 %4987
      %v4989 = vlaneseq
      %v4990 = vshrl.u32 %v4989, 7
      %v4991 = vadd.s32 %v4990, 24
      %4992 = vset.pattern.permute.xlu0 %v4991
      %4993 = vperm.xlu0 %4992, %v4151
      %v4994 = vpop.permute.xlu0 %4993
      %v4995 = vlaneseq
      %v4996 = vshrl.u32 %v4995, 7
      %v4997 = vadd.s32 %v4996, 16
      %4998 = vset.pattern.permute.xlu0 %v4997
      %4999 = vperm.xlu0 %4998, %v4164
      %v5000 = vpop.permute.xlu0 %4999
      %v5001 = vlaneseq
      %v5002 = vshrl.u32 %v5001, 7
      %v5003 = vadd.s32 %v5002, 24
      %5004 = vset.pattern.permute.xlu0 %v5003
      %5005 = vperm.xlu0 %5004, %v4164
      %v5006 = vpop.permute.xlu0 %5005
      %v5007 = vlaneseq
      %v5008 = vshrl.u32 %v5007, 7
      %v5009 = vadd.s32 %v5008, 16
      %5010 = vset.pattern.permute.xlu0 %v5009
      %5011 = vperm.xlu0 %5010, %v4177
      %v5012 = vpop.permute.xlu0 %5011
      %v5013 = vlaneseq
      %v5014 = vshrl.u32 %v5013, 7
      %v5015 = vadd.s32 %v5014, 24
      %5016 = vset.pattern.permute.xlu0 %v5015
      %5017 = vperm.xlu0 %5016, %v4177
      %v5018 = vpop.permute.xlu0 %5017
      %v5019 = vlaneseq
      %v5020 = vshrl.u32 %v5019, 7
      %v5021 = vadd.s32 %v5020, 16
      %5022 = vset.pattern.permute.xlu0 %v5021
      %5023 = vperm.xlu0 %5022, %v4190
      %v5024 = vpop.permute.xlu0 %5023
      %v5025 = vlaneseq
      %v5026 = vshrl.u32 %v5025, 7
      %v5027 = vadd.s32 %v5026, 24
      %5028 = vset.pattern.permute.xlu0 %v5027
      %5029 = vperm.xlu0 %5028, %v4190
      %v5030 = vpop.permute.xlu0 %5029
      %v5031 = vlaneseq
      %v5032 = vshrl.u32 %v5031, 7
      %v5033 = vadd.s32 %v5032, 16
      %5034 = vset.pattern.permute.xlu0 %v5033
      %5035 = vperm.xlu0 %5034, %v4203
      %v5036 = vpop.permute.xlu0 %5035
      %v5037 = vlaneseq
      %v5038 = vshrl.u32 %v5037, 7
      %v5039 = vadd.s32 %v5038, 24
      %5040 = vset.pattern.permute.xlu0 %v5039
      %5041 = vperm.xlu0 %5040, %v4203
      %v5042 = vpop.permute.xlu0 %5041
      %v5043 = vlaneseq
      %v5044 = vshrl.u32 %v5043, 7
      %v5045 = vadd.s32 %v5044, 16
      %5046 = vset.pattern.permute.xlu0 %v5045
      %5047 = vperm.xlu0 %5046, %v4216
      %v5048 = vpop.permute.xlu0 %5047
      %v5049 = vlaneseq
      %v5050 = vshrl.u32 %v5049, 7
      %v5051 = vadd.s32 %v5050, 24
      %5052 = vset.pattern.permute.xlu0 %v5051
      %5053 = vperm.xlu0 %5052, %v4216
      %v5054 = vpop.permute.xlu0 %5053
      %v5055 = vlaneseq
      %v5056 = vshrl.u32 %v5055, 7
      %v5057 = vadd.s32 %v5056, 16
      %5058 = vset.pattern.permute.xlu0 %v5057
      %5059 = vperm.xlu0 %5058, %v4229
      %v5060 = vpop.permute.xlu0 %5059
      %v5061 = vlaneseq
      %v5062 = vshrl.u32 %v5061, 7
      %v5063 = vadd.s32 %v5062, 24
      %5064 = vset.pattern.permute.xlu0 %v5063
      %5065 = vperm.xlu0 %5064, %v4229
      %v5066 = vpop.permute.xlu0 %5065
      %v5067 = vlaneseq
      %v5068 = vshrl.u32 %v5067, 7
      %v5069 = vadd.s32 %v5068, 16
      %5070 = vset.pattern.permute.xlu0 %v5069
      %5071 = vperm.xlu0 %5070, %v4242
      %v5072 = vpop.permute.xlu0 %5071
      %v5073 = vlaneseq
      %v5074 = vshrl.u32 %v5073, 7
      %v5075 = vadd.s32 %v5074, 24
      %5076 = vset.pattern.permute.xlu0 %v5075
      %5077 = vperm.xlu0 %5076, %v4242
      %v5078 = vpop.permute.xlu0 %5077
      %v5079 = vlaneseq
      %v5080 = vshrl.u32 %v5079, 7
      %v5081 = vadd.s32 %v5080, 16
      %5082 = vset.pattern.permute.xlu0 %v5081
      %5083 = vperm.xlu0 %5082, %v4255
      %v5084 = vpop.permute.xlu0 %5083
      %v5085 = vlaneseq
      %v5086 = vshrl.u32 %v5085, 7
      %v5087 = vadd.s32 %v5086, 24
      %5088 = vset.pattern.permute.xlu0 %v5087
      %5089 = vperm.xlu0 %5088, %v4255
      %v5090 = vpop.permute.xlu0 %5089
      %v5091 = vlaneseq
      %v5092 = vshrl.u32 %v5091, 7
      %v5093 = vadd.s32 %v5092, 16
      %5094 = vset.pattern.permute.xlu0 %v5093
      %5095 = vperm.xlu0 %5094, %v4268
      %v5096 = vpop.permute.xlu0 %5095
      %v5097 = vlaneseq
      %v5098 = vshrl.u32 %v5097, 7
      %v5099 = vadd.s32 %v5098, 24
      %5100 = vset.pattern.permute.xlu0 %v5099
      %5101 = vperm.xlu0 %5100, %v4268
      %v5102 = vpop.permute.xlu0 %5101
      %v5103 = vlaneseq
      %v5104 = vshrl.u32 %v5103, 7
      %v5105 = vadd.s32 %v5104, 16
      %5106 = vset.pattern.permute.xlu0 %v5105
      %5107 = vperm.xlu0 %5106, %v4281
      %v5108 = vpop.permute.xlu0 %5107
      %v5109 = vlaneseq
      %v5110 = vshrl.u32 %v5109, 7
      %v5111 = vadd.s32 %v5110, 24
      %5112 = vset.pattern.permute.xlu0 %v5111
      %5113 = vperm.xlu0 %5112, %v4281
      %v5114 = vpop.permute.xlu0 %5113
      %v5115 = vlaneseq
      %v5116 = vshrl.u32 %v5115, 7
      %v5117 = vadd.s32 %v5116, 16
      %5118 = vset.pattern.permute.xlu0 %v5117
      %5119 = vperm.xlu0 %5118, %v4294
      %v5120 = vpop.permute.xlu0 %5119
      %v5121 = vlaneseq
      %v5122 = vshrl.u32 %v5121, 7
      %v5123 = vadd.s32 %v5122, 24
      %5124 = vset.pattern.permute.xlu0 %v5123
      %5125 = vperm.xlu0 %5124, %v4294
      %v5126 = vpop.permute.xlu0 %5125
      %v5127 = vlaneseq
      %v5128 = vshrl.u32 %v5127, 7
      %v5129 = vadd.s32 %v5128, 16
      %5130 = vset.pattern.permute.xlu0 %v5129
      %5131 = vperm.xlu0 %5130, %v4307
      %v5132 = vpop.permute.xlu0 %5131
      %v5133 = vlaneseq
      %v5134 = vshrl.u32 %v5133, 7
      %v5135 = vadd.s32 %v5134, 24
      %5136 = vset.pattern.permute.xlu0 %v5135
      %5137 = vperm.xlu0 %5136, %v4307
      %v5138 = vpop.permute.xlu0 %5137
      %v5139 = vlaneseq
      %v5140 = vshrl.u32 %v5139, 7
      %v5141 = vadd.s32 %v5140, 16
      %5142 = vset.pattern.permute.xlu0 %v5141
      %5143 = vperm.xlu0 %5142, %v4320
      %v5144 = vpop.permute.xlu0 %5143
      %v5145 = vlaneseq
      %v5146 = vshrl.u32 %v5145, 7
      %v5147 = vadd.s32 %v5146, 24
      %5148 = vset.pattern.permute.xlu0 %v5147
      %5149 = vperm.xlu0 %5148, %v4320
      %v5150 = vpop.permute.xlu0 %5149
      %v5151 = vlaneseq
      %v5152 = vshrl.u32 %v5151, 7
      %v5153 = vadd.s32 %v5152, 16
      %5154 = vset.pattern.permute.xlu0 %v5153
      %5155 = vperm.xlu0 %5154, %v4333
      %v5156 = vpop.permute.xlu0 %5155
      %v5157 = vlaneseq
      %v5158 = vshrl.u32 %v5157, 7
      %v5159 = vadd.s32 %v5158, 24
      %5160 = vset.pattern.permute.xlu0 %v5159
      %5161 = vperm.xlu0 %5160, %v4333
      %v5162 = vpop.permute.xlu0 %5161
      %v5163 = vlaneseq
      %v5164 = vshrl.u32 %v5163, 7
      %v5165 = vadd.s32 %v5164, 16
      %5166 = vset.pattern.permute.xlu0 %v5165
      %5167 = vperm.xlu0 %5166, %v4346
      %v5168 = vpop.permute.xlu0 %5167
      %v5169 = vlaneseq
      %v5170 = vshrl.u32 %v5169, 7
      %v5171 = vadd.s32 %v5170, 24
      %5172 = vset.pattern.permute.xlu0 %v5171
      %5173 = vperm.xlu0 %5172, %v4346
      %v5174 = vpop.permute.xlu0 %5173
      %v5175 = vlaneseq
      %v5176 = vshrl.u32 %v5175, 7
      %v5177 = vadd.s32 %v5176, 16
      %5178 = vset.pattern.permute.xlu0 %v5177
      %5179 = vperm.xlu0 %5178, %v4359
      %v5180 = vpop.permute.xlu0 %5179
      %v5181 = vlaneseq
      %v5182 = vshrl.u32 %v5181, 7
      %v5183 = vadd.s32 %v5182, 24
      %5184 = vset.pattern.permute.xlu0 %v5183
      %5185 = vperm.xlu0 %5184, %v4359
      %v5186 = vpop.permute.xlu0 %5185
      %v5187 = vlaneseq
      %v5188 = vshrl.u32 %v5187, 7
      %v5189 = vadd.s32 %v5188, 16
      %5190 = vset.pattern.permute.xlu0 %v5189
      %5191 = vperm.xlu0 %5190, %v4372
      %v5192 = vpop.permute.xlu0 %5191
      %v5193 = vlaneseq
      %v5194 = vshrl.u32 %v5193, 7
      %v5195 = vadd.s32 %v5194, 24
      %5196 = vset.pattern.permute.xlu0 %v5195
      %5197 = vperm.xlu0 %5196, %v4372
      %v5198 = vpop.permute.xlu0 %5197
      %v5199 = vlaneseq
      %v5200 = vshrl.u32 %v5199, 7
      %v5201 = vadd.s32 %v5200, 16
      %5202 = vset.pattern.permute.xlu0 %v5201
      %5203 = vperm.xlu0 %5202, %v4385
      %v5204 = vpop.permute.xlu0 %5203
      %v5205 = vlaneseq
      %v5206 = vshrl.u32 %v5205, 7
      %v5207 = vadd.s32 %v5206, 24
      %5208 = vset.pattern.permute.xlu0 %v5207
      %5209 = vperm.xlu0 %5208, %v4385
      %v5210 = vpop.permute.xlu0 %5209
      %v5211 = vlaneseq
      %v5212 = vshrl.u32 %v5211, 7
      %v5213 = vadd.s32 %v5212, 16
      %5214 = vset.pattern.permute.xlu0 %v5213
      %5215 = vperm.xlu0 %5214, %v4398
      %v5216 = vpop.permute.xlu0 %5215
      %v5217 = vlaneseq
      %v5218 = vshrl.u32 %v5217, 7
      %v5219 = vadd.s32 %v5218, 24
      %5220 = vset.pattern.permute.xlu0 %v5219
      %5221 = vperm.xlu0 %5220, %v4398
      %v5222 = vpop.permute.xlu0 %5221
      %v5223 = vlaneseq
      %v5224 = vshrl.u32 %v5223, 7
      %v5225 = vadd.s32 %v5224, 16
      %5226 = vset.pattern.permute.xlu0 %v5225
      %5227 = vperm.xlu0 %5226, %v4411
      %v5228 = vpop.permute.xlu0 %5227
      %v5229 = vlaneseq
      %v5230 = vshrl.u32 %v5229, 7
      %v5231 = vadd.s32 %v5230, 24
      %5232 = vset.pattern.permute.xlu0 %v5231
      %5233 = vperm.xlu0 %5232, %v4411
      %v5234 = vpop.permute.xlu0 %5233
      %v5235 = vlaneseq
      %v5236 = vshrl.u32 %v5235, 7
      %v5237 = vadd.s32 %v5236, 16
      %5238 = vset.pattern.permute.xlu0 %v5237
      %5239 = vperm.xlu0 %5238, %v4424
      %v5240 = vpop.permute.xlu0 %5239
      %v5241 = vlaneseq
      %v5242 = vshrl.u32 %v5241, 7
      %v5243 = vadd.s32 %v5242, 24
      %5244 = vset.pattern.permute.xlu0 %v5243
      %5245 = vperm.xlu0 %5244, %v4424
      %v5246 = vpop.permute.xlu0 %5245
      %v5247 = vlaneseq
      %v5248 = vshrl.u32 %v5247, 7
      %v5249 = vadd.s32 %v5248, 16
      %5250 = vset.pattern.permute.xlu0 %v5249
      %5251 = vperm.xlu0 %5250, %v4437
      %v5252 = vpop.permute.xlu0 %5251
      %v5253 = vlaneseq
      %v5254 = vshrl.u32 %v5253, 7
      %v5255 = vadd.s32 %v5254, 24
      %5256 = vset.pattern.permute.xlu0 %v5255
      %5257 = vperm.xlu0 %5256, %v4437
      %v5258 = vpop.permute.xlu0 %5257
      %v5259 = vlaneseq
      %v5260 = vshrl.u32 %v5259, 7
      %v5261 = vadd.s32 %v5260, 16
      %5262 = vset.pattern.permute.xlu0 %v5261
      %5263 = vperm.xlu0 %5262, %v4450
      %v5264 = vpop.permute.xlu0 %5263
      %v5265 = vlaneseq
      %v5266 = vshrl.u32 %v5265, 7
      %v5267 = vadd.s32 %v5266, 24
      %5268 = vset.pattern.permute.xlu0 %v5267
      %5269 = vperm.xlu0 %5268, %v4450
      %v5270 = vpop.permute.xlu0 %5269
      %v5271 = vlaneseq
      %v5272 = vshrl.u32 %v5271, 7
      %v5273 = vadd.s32 %v5272, 16
      %5274 = vset.pattern.permute.xlu0 %v5273
      %5275 = vperm.xlu0 %5274, %v4463
      %v5276 = vpop.permute.xlu0 %5275
      %v5277 = vlaneseq
      %v5278 = vshrl.u32 %v5277, 7
      %v5279 = vadd.s32 %v5278, 24
      %5280 = vset.pattern.permute.xlu0 %v5279
      %5281 = vperm.xlu0 %5280, %v4463
      %v5282 = vpop.permute.xlu0 %5281
      %v5283 = vlaneseq
      %v5284 = vshrl.u32 %v5283, 7
      %v5285 = vadd.s32 %v5284, 16
      %5286 = vset.pattern.permute.xlu0 %v5285
      %5287 = vperm.xlu0 %5286, %v4476
      %v5288 = vpop.permute.xlu0 %5287
      %v5289 = vlaneseq
      %v5290 = vshrl.u32 %v5289, 7
      %v5291 = vadd.s32 %v5290, 24
      %5292 = vset.pattern.permute.xlu0 %v5291
      %5293 = vperm.xlu0 %5292, %v4476
      %v5294 = vpop.permute.xlu0 %5293
      %v5295 = vlaneseq
      %v5296 = vshrl.u32 %v5295, 7
      %v5297 = vadd.s32 %v5296, 16
      %5298 = vset.pattern.permute.xlu0 %v5297
      %5299 = vperm.xlu0 %5298, %v4489
      %v5300 = vpop.permute.xlu0 %5299
      %v5301 = vlaneseq
      %v5302 = vshrl.u32 %v5301, 7
      %v5303 = vadd.s32 %v5302, 24
      %5304 = vset.pattern.permute.xlu0 %v5303
      %5305 = vperm.xlu0 %5304, %v4489
      %v5306 = vpop.permute.xlu0 %5305
      %v5307 = vlaneseq
      %v5308 = vshrl.u32 %v5307, 7
      %v5309 = vadd.s32 %v5308, 16
      %5310 = vset.pattern.permute.xlu0 %v5309
      %5311 = vperm.xlu0 %5310, %v4502
      %v5312 = vpop.permute.xlu0 %5311
      %v5313 = vlaneseq
      %v5314 = vshrl.u32 %v5313, 7
      %v5315 = vadd.s32 %v5314, 24
      %5316 = vset.pattern.permute.xlu0 %v5315
      %5317 = vperm.xlu0 %5316, %v4502
      %v5318 = vpop.permute.xlu0 %5317
      %v5319 = vlaneseq
      %v5320 = vshrl.u32 %v5319, 7
      %v5321 = vadd.s32 %v5320, 16
      %5322 = vset.pattern.permute.xlu0 %v5321
      %5323 = vperm.xlu0 %5322, %v4515
      %v5324 = vpop.permute.xlu0 %5323
      %v5325 = vlaneseq
      %v5326 = vshrl.u32 %v5325, 7
      %v5327 = vadd.s32 %v5326, 24
      %5328 = vset.pattern.permute.xlu0 %v5327
      %5329 = vperm.xlu0 %5328, %v4515
      %v5330 = vpop.permute.xlu0 %5329
      %v5331 = vlaneseq
      %v5332 = vshrl.u32 %v5331, 7
      %v5333 = vadd.s32 %v5332, 16
      %5334 = vset.pattern.permute.xlu0 %v5333
      %5335 = vperm.xlu0 %5334, %v4528
      %v5336 = vpop.permute.xlu0 %5335
      %v5337 = vlaneseq
      %v5338 = vshrl.u32 %v5337, 7
      %v5339 = vadd.s32 %v5338, 24
      %5340 = vset.pattern.permute.xlu0 %v5339
      %5341 = vperm.xlu0 %5340, %v4528
      %v5342 = vpop.permute.xlu0 %5341
      %v5343 = vlaneseq
      %v5344 = vshrl.u32 %v5343, 7
      %v5345 = vadd.s32 %v5344, 16
      %5346 = vset.pattern.permute.xlu0 %v5345
      %5347 = vperm.xlu0 %5346, %v4541
      %v5348 = vpop.permute.xlu0 %5347
      %v5349 = vlaneseq
      %v5350 = vshrl.u32 %v5349, 7
      %v5351 = vadd.s32 %v5350, 24
      %5352 = vset.pattern.permute.xlu0 %v5351
      %5353 = vperm.xlu0 %5352, %v4541
      %v5354 = vpop.permute.xlu0 %5353
      %v5355 = vlaneseq
      %v5356 = vshrl.u32 %v5355, 7
      %v5357 = vadd.s32 %v5356, 16
      %5358 = vset.pattern.permute.xlu0 %v5357
      %5359 = vperm.xlu0 %5358, %v4554
      %v5360 = vpop.permute.xlu0 %5359
      %v5361 = vlaneseq
      %v5362 = vshrl.u32 %v5361, 7
      %v5363 = vadd.s32 %v5362, 24
      %5364 = vset.pattern.permute.xlu0 %v5363
      %5365 = vperm.xlu0 %5364, %v4554
      %v5366 = vpop.permute.xlu0 %5365
      %v5367 = vlaneseq
      %v5368 = vshrl.u32 %v5367, 7
      %v5369 = vadd.s32 %v5368, 16
      %5370 = vset.pattern.permute.xlu0 %v5369
      %5371 = vperm.xlu0 %5370, %v4567
      %v5372 = vpop.permute.xlu0 %5371
      %v5373 = vlaneseq
      %v5374 = vshrl.u32 %v5373, 7
      %v5375 = vadd.s32 %v5374, 24
      %5376 = vset.pattern.permute.xlu0 %v5375
      %5377 = vperm.xlu0 %5376, %v4567
      %v5378 = vpop.permute.xlu0 %5377
      %v5379 = vlaneseq
      %v5380 = vshrl.u32 %v5379, 7
      %v5381 = vadd.s32 %v5380, 16
      %5382 = vset.pattern.permute.xlu0 %v5381
      %5383 = vperm.xlu0 %5382, %v4580
      %v5384 = vpop.permute.xlu0 %5383
      %v5385 = vlaneseq
      %v5386 = vshrl.u32 %v5385, 7
      %v5387 = vadd.s32 %v5386, 24
      %5388 = vset.pattern.permute.xlu0 %v5387
      %5389 = vperm.xlu0 %5388, %v4580
      %v5390 = vpop.permute.xlu0 %5389
      %v5391 = vlaneseq
      %v5392 = vshrl.u32 %v5391, 7
      %v5393 = vadd.s32 %v5392, 16
      %5394 = vset.pattern.permute.xlu0 %v5393
      %5395 = vperm.xlu0 %5394, %v4593
      %v5396 = vpop.permute.xlu0 %5395
      %v5397 = vlaneseq
      %v5398 = vshrl.u32 %v5397, 7
      %v5399 = vadd.s32 %v5398, 24
      %5400 = vset.pattern.permute.xlu0 %v5399
      %5401 = vperm.xlu0 %5400, %v4593
      %v5402 = vpop.permute.xlu0 %5401
      %v5403 = vlaneseq
      %v5404 = vshrl.u32 %v5403, 7
      %v5405 = vadd.s32 %v5404, 16
      %5406 = vset.pattern.permute.xlu0 %v5405
      %5407 = vperm.xlu0 %5406, %v4606
      %v5408 = vpop.permute.xlu0 %5407
      %v5409 = vlaneseq
      %v5410 = vshrl.u32 %v5409, 7
      %v5411 = vadd.s32 %v5410, 24
      %5412 = vset.pattern.permute.xlu0 %v5411
      %5413 = vperm.xlu0 %5412, %v4606
      %v5414 = vpop.permute.xlu0 %5413
      %v5415 = vlaneseq
      %v5416 = vshrl.u32 %v5415, 7
      %v5417 = vadd.s32 %v5416, 16
      %5418 = vset.pattern.permute.xlu0 %v5417
      %5419 = vperm.xlu0 %5418, %v4619
      %v5420 = vpop.permute.xlu0 %5419
      %v5421 = vlaneseq
      %v5422 = vshrl.u32 %v5421, 7
      %v5423 = vadd.s32 %v5422, 24
      %5424 = vset.pattern.permute.xlu0 %v5423
      %5425 = vperm.xlu0 %5424, %v4619
      %v5426 = vpop.permute.xlu0 %5425
      %v5427 = vlaneseq
      %v5428 = vshrl.u32 %v5427, 7
      %v5429 = vadd.s32 %v5428, 16
      %5430 = vset.pattern.permute.xlu0 %v5429
      %5431 = vperm.xlu0 %5430, %v4632
      %v5432 = vpop.permute.xlu0 %5431
      %v5433 = vlaneseq
      %v5434 = vshrl.u32 %v5433, 7
      %v5435 = vadd.s32 %v5434, 24
      %5436 = vset.pattern.permute.xlu0 %v5435
      %5437 = vperm.xlu0 %5436, %v4632
      %v5438 = vpop.permute.xlu0 %5437
      %v5439 = vlaneseq
      %v5440 = vshrl.u32 %v5439, 7
      %v5441 = vadd.s32 %v5440, 16
      %5442 = vset.pattern.permute.xlu0 %v5441
      %5443 = vperm.xlu0 %5442, %v4645
      %v5444 = vpop.permute.xlu0 %5443
      %v5445 = vlaneseq
      %v5446 = vshrl.u32 %v5445, 7
      %v5447 = vadd.s32 %v5446, 24
      %5448 = vset.pattern.permute.xlu0 %v5447
      %5449 = vperm.xlu0 %5448, %v4645
      %v5450 = vpop.permute.xlu0 %5449
      %v5451 = vlaneseq
      %v5452 = vshrl.u32 %v5451, 7
      %v5453 = vadd.s32 %v5452, 16
      %5454 = vset.pattern.permute.xlu0 %v5453
      %5455 = vperm.xlu0 %5454, %v4658
      %v5456 = vpop.permute.xlu0 %5455
      %v5457 = vlaneseq
      %v5458 = vshrl.u32 %v5457, 7
      %v5459 = vadd.s32 %v5458, 24
      %5460 = vset.pattern.permute.xlu0 %v5459
      %5461 = vperm.xlu0 %5460, %v4658
      %v5462 = vpop.permute.xlu0 %5461
      %v5463 = vlaneseq
      %v5464 = vshrl.u32 %v5463, 7
      %v5465 = vadd.s32 %v5464, 16
      %5466 = vset.pattern.permute.xlu0 %v5465
      %5467 = vperm.xlu0 %5466, %v4671
      %v5468 = vpop.permute.xlu0 %5467
      %v5469 = vlaneseq
      %v5470 = vshrl.u32 %v5469, 7
      %v5471 = vadd.s32 %v5470, 24
      %5472 = vset.pattern.permute.xlu0 %v5471
      %5473 = vperm.xlu0 %5472, %v4671
      %v5474 = vpop.permute.xlu0 %5473
      %v5475 = vlaneseq
      %v5476 = vshrl.u32 %v5475, 7
      %v5477 = vadd.s32 %v5476, 16
      %5478 = vset.pattern.permute.xlu0 %v5477
      %5479 = vperm.xlu0 %5478, %v4684
      %v5480 = vpop.permute.xlu0 %5479
      %v5481 = vlaneseq
      %v5482 = vshrl.u32 %v5481, 7
      %v5483 = vadd.s32 %v5482, 24
      %5484 = vset.pattern.permute.xlu0 %v5483
      %5485 = vperm.xlu0 %5484, %v4684
      %v5486 = vpop.permute.xlu0 %5485
      %v5487 = vlaneseq
      %v5488 = vshrl.u32 %v5487, 7
      %v5489 = vadd.s32 %v5488, 16
      %5490 = vset.pattern.permute.xlu0 %v5489
      %5491 = vperm.xlu0 %5490, %v4697
      %v5492 = vpop.permute.xlu0 %5491
      %v5493 = vlaneseq
      %v5494 = vshrl.u32 %v5493, 7
      %v5495 = vadd.s32 %v5494, 24
      %5496 = vset.pattern.permute.xlu0 %v5495
      %5497 = vperm.xlu0 %5496, %v4697
      %v5498 = vpop.permute.xlu0 %5497
      %v5499 = vlaneseq
      %v5500 = vshrl.u32 %v5499, 7
      %v5501 = vadd.s32 %v5500, 16
      %5502 = vset.pattern.permute.xlu0 %v5501
      %5503 = vperm.xlu0 %5502, %v4710
      %v5504 = vpop.permute.xlu0 %5503
      %v5505 = vlaneseq
      %v5506 = vshrl.u32 %v5505, 7
      %v5507 = vadd.s32 %v5506, 24
      %5508 = vset.pattern.permute.xlu0 %v5507
      %5509 = vperm.xlu0 %5508, %v4710
      %v5510 = vpop.permute.xlu0 %5509
      %v5511 = vlaneseq
      %v5512 = vshrl.u32 %v5511, 7
      %v5513 = vadd.s32 %v5512, 16
      %5514 = vset.pattern.permute.xlu0 %v5513
      %5515 = vperm.xlu0 %5514, %v4723
      %v5516 = vpop.permute.xlu0 %5515
      %v5517 = vlaneseq
      %v5518 = vshrl.u32 %v5517, 7
      %v5519 = vadd.s32 %v5518, 24
      %5520 = vset.pattern.permute.xlu0 %v5519
      %5521 = vperm.xlu0 %5520, %v4723
      %v5522 = vpop.permute.xlu0 %5521
      %v5523 = vlaneseq
      %v5524 = vshrl.u32 %v5523, 7
      %v5525 = vadd.s32 %v5524, 16
      %5526 = vset.pattern.permute.xlu0 %v5525
      %5527 = vperm.xlu0 %5526, %v4736
      %v5528 = vpop.permute.xlu0 %5527
      %v5529 = vlaneseq
      %v5530 = vshrl.u32 %v5529, 7
      %v5531 = vadd.s32 %v5530, 24
      %5532 = vset.pattern.permute.xlu0 %v5531
      %5533 = vperm.xlu0 %5532, %v4736
      %v5534 = vpop.permute.xlu0 %5533
      %v5535 = vlaneseq
      %v5536 = vshrl.u32 %v5535, 7
      %v5537 = vadd.s32 %v5536, 16
      %5538 = vset.pattern.permute.xlu0 %v5537
      %5539 = vperm.xlu0 %5538, %v4749
      %v5540 = vpop.permute.xlu0 %5539
      %v5541 = vlaneseq
      %v5542 = vshrl.u32 %v5541, 7
      %v5543 = vadd.s32 %v5542, 24
      %5544 = vset.pattern.permute.xlu0 %v5543
      %5545 = vperm.xlu0 %5544, %v4749
      %v5546 = vpop.permute.xlu0 %5545
      %v5547 = vlaneseq
      %v5548 = vshrl.u32 %v5547, 7
      %v5549 = vadd.s32 %v5548, 16
      %5550 = vset.pattern.permute.xlu0 %v5549
      %5551 = vperm.xlu0 %5550, %v4762
      %v5552 = vpop.permute.xlu0 %5551
      %v5553 = vlaneseq
      %v5554 = vshrl.u32 %v5553, 7
      %v5555 = vadd.s32 %v5554, 24
      %5556 = vset.pattern.permute.xlu0 %v5555
      %5557 = vperm.xlu0 %5556, %v4762
      %v5558 = vpop.permute.xlu0 %5557
      %v5559 = vlaneseq
      %v5560 = vshrl.u32 %v5559, 7
      %v5561 = vadd.s32 %v5560, 16
      %5562 = vset.pattern.permute.xlu0 %v5561
      %5563 = vperm.xlu0 %5562, %v4775
      %v5564 = vpop.permute.xlu0 %5563
      %v5565 = vlaneseq
      %v5566 = vshrl.u32 %v5565, 7
      %v5567 = vadd.s32 %v5566, 24
      %5568 = vset.pattern.permute.xlu0 %v5567
      %5569 = vperm.xlu0 %5568, %v4775
      %v5570 = vpop.permute.xlu0 %5569
      %v5571 = vlaneseq
      %v5572 = vshrl.u32 %v5571, 7
      %v5573 = vadd.s32 %v5572, 16
      %5574 = vset.pattern.permute.xlu0 %v5573
      %5575 = vperm.xlu0 %5574, %v4788
      %v5576 = vpop.permute.xlu0 %5575
      %v5577 = vlaneseq
      %v5578 = vshrl.u32 %v5577, 7
      %v5579 = vadd.s32 %v5578, 24
      %5580 = vset.pattern.permute.xlu0 %v5579
      %5581 = vperm.xlu0 %5580, %v4788
      %v5582 = vpop.permute.xlu0 %5581
      %v5583 = vlaneseq
      %v5584 = vshrl.u32 %v5583, 7
      %v5585 = vadd.s32 %v5584, 16
      %5586 = vset.pattern.permute.xlu0 %v5585
      %5587 = vperm.xlu0 %5586, %v4801
      %v5588 = vpop.permute.xlu0 %5587
      %v5589 = vlaneseq
      %v5590 = vshrl.u32 %v5589, 7
      %v5591 = vadd.s32 %v5590, 24
      %5592 = vset.pattern.permute.xlu0 %v5591
      %5593 = vperm.xlu0 %5592, %v4801
      %v5594 = vpop.permute.xlu0 %5593
      %v5595 = vlaneseq
      %v5596 = vshrl.u32 %v5595, 7
      %v5597 = vadd.s32 %v5596, 16
      %5598 = vset.pattern.permute.xlu0 %v5597
      %5599 = vperm.xlu0 %5598, %v4814
      %v5600 = vpop.permute.xlu0 %5599
      %v5601 = vlaneseq
      %v5602 = vshrl.u32 %v5601, 7
      %v5603 = vadd.s32 %v5602, 24
      %5604 = vset.pattern.permute.xlu0 %v5603
      %5605 = vperm.xlu0 %5604, %v4814
      %v5606 = vpop.permute.xlu0 %5605
      %v5607 = vlaneseq
      %v5608 = vshrl.u32 %v5607, 7
      %v5609 = vadd.s32 %v5608, 16
      %5610 = vset.pattern.permute.xlu0 %v5609
      %5611 = vperm.xlu0 %5610, %v4827
      %v5612 = vpop.permute.xlu0 %5611
      %v5613 = vlaneseq
      %v5614 = vshrl.u32 %v5613, 7
      %v5615 = vadd.s32 %v5614, 24
      %5616 = vset.pattern.permute.xlu0 %v5615
      %5617 = vperm.xlu0 %5616, %v4827
      %v5618 = vpop.permute.xlu0 %5617
      %v5619 = vlaneseq
      %v5620 = vshrl.u32 %v5619, 7
      %v5621 = vadd.s32 %v5620, 16
      %5622 = vset.pattern.permute.xlu0 %v5621
      %5623 = vperm.xlu0 %5622, %v4840
      %v5624 = vpop.permute.xlu0 %5623
      %v5625 = vlaneseq
      %v5626 = vshrl.u32 %v5625, 7
      %v5627 = vadd.s32 %v5626, 24
      %5628 = vset.pattern.permute.xlu0 %v5627
      %5629 = vperm.xlu0 %5628, %v4840
      %v5630 = vpop.permute.xlu0 %5629
      %v5631 = vlaneseq
      %v5632 = vshrl.u32 %v5631, 7
      %v5633 = vadd.s32 %v5632, 16
      %5634 = vset.pattern.permute.xlu0 %v5633
      %5635 = vperm.xlu0 %5634, %v4853
      %v5636 = vpop.permute.xlu0 %5635
      %v5637 = vlaneseq
      %v5638 = vshrl.u32 %v5637, 7
      %v5639 = vadd.s32 %v5638, 24
      %5640 = vset.pattern.permute.xlu0 %v5639
      %5641 = vperm.xlu0 %5640, %v4853
      %v5642 = vpop.permute.xlu0 %5641
      %v5643 = vlaneseq
      %v5644 = vshrl.u32 %v5643, 7
      %v5645 = vadd.s32 %v5644, 16
      %5646 = vset.pattern.permute.xlu0 %v5645
      %5647 = vperm.xlu0 %5646, %v4866
      %v5648 = vpop.permute.xlu0 %5647
      %v5649 = vlaneseq
      %v5650 = vshrl.u32 %v5649, 7
      %v5651 = vadd.s32 %v5650, 24
      %5652 = vset.pattern.permute.xlu0 %v5651
      %5653 = vperm.xlu0 %5652, %v4866
      %v5654 = vpop.permute.xlu0 %5653
      %v5655 = vlaneseq
      %v5656 = vshrl.u32 %v5655, 7
      %v5657 = vadd.s32 %v5656, 16
      %5658 = vset.pattern.permute.xlu0 %v5657
      %5659 = vperm.xlu0 %5658, %v4879
      %v5660 = vpop.permute.xlu0 %5659
      %v5661 = vlaneseq
      %v5662 = vshrl.u32 %v5661, 7
      %v5663 = vadd.s32 %v5662, 24
      %5664 = vset.pattern.permute.xlu0 %v5663
      %5665 = vperm.xlu0 %5664, %v4879
      %v5666 = vpop.permute.xlu0 %5665
      %v5667 = vlaneseq
      %v5668 = vshrl.u32 %v5667, 7
      %v5669 = vadd.s32 %v5668, 16
      %5670 = vset.pattern.permute.xlu0 %v5669
      %5671 = vperm.xlu0 %5670, %v4892
      %v5672 = vpop.permute.xlu0 %5671
      %v5673 = vlaneseq
      %v5674 = vshrl.u32 %v5673, 7
      %v5675 = vadd.s32 %v5674, 24
      %5676 = vset.pattern.permute.xlu0 %v5675
      %5677 = vperm.xlu0 %5676, %v4892
      %v5678 = vpop.permute.xlu0 %5677
      %v5679 = vlaneseq
      %v5680 = vshrl.u32 %v5679, 7
      %v5681 = vadd.s32 %v5680, 16
      %5682 = vset.pattern.permute.xlu0 %v5681
      %5683 = vperm.xlu0 %5682, %v4905
      %v5684 = vpop.permute.xlu0 %5683
      %v5685 = vlaneseq
      %v5686 = vshrl.u32 %v5685, 7
      %v5687 = vadd.s32 %v5686, 24
      %5688 = vset.pattern.permute.xlu0 %v5687
      %5689 = vperm.xlu0 %5688, %v4905
      %v5690 = vpop.permute.xlu0 %5689
      %v5691 = vlaneseq
      %v5692 = vshrl.u32 %v5691, 7
      %v5693 = vadd.s32 %v5692, 16
      %5694 = vset.pattern.permute.xlu0 %v5693
      %5695 = vperm.xlu0 %5694, %v4918
      %v5696 = vpop.permute.xlu0 %5695
      %v5697 = vlaneseq
      %v5698 = vshrl.u32 %v5697, 7
      %v5699 = vadd.s32 %v5698, 24
      %5700 = vset.pattern.permute.xlu0 %v5699
      %5701 = vperm.xlu0 %5700, %v4918
      %v5702 = vpop.permute.xlu0 %5701
      %v5703 = vlaneseq
      %v5704 = vshrl.u32 %v5703, 7
      %v5705 = vadd.s32 %v5704, 16
      %5706 = vset.pattern.permute.xlu0 %v5705
      %5707 = vperm.xlu0 %5706, %v4931
      %v5708 = vpop.permute.xlu0 %5707
      %v5709 = vlaneseq
      %v5710 = vshrl.u32 %v5709, 7
      %v5711 = vadd.s32 %v5710, 24
      %5712 = vset.pattern.permute.xlu0 %v5711
      %5713 = vperm.xlu0 %5712, %v4931
      %v5714 = vpop.permute.xlu0 %5713
      %v5715 = vlaneseq
      %v5716 = vshrl.u32 %v5715, 7
      %v5717 = vadd.s32 %v5716, 16
      %5718 = vset.pattern.permute.xlu0 %v5717
      %5719 = vperm.xlu0 %5718, %v4944
      %v5720 = vpop.permute.xlu0 %5719
      %v5721 = vlaneseq
      %v5722 = vshrl.u32 %v5721, 7
      %v5723 = vadd.s32 %v5722, 24
      %5724 = vset.pattern.permute.xlu0 %v5723
      %5725 = vperm.xlu0 %5724, %v4944
      %v5726 = vpop.permute.xlu0 %5725
      %v5727 = vlaneseq
      %v5728 = vshrl.u32 %v5727, 7
      %v5729 = vadd.s32 %v5728, 16
      %5730 = vset.pattern.permute.xlu0 %v5729
      %5731 = vperm.xlu0 %5730, %v4957
      %v5732 = vpop.permute.xlu0 %5731
      %v5733 = vlaneseq
      %v5734 = vshrl.u32 %v5733, 7
      %v5735 = vadd.s32 %v5734, 24
      %5736 = vset.pattern.permute.xlu0 %v5735
      %5737 = vperm.xlu0 %5736, %v4957
      %v5738 = vpop.permute.xlu0 %5737
      %v5739 = vlaneseq
      %v5740 = vshrl.u32 %v5739, 7
      %v5741 = vadd.s32 %v5740, 16
      %5742 = vset.pattern.permute.xlu0 %v5741
      %5743 = vperm.xlu0 %5742, %v4970
      %v5744 = vpop.permute.xlu0 %5743
      %v5745 = vlaneseq
      %v5746 = vshrl.u32 %v5745, 7
      %v5747 = vadd.s32 %v5746, 24
      %5748 = vset.pattern.permute.xlu0 %v5747
      %5749 = vperm.xlu0 %5748, %v4970
      %v5750 = vpop.permute.xlu0 %5749
      %v5751 = vsel %vm290, %v4157, %v4988
      %v5752 = vsel %vm290, %v4163, %v4994
      %v5753 = vsel %vm290, %v4170, %v5000
      %v5754 = vsel %vm290, %v4176, %v5006
      %v5755 = vsel %vm290, %v4183, %v5012
      %v5756 = vsel %vm290, %v4189, %v5018
      %v5757 = vsel %vm290, %v4196, %v5024
      %v5758 = vsel %vm290, %v4202, %v5030
      %v5759 = vsel %vm290, %v4209, %v5036
      %v5760 = vsel %vm290, %v4215, %v5042
      %v5761 = vsel %vm290, %v4222, %v5048
      %v5762 = vsel %vm290, %v4228, %v5054
      %v5763 = vsel %vm290, %v4235, %v5060
      %v5764 = vsel %vm290, %v4241, %v5066
      %v5765 = vsel %vm290, %v4248, %v5072
      %v5766 = vsel %vm290, %v4254, %v5078
      %v5767 = vsel %vm290, %v4261, %v5084
      %v5768 = vsel %vm290, %v4267, %v5090
      %v5769 = vsel %vm290, %v4274, %v5096
      %v5770 = vsel %vm290, %v4280, %v5102
      %v5771 = vsel %vm290, %v4287, %v5108
      %v5772 = vsel %vm290, %v4293, %v5114
      %v5773 = vsel %vm290, %v4300, %v5120
      %v5774 = vsel %vm290, %v4306, %v5126
      %v5775 = vsel %vm290, %v4313, %v5132
      %v5776 = vsel %vm290, %v4319, %v5138
      %v5777 = vsel %vm290, %v4326, %v5144
      %v5778 = vsel %vm290, %v4332, %v5150
      %v5779 = vsel %vm290, %v4339, %v5156
      %v5780 = vsel %vm290, %v4345, %v5162
      %v5781 = vsel %vm290, %v4352, %v5168
      %v5782 = vsel %vm290, %v4358, %v5174
      %v5783 = vsel %vm290, %v4365, %v5180
      %v5784 = vsel %vm290, %v4371, %v5186
      %v5785 = vsel %vm290, %v4378, %v5192
      %v5786 = vsel %vm290, %v4384, %v5198
      %v5787 = vsel %vm290, %v4391, %v5204
      %v5788 = vsel %vm290, %v4397, %v5210
      %v5789 = vsel %vm290, %v4404, %v5216
      %v5790 = vsel %vm290, %v4410, %v5222
      %v5791 = vsel %vm290, %v4417, %v5228
      %v5792 = vsel %vm290, %v4423, %v5234
      %v5793 = vsel %vm290, %v4430, %v5240
      %v5794 = vsel %vm290, %v4436, %v5246
      %v5795 = vsel %vm290, %v4443, %v5252
      %v5796 = vsel %vm290, %v4449, %v5258
      %v5797 = vsel %vm290, %v4456, %v5264
      %v5798 = vsel %vm290, %v4462, %v5270
      %v5799 = vsel %vm290, %v4469, %v5276
      %v5800 = vsel %vm290, %v4475, %v5282
      %v5801 = vsel %vm290, %v4482, %v5288
      %v5802 = vsel %vm290, %v4488, %v5294
      %v5803 = vsel %vm290, %v4495, %v5300
      %v5804 = vsel %vm290, %v4501, %v5306
      %v5805 = vsel %vm290, %v4508, %v5312
      %v5806 = vsel %vm290, %v4514, %v5318
      %v5807 = vsel %vm290, %v4521, %v5324
      %v5808 = vsel %vm290, %v4527, %v5330
      %v5809 = vsel %vm290, %v4534, %v5336
      %v5810 = vsel %vm290, %v4540, %v5342
      %v5811 = vsel %vm290, %v4547, %v5348
      %v5812 = vsel %vm290, %v4553, %v5354
      %v5813 = vsel %vm290, %v4560, %v5360
      %v5814 = vsel %vm290, %v4566, %v5366
      %v5815 = vsel %vm290, %v4573, %v5372
      %v5816 = vsel %vm290, %v4579, %v5378
      %v5817 = vsel %vm290, %v4586, %v5384
      %v5818 = vsel %vm290, %v4592, %v5390
      %v5819 = vsel %vm290, %v4599, %v5396
      %v5820 = vsel %vm290, %v4605, %v5402
      %v5821 = vsel %vm290, %v4612, %v5408
      %v5822 = vsel %vm290, %v4618, %v5414
      %v5823 = vsel %vm290, %v4625, %v5420
      %v5824 = vsel %vm290, %v4631, %v5426
      %v5825 = vsel %vm290, %v4638, %v5432
      %v5826 = vsel %vm290, %v4644, %v5438
      %v5827 = vsel %vm290, %v4651, %v5444
      %v5828 = vsel %vm290, %v4657, %v5450
      %v5829 = vsel %vm290, %v4664, %v5456
      %v5830 = vsel %vm290, %v4670, %v5462
      %v5831 = vsel %vm290, %v4677, %v5468
      %v5832 = vsel %vm290, %v4683, %v5474
      %v5833 = vsel %vm290, %v4690, %v5480
      %v5834 = vsel %vm290, %v4696, %v5486
      %v5835 = vsel %vm290, %v4703, %v5492
      %v5836 = vsel %vm290, %v4709, %v5498
      %v5837 = vsel %vm290, %v4716, %v5504
      %v5838 = vsel %vm290, %v4722, %v5510
      %v5839 = vsel %vm290, %v4729, %v5516
      %v5840 = vsel %vm290, %v4735, %v5522
      %v5841 = vsel %vm290, %v4742, %v5528
      %v5842 = vsel %vm290, %v4748, %v5534
      %v5843 = vsel %vm290, %v4755, %v5540
      %v5844 = vsel %vm290, %v4761, %v5546
      %v5845 = vsel %vm290, %v4768, %v5552
      %v5846 = vsel %vm290, %v4774, %v5558
      %v5847 = vsel %vm290, %v4781, %v5564
      %v5848 = vsel %vm290, %v4787, %v5570
      %v5849 = vsel %vm290, %v4794, %v5576
      %v5850 = vsel %vm290, %v4800, %v5582
      %v5851 = vsel %vm290, %v4807, %v5588
      %v5852 = vsel %vm290, %v4813, %v5594
      %v5853 = vsel %vm290, %v4820, %v5600
      %v5854 = vsel %vm290, %v4826, %v5606
      %v5855 = vsel %vm290, %v4833, %v5612
      %v5856 = vsel %vm290, %v4839, %v5618
      %v5857 = vsel %vm290, %v4846, %v5624
      %v5858 = vsel %vm290, %v4852, %v5630
      %v5859 = vsel %vm290, %v4859, %v5636
      %v5860 = vsel %vm290, %v4865, %v5642
      %v5861 = vsel %vm290, %v4872, %v5648
      %v5862 = vsel %vm290, %v4878, %v5654
      %v5863 = vsel %vm290, %v4885, %v5660
      %v5864 = vsel %vm290, %v4891, %v5666
      %v5865 = vsel %vm290, %v4898, %v5672
      %v5866 = vsel %vm290, %v4904, %v5678
      %v5867 = vsel %vm290, %v4911, %v5684
      %v5868 = vsel %vm290, %v4917, %v5690
      %v5869 = vsel %vm290, %v4924, %v5696
      %v5870 = vsel %vm290, %v4930, %v5702
      %v5871 = vsel %vm290, %v4937, %v5708
      %v5872 = vsel %vm290, %v4943, %v5714
      %v5873 = vsel %vm290, %v4950, %v5720
      %v5874 = vsel %vm290, %v4956, %v5726
      %v5875 = vsel %vm290, %v4963, %v5732
      %v5876 = vsel %vm290, %v4969, %v5738
      %v5877 = vsel %vm290, %v4976, %v5744
      %v5878 = vsel %vm290, %v4982, %v5750
      %v5879 = vmul.f32 %v1840, %v1844
      %v5880 = vmul.f32 %v1842, %v1846
      %v5881 = vmul.f32 %v1872, %v1876
      %v5882 = vmul.f32 %v1874, %v1878
      %v5883 = vmul.f32 %v1904, %v1908
      %v5884 = vmul.f32 %v1906, %v1910
      %v5885 = vmul.f32 %v1936, %v1940
      %v5886 = vmul.f32 %v1938, %v1942
      %v5887 = vmul.f32 %v1968, %v1972
      %v5888 = vmul.f32 %v1970, %v1974
      %v5889 = vmul.f32 %v2000, %v2004
      %v5890 = vmul.f32 %v2002, %v2006
      %v5891 = vmul.f32 %v2032, %v2036
      %v5892 = vmul.f32 %v2034, %v2038
      %v5893 = vmul.f32 %v2064, %v2068
      %v5894 = vmul.f32 %v2066, %v2070
      %v5895 = vmul.f32 %v1844, %v4023
      %v5896 = vmul.f32 %v1846, %v4024
      %v5897 = vmul.f32 %v1876, %v4039
      %v5898 = vmul.f32 %v1878, %v4040
      %v5899 = vmul.f32 %v1908, %v4055
      %v5900 = vmul.f32 %v1910, %v4056
      %v5901 = vmul.f32 %v1940, %v4071
      %v5902 = vmul.f32 %v1942, %v4072
      %v5903 = vmul.f32 %v1972, %v4087
      %v5904 = vmul.f32 %v1974, %v4088
      %v5905 = vmul.f32 %v2004, %v4103
      %v5906 = vmul.f32 %v2006, %v4104
      %v5907 = vmul.f32 %v2036, %v4119
      %v5908 = vmul.f32 %v2038, %v4120
      %v5909 = vmul.f32 %v2068, %v4135
      %v5910 = vmul.f32 %v2070, %v4136
      %v5911 = vadd.f32 %v5895, %v4025
      %v5912 = vadd.f32 %v5896, %v4026
      %v5913 = vadd.f32 %v5897, %v4041
      %v5914 = vadd.f32 %v5898, %v4042
      %v5915 = vadd.f32 %v5899, %v4057
      %v5916 = vadd.f32 %v5900, %v4058
      %v5917 = vadd.f32 %v5901, %v4073
      %v5918 = vadd.f32 %v5902, %v4074
      %v5919 = vadd.f32 %v5903, %v4089
      %v5920 = vadd.f32 %v5904, %v4090
      %v5921 = vadd.f32 %v5905, %v4105
      %v5922 = vadd.f32 %v5906, %v4106
      %v5923 = vadd.f32 %v5907, %v4121
      %v5924 = vadd.f32 %v5908, %v4122
      %v5925 = vadd.f32 %v5909, %v4137
      %v5926 = vadd.f32 %v5910, %v4138
      %v5927 = vmul.f32 %v1868, %v1864
      %v5928 = vmul.f32 %v1870, %v1866
      %v5929 = vmul.f32 %v1900, %v1896
      %v5930 = vmul.f32 %v1902, %v1898
      %v5931 = vmul.f32 %v1932, %v1928
      %v5932 = vmul.f32 %v1934, %v1930
      %v5933 = vmul.f32 %v1964, %v1960
      %v5934 = vmul.f32 %v1966, %v1962
      %v5935 = vmul.f32 %v1996, %v1992
      %v5936 = vmul.f32 %v1998, %v1994
      %v5937 = vmul.f32 %v2028, %v2024
      %v5938 = vmul.f32 %v2030, %v2026
      %v5939 = vmul.f32 %v2060, %v2056
      %v5940 = vmul.f32 %v2062, %v2058
      %v5941 = vmul.f32 %v2092, %v2088
      %v5942 = vmul.f32 %v2094, %v2090
      %v5943 = vmul.f32 %v1864, %v4037
      %v5944 = vmul.f32 %v1866, %v4038
      %v5945 = vmul.f32 %v1896, %v4053
      %v5946 = vmul.f32 %v1898, %v4054
      %v5947 = vmul.f32 %v1928, %v4069
      %v5948 = vmul.f32 %v1930, %v4070
      %v5949 = vmul.f32 %v1960, %v4085
      %v5950 = vmul.f32 %v1962, %v4086
      %v5951 = vmul.f32 %v1992, %v4101
      %v5952 = vmul.f32 %v1994, %v4102
      %v5953 = vmul.f32 %v2024, %v4117
      %v5954 = vmul.f32 %v2026, %v4118
      %v5955 = vmul.f32 %v2056, %v4133
      %v5956 = vmul.f32 %v2058, %v4134
      %v5957 = vmul.f32 %v2088, %v4149
      %v5958 = vmul.f32 %v2090, %v4150
      %v5959 = vadd.f32 %v5943, %v4035
      %v5960 = vadd.f32 %v5944, %v4036
      %v5961 = vadd.f32 %v5945, %v4051
      %v5962 = vadd.f32 %v5946, %v4052
      %v5963 = vadd.f32 %v5947, %v4067
      %v5964 = vadd.f32 %v5948, %v4068
      %v5965 = vadd.f32 %v5949, %v4083
      %v5966 = vadd.f32 %v5950, %v4084
      %v5967 = vadd.f32 %v5951, %v4099
      %v5968 = vadd.f32 %v5952, %v4100
      %v5969 = vadd.f32 %v5953, %v4115
      %v5970 = vadd.f32 %v5954, %v4116
      %v5971 = vadd.f32 %v5955, %v4131
      %v5972 = vadd.f32 %v5956, %v4132
      %v5973 = vadd.f32 %v5957, %v4147
      %v5974 = vadd.f32 %v5958, %v4148
      %v5975 = vmul.f32 %v5879, %v1848
      %v5976 = vmul.f32 %v5880, %v1850
      %v5977 = vmul.f32 %v5881, %v1880
      %v5978 = vmul.f32 %v5882, %v1882
      %v5979 = vmul.f32 %v5883, %v1912
      %v5980 = vmul.f32 %v5884, %v1914
      %v5981 = vmul.f32 %v5885, %v1944
      %v5982 = vmul.f32 %v5886, %v1946
      %v5983 = vmul.f32 %v5887, %v1976
      %v5984 = vmul.f32 %v5888, %v1978
      %v5985 = vmul.f32 %v5889, %v2008
      %v5986 = vmul.f32 %v5890, %v2010
      %v5987 = vmul.f32 %v5891, %v2040
      %v5988 = vmul.f32 %v5892, %v2042
      %v5989 = vmul.f32 %v5893, %v2072
      %v5990 = vmul.f32 %v5894, %v2074
      %v5991 = vmul.f32 %v1848, %v5911
      %v5992 = vmul.f32 %v1850, %v5912
      %v5993 = vmul.f32 %v1880, %v5913
      %v5994 = vmul.f32 %v1882, %v5914
      %v5995 = vmul.f32 %v1912, %v5915
      %v5996 = vmul.f32 %v1914, %v5916
      %v5997 = vmul.f32 %v1944, %v5917
      %v5998 = vmul.f32 %v1946, %v5918
      %v5999 = vmul.f32 %v1976, %v5919
      %v6000 = vmul.f32 %v1978, %v5920
      %v6001 = vmul.f32 %v2008, %v5921
      %v6002 = vmul.f32 %v2010, %v5922
      %v6003 = vmul.f32 %v2040, %v5923
      %v6004 = vmul.f32 %v2042, %v5924
      %v6005 = vmul.f32 %v2072, %v5925
      %v6006 = vmul.f32 %v2074, %v5926
      %v6007 = vadd.f32 %v5991, %v4027
      %v6008 = vadd.f32 %v5992, %v4028
      %v6009 = vadd.f32 %v5993, %v4043
      %v6010 = vadd.f32 %v5994, %v4044
      %v6011 = vadd.f32 %v5995, %v4059
      %v6012 = vadd.f32 %v5996, %v4060
      %v6013 = vadd.f32 %v5997, %v4075
      %v6014 = vadd.f32 %v5998, %v4076
      %v6015 = vadd.f32 %v5999, %v4091
      %v6016 = vadd.f32 %v6000, %v4092
      %v6017 = vadd.f32 %v6001, %v4107
      %v6018 = vadd.f32 %v6002, %v4108
      %v6019 = vadd.f32 %v6003, %v4123
      %v6020 = vadd.f32 %v6004, %v4124
      %v6021 = vadd.f32 %v6005, %v4139
      %v6022 = vadd.f32 %v6006, %v4140
      %v6023 = vmul.f32 %v5927, %v1860
      %v6024 = vmul.f32 %v5928, %v1862
      %v6025 = vmul.f32 %v5929, %v1892
      %v6026 = vmul.f32 %v5930, %v1894
      %v6027 = vmul.f32 %v5931, %v1924
      %v6028 = vmul.f32 %v5932, %v1926
      %v6029 = vmul.f32 %v5933, %v1956
      %v6030 = vmul.f32 %v5934, %v1958
      %v6031 = vmul.f32 %v5935, %v1988
      %v6032 = vmul.f32 %v5936, %v1990
      %v6033 = vmul.f32 %v5937, %v2020
      %v6034 = vmul.f32 %v5938, %v2022
      %v6035 = vmul.f32 %v5939, %v2052
      %v6036 = vmul.f32 %v5940, %v2054
      %v6037 = vmul.f32 %v5941, %v2084
      %v6038 = vmul.f32 %v5942, %v2086
      %v6039 = vmul.f32 %v1860, %v5959
      %v6040 = vmul.f32 %v1862, %v5960
      %v6041 = vmul.f32 %v1892, %v5961
      %v6042 = vmul.f32 %v1894, %v5962
      %v6043 = vmul.f32 %v1924, %v5963
      %v6044 = vmul.f32 %v1926, %v5964
      %v6045 = vmul.f32 %v1956, %v5965
      %v6046 = vmul.f32 %v1958, %v5966
      %v6047 = vmul.f32 %v1988, %v5967
      %v6048 = vmul.f32 %v1990, %v5968
      %v6049 = vmul.f32 %v2020, %v5969
      %v6050 = vmul.f32 %v2022, %v5970
      %v6051 = vmul.f32 %v2052, %v5971
      %v6052 = vmul.f32 %v2054, %v5972
      %v6053 = vmul.f32 %v2084, %v5973
      %v6054 = vmul.f32 %v2086, %v5974
      %v6055 = vadd.f32 %v6039, %v4033
      %v6056 = vadd.f32 %v6040, %v4034
      %v6057 = vadd.f32 %v6041, %v4049
      %v6058 = vadd.f32 %v6042, %v4050
      %v6059 = vadd.f32 %v6043, %v4065
      %v6060 = vadd.f32 %v6044, %v4066
      %v6061 = vadd.f32 %v6045, %v4081
      %v6062 = vadd.f32 %v6046, %v4082
      %v6063 = vadd.f32 %v6047, %v4097
      %v6064 = vadd.f32 %v6048, %v4098
      %v6065 = vadd.f32 %v6049, %v4113
      %v6066 = vadd.f32 %v6050, %v4114
      %v6067 = vadd.f32 %v6051, %v4129
      %v6068 = vadd.f32 %v6052, %v4130
      %v6069 = vadd.f32 %v6053, %v4145
      %v6070 = vadd.f32 %v6054, %v4146
      %v6071 = vmul.f32 %v5975, %v1852
      %v6072 = vmul.f32 %v5976, %v1854
      %v6073 = vmul.f32 %v5977, %v1884
      %v6074 = vmul.f32 %v5978, %v1886
      %v6075 = vmul.f32 %v5979, %v1916
      %v6076 = vmul.f32 %v5980, %v1918
      %v6077 = vmul.f32 %v5981, %v1948
      %v6078 = vmul.f32 %v5982, %v1950
      %v6079 = vmul.f32 %v5983, %v1980
      %v6080 = vmul.f32 %v5984, %v1982
      %v6081 = vmul.f32 %v5985, %v2012
      %v6082 = vmul.f32 %v5986, %v2014
      %v6083 = vmul.f32 %v5987, %v2044
      %v6084 = vmul.f32 %v5988, %v2046
      %v6085 = vmul.f32 %v5989, %v2076
      %v6086 = vmul.f32 %v5990, %v2078
      %v6087 = vmul.f32 %v1852, %v6007
      %v6088 = vmul.f32 %v1854, %v6008
      %v6089 = vmul.f32 %v1884, %v6009
      %v6090 = vmul.f32 %v1886, %v6010
      %v6091 = vmul.f32 %v1916, %v6011
      %v6092 = vmul.f32 %v1918, %v6012
      %v6093 = vmul.f32 %v1948, %v6013
      %v6094 = vmul.f32 %v1950, %v6014
      %v6095 = vmul.f32 %v1980, %v6015
      %v6096 = vmul.f32 %v1982, %v6016
      %v6097 = vmul.f32 %v2012, %v6017
      %v6098 = vmul.f32 %v2014, %v6018
      %v6099 = vmul.f32 %v2044, %v6019
      %v6100 = vmul.f32 %v2046, %v6020
      %v6101 = vmul.f32 %v2076, %v6021
      %v6102 = vmul.f32 %v2078, %v6022
      %v6103 = vadd.f32 %v6087, %v4029
      %v6104 = vadd.f32 %v6088, %v4030
      %v6105 = vadd.f32 %v6089, %v4045
      %v6106 = vadd.f32 %v6090, %v4046
      %v6107 = vadd.f32 %v6091, %v4061
      %v6108 = vadd.f32 %v6092, %v4062
      %v6109 = vadd.f32 %v6093, %v4077
      %v6110 = vadd.f32 %v6094, %v4078
      %v6111 = vadd.f32 %v6095, %v4093
      %v6112 = vadd.f32 %v6096, %v4094
      %v6113 = vadd.f32 %v6097, %v4109
      %v6114 = vadd.f32 %v6098, %v4110
      %v6115 = vadd.f32 %v6099, %v4125
      %v6116 = vadd.f32 %v6100, %v4126
      %v6117 = vadd.f32 %v6101, %v4141
      %v6118 = vadd.f32 %v6102, %v4142
      %v6119 = vmul.f32 %v6023, %v1856
      %v6120 = vmul.f32 %v6024, %v1858
      %v6121 = vmul.f32 %v6025, %v1888
      %v6122 = vmul.f32 %v6026, %v1890
      %v6123 = vmul.f32 %v6027, %v1920
      %v6124 = vmul.f32 %v6028, %v1922
      %v6125 = vmul.f32 %v6029, %v1952
      %v6126 = vmul.f32 %v6030, %v1954
      %v6127 = vmul.f32 %v6031, %v1984
      %v6128 = vmul.f32 %v6032, %v1986
      %v6129 = vmul.f32 %v6033, %v2016
      %v6130 = vmul.f32 %v6034, %v2018
      %v6131 = vmul.f32 %v6035, %v2048
      %v6132 = vmul.f32 %v6036, %v2050
      %v6133 = vmul.f32 %v6037, %v2080
      %v6134 = vmul.f32 %v6038, %v2082
      %v6135 = vmul.f32 %v1856, %v6055
      %v6136 = vmul.f32 %v1858, %v6056
      %v6137 = vmul.f32 %v1888, %v6057
      %v6138 = vmul.f32 %v1890, %v6058
      %v6139 = vmul.f32 %v1920, %v6059
      %v6140 = vmul.f32 %v1922, %v6060
      %v6141 = vmul.f32 %v1952, %v6061
      %v6142 = vmul.f32 %v1954, %v6062
      %v6143 = vmul.f32 %v1984, %v6063
      %v6144 = vmul.f32 %v1986, %v6064
      %v6145 = vmul.f32 %v2016, %v6065
      %v6146 = vmul.f32 %v2018, %v6066
      %v6147 = vmul.f32 %v2048, %v6067
      %v6148 = vmul.f32 %v2050, %v6068
      %v6149 = vmul.f32 %v2080, %v6069
      %v6150 = vmul.f32 %v2082, %v6070
      %v6151 = vadd.f32 %v6135, %v4031
      %v6152 = vadd.f32 %v6136, %v4032
      %v6153 = vadd.f32 %v6137, %v4047
      %v6154 = vadd.f32 %v6138, %v4048
      %v6155 = vadd.f32 %v6139, %v4063
      %v6156 = vadd.f32 %v6140, %v4064
      %v6157 = vadd.f32 %v6141, %v4079
      %v6158 = vadd.f32 %v6142, %v4080
      %v6159 = vadd.f32 %v6143, %v4095
      %v6160 = vadd.f32 %v6144, %v4096
      %v6161 = vadd.f32 %v6145, %v4111
      %v6162 = vadd.f32 %v6146, %v4112
      %v6163 = vadd.f32 %v6147, %v4127
      %v6164 = vadd.f32 %v6148, %v4128
      %v6165 = vadd.f32 %v6149, %v4143
      %v6166 = vadd.f32 %v6150, %v4144
      %v6167 = vmul.f32 %v6071, %v1856
      %v6168 = vmul.f32 %v6072, %v1858
      %v6169 = vmul.f32 %v6073, %v1888
      %v6170 = vmul.f32 %v6074, %v1890
      %v6171 = vmul.f32 %v6075, %v1920
      %v6172 = vmul.f32 %v6076, %v1922
      %v6173 = vmul.f32 %v6077, %v1952
      %v6174 = vmul.f32 %v6078, %v1954
      %v6175 = vmul.f32 %v6079, %v1984
      %v6176 = vmul.f32 %v6080, %v1986
      %v6177 = vmul.f32 %v6081, %v2016
      %v6178 = vmul.f32 %v6082, %v2018
      %v6179 = vmul.f32 %v6083, %v2048
      %v6180 = vmul.f32 %v6084, %v2050
      %v6181 = vmul.f32 %v6085, %v2080
      %v6182 = vmul.f32 %v6086, %v2082
      %v6183 = vmul.f32 %v1856, %v6103
      %v6184 = vmul.f32 %v1858, %v6104
      %v6185 = vmul.f32 %v1888, %v6105
      %v6186 = vmul.f32 %v1890, %v6106
      %v6187 = vmul.f32 %v1920, %v6107
      %v6188 = vmul.f32 %v1922, %v6108
      %v6189 = vmul.f32 %v1952, %v6109
      %v6190 = vmul.f32 %v1954, %v6110
      %v6191 = vmul.f32 %v1984, %v6111
      %v6192 = vmul.f32 %v1986, %v6112
      %v6193 = vmul.f32 %v2016, %v6113
      %v6194 = vmul.f32 %v2018, %v6114
      %v6195 = vmul.f32 %v2048, %v6115
      %v6196 = vmul.f32 %v2050, %v6116
      %v6197 = vmul.f32 %v2080, %v6117
      %v6198 = vmul.f32 %v2082, %v6118
      %v6199 = vadd.f32 %v6183, %v4031
      %v6200 = vadd.f32 %v6184, %v4032
      %v6201 = vadd.f32 %v6185, %v4047
      %v6202 = vadd.f32 %v6186, %v4048
      %v6203 = vadd.f32 %v6187, %v4063
      %v6204 = vadd.f32 %v6188, %v4064
      %v6205 = vadd.f32 %v6189, %v4079
      %v6206 = vadd.f32 %v6190, %v4080
      %v6207 = vadd.f32 %v6191, %v4095
      %v6208 = vadd.f32 %v6192, %v4096
      %v6209 = vadd.f32 %v6193, %v4111
      %v6210 = vadd.f32 %v6194, %v4112
      %v6211 = vadd.f32 %v6195, %v4127
      %v6212 = vadd.f32 %v6196, %v4128
      %v6213 = vadd.f32 %v6197, %v4143
      %v6214 = vadd.f32 %v6198, %v4144
      %v6215 = vmul.f32 %v6119, %v1852
      %v6216 = vmul.f32 %v6120, %v1854
      %v6217 = vmul.f32 %v6121, %v1884
      %v6218 = vmul.f32 %v6122, %v1886
      %v6219 = vmul.f32 %v6123, %v1916
      %v6220 = vmul.f32 %v6124, %v1918
      %v6221 = vmul.f32 %v6125, %v1948
      %v6222 = vmul.f32 %v6126, %v1950
      %v6223 = vmul.f32 %v6127, %v1980
      %v6224 = vmul.f32 %v6128, %v1982
      %v6225 = vmul.f32 %v6129, %v2012
      %v6226 = vmul.f32 %v6130, %v2014
      %v6227 = vmul.f32 %v6131, %v2044
      %v6228 = vmul.f32 %v6132, %v2046
      %v6229 = vmul.f32 %v6133, %v2076
      %v6230 = vmul.f32 %v6134, %v2078
      %v6231 = vmul.f32 %v1852, %v6151
      %v6232 = vmul.f32 %v1854, %v6152
      %v6233 = vmul.f32 %v1884, %v6153
      %v6234 = vmul.f32 %v1886, %v6154
      %v6235 = vmul.f32 %v1916, %v6155
      %v6236 = vmul.f32 %v1918, %v6156
      %v6237 = vmul.f32 %v1948, %v6157
      %v6238 = vmul.f32 %v1950, %v6158
      %v6239 = vmul.f32 %v1980, %v6159
      %v6240 = vmul.f32 %v1982, %v6160
      %v6241 = vmul.f32 %v2012, %v6161
      %v6242 = vmul.f32 %v2014, %v6162
      %v6243 = vmul.f32 %v2044, %v6163
      %v6244 = vmul.f32 %v2046, %v6164
      %v6245 = vmul.f32 %v2076, %v6165
      %v6246 = vmul.f32 %v2078, %v6166
      %v6247 = vadd.f32 %v6231, %v4029
      %v6248 = vadd.f32 %v6232, %v4030
      %v6249 = vadd.f32 %v6233, %v4045
      %v6250 = vadd.f32 %v6234, %v4046
      %v6251 = vadd.f32 %v6235, %v4061
      %v6252 = vadd.f32 %v6236, %v4062
      %v6253 = vadd.f32 %v6237, %v4077
      %v6254 = vadd.f32 %v6238, %v4078
      %v6255 = vadd.f32 %v6239, %v4093
      %v6256 = vadd.f32 %v6240, %v4094
      %v6257 = vadd.f32 %v6241, %v4109
      %v6258 = vadd.f32 %v6242, %v4110
      %v6259 = vadd.f32 %v6243, %v4125
      %v6260 = vadd.f32 %v6244, %v4126
      %v6261 = vadd.f32 %v6245, %v4141
      %v6262 = vadd.f32 %v6246, %v4142
      %v6263 = vmul.f32 %v6167, %v1860
      %v6264 = vmul.f32 %v6168, %v1862
      %v6265 = vmul.f32 %v6169, %v1892
      %v6266 = vmul.f32 %v6170, %v1894
      %v6267 = vmul.f32 %v6171, %v1924
      %v6268 = vmul.f32 %v6172, %v1926
      %v6269 = vmul.f32 %v6173, %v1956
      %v6270 = vmul.f32 %v6174, %v1958
      %v6271 = vmul.f32 %v6175, %v1988
      %v6272 = vmul.f32 %v6176, %v1990
      %v6273 = vmul.f32 %v6177, %v2020
      %v6274 = vmul.f32 %v6178, %v2022
      %v6275 = vmul.f32 %v6179, %v2052
      %v6276 = vmul.f32 %v6180, %v2054
      %v6277 = vmul.f32 %v6181, %v2084
      %v6278 = vmul.f32 %v6182, %v2086
      %v6279 = vmul.f32 %v1860, %v6199
      %v6280 = vmul.f32 %v1862, %v6200
      %v6281 = vmul.f32 %v1892, %v6201
      %v6282 = vmul.f32 %v1894, %v6202
      %v6283 = vmul.f32 %v1924, %v6203
      %v6284 = vmul.f32 %v1926, %v6204
      %v6285 = vmul.f32 %v1956, %v6205
      %v6286 = vmul.f32 %v1958, %v6206
      %v6287 = vmul.f32 %v1988, %v6207
      %v6288 = vmul.f32 %v1990, %v6208
      %v6289 = vmul.f32 %v2020, %v6209
      %v6290 = vmul.f32 %v2022, %v6210
      %v6291 = vmul.f32 %v2052, %v6211
      %v6292 = vmul.f32 %v2054, %v6212
      %v6293 = vmul.f32 %v2084, %v6213
      %v6294 = vmul.f32 %v2086, %v6214
      %v6295 = vadd.f32 %v6279, %v4033
      %v6296 = vadd.f32 %v6280, %v4034
      %v6297 = vadd.f32 %v6281, %v4049
      %v6298 = vadd.f32 %v6282, %v4050
      %v6299 = vadd.f32 %v6283, %v4065
      %v6300 = vadd.f32 %v6284, %v4066
      %v6301 = vadd.f32 %v6285, %v4081
      %v6302 = vadd.f32 %v6286, %v4082
      %v6303 = vadd.f32 %v6287, %v4097
      %v6304 = vadd.f32 %v6288, %v4098
      %v6305 = vadd.f32 %v6289, %v4113
      %v6306 = vadd.f32 %v6290, %v4114
      %v6307 = vadd.f32 %v6291, %v4129
      %v6308 = vadd.f32 %v6292, %v4130
      %v6309 = vadd.f32 %v6293, %v4145
      %v6310 = vadd.f32 %v6294, %v4146
      %v6311 = vmul.f32 %v6215, %v1848
      %v6312 = vmul.f32 %v6216, %v1850
      %v6313 = vmul.f32 %v6217, %v1880
      %v6314 = vmul.f32 %v6218, %v1882
      %v6315 = vmul.f32 %v6219, %v1912
      %v6316 = vmul.f32 %v6220, %v1914
      %v6317 = vmul.f32 %v6221, %v1944
      %v6318 = vmul.f32 %v6222, %v1946
      %v6319 = vmul.f32 %v6223, %v1976
      %v6320 = vmul.f32 %v6224, %v1978
      %v6321 = vmul.f32 %v6225, %v2008
      %v6322 = vmul.f32 %v6226, %v2010
      %v6323 = vmul.f32 %v6227, %v2040
      %v6324 = vmul.f32 %v6228, %v2042
      %v6325 = vmul.f32 %v6229, %v2072
      %v6326 = vmul.f32 %v6230, %v2074
      %v6327 = vmul.f32 %v1848, %v6247
      %v6328 = vmul.f32 %v1850, %v6248
      %v6329 = vmul.f32 %v1880, %v6249
      %v6330 = vmul.f32 %v1882, %v6250
      %v6331 = vmul.f32 %v1912, %v6251
      %v6332 = vmul.f32 %v1914, %v6252
      %v6333 = vmul.f32 %v1944, %v6253
      %v6334 = vmul.f32 %v1946, %v6254
      %v6335 = vmul.f32 %v1976, %v6255
      %v6336 = vmul.f32 %v1978, %v6256
      %v6337 = vmul.f32 %v2008, %v6257
      %v6338 = vmul.f32 %v2010, %v6258
      %v6339 = vmul.f32 %v2040, %v6259
      %v6340 = vmul.f32 %v2042, %v6260
      %v6341 = vmul.f32 %v2072, %v6261
      %v6342 = vmul.f32 %v2074, %v6262
      %v6343 = vadd.f32 %v6327, %v4027
      %v6344 = vadd.f32 %v6328, %v4028
      %v6345 = vadd.f32 %v6329, %v4043
      %v6346 = vadd.f32 %v6330, %v4044
      %v6347 = vadd.f32 %v6331, %v4059
      %v6348 = vadd.f32 %v6332, %v4060
      %v6349 = vadd.f32 %v6333, %v4075
      %v6350 = vadd.f32 %v6334, %v4076
      %v6351 = vadd.f32 %v6335, %v4091
      %v6352 = vadd.f32 %v6336, %v4092
      %v6353 = vadd.f32 %v6337, %v4107
      %v6354 = vadd.f32 %v6338, %v4108
      %v6355 = vadd.f32 %v6339, %v4123
      %v6356 = vadd.f32 %v6340, %v4124
      %v6357 = vadd.f32 %v6341, %v4139
      %v6358 = vadd.f32 %v6342, %v4140
      %v6359 = vmul.f32 %v6263, %v1864
      %v6360 = vmul.f32 %v6264, %v1866
      %v6361 = vmul.f32 %v6265, %v1896
      %v6362 = vmul.f32 %v6266, %v1898
      %v6363 = vmul.f32 %v6267, %v1928
      %v6364 = vmul.f32 %v6268, %v1930
      %v6365 = vmul.f32 %v6269, %v1960
      %v6366 = vmul.f32 %v6270, %v1962
      %v6367 = vmul.f32 %v6271, %v1992
      %v6368 = vmul.f32 %v6272, %v1994
      %v6369 = vmul.f32 %v6273, %v2024
      %v6370 = vmul.f32 %v6274, %v2026
      %v6371 = vmul.f32 %v6275, %v2056
      %v6372 = vmul.f32 %v6276, %v2058
      %v6373 = vmul.f32 %v6277, %v2088
      %v6374 = vmul.f32 %v6278, %v2090
      %v6375 = vmul.f32 %v1864, %v6295
      %v6376 = vmul.f32 %v1866, %v6296
      %v6377 = vmul.f32 %v1896, %v6297
      %v6378 = vmul.f32 %v1898, %v6298
      %v6379 = vmul.f32 %v1928, %v6299
      %v6380 = vmul.f32 %v1930, %v6300
      %v6381 = vmul.f32 %v1960, %v6301
      %v6382 = vmul.f32 %v1962, %v6302
      %v6383 = vmul.f32 %v1992, %v6303
      %v6384 = vmul.f32 %v1994, %v6304
      %v6385 = vmul.f32 %v2024, %v6305
      %v6386 = vmul.f32 %v2026, %v6306
      %v6387 = vmul.f32 %v2056, %v6307
      %v6388 = vmul.f32 %v2058, %v6308
      %v6389 = vmul.f32 %v2088, %v6309
      %v6390 = vmul.f32 %v2090, %v6310
      %v6391 = vadd.f32 %v6375, %v4035
      %v6392 = vadd.f32 %v6376, %v4036
      %v6393 = vadd.f32 %v6377, %v4051
      %v6394 = vadd.f32 %v6378, %v4052
      %v6395 = vadd.f32 %v6379, %v4067
      %v6396 = vadd.f32 %v6380, %v4068
      %v6397 = vadd.f32 %v6381, %v4083
      %v6398 = vadd.f32 %v6382, %v4084
      %v6399 = vadd.f32 %v6383, %v4099
      %v6400 = vadd.f32 %v6384, %v4100
      %v6401 = vadd.f32 %v6385, %v4115
      %v6402 = vadd.f32 %v6386, %v4116
      %v6403 = vadd.f32 %v6387, %v4131
      %v6404 = vadd.f32 %v6388, %v4132
      %v6405 = vadd.f32 %v6389, %v4147
      %v6406 = vadd.f32 %v6390, %v4148
      %v6407 = vmul.f32 %v6311, %v1844
      %v6408 = vmul.f32 %v6312, %v1846
      %v6409 = vmul.f32 %v6313, %v1876
      %v6410 = vmul.f32 %v6314, %v1878
      %v6411 = vmul.f32 %v6315, %v1908
      %v6412 = vmul.f32 %v6316, %v1910
      %v6413 = vmul.f32 %v6317, %v1940
      %v6414 = vmul.f32 %v6318, %v1942
      %v6415 = vmul.f32 %v6319, %v1972
      %v6416 = vmul.f32 %v6320, %v1974
      %v6417 = vmul.f32 %v6321, %v2004
      %v6418 = vmul.f32 %v6322, %v2006
      %v6419 = vmul.f32 %v6323, %v2036
      %v6420 = vmul.f32 %v6324, %v2038
      %v6421 = vmul.f32 %v6325, %v2068
      %v6422 = vmul.f32 %v6326, %v2070
      %v6423 = vmul.f32 %v1844, %v6343
      %v6424 = vmul.f32 %v1846, %v6344
      %v6425 = vmul.f32 %v1876, %v6345
      %v6426 = vmul.f32 %v1878, %v6346
      %v6427 = vmul.f32 %v1908, %v6347
      %v6428 = vmul.f32 %v1910, %v6348
      %v6429 = vmul.f32 %v1940, %v6349
      %v6430 = vmul.f32 %v1942, %v6350
      %v6431 = vmul.f32 %v1972, %v6351
      %v6432 = vmul.f32 %v1974, %v6352
      %v6433 = vmul.f32 %v2004, %v6353
      %v6434 = vmul.f32 %v2006, %v6354
      %v6435 = vmul.f32 %v2036, %v6355
      %v6436 = vmul.f32 %v2038, %v6356
      %v6437 = vmul.f32 %v2068, %v6357
      %v6438 = vmul.f32 %v2070, %v6358
      %v6439 = vadd.f32 %v6423, %v4025
      %v6440 = vadd.f32 %v6424, %v4026
      %v6441 = vadd.f32 %v6425, %v4041
      %v6442 = vadd.f32 %v6426, %v4042
      %v6443 = vadd.f32 %v6427, %v4057
      %v6444 = vadd.f32 %v6428, %v4058
      %v6445 = vadd.f32 %v6429, %v4073
      %v6446 = vadd.f32 %v6430, %v4074
      %v6447 = vadd.f32 %v6431, %v4089
      %v6448 = vadd.f32 %v6432, %v4090
      %v6449 = vadd.f32 %v6433, %v4105
      %v6450 = vadd.f32 %v6434, %v4106
      %v6451 = vadd.f32 %v6435, %v4121
      %v6452 = vadd.f32 %v6436, %v4122
      %v6453 = vadd.f32 %v6437, %v4137
      %v6454 = vadd.f32 %v6438, %v4138
      %v6455 = vmul.f32 %v6359, %v1868
      %v6456 = vmul.f32 %v6360, %v1870
      %v6457 = vmul.f32 %v6361, %v1900
      %v6458 = vmul.f32 %v6362, %v1902
      %v6459 = vmul.f32 %v6363, %v1932
      %v6460 = vmul.f32 %v6364, %v1934
      %v6461 = vmul.f32 %v6365, %v1964
      %v6462 = vmul.f32 %v6366, %v1966
      %v6463 = vmul.f32 %v6367, %v1996
      %v6464 = vmul.f32 %v6368, %v1998
      %v6465 = vmul.f32 %v6369, %v2028
      %v6466 = vmul.f32 %v6370, %v2030
      %v6467 = vmul.f32 %v6371, %v2060
      %v6468 = vmul.f32 %v6372, %v2062
      %v6469 = vmul.f32 %v6373, %v2092
      %v6470 = vmul.f32 %v6374, %v2094
      %v6471 = vmul.f32 %v1868, %v6391
      %v6472 = vmul.f32 %v1870, %v6392
      %v6473 = vmul.f32 %v1900, %v6393
      %v6474 = vmul.f32 %v1902, %v6394
      %v6475 = vmul.f32 %v1932, %v6395
      %v6476 = vmul.f32 %v1934, %v6396
      %v6477 = vmul.f32 %v1964, %v6397
      %v6478 = vmul.f32 %v1966, %v6398
      %v6479 = vmul.f32 %v1996, %v6399
      %v6480 = vmul.f32 %v1998, %v6400
      %v6481 = vmul.f32 %v2028, %v6401
      %v6482 = vmul.f32 %v2030, %v6402
      %v6483 = vmul.f32 %v2060, %v6403
      %v6484 = vmul.f32 %v2062, %v6404
      %v6485 = vmul.f32 %v2092, %v6405
      %v6486 = vmul.f32 %v2094, %v6406
      %v6487 = vadd.f32 %v6471, %v4037
      %v6488 = vadd.f32 %v6472, %v4038
      %v6489 = vadd.f32 %v6473, %v4053
      %v6490 = vadd.f32 %v6474, %v4054
      %v6491 = vadd.f32 %v6475, %v4069
      %v6492 = vadd.f32 %v6476, %v4070
      %v6493 = vadd.f32 %v6477, %v4085
      %v6494 = vadd.f32 %v6478, %v4086
      %v6495 = vadd.f32 %v6479, %v4101
      %v6496 = vadd.f32 %v6480, %v4102
      %v6497 = vadd.f32 %v6481, %v4117
      %v6498 = vadd.f32 %v6482, %v4118
      %v6499 = vadd.f32 %v6483, %v4133
      %v6500 = vadd.f32 %v6484, %v4134
      %v6501 = vadd.f32 %v6485, %v4149
      %v6502 = vadd.f32 %v6486, %v4150
      %v6503 = vmul.f32 %v6407, %v1840
      %v6504 = vmul.f32 %v6408, %v1842
      %v6505 = vmul.f32 %v6409, %v1872
      %v6506 = vmul.f32 %v6410, %v1874
      %v6507 = vmul.f32 %v6411, %v1904
      %v6508 = vmul.f32 %v6412, %v1906
      %v6509 = vmul.f32 %v6413, %v1936
      %v6510 = vmul.f32 %v6414, %v1938
      %v6511 = vmul.f32 %v6415, %v1968
      %v6512 = vmul.f32 %v6416, %v1970
      %v6513 = vmul.f32 %v6417, %v2000
      %v6514 = vmul.f32 %v6418, %v2002
      %v6515 = vmul.f32 %v6419, %v2032
      %v6516 = vmul.f32 %v6420, %v2034
      %v6517 = vmul.f32 %v6421, %v2064
      %v6518 = vmul.f32 %v6422, %v2066
      %v6519 = vmul.f32 %v1840, %v6439
      %v6520 = vmul.f32 %v1842, %v6440
      %v6521 = vmul.f32 %v1872, %v6441
      %v6522 = vmul.f32 %v1874, %v6442
      %v6523 = vmul.f32 %v1904, %v6443
      %v6524 = vmul.f32 %v1906, %v6444
      %v6525 = vmul.f32 %v1936, %v6445
      %v6526 = vmul.f32 %v1938, %v6446
      %v6527 = vmul.f32 %v1968, %v6447
      %v6528 = vmul.f32 %v1970, %v6448
      %v6529 = vmul.f32 %v2000, %v6449
      %v6530 = vmul.f32 %v2002, %v6450
      %v6531 = vmul.f32 %v2032, %v6451
      %v6532 = vmul.f32 %v2034, %v6452
      %v6533 = vmul.f32 %v2064, %v6453
      %v6534 = vmul.f32 %v2066, %v6454
      %v6535 = vadd.f32 %v6519, %v4023
      %v6536 = vadd.f32 %v6520, %v4024
      %v6537 = vadd.f32 %v6521, %v4039
      %v6538 = vadd.f32 %v6522, %v4040
      %v6539 = vadd.f32 %v6523, %v4055
      %v6540 = vadd.f32 %v6524, %v4056
      %v6541 = vadd.f32 %v6525, %v4071
      %v6542 = vadd.f32 %v6526, %v4072
      %v6543 = vadd.f32 %v6527, %v4087
      %v6544 = vadd.f32 %v6528, %v4088
      %v6545 = vadd.f32 %v6529, %v4103
      %v6546 = vadd.f32 %v6530, %v4104
      %v6547 = vadd.f32 %v6531, %v4119
      %v6548 = vadd.f32 %v6532, %v4120
      %v6549 = vadd.f32 %v6533, %v4135
      %v6550 = vadd.f32 %v6534, %v4136
      %v6551 = vmul.f32 %v6455, 0.0
      %v6552 = vmul.f32 %v6456, 0.0
      %v6553 = vadd.f32 %v6551, %v6487
      %v6554 = vadd.f32 %v6552, %v6488
      %v6555 = vmul.f32 %v6457, %v6553
      %v6556 = vmul.f32 %v6458, %v6554
      %v6557 = vadd.f32 %v6555, %v6489
      %v6558 = vadd.f32 %v6556, %v6490
      %v6559 = vmul.f32 %v6459, %v6557
      %v6560 = vmul.f32 %v6460, %v6558
      %v6561 = vadd.f32 %v6559, %v6491
      %v6562 = vadd.f32 %v6560, %v6492
      %v6563 = vmul.f32 %v6461, %v6561
      %v6564 = vmul.f32 %v6462, %v6562
      %v6565 = vadd.f32 %v6563, %v6493
      %v6566 = vadd.f32 %v6564, %v6494
      %v6567 = vmul.f32 %v6463, %v6565
      %v6568 = vmul.f32 %v6464, %v6566
      %v6569 = vadd.f32 %v6567, %v6495
      %v6570 = vadd.f32 %v6568, %v6496
      %v6571 = vmul.f32 %v6465, %v6569
      %v6572 = vmul.f32 %v6466, %v6570
      %v6573 = vadd.f32 %v6571, %v6497
      %v6574 = vadd.f32 %v6572, %v6498
      %v6575 = vmul.f32 %v6467, %v6573
      %v6576 = vmul.f32 %v6468, %v6574
      %v6577 = vadd.f32 %v6575, %v6499
      %v6578 = vadd.f32 %v6576, %v6500
      %v6579 = vmul.f32 %v6517, 0.0
      %v6580 = vmul.f32 %v6518, 0.0
      %v6581 = vadd.f32 %v6579, %v6549
      %v6582 = vadd.f32 %v6580, %v6550
      %v6583 = vmul.f32 %v6515, %v6581
      %v6584 = vmul.f32 %v6516, %v6582
      %v6585 = vadd.f32 %v6583, %v6547
      %v6586 = vadd.f32 %v6584, %v6548
      %v6587 = vmul.f32 %v6513, %v6585
      %v6588 = vmul.f32 %v6514, %v6586
      %v6589 = vadd.f32 %v6587, %v6545
      %v6590 = vadd.f32 %v6588, %v6546
      %v6591 = vmul.f32 %v6511, %v6589
      %v6592 = vmul.f32 %v6512, %v6590
      %v6593 = vadd.f32 %v6591, %v6543
      %v6594 = vadd.f32 %v6592, %v6544
      %v6595 = vmul.f32 %v6509, %v6593
      %v6596 = vmul.f32 %v6510, %v6594
      %v6597 = vadd.f32 %v6595, %v6541
      %v6598 = vadd.f32 %v6596, %v6542
      %v6599 = vmul.f32 %v6507, %v6597
      %v6600 = vmul.f32 %v6508, %v6598
      %v6601 = vadd.f32 %v6599, %v6539
      %v6602 = vadd.f32 %v6600, %v6540
      %v6603 = vmul.f32 %v6505, %v6601
      %v6604 = vmul.f32 %v6506, %v6602
      %v6605 = vadd.f32 %v6603, %v6537
      %v6606 = vadd.f32 %v6604, %v6538
      %v6607 = vmul.f32 %v1840, 0.0
      %v6608 = vmul.f32 %v1842, 0.0
      %v6609 = vmul.f32 %v1872, %v6553
      %v6610 = vmul.f32 %v1874, %v6554
      %v6611 = vmul.f32 %v1904, %v6557
      %v6612 = vmul.f32 %v1906, %v6558
      %v6613 = vmul.f32 %v1936, %v6561
      %v6614 = vmul.f32 %v1938, %v6562
      %v6615 = vmul.f32 %v1968, %v6565
      %v6616 = vmul.f32 %v1970, %v6566
      %v6617 = vmul.f32 %v2000, %v6569
      %v6618 = vmul.f32 %v2002, %v6570
      %v6619 = vmul.f32 %v2032, %v6573
      %v6620 = vmul.f32 %v2034, %v6574
      %v6621 = vmul.f32 %v2064, %v6577
      %v6622 = vmul.f32 %v2066, %v6578
      %v6623 = vadd.f32 %v6607, %v4023
      %v6624 = vadd.f32 %v6608, %v4024
      %v6625 = vadd.f32 %v6609, %v4039
      %v6626 = vadd.f32 %v6610, %v4040
      %v6627 = vadd.f32 %v6611, %v4055
      %v6628 = vadd.f32 %v6612, %v4056
      %v6629 = vadd.f32 %v6613, %v4071
      %v6630 = vadd.f32 %v6614, %v4072
      %v6631 = vadd.f32 %v6615, %v4087
      %v6632 = vadd.f32 %v6616, %v4088
      %v6633 = vadd.f32 %v6617, %v4103
      %v6634 = vadd.f32 %v6618, %v4104
      %v6635 = vadd.f32 %v6619, %v4119
      %v6636 = vadd.f32 %v6620, %v4120
      %v6637 = vadd.f32 %v6621, %v4135
      %v6638 = vadd.f32 %v6622, %v4136
      %v6639 = vmul.f32 %v5751, %v6623
      %v6640 = vmul.f32 %v5752, %v6624
      %v6641 = vmul.f32 %v5767, %v6625
      %v6642 = vmul.f32 %v5768, %v6626
      %v6643 = vmul.f32 %v5783, %v6627
      %v6644 = vmul.f32 %v5784, %v6628
      %v6645 = vmul.f32 %v5799, %v6629
      %v6646 = vmul.f32 %v5800, %v6630
      %v6647 = vmul.f32 %v5815, %v6631
      %v6648 = vmul.f32 %v5816, %v6632
      %v6649 = vmul.f32 %v5831, %v6633
      %v6650 = vmul.f32 %v5832, %v6634
      %v6651 = vmul.f32 %v5847, %v6635
      %v6652 = vmul.f32 %v5848, %v6636
      %v6653 = vmul.f32 %v5863, %v6637
      %v6654 = vmul.f32 %v5864, %v6638
      %v6655 = vadd.f32 %v6639, %v6640
      %v6656 = vrot.slane %v6655, 4
      %v6657 = vadd.f32 %v6655, %v6656
      %v6658 = vrot.slane %v6657, 2
      %v6659 = vadd.f32 %v6657, %v6658
      %v6660 = vrot.slane %v6659, 1
      %v6661 = vadd.f32 %v6659, %v6660
      %v6662 = vadd.f32 %v6641, %v6642
      %v6663 = vrot.slane %v6662, 4
      %v6664 = vadd.f32 %v6662, %v6663
      %v6665 = vrot.slane %v6664, 2
      %v6666 = vadd.f32 %v6664, %v6665
      %v6667 = vrot.slane %v6666, 1
      %v6668 = vadd.f32 %v6666, %v6667
      %v6669 = vadd.f32 %v6643, %v6644
      %v6670 = vrot.slane %v6669, 4
      %v6671 = vadd.f32 %v6669, %v6670
      %v6672 = vrot.slane %v6671, 2
      %v6673 = vadd.f32 %v6671, %v6672
      %v6674 = vrot.slane %v6673, 1
      %v6675 = vadd.f32 %v6673, %v6674
      %v6676 = vadd.f32 %v6645, %v6646
      %v6677 = vrot.slane %v6676, 4
      %v6678 = vadd.f32 %v6676, %v6677
      %v6679 = vrot.slane %v6678, 2
      %v6680 = vadd.f32 %v6678, %v6679
      %v6681 = vrot.slane %v6680, 1
      %v6682 = vadd.f32 %v6680, %v6681
      %v6683 = vadd.f32 %v6647, %v6648
      %v6684 = vrot.slane %v6683, 4
      %v6685 = vadd.f32 %v6683, %v6684
      %v6686 = vrot.slane %v6685, 2
      %v6687 = vadd.f32 %v6685, %v6686
      %v6688 = vrot.slane %v6687, 1
      %v6689 = vadd.f32 %v6687, %v6688
      %v6690 = vadd.f32 %v6649, %v6650
      %v6691 = vrot.slane %v6690, 4
      %v6692 = vadd.f32 %v6690, %v6691
      %v6693 = vrot.slane %v6692, 2
      %v6694 = vadd.f32 %v6692, %v6693
      %v6695 = vrot.slane %v6694, 1
      %v6696 = vadd.f32 %v6694, %v6695
      %v6697 = vadd.f32 %v6651, %v6652
      %v6698 = vrot.slane %v6697, 4
      %v6699 = vadd.f32 %v6697, %v6698
      %v6700 = vrot.slane %v6699, 2
      %v6701 = vadd.f32 %v6699, %v6700
      %v6702 = vrot.slane %v6701, 1
      %v6703 = vadd.f32 %v6701, %v6702
      %v6704 = vadd.f32 %v6653, %v6654
      %v6705 = vrot.slane %v6704, 4
      %v6706 = vadd.f32 %v6704, %v6705
      %v6707 = vrot.slane %v6706, 2
      %v6708 = vadd.f32 %v6706, %v6707
      %v6709 = vrot.slane %v6708, 1
      %v6710 = vadd.f32 %v6708, %v6709
      %v6711 = vmul.f32 %v6503, %v6605
      %v6712 = vmul.f32 %v6504, %v6606
      %v6713 = vadd.f32 %v6711, %v6535
      %v6714 = vadd.f32 %v6712, %v6536
      %v6715 = vmul.f32 %v5751, %v6713
      %v6716 = vmul.f32 %v5752, %v6714
      %v6717 = vmul.f32 %v5767, %v6605
      %v6718 = vmul.f32 %v5768, %v6606
      %v6719 = vmul.f32 %v5783, %v6601
      %v6720 = vmul.f32 %v5784, %v6602
      %v6721 = vmul.f32 %v5799, %v6597
      %v6722 = vmul.f32 %v5800, %v6598
      %v6723 = vmul.f32 %v5815, %v6593
      %v6724 = vmul.f32 %v5816, %v6594
      %v6725 = vmul.f32 %v5831, %v6589
      %v6726 = vmul.f32 %v5832, %v6590
      %v6727 = vmul.f32 %v5847, %v6585
      %v6728 = vmul.f32 %v5848, %v6586
      %v6729 = vmul.f32 %v5863, %v6581
      %v6730 = vmul.f32 %v5864, %v6582
      %v6731 = vadd.f32 %v6715, %v6716
      %v6732 = vrot.slane %v6731, 4
      %v6733 = vadd.f32 %v6731, %v6732
      %v6734 = vrot.slane %v6733, 2
      %v6735 = vadd.f32 %v6733, %v6734
      %v6736 = vrot.slane %v6735, 1
      %v6737 = vadd.f32 %v6735, %v6736
      %v6738 = vadd.f32 %v6717, %v6718
      %v6739 = vrot.slane %v6738, 4
      %v6740 = vadd.f32 %v6738, %v6739
      %v6741 = vrot.slane %v6740, 2
      %v6742 = vadd.f32 %v6740, %v6741
      %v6743 = vrot.slane %v6742, 1
      %v6744 = vadd.f32 %v6742, %v6743
      %v6745 = vadd.f32 %v6719, %v6720
      %v6746 = vrot.slane %v6745, 4
      %v6747 = vadd.f32 %v6745, %v6746
      %v6748 = vrot.slane %v6747, 2
      %v6749 = vadd.f32 %v6747, %v6748
      %v6750 = vrot.slane %v6749, 1
      %v6751 = vadd.f32 %v6749, %v6750
      %v6752 = vadd.f32 %v6721, %v6722
      %v6753 = vrot.slane %v6752, 4
      %v6754 = vadd.f32 %v6752, %v6753
      %v6755 = vrot.slane %v6754, 2
      %v6756 = vadd.f32 %v6754, %v6755
      %v6757 = vrot.slane %v6756, 1
      %v6758 = vadd.f32 %v6756, %v6757
      %v6759 = vadd.f32 %v6723, %v6724
      %v6760 = vrot.slane %v6759, 4
      %v6761 = vadd.f32 %v6759, %v6760
      %v6762 = vrot.slane %v6761, 2
      %v6763 = vadd.f32 %v6761, %v6762
      %v6764 = vrot.slane %v6763, 1
      %v6765 = vadd.f32 %v6763, %v6764
      %v6766 = vadd.f32 %v6725, %v6726
      %v6767 = vrot.slane %v6766, 4
      %v6768 = vadd.f32 %v6766, %v6767
      %v6769 = vrot.slane %v6768, 2
      %v6770 = vadd.f32 %v6768, %v6769
      %v6771 = vrot.slane %v6770, 1
      %v6772 = vadd.f32 %v6770, %v6771
      %v6773 = vadd.f32 %v6727, %v6728
      %v6774 = vrot.slane %v6773, 4
      %v6775 = vadd.f32 %v6773, %v6774
      %v6776 = vrot.slane %v6775, 2
      %v6777 = vadd.f32 %v6775, %v6776
      %v6778 = vrot.slane %v6777, 1
      %v6779 = vadd.f32 %v6777, %v6778
      %v6780 = vadd.f32 %v6729, %v6730
      %v6781 = vrot.slane %v6780, 4
      %v6782 = vadd.f32 %v6780, %v6781
      %v6783 = vrot.slane %v6782, 2
      %v6784 = vadd.f32 %v6782, %v6783
      %v6785 = vrot.slane %v6784, 1
      %v6786 = vadd.f32 %v6784, %v6785
      %v6787 = vmul.f32 %v5879, 0.0
      %v6788 = vmul.f32 %v5880, 0.0
      %v6789 = vmul.f32 %v5881, %v6553
      %v6790 = vmul.f32 %v5882, %v6554
      %v6791 = vmul.f32 %v5883, %v6557
      %v6792 = vmul.f32 %v5884, %v6558
      %v6793 = vmul.f32 %v5885, %v6561
      %v6794 = vmul.f32 %v5886, %v6562
      %v6795 = vmul.f32 %v5887, %v6565
      %v6796 = vmul.f32 %v5888, %v6566
      %v6797 = vmul.f32 %v5889, %v6569
      %v6798 = vmul.f32 %v5890, %v6570
      %v6799 = vmul.f32 %v5891, %v6573
      %v6800 = vmul.f32 %v5892, %v6574
      %v6801 = vmul.f32 %v5893, %v6577
      %v6802 = vmul.f32 %v5894, %v6578
      %v6803 = vadd.f32 %v6787, %v5911
      %v6804 = vadd.f32 %v6788, %v5912
      %v6805 = vadd.f32 %v6789, %v5913
      %v6806 = vadd.f32 %v6790, %v5914
      %v6807 = vadd.f32 %v6791, %v5915
      %v6808 = vadd.f32 %v6792, %v5916
      %v6809 = vadd.f32 %v6793, %v5917
      %v6810 = vadd.f32 %v6794, %v5918
      %v6811 = vadd.f32 %v6795, %v5919
      %v6812 = vadd.f32 %v6796, %v5920
      %v6813 = vadd.f32 %v6797, %v5921
      %v6814 = vadd.f32 %v6798, %v5922
      %v6815 = vadd.f32 %v6799, %v5923
      %v6816 = vadd.f32 %v6800, %v5924
      %v6817 = vadd.f32 %v6801, %v5925
      %v6818 = vadd.f32 %v6802, %v5926
      %v6819 = vmul.f32 %v5753, %v6803
      %v6820 = vmul.f32 %v5754, %v6804
      %v6821 = vmul.f32 %v5769, %v6805
      %v6822 = vmul.f32 %v5770, %v6806
      %v6823 = vmul.f32 %v5785, %v6807
      %v6824 = vmul.f32 %v5786, %v6808
      %v6825 = vmul.f32 %v5801, %v6809
      %v6826 = vmul.f32 %v5802, %v6810
      %v6827 = vmul.f32 %v5817, %v6811
      %v6828 = vmul.f32 %v5818, %v6812
      %v6829 = vmul.f32 %v5833, %v6813
      %v6830 = vmul.f32 %v5834, %v6814
      %v6831 = vmul.f32 %v5849, %v6815
      %v6832 = vmul.f32 %v5850, %v6816
      %v6833 = vmul.f32 %v5865, %v6817
      %v6834 = vmul.f32 %v5866, %v6818
      %v6835 = vadd.f32 %v6819, %v6820
      %v6836 = vrot.slane %v6835, 4
      %v6837 = vadd.f32 %v6835, %v6836
      %v6838 = vrot.slane %v6837, 2
      %v6839 = vadd.f32 %v6837, %v6838
      %v6840 = vrot.slane %v6839, 1
      %v6841 = vadd.f32 %v6839, %v6840
      %v6842 = vadd.f32 %v6821, %v6822
      %v6843 = vrot.slane %v6842, 4
      %v6844 = vadd.f32 %v6842, %v6843
      %v6845 = vrot.slane %v6844, 2
      %v6846 = vadd.f32 %v6844, %v6845
      %v6847 = vrot.slane %v6846, 1
      %v6848 = vadd.f32 %v6846, %v6847
      %v6849 = vadd.f32 %v6823, %v6824
      %v6850 = vrot.slane %v6849, 4
      %v6851 = vadd.f32 %v6849, %v6850
      %v6852 = vrot.slane %v6851, 2
      %v6853 = vadd.f32 %v6851, %v6852
      %v6854 = vrot.slane %v6853, 1
      %v6855 = vadd.f32 %v6853, %v6854
      %v6856 = vadd.f32 %v6825, %v6826
      %v6857 = vrot.slane %v6856, 4
      %v6858 = vadd.f32 %v6856, %v6857
      %v6859 = vrot.slane %v6858, 2
      %v6860 = vadd.f32 %v6858, %v6859
      %v6861 = vrot.slane %v6860, 1
      %v6862 = vadd.f32 %v6860, %v6861
      %v6863 = vadd.f32 %v6827, %v6828
      %v6864 = vrot.slane %v6863, 4
      %v6865 = vadd.f32 %v6863, %v6864
      %v6866 = vrot.slane %v6865, 2
      %v6867 = vadd.f32 %v6865, %v6866
      %v6868 = vrot.slane %v6867, 1
      %v6869 = vadd.f32 %v6867, %v6868
      %v6870 = vadd.f32 %v6829, %v6830
      %v6871 = vrot.slane %v6870, 4
      %v6872 = vadd.f32 %v6870, %v6871
      %v6873 = vrot.slane %v6872, 2
      %v6874 = vadd.f32 %v6872, %v6873
      %v6875 = vrot.slane %v6874, 1
      %v6876 = vadd.f32 %v6874, %v6875
      %v6877 = vadd.f32 %v6831, %v6832
      %v6878 = vrot.slane %v6877, 4
      %v6879 = vadd.f32 %v6877, %v6878
      %v6880 = vrot.slane %v6879, 2
      %v6881 = vadd.f32 %v6879, %v6880
      %v6882 = vrot.slane %v6881, 1
      %v6883 = vadd.f32 %v6881, %v6882
      %v6884 = vadd.f32 %v6833, %v6834
      %v6885 = vrot.slane %v6884, 4
      %v6886 = vadd.f32 %v6884, %v6885
      %v6887 = vrot.slane %v6886, 2
      %v6888 = vadd.f32 %v6886, %v6887
      %v6889 = vrot.slane %v6888, 1
      %v6890 = vadd.f32 %v6888, %v6889
      %v6891 = vmul.f32 %v6407, %v6605
      %v6892 = vmul.f32 %v6408, %v6606
      %v6893 = vmul.f32 %v6409, %v6601
      %v6894 = vmul.f32 %v6410, %v6602
      %v6895 = vmul.f32 %v6411, %v6597
      %v6896 = vmul.f32 %v6412, %v6598
      %v6897 = vmul.f32 %v6413, %v6593
      %v6898 = vmul.f32 %v6414, %v6594
      %v6899 = vmul.f32 %v6415, %v6589
      %v6900 = vmul.f32 %v6416, %v6590
      %v6901 = vmul.f32 %v6417, %v6585
      %v6902 = vmul.f32 %v6418, %v6586
      %v6903 = vmul.f32 %v6419, %v6581
      %v6904 = vmul.f32 %v6420, %v6582
      %v6905 = vmul.f32 %v6421, 0.0
      %v6906 = vmul.f32 %v6422, 0.0
      %v6907 = vadd.f32 %v6891, %v6439
      %v6908 = vadd.f32 %v6892, %v6440
      %v6909 = vadd.f32 %v6893, %v6441
      %v6910 = vadd.f32 %v6894, %v6442
      %v6911 = vadd.f32 %v6895, %v6443
      %v6912 = vadd.f32 %v6896, %v6444
      %v6913 = vadd.f32 %v6897, %v6445
      %v6914 = vadd.f32 %v6898, %v6446
      %v6915 = vadd.f32 %v6899, %v6447
      %v6916 = vadd.f32 %v6900, %v6448
      %v6917 = vadd.f32 %v6901, %v6449
      %v6918 = vadd.f32 %v6902, %v6450
      %v6919 = vadd.f32 %v6903, %v6451
      %v6920 = vadd.f32 %v6904, %v6452
      %v6921 = vadd.f32 %v6905, %v6453
      %v6922 = vadd.f32 %v6906, %v6454
      %v6923 = vmul.f32 %v5753, %v6907
      %v6924 = vmul.f32 %v5754, %v6908
      %v6925 = vmul.f32 %v5769, %v6909
      %v6926 = vmul.f32 %v5770, %v6910
      %v6927 = vmul.f32 %v5785, %v6911
      %v6928 = vmul.f32 %v5786, %v6912
      %v6929 = vmul.f32 %v5801, %v6913
      %v6930 = vmul.f32 %v5802, %v6914
      %v6931 = vmul.f32 %v5817, %v6915
      %v6932 = vmul.f32 %v5818, %v6916
      %v6933 = vmul.f32 %v5833, %v6917
      %v6934 = vmul.f32 %v5834, %v6918
      %v6935 = vmul.f32 %v5849, %v6919
      %v6936 = vmul.f32 %v5850, %v6920
      %v6937 = vmul.f32 %v5865, %v6921
      %v6938 = vmul.f32 %v5866, %v6922
      %v6939 = vadd.f32 %v6923, %v6924
      %v6940 = vrot.slane %v6939, 4
      %v6941 = vadd.f32 %v6939, %v6940
      %v6942 = vrot.slane %v6941, 2
      %v6943 = vadd.f32 %v6941, %v6942
      %v6944 = vrot.slane %v6943, 1
      %v6945 = vadd.f32 %v6943, %v6944
      %v6946 = vadd.f32 %v6925, %v6926
      %v6947 = vrot.slane %v6946, 4
      %v6948 = vadd.f32 %v6946, %v6947
      %v6949 = vrot.slane %v6948, 2
      %v6950 = vadd.f32 %v6948, %v6949
      %v6951 = vrot.slane %v6950, 1
      %v6952 = vadd.f32 %v6950, %v6951
      %v6953 = vadd.f32 %v6927, %v6928
      %v6954 = vrot.slane %v6953, 4
      %v6955 = vadd.f32 %v6953, %v6954
      %v6956 = vrot.slane %v6955, 2
      %v6957 = vadd.f32 %v6955, %v6956
      %v6958 = vrot.slane %v6957, 1
      %v6959 = vadd.f32 %v6957, %v6958
      %v6960 = vadd.f32 %v6929, %v6930
      %v6961 = vrot.slane %v6960, 4
      %v6962 = vadd.f32 %v6960, %v6961
      %v6963 = vrot.slane %v6962, 2
      %v6964 = vadd.f32 %v6962, %v6963
      %v6965 = vrot.slane %v6964, 1
      %v6966 = vadd.f32 %v6964, %v6965
      %v6967 = vadd.f32 %v6931, %v6932
      %v6968 = vrot.slane %v6967, 4
      %v6969 = vadd.f32 %v6967, %v6968
      %v6970 = vrot.slane %v6969, 2
      %v6971 = vadd.f32 %v6969, %v6970
      %v6972 = vrot.slane %v6971, 1
      %v6973 = vadd.f32 %v6971, %v6972
      %v6974 = vadd.f32 %v6933, %v6934
      %v6975 = vrot.slane %v6974, 4
      %v6976 = vadd.f32 %v6974, %v6975
      %v6977 = vrot.slane %v6976, 2
      %v6978 = vadd.f32 %v6976, %v6977
      %v6979 = vrot.slane %v6978, 1
      %v6980 = vadd.f32 %v6978, %v6979
      %v6981 = vadd.f32 %v6935, %v6936
      %v6982 = vrot.slane %v6981, 4
      %v6983 = vadd.f32 %v6981, %v6982
      %v6984 = vrot.slane %v6983, 2
      %v6985 = vadd.f32 %v6983, %v6984
      %v6986 = vrot.slane %v6985, 1
      %v6987 = vadd.f32 %v6985, %v6986
      %v6988 = vadd.f32 %v6937, %v6938
      %v6989 = vrot.slane %v6988, 4
      %v6990 = vadd.f32 %v6988, %v6989
      %v6991 = vrot.slane %v6990, 2
      %v6992 = vadd.f32 %v6990, %v6991
      %v6993 = vrot.slane %v6992, 1
      %v6994 = vadd.f32 %v6992, %v6993
      %v6995 = vmul.f32 %v5975, 0.0
      %v6996 = vmul.f32 %v5976, 0.0
      %v6997 = vmul.f32 %v5977, %v6553
      %v6998 = vmul.f32 %v5978, %v6554
      %v6999 = vmul.f32 %v5979, %v6557
      %v7000 = vmul.f32 %v5980, %v6558
      %v7001 = vmul.f32 %v5981, %v6561
      %v7002 = vmul.f32 %v5982, %v6562
      %v7003 = vmul.f32 %v5983, %v6565
      %v7004 = vmul.f32 %v5984, %v6566
      %v7005 = vmul.f32 %v5985, %v6569
      %v7006 = vmul.f32 %v5986, %v6570
      %v7007 = vmul.f32 %v5987, %v6573
      %v7008 = vmul.f32 %v5988, %v6574
      %v7009 = vmul.f32 %v5989, %v6577
      %v7010 = vmul.f32 %v5990, %v6578
      %v7011 = vadd.f32 %v6995, %v6007
      %v7012 = vadd.f32 %v6996, %v6008
      %v7013 = vadd.f32 %v6997, %v6009
      %v7014 = vadd.f32 %v6998, %v6010
      %v7015 = vadd.f32 %v6999, %v6011
      %v7016 = vadd.f32 %v7000, %v6012
      %v7017 = vadd.f32 %v7001, %v6013
      %v7018 = vadd.f32 %v7002, %v6014
      %v7019 = vadd.f32 %v7003, %v6015
      %v7020 = vadd.f32 %v7004, %v6016
      %v7021 = vadd.f32 %v7005, %v6017
      %v7022 = vadd.f32 %v7006, %v6018
      %v7023 = vadd.f32 %v7007, %v6019
      %v7024 = vadd.f32 %v7008, %v6020
      %v7025 = vadd.f32 %v7009, %v6021
      %v7026 = vadd.f32 %v7010, %v6022
      %v7027 = vmul.f32 %v5755, %v7011
      %v7028 = vmul.f32 %v5756, %v7012
      %v7029 = vmul.f32 %v5771, %v7013
      %v7030 = vmul.f32 %v5772, %v7014
      %v7031 = vmul.f32 %v5787, %v7015
      %v7032 = vmul.f32 %v5788, %v7016
      %v7033 = vmul.f32 %v5803, %v7017
      %v7034 = vmul.f32 %v5804, %v7018
      %v7035 = vmul.f32 %v5819, %v7019
      %v7036 = vmul.f32 %v5820, %v7020
      %v7037 = vmul.f32 %v5835, %v7021
      %v7038 = vmul.f32 %v5836, %v7022
      %v7039 = vmul.f32 %v5851, %v7023
      %v7040 = vmul.f32 %v5852, %v7024
      %v7041 = vmul.f32 %v5867, %v7025
      %v7042 = vmul.f32 %v5868, %v7026
      %v7043 = vadd.f32 %v7027, %v7028
      %v7044 = vrot.slane %v7043, 4
      %v7045 = vadd.f32 %v7043, %v7044
      %v7046 = vrot.slane %v7045, 2
      %v7047 = vadd.f32 %v7045, %v7046
      %v7048 = vrot.slane %v7047, 1
      %v7049 = vadd.f32 %v7047, %v7048
      %v7050 = vadd.f32 %v7029, %v7030
      %v7051 = vrot.slane %v7050, 4
      %v7052 = vadd.f32 %v7050, %v7051
      %v7053 = vrot.slane %v7052, 2
      %v7054 = vadd.f32 %v7052, %v7053
      %v7055 = vrot.slane %v7054, 1
      %v7056 = vadd.f32 %v7054, %v7055
      %v7057 = vadd.f32 %v7031, %v7032
      %v7058 = vrot.slane %v7057, 4
      %v7059 = vadd.f32 %v7057, %v7058
      %v7060 = vrot.slane %v7059, 2
      %v7061 = vadd.f32 %v7059, %v7060
      %v7062 = vrot.slane %v7061, 1
      %v7063 = vadd.f32 %v7061, %v7062
      %v7064 = vadd.f32 %v7033, %v7034
      %v7065 = vrot.slane %v7064, 4
      %v7066 = vadd.f32 %v7064, %v7065
      %v7067 = vrot.slane %v7066, 2
      %v7068 = vadd.f32 %v7066, %v7067
      %v7069 = vrot.slane %v7068, 1
      %v7070 = vadd.f32 %v7068, %v7069
      %v7071 = vadd.f32 %v7035, %v7036
      %v7072 = vrot.slane %v7071, 4
      %v7073 = vadd.f32 %v7071, %v7072
      %v7074 = vrot.slane %v7073, 2
      %v7075 = vadd.f32 %v7073, %v7074
      %v7076 = vrot.slane %v7075, 1
      %v7077 = vadd.f32 %v7075, %v7076
      %v7078 = vadd.f32 %v7037, %v7038
      %v7079 = vrot.slane %v7078, 4
      %v7080 = vadd.f32 %v7078, %v7079
      %v7081 = vrot.slane %v7080, 2
      %v7082 = vadd.f32 %v7080, %v7081
      %v7083 = vrot.slane %v7082, 1
      %v7084 = vadd.f32 %v7082, %v7083
      %v7085 = vadd.f32 %v7039, %v7040
      %v7086 = vrot.slane %v7085, 4
      %v7087 = vadd.f32 %v7085, %v7086
      %v7088 = vrot.slane %v7087, 2
      %v7089 = vadd.f32 %v7087, %v7088
      %v7090 = vrot.slane %v7089, 1
      %v7091 = vadd.f32 %v7089, %v7090
      %v7092 = vadd.f32 %v7041, %v7042
      %v7093 = vrot.slane %v7092, 4
      %v7094 = vadd.f32 %v7092, %v7093
      %v7095 = vrot.slane %v7094, 2
      %v7096 = vadd.f32 %v7094, %v7095
      %v7097 = vrot.slane %v7096, 1
      %v7098 = vadd.f32 %v7096, %v7097
      %v7099 = vmul.f32 %v6311, %v6605
      %v7100 = vmul.f32 %v6312, %v6606
      %v7101 = vmul.f32 %v6313, %v6601
      %v7102 = vmul.f32 %v6314, %v6602
      %v7103 = vmul.f32 %v6315, %v6597
      %v7104 = vmul.f32 %v6316, %v6598
      %v7105 = vmul.f32 %v6317, %v6593
      %v7106 = vmul.f32 %v6318, %v6594
      %v7107 = vmul.f32 %v6319, %v6589
      %v7108 = vmul.f32 %v6320, %v6590
      %v7109 = vmul.f32 %v6321, %v6585
      %v7110 = vmul.f32 %v6322, %v6586
      %v7111 = vmul.f32 %v6323, %v6581
      %v7112 = vmul.f32 %v6324, %v6582
      %v7113 = vmul.f32 %v6325, 0.0
      %v7114 = vmul.f32 %v6326, 0.0
      %v7115 = vadd.f32 %v7099, %v6343
      %v7116 = vadd.f32 %v7100, %v6344
      %v7117 = vadd.f32 %v7101, %v6345
      %v7118 = vadd.f32 %v7102, %v6346
      %v7119 = vadd.f32 %v7103, %v6347
      %v7120 = vadd.f32 %v7104, %v6348
      %v7121 = vadd.f32 %v7105, %v6349
      %v7122 = vadd.f32 %v7106, %v6350
      %v7123 = vadd.f32 %v7107, %v6351
      %v7124 = vadd.f32 %v7108, %v6352
      %v7125 = vadd.f32 %v7109, %v6353
      %v7126 = vadd.f32 %v7110, %v6354
      %v7127 = vadd.f32 %v7111, %v6355
      %v7128 = vadd.f32 %v7112, %v6356
      %v7129 = vadd.f32 %v7113, %v6357
      %v7130 = vadd.f32 %v7114, %v6358
      %v7131 = vmul.f32 %v5755, %v7115
      %v7132 = vmul.f32 %v5756, %v7116
      %v7133 = vmul.f32 %v5771, %v7117
      %v7134 = vmul.f32 %v5772, %v7118
      %v7135 = vmul.f32 %v5787, %v7119
      %v7136 = vmul.f32 %v5788, %v7120
      %v7137 = vmul.f32 %v5803, %v7121
      %v7138 = vmul.f32 %v5804, %v7122
      %v7139 = vmul.f32 %v5819, %v7123
      %v7140 = vmul.f32 %v5820, %v7124
      %v7141 = vmul.f32 %v5835, %v7125
      %v7142 = vmul.f32 %v5836, %v7126
      %v7143 = vmul.f32 %v5851, %v7127
      %v7144 = vmul.f32 %v5852, %v7128
      %v7145 = vmul.f32 %v5867, %v7129
      %v7146 = vmul.f32 %v5868, %v7130
      %v7147 = vadd.f32 %v7131, %v7132
      %v7148 = vrot.slane %v7147, 4
      %v7149 = vadd.f32 %v7147, %v7148
      %v7150 = vrot.slane %v7149, 2
      %v7151 = vadd.f32 %v7149, %v7150
      %v7152 = vrot.slane %v7151, 1
      %v7153 = vadd.f32 %v7151, %v7152
      %v7154 = vadd.f32 %v7133, %v7134
      %v7155 = vrot.slane %v7154, 4
      %v7156 = vadd.f32 %v7154, %v7155
      %v7157 = vrot.slane %v7156, 2
      %v7158 = vadd.f32 %v7156, %v7157
      %v7159 = vrot.slane %v7158, 1
      %v7160 = vadd.f32 %v7158, %v7159
      %v7161 = vadd.f32 %v7135, %v7136
      %v7162 = vrot.slane %v7161, 4
      %v7163 = vadd.f32 %v7161, %v7162
      %v7164 = vrot.slane %v7163, 2
      %v7165 = vadd.f32 %v7163, %v7164
      %v7166 = vrot.slane %v7165, 1
      %v7167 = vadd.f32 %v7165, %v7166
      %v7168 = vadd.f32 %v7137, %v7138
      %v7169 = vrot.slane %v7168, 4
      %v7170 = vadd.f32 %v7168, %v7169
      %v7171 = vrot.slane %v7170, 2
      %v7172 = vadd.f32 %v7170, %v7171
      %v7173 = vrot.slane %v7172, 1
      %v7174 = vadd.f32 %v7172, %v7173
      %v7175 = vadd.f32 %v7139, %v7140
      %v7176 = vrot.slane %v7175, 4
      %v7177 = vadd.f32 %v7175, %v7176
      %v7178 = vrot.slane %v7177, 2
      %v7179 = vadd.f32 %v7177, %v7178
      %v7180 = vrot.slane %v7179, 1
      %v7181 = vadd.f32 %v7179, %v7180
      %v7182 = vadd.f32 %v7141, %v7142
      %v7183 = vrot.slane %v7182, 4
      %v7184 = vadd.f32 %v7182, %v7183
      %v7185 = vrot.slane %v7184, 2
      %v7186 = vadd.f32 %v7184, %v7185
      %v7187 = vrot.slane %v7186, 1
      %v7188 = vadd.f32 %v7186, %v7187
      %v7189 = vadd.f32 %v7143, %v7144
      %v7190 = vrot.slane %v7189, 4
      %v7191 = vadd.f32 %v7189, %v7190
      %v7192 = vrot.slane %v7191, 2
      %v7193 = vadd.f32 %v7191, %v7192
      %v7194 = vrot.slane %v7193, 1
      %v7195 = vadd.f32 %v7193, %v7194
      %v7196 = vadd.f32 %v7145, %v7146
      %v7197 = vrot.slane %v7196, 4
      %v7198 = vadd.f32 %v7196, %v7197
      %v7199 = vrot.slane %v7198, 2
      %v7200 = vadd.f32 %v7198, %v7199
      %v7201 = vrot.slane %v7200, 1
      %v7202 = vadd.f32 %v7200, %v7201
      %v7203 = vmul.f32 %v6071, 0.0
      %v7204 = vmul.f32 %v6072, 0.0
      %v7205 = vmul.f32 %v6073, %v6553
      %v7206 = vmul.f32 %v6074, %v6554
      %v7207 = vmul.f32 %v6075, %v6557
      %v7208 = vmul.f32 %v6076, %v6558
      %v7209 = vmul.f32 %v6077, %v6561
      %v7210 = vmul.f32 %v6078, %v6562
      %v7211 = vmul.f32 %v6079, %v6565
      %v7212 = vmul.f32 %v6080, %v6566
      %v7213 = vmul.f32 %v6081, %v6569
      %v7214 = vmul.f32 %v6082, %v6570
      %v7215 = vmul.f32 %v6083, %v6573
      %v7216 = vmul.f32 %v6084, %v6574
      %v7217 = vmul.f32 %v6085, %v6577
      %v7218 = vmul.f32 %v6086, %v6578
      %v7219 = vadd.f32 %v7203, %v6103
      %v7220 = vadd.f32 %v7204, %v6104
      %v7221 = vadd.f32 %v7205, %v6105
      %v7222 = vadd.f32 %v7206, %v6106
      %v7223 = vadd.f32 %v7207, %v6107
      %v7224 = vadd.f32 %v7208, %v6108
      %v7225 = vadd.f32 %v7209, %v6109
      %v7226 = vadd.f32 %v7210, %v6110
      %v7227 = vadd.f32 %v7211, %v6111
      %v7228 = vadd.f32 %v7212, %v6112
      %v7229 = vadd.f32 %v7213, %v6113
      %v7230 = vadd.f32 %v7214, %v6114
      %v7231 = vadd.f32 %v7215, %v6115
      %v7232 = vadd.f32 %v7216, %v6116
      %v7233 = vadd.f32 %v7217, %v6117
      %v7234 = vadd.f32 %v7218, %v6118
      %v7235 = vmul.f32 %v5757, %v7219
      %v7236 = vmul.f32 %v5758, %v7220
      %v7237 = vmul.f32 %v5773, %v7221
      %v7238 = vmul.f32 %v5774, %v7222
      %v7239 = vmul.f32 %v5789, %v7223
      %v7240 = vmul.f32 %v5790, %v7224
      %v7241 = vmul.f32 %v5805, %v7225
      %v7242 = vmul.f32 %v5806, %v7226
      %v7243 = vmul.f32 %v5821, %v7227
      %v7244 = vmul.f32 %v5822, %v7228
      %v7245 = vmul.f32 %v5837, %v7229
      %v7246 = vmul.f32 %v5838, %v7230
      %v7247 = vmul.f32 %v5853, %v7231
      %v7248 = vmul.f32 %v5854, %v7232
      %v7249 = vmul.f32 %v5869, %v7233
      %v7250 = vmul.f32 %v5870, %v7234
      %v7251 = vadd.f32 %v7235, %v7236
      %v7252 = vrot.slane %v7251, 4
      %v7253 = vadd.f32 %v7251, %v7252
      %v7254 = vrot.slane %v7253, 2
      %v7255 = vadd.f32 %v7253, %v7254
      %v7256 = vrot.slane %v7255, 1
      %v7257 = vadd.f32 %v7255, %v7256
      %v7258 = vadd.f32 %v7237, %v7238
      %v7259 = vrot.slane %v7258, 4
      %v7260 = vadd.f32 %v7258, %v7259
      %v7261 = vrot.slane %v7260, 2
      %v7262 = vadd.f32 %v7260, %v7261
      %v7263 = vrot.slane %v7262, 1
      %v7264 = vadd.f32 %v7262, %v7263
      %v7265 = vadd.f32 %v7239, %v7240
      %v7266 = vrot.slane %v7265, 4
      %v7267 = vadd.f32 %v7265, %v7266
      %v7268 = vrot.slane %v7267, 2
      %v7269 = vadd.f32 %v7267, %v7268
      %v7270 = vrot.slane %v7269, 1
      %v7271 = vadd.f32 %v7269, %v7270
      %v7272 = vadd.f32 %v7241, %v7242
      %v7273 = vrot.slane %v7272, 4
      %v7274 = vadd.f32 %v7272, %v7273
      %v7275 = vrot.slane %v7274, 2
      %v7276 = vadd.f32 %v7274, %v7275
      %v7277 = vrot.slane %v7276, 1
      %v7278 = vadd.f32 %v7276, %v7277
      %v7279 = vadd.f32 %v7243, %v7244
      %v7280 = vrot.slane %v7279, 4
      %v7281 = vadd.f32 %v7279, %v7280
      %v7282 = vrot.slane %v7281, 2
      %v7283 = vadd.f32 %v7281, %v7282
      %v7284 = vrot.slane %v7283, 1
      %v7285 = vadd.f32 %v7283, %v7284
      %v7286 = vadd.f32 %v7245, %v7246
      %v7287 = vrot.slane %v7286, 4
      %v7288 = vadd.f32 %v7286, %v7287
      %v7289 = vrot.slane %v7288, 2
      %v7290 = vadd.f32 %v7288, %v7289
      %v7291 = vrot.slane %v7290, 1
      %v7292 = vadd.f32 %v7290, %v7291
      %v7293 = vadd.f32 %v7247, %v7248
      %v7294 = vrot.slane %v7293, 4
      %v7295 = vadd.f32 %v7293, %v7294
      %v7296 = vrot.slane %v7295, 2
      %v7297 = vadd.f32 %v7295, %v7296
      %v7298 = vrot.slane %v7297, 1
      %v7299 = vadd.f32 %v7297, %v7298
      %v7300 = vadd.f32 %v7249, %v7250
      %v7301 = vrot.slane %v7300, 4
      %v7302 = vadd.f32 %v7300, %v7301
      %v7303 = vrot.slane %v7302, 2
      %v7304 = vadd.f32 %v7302, %v7303
      %v7305 = vrot.slane %v7304, 1
      %v7306 = vadd.f32 %v7304, %v7305
      %v7307 = vmul.f32 %v6215, %v6605
      %v7308 = vmul.f32 %v6216, %v6606
      %v7309 = vmul.f32 %v6217, %v6601
      %v7310 = vmul.f32 %v6218, %v6602
      %v7311 = vmul.f32 %v6219, %v6597
      %v7312 = vmul.f32 %v6220, %v6598
      %v7313 = vmul.f32 %v6221, %v6593
      %v7314 = vmul.f32 %v6222, %v6594
      %v7315 = vmul.f32 %v6223, %v6589
      %v7316 = vmul.f32 %v6224, %v6590
      %v7317 = vmul.f32 %v6225, %v6585
      %v7318 = vmul.f32 %v6226, %v6586
      %v7319 = vmul.f32 %v6227, %v6581
      %v7320 = vmul.f32 %v6228, %v6582
      %v7321 = vmul.f32 %v6229, 0.0
      %v7322 = vmul.f32 %v6230, 0.0
      %v7323 = vadd.f32 %v7307, %v6247
      %v7324 = vadd.f32 %v7308, %v6248
      %v7325 = vadd.f32 %v7309, %v6249
      %v7326 = vadd.f32 %v7310, %v6250
      %v7327 = vadd.f32 %v7311, %v6251
      %v7328 = vadd.f32 %v7312, %v6252
      %v7329 = vadd.f32 %v7313, %v6253
      %v7330 = vadd.f32 %v7314, %v6254
      %v7331 = vadd.f32 %v7315, %v6255
      %v7332 = vadd.f32 %v7316, %v6256
      %v7333 = vadd.f32 %v7317, %v6257
      %v7334 = vadd.f32 %v7318, %v6258
      %v7335 = vadd.f32 %v7319, %v6259
      %v7336 = vadd.f32 %v7320, %v6260
      %v7337 = vadd.f32 %v7321, %v6261
      %v7338 = vadd.f32 %v7322, %v6262
      %v7339 = vmul.f32 %v5757, %v7323
      %v7340 = vmul.f32 %v5758, %v7324
      %v7341 = vmul.f32 %v5773, %v7325
      %v7342 = vmul.f32 %v5774, %v7326
      %v7343 = vmul.f32 %v5789, %v7327
      %v7344 = vmul.f32 %v5790, %v7328
      %v7345 = vmul.f32 %v5805, %v7329
      %v7346 = vmul.f32 %v5806, %v7330
      %v7347 = vmul.f32 %v5821, %v7331
      %v7348 = vmul.f32 %v5822, %v7332
      %v7349 = vmul.f32 %v5837, %v7333
      %v7350 = vmul.f32 %v5838, %v7334
      %v7351 = vmul.f32 %v5853, %v7335
      %v7352 = vmul.f32 %v5854, %v7336
      %v7353 = vmul.f32 %v5869, %v7337
      %v7354 = vmul.f32 %v5870, %v7338
      %v7355 = vadd.f32 %v7339, %v7340
      %v7356 = vrot.slane %v7355, 4
      %v7357 = vadd.f32 %v7355, %v7356
      %v7358 = vrot.slane %v7357, 2
      %v7359 = vadd.f32 %v7357, %v7358
      %v7360 = vrot.slane %v7359, 1
      %v7361 = vadd.f32 %v7359, %v7360
      %v7362 = vadd.f32 %v7341, %v7342
      %v7363 = vrot.slane %v7362, 4
      %v7364 = vadd.f32 %v7362, %v7363
      %v7365 = vrot.slane %v7364, 2
      %v7366 = vadd.f32 %v7364, %v7365
      %v7367 = vrot.slane %v7366, 1
      %v7368 = vadd.f32 %v7366, %v7367
      %v7369 = vadd.f32 %v7343, %v7344
      %v7370 = vrot.slane %v7369, 4
      %v7371 = vadd.f32 %v7369, %v7370
      %v7372 = vrot.slane %v7371, 2
      %v7373 = vadd.f32 %v7371, %v7372
      %v7374 = vrot.slane %v7373, 1
      %v7375 = vadd.f32 %v7373, %v7374
      %v7376 = vadd.f32 %v7345, %v7346
      %v7377 = vrot.slane %v7376, 4
      %v7378 = vadd.f32 %v7376, %v7377
      %v7379 = vrot.slane %v7378, 2
      %v7380 = vadd.f32 %v7378, %v7379
      %v7381 = vrot.slane %v7380, 1
      %v7382 = vadd.f32 %v7380, %v7381
      %v7383 = vadd.f32 %v7347, %v7348
      %v7384 = vrot.slane %v7383, 4
      %v7385 = vadd.f32 %v7383, %v7384
      %v7386 = vrot.slane %v7385, 2
      %v7387 = vadd.f32 %v7385, %v7386
      %v7388 = vrot.slane %v7387, 1
      %v7389 = vadd.f32 %v7387, %v7388
      %v7390 = vadd.f32 %v7349, %v7350
      %v7391 = vrot.slane %v7390, 4
      %v7392 = vadd.f32 %v7390, %v7391
      %v7393 = vrot.slane %v7392, 2
      %v7394 = vadd.f32 %v7392, %v7393
      %v7395 = vrot.slane %v7394, 1
      %v7396 = vadd.f32 %v7394, %v7395
      %v7397 = vadd.f32 %v7351, %v7352
      %v7398 = vrot.slane %v7397, 4
      %v7399 = vadd.f32 %v7397, %v7398
      %v7400 = vrot.slane %v7399, 2
      %v7401 = vadd.f32 %v7399, %v7400
      %v7402 = vrot.slane %v7401, 1
      %v7403 = vadd.f32 %v7401, %v7402
      %v7404 = vadd.f32 %v7353, %v7354
      %v7405 = vrot.slane %v7404, 4
      %v7406 = vadd.f32 %v7404, %v7405
      %v7407 = vrot.slane %v7406, 2
      %v7408 = vadd.f32 %v7406, %v7407
      %v7409 = vrot.slane %v7408, 1
      %v7410 = vadd.f32 %v7408, %v7409
      %v7411 = vmul.f32 %v6167, 0.0
      %v7412 = vmul.f32 %v6168, 0.0
      %v7413 = vmul.f32 %v6169, %v6553
      %v7414 = vmul.f32 %v6170, %v6554
      %v7415 = vmul.f32 %v6171, %v6557
      %v7416 = vmul.f32 %v6172, %v6558
      %v7417 = vmul.f32 %v6173, %v6561
      %v7418 = vmul.f32 %v6174, %v6562
      %v7419 = vmul.f32 %v6175, %v6565
      %v7420 = vmul.f32 %v6176, %v6566
      %v7421 = vmul.f32 %v6177, %v6569
      %v7422 = vmul.f32 %v6178, %v6570
      %v7423 = vmul.f32 %v6179, %v6573
      %v7424 = vmul.f32 %v6180, %v6574
      %v7425 = vmul.f32 %v6181, %v6577
      %v7426 = vmul.f32 %v6182, %v6578
      %v7427 = vadd.f32 %v7411, %v6199
      %v7428 = vadd.f32 %v7412, %v6200
      %v7429 = vadd.f32 %v7413, %v6201
      %v7430 = vadd.f32 %v7414, %v6202
      %v7431 = vadd.f32 %v7415, %v6203
      %v7432 = vadd.f32 %v7416, %v6204
      %v7433 = vadd.f32 %v7417, %v6205
      %v7434 = vadd.f32 %v7418, %v6206
      %v7435 = vadd.f32 %v7419, %v6207
      %v7436 = vadd.f32 %v7420, %v6208
      %v7437 = vadd.f32 %v7421, %v6209
      %v7438 = vadd.f32 %v7422, %v6210
      %v7439 = vadd.f32 %v7423, %v6211
      %v7440 = vadd.f32 %v7424, %v6212
      %v7441 = vadd.f32 %v7425, %v6213
      %v7442 = vadd.f32 %v7426, %v6214
      %v7443 = vmul.f32 %v5759, %v7427
      %v7444 = vmul.f32 %v5760, %v7428
      %v7445 = vmul.f32 %v5775, %v7429
      %v7446 = vmul.f32 %v5776, %v7430
      %v7447 = vmul.f32 %v5791, %v7431
      %v7448 = vmul.f32 %v5792, %v7432
      %v7449 = vmul.f32 %v5807, %v7433
      %v7450 = vmul.f32 %v5808, %v7434
      %v7451 = vmul.f32 %v5823, %v7435
      %v7452 = vmul.f32 %v5824, %v7436
      %v7453 = vmul.f32 %v5839, %v7437
      %v7454 = vmul.f32 %v5840, %v7438
      %v7455 = vmul.f32 %v5855, %v7439
      %v7456 = vmul.f32 %v5856, %v7440
      %v7457 = vmul.f32 %v5871, %v7441
      %v7458 = vmul.f32 %v5872, %v7442
      %v7459 = vadd.f32 %v7443, %v7444
      %v7460 = vrot.slane %v7459, 4
      %v7461 = vadd.f32 %v7459, %v7460
      %v7462 = vrot.slane %v7461, 2
      %v7463 = vadd.f32 %v7461, %v7462
      %v7464 = vrot.slane %v7463, 1
      %v7465 = vadd.f32 %v7463, %v7464
      %v7466 = vadd.f32 %v7445, %v7446
      %v7467 = vrot.slane %v7466, 4
      %v7468 = vadd.f32 %v7466, %v7467
      %v7469 = vrot.slane %v7468, 2
      %v7470 = vadd.f32 %v7468, %v7469
      %v7471 = vrot.slane %v7470, 1
      %v7472 = vadd.f32 %v7470, %v7471
      %v7473 = vadd.f32 %v7447, %v7448
      %v7474 = vrot.slane %v7473, 4
      %v7475 = vadd.f32 %v7473, %v7474
      %v7476 = vrot.slane %v7475, 2
      %v7477 = vadd.f32 %v7475, %v7476
      %v7478 = vrot.slane %v7477, 1
      %v7479 = vadd.f32 %v7477, %v7478
      %v7480 = vadd.f32 %v7449, %v7450
      %v7481 = vrot.slane %v7480, 4
      %v7482 = vadd.f32 %v7480, %v7481
      %v7483 = vrot.slane %v7482, 2
      %v7484 = vadd.f32 %v7482, %v7483
      %v7485 = vrot.slane %v7484, 1
      %v7486 = vadd.f32 %v7484, %v7485
      %v7487 = vadd.f32 %v7451, %v7452
      %v7488 = vrot.slane %v7487, 4
      %v7489 = vadd.f32 %v7487, %v7488
      %v7490 = vrot.slane %v7489, 2
      %v7491 = vadd.f32 %v7489, %v7490
      %v7492 = vrot.slane %v7491, 1
      %v7493 = vadd.f32 %v7491, %v7492
      %v7494 = vadd.f32 %v7453, %v7454
      %v7495 = vrot.slane %v7494, 4
      %v7496 = vadd.f32 %v7494, %v7495
      %v7497 = vrot.slane %v7496, 2
      %v7498 = vadd.f32 %v7496, %v7497
      %v7499 = vrot.slane %v7498, 1
      %v7500 = vadd.f32 %v7498, %v7499
      %v7501 = vadd.f32 %v7455, %v7456
      %v7502 = vrot.slane %v7501, 4
      %v7503 = vadd.f32 %v7501, %v7502
      %v7504 = vrot.slane %v7503, 2
      %v7505 = vadd.f32 %v7503, %v7504
      %v7506 = vrot.slane %v7505, 1
      %v7507 = vadd.f32 %v7505, %v7506
      %v7508 = vadd.f32 %v7457, %v7458
      %v7509 = vrot.slane %v7508, 4
      %v7510 = vadd.f32 %v7508, %v7509
      %v7511 = vrot.slane %v7510, 2
      %v7512 = vadd.f32 %v7510, %v7511
      %v7513 = vrot.slane %v7512, 1
      %v7514 = vadd.f32 %v7512, %v7513
      %v7515 = vmul.f32 %v6119, %v6605
      %v7516 = vmul.f32 %v6120, %v6606
      %v7517 = vmul.f32 %v6121, %v6601
      %v7518 = vmul.f32 %v6122, %v6602
      %v7519 = vmul.f32 %v6123, %v6597
      %v7520 = vmul.f32 %v6124, %v6598
      %v7521 = vmul.f32 %v6125, %v6593
      %v7522 = vmul.f32 %v6126, %v6594
      %v7523 = vmul.f32 %v6127, %v6589
      %v7524 = vmul.f32 %v6128, %v6590
      %v7525 = vmul.f32 %v6129, %v6585
      %v7526 = vmul.f32 %v6130, %v6586
      %v7527 = vmul.f32 %v6131, %v6581
      %v7528 = vmul.f32 %v6132, %v6582
      %v7529 = vmul.f32 %v6133, 0.0
      %v7530 = vmul.f32 %v6134, 0.0
      %v7531 = vadd.f32 %v7515, %v6151
      %v7532 = vadd.f32 %v7516, %v6152
      %v7533 = vadd.f32 %v7517, %v6153
      %v7534 = vadd.f32 %v7518, %v6154
      %v7535 = vadd.f32 %v7519, %v6155
      %v7536 = vadd.f32 %v7520, %v6156
      %v7537 = vadd.f32 %v7521, %v6157
      %v7538 = vadd.f32 %v7522, %v6158
      %v7539 = vadd.f32 %v7523, %v6159
      %v7540 = vadd.f32 %v7524, %v6160
      %v7541 = vadd.f32 %v7525, %v6161
      %v7542 = vadd.f32 %v7526, %v6162
      %v7543 = vadd.f32 %v7527, %v6163
      %v7544 = vadd.f32 %v7528, %v6164
      %v7545 = vadd.f32 %v7529, %v6165
      %v7546 = vadd.f32 %v7530, %v6166
      %v7547 = vmul.f32 %v5759, %v7531
      %v7548 = vmul.f32 %v5760, %v7532
      %v7549 = vmul.f32 %v5775, %v7533
      %v7550 = vmul.f32 %v5776, %v7534
      %v7551 = vmul.f32 %v5791, %v7535
      %v7552 = vmul.f32 %v5792, %v7536
      %v7553 = vmul.f32 %v5807, %v7537
      %v7554 = vmul.f32 %v5808, %v7538
      %v7555 = vmul.f32 %v5823, %v7539
      %v7556 = vmul.f32 %v5824, %v7540
      %v7557 = vmul.f32 %v5839, %v7541
      %v7558 = vmul.f32 %v5840, %v7542
      %v7559 = vmul.f32 %v5855, %v7543
      %v7560 = vmul.f32 %v5856, %v7544
      %v7561 = vmul.f32 %v5871, %v7545
      %v7562 = vmul.f32 %v5872, %v7546
      %v7563 = vadd.f32 %v7547, %v7548
      %v7564 = vrot.slane %v7563, 4
      %v7565 = vadd.f32 %v7563, %v7564
      %v7566 = vrot.slane %v7565, 2
      %v7567 = vadd.f32 %v7565, %v7566
      %v7568 = vrot.slane %v7567, 1
      %v7569 = vadd.f32 %v7567, %v7568
      %v7570 = vadd.f32 %v7549, %v7550
      %v7571 = vrot.slane %v7570, 4
      %v7572 = vadd.f32 %v7570, %v7571
      %v7573 = vrot.slane %v7572, 2
      %v7574 = vadd.f32 %v7572, %v7573
      %v7575 = vrot.slane %v7574, 1
      %v7576 = vadd.f32 %v7574, %v7575
      %v7577 = vadd.f32 %v7551, %v7552
      %v7578 = vrot.slane %v7577, 4
      %v7579 = vadd.f32 %v7577, %v7578
      %v7580 = vrot.slane %v7579, 2
      %v7581 = vadd.f32 %v7579, %v7580
      %v7582 = vrot.slane %v7581, 1
      %v7583 = vadd.f32 %v7581, %v7582
      %v7584 = vadd.f32 %v7553, %v7554
      %v7585 = vrot.slane %v7584, 4
      %v7586 = vadd.f32 %v7584, %v7585
      %v7587 = vrot.slane %v7586, 2
      %v7588 = vadd.f32 %v7586, %v7587
      %v7589 = vrot.slane %v7588, 1
      %v7590 = vadd.f32 %v7588, %v7589
      %v7591 = vadd.f32 %v7555, %v7556
      %v7592 = vrot.slane %v7591, 4
      %v7593 = vadd.f32 %v7591, %v7592
      %v7594 = vrot.slane %v7593, 2
      %v7595 = vadd.f32 %v7593, %v7594
      %v7596 = vrot.slane %v7595, 1
      %v7597 = vadd.f32 %v7595, %v7596
      %v7598 = vadd.f32 %v7557, %v7558
      %v7599 = vrot.slane %v7598, 4
      %v7600 = vadd.f32 %v7598, %v7599
      %v7601 = vrot.slane %v7600, 2
      %v7602 = vadd.f32 %v7600, %v7601
      %v7603 = vrot.slane %v7602, 1
      %v7604 = vadd.f32 %v7602, %v7603
      %v7605 = vadd.f32 %v7559, %v7560
      %v7606 = vrot.slane %v7605, 4
      %v7607 = vadd.f32 %v7605, %v7606
      %v7608 = vrot.slane %v7607, 2
      %v7609 = vadd.f32 %v7607, %v7608
      %v7610 = vrot.slane %v7609, 1
      %v7611 = vadd.f32 %v7609, %v7610
      %v7612 = vadd.f32 %v7561, %v7562
      %v7613 = vrot.slane %v7612, 4
      %v7614 = vadd.f32 %v7612, %v7613
      %v7615 = vrot.slane %v7614, 2
      %v7616 = vadd.f32 %v7614, %v7615
      %v7617 = vrot.slane %v7616, 1
      %v7618 = vadd.f32 %v7616, %v7617
      %v7619 = vmul.f32 %v6263, 0.0
      %v7620 = vmul.f32 %v6264, 0.0
      %v7621 = vmul.f32 %v6265, %v6553
      %v7622 = vmul.f32 %v6266, %v6554
      %v7623 = vmul.f32 %v6267, %v6557
      %v7624 = vmul.f32 %v6268, %v6558
      %v7625 = vmul.f32 %v6269, %v6561
      %v7626 = vmul.f32 %v6270, %v6562
      %v7627 = vmul.f32 %v6271, %v6565
      %v7628 = vmul.f32 %v6272, %v6566
      %v7629 = vmul.f32 %v6273, %v6569
      %v7630 = vmul.f32 %v6274, %v6570
      %v7631 = vmul.f32 %v6275, %v6573
      %v7632 = vmul.f32 %v6276, %v6574
      %v7633 = vmul.f32 %v6277, %v6577
      %v7634 = vmul.f32 %v6278, %v6578
      %v7635 = vadd.f32 %v7619, %v6295
      %v7636 = vadd.f32 %v7620, %v6296
      %v7637 = vadd.f32 %v7621, %v6297
      %v7638 = vadd.f32 %v7622, %v6298
      %v7639 = vadd.f32 %v7623, %v6299
      %v7640 = vadd.f32 %v7624, %v6300
      %v7641 = vadd.f32 %v7625, %v6301
      %v7642 = vadd.f32 %v7626, %v6302
      %v7643 = vadd.f32 %v7627, %v6303
      %v7644 = vadd.f32 %v7628, %v6304
      %v7645 = vadd.f32 %v7629, %v6305
      %v7646 = vadd.f32 %v7630, %v6306
      %v7647 = vadd.f32 %v7631, %v6307
      %v7648 = vadd.f32 %v7632, %v6308
      %v7649 = vadd.f32 %v7633, %v6309
      %v7650 = vadd.f32 %v7634, %v6310
      %v7651 = vmul.f32 %v5761, %v7635
      %v7652 = vmul.f32 %v5762, %v7636
      %v7653 = vmul.f32 %v5777, %v7637
      %v7654 = vmul.f32 %v5778, %v7638
      %v7655 = vmul.f32 %v5793, %v7639
      %v7656 = vmul.f32 %v5794, %v7640
      %v7657 = vmul.f32 %v5809, %v7641
      %v7658 = vmul.f32 %v5810, %v7642
      %v7659 = vmul.f32 %v5825, %v7643
      %v7660 = vmul.f32 %v5826, %v7644
      %v7661 = vmul.f32 %v5841, %v7645
      %v7662 = vmul.f32 %v5842, %v7646
      %v7663 = vmul.f32 %v5857, %v7647
      %v7664 = vmul.f32 %v5858, %v7648
      %v7665 = vmul.f32 %v5873, %v7649
      %v7666 = vmul.f32 %v5874, %v7650
      %v7667 = vadd.f32 %v7651, %v7652
      %v7668 = vrot.slane %v7667, 4
      %v7669 = vadd.f32 %v7667, %v7668
      %v7670 = vrot.slane %v7669, 2
      %v7671 = vadd.f32 %v7669, %v7670
      %v7672 = vrot.slane %v7671, 1
      %v7673 = vadd.f32 %v7671, %v7672
      %v7674 = vadd.f32 %v7653, %v7654
      %v7675 = vrot.slane %v7674, 4
      %v7676 = vadd.f32 %v7674, %v7675
      %v7677 = vrot.slane %v7676, 2
      %v7678 = vadd.f32 %v7676, %v7677
      %v7679 = vrot.slane %v7678, 1
      %v7680 = vadd.f32 %v7678, %v7679
      %v7681 = vadd.f32 %v7655, %v7656
      %v7682 = vrot.slane %v7681, 4
      %v7683 = vadd.f32 %v7681, %v7682
      %v7684 = vrot.slane %v7683, 2
      %v7685 = vadd.f32 %v7683, %v7684
      %v7686 = vrot.slane %v7685, 1
      %v7687 = vadd.f32 %v7685, %v7686
      %v7688 = vadd.f32 %v7657, %v7658
      %v7689 = vrot.slane %v7688, 4
      %v7690 = vadd.f32 %v7688, %v7689
      %v7691 = vrot.slane %v7690, 2
      %v7692 = vadd.f32 %v7690, %v7691
      %v7693 = vrot.slane %v7692, 1
      %v7694 = vadd.f32 %v7692, %v7693
      %v7695 = vadd.f32 %v7659, %v7660
      %v7696 = vrot.slane %v7695, 4
      %v7697 = vadd.f32 %v7695, %v7696
      %v7698 = vrot.slane %v7697, 2
      %v7699 = vadd.f32 %v7697, %v7698
      %v7700 = vrot.slane %v7699, 1
      %v7701 = vadd.f32 %v7699, %v7700
      %v7702 = vadd.f32 %v7661, %v7662
      %v7703 = vrot.slane %v7702, 4
      %v7704 = vadd.f32 %v7702, %v7703
      %v7705 = vrot.slane %v7704, 2
      %v7706 = vadd.f32 %v7704, %v7705
      %v7707 = vrot.slane %v7706, 1
      %v7708 = vadd.f32 %v7706, %v7707
      %v7709 = vadd.f32 %v7663, %v7664
      %v7710 = vrot.slane %v7709, 4
      %v7711 = vadd.f32 %v7709, %v7710
      %v7712 = vrot.slane %v7711, 2
      %v7713 = vadd.f32 %v7711, %v7712
      %v7714 = vrot.slane %v7713, 1
      %v7715 = vadd.f32 %v7713, %v7714
      %v7716 = vadd.f32 %v7665, %v7666
      %v7717 = vrot.slane %v7716, 4
      %v7718 = vadd.f32 %v7716, %v7717
      %v7719 = vrot.slane %v7718, 2
      %v7720 = vadd.f32 %v7718, %v7719
      %v7721 = vrot.slane %v7720, 1
      %v7722 = vadd.f32 %v7720, %v7721
      %v7723 = vmul.f32 %v6023, %v6605
      %v7724 = vmul.f32 %v6024, %v6606
      %v7725 = vmul.f32 %v6025, %v6601
      %v7726 = vmul.f32 %v6026, %v6602
      %v7727 = vmul.f32 %v6027, %v6597
      %v7728 = vmul.f32 %v6028, %v6598
      %v7729 = vmul.f32 %v6029, %v6593
      %v7730 = vmul.f32 %v6030, %v6594
      %v7731 = vmul.f32 %v6031, %v6589
      %v7732 = vmul.f32 %v6032, %v6590
      %v7733 = vmul.f32 %v6033, %v6585
      %v7734 = vmul.f32 %v6034, %v6586
      %v7735 = vmul.f32 %v6035, %v6581
      %v7736 = vmul.f32 %v6036, %v6582
      %v7737 = vmul.f32 %v6037, 0.0
      %v7738 = vmul.f32 %v6038, 0.0
      %v7739 = vadd.f32 %v7723, %v6055
      %v7740 = vadd.f32 %v7724, %v6056
      %v7741 = vadd.f32 %v7725, %v6057
      %v7742 = vadd.f32 %v7726, %v6058
      %v7743 = vadd.f32 %v7727, %v6059
      %v7744 = vadd.f32 %v7728, %v6060
      %v7745 = vadd.f32 %v7729, %v6061
      %v7746 = vadd.f32 %v7730, %v6062
      %v7747 = vadd.f32 %v7731, %v6063
      %v7748 = vadd.f32 %v7732, %v6064
      %v7749 = vadd.f32 %v7733, %v6065
      %v7750 = vadd.f32 %v7734, %v6066
      %v7751 = vadd.f32 %v7735, %v6067
      %v7752 = vadd.f32 %v7736, %v6068
      %v7753 = vadd.f32 %v7737, %v6069
      %v7754 = vadd.f32 %v7738, %v6070
      %v7755 = vmul.f32 %v5761, %v7739
      %v7756 = vmul.f32 %v5762, %v7740
      %v7757 = vmul.f32 %v5777, %v7741
      %v7758 = vmul.f32 %v5778, %v7742
      %v7759 = vmul.f32 %v5793, %v7743
      %v7760 = vmul.f32 %v5794, %v7744
      %v7761 = vmul.f32 %v5809, %v7745
      %v7762 = vmul.f32 %v5810, %v7746
      %v7763 = vmul.f32 %v5825, %v7747
      %v7764 = vmul.f32 %v5826, %v7748
      %v7765 = vmul.f32 %v5841, %v7749
      %v7766 = vmul.f32 %v5842, %v7750
      %v7767 = vmul.f32 %v5857, %v7751
      %v7768 = vmul.f32 %v5858, %v7752
      %v7769 = vmul.f32 %v5873, %v7753
      %v7770 = vmul.f32 %v5874, %v7754
      %v7771 = vadd.f32 %v7755, %v7756
      %v7772 = vrot.slane %v7771, 4
      %v7773 = vadd.f32 %v7771, %v7772
      %v7774 = vrot.slane %v7773, 2
      %v7775 = vadd.f32 %v7773, %v7774
      %v7776 = vrot.slane %v7775, 1
      %v7777 = vadd.f32 %v7775, %v7776
      %v7778 = vadd.f32 %v7757, %v7758
      %v7779 = vrot.slane %v7778, 4
      %v7780 = vadd.f32 %v7778, %v7779
      %v7781 = vrot.slane %v7780, 2
      %v7782 = vadd.f32 %v7780, %v7781
      %v7783 = vrot.slane %v7782, 1
      %v7784 = vadd.f32 %v7782, %v7783
      %v7785 = vadd.f32 %v7759, %v7760
      %v7786 = vrot.slane %v7785, 4
      %v7787 = vadd.f32 %v7785, %v7786
      %v7788 = vrot.slane %v7787, 2
      %v7789 = vadd.f32 %v7787, %v7788
      %v7790 = vrot.slane %v7789, 1
      %v7791 = vadd.f32 %v7789, %v7790
      %v7792 = vadd.f32 %v7761, %v7762
      %v7793 = vrot.slane %v7792, 4
      %v7794 = vadd.f32 %v7792, %v7793
      %v7795 = vrot.slane %v7794, 2
      %v7796 = vadd.f32 %v7794, %v7795
      %v7797 = vrot.slane %v7796, 1
      %v7798 = vadd.f32 %v7796, %v7797
      %v7799 = vadd.f32 %v7763, %v7764
      %v7800 = vrot.slane %v7799, 4
      %v7801 = vadd.f32 %v7799, %v7800
      %v7802 = vrot.slane %v7801, 2
      %v7803 = vadd.f32 %v7801, %v7802
      %v7804 = vrot.slane %v7803, 1
      %v7805 = vadd.f32 %v7803, %v7804
      %v7806 = vadd.f32 %v7765, %v7766
      %v7807 = vrot.slane %v7806, 4
      %v7808 = vadd.f32 %v7806, %v7807
      %v7809 = vrot.slane %v7808, 2
      %v7810 = vadd.f32 %v7808, %v7809
      %v7811 = vrot.slane %v7810, 1
      %v7812 = vadd.f32 %v7810, %v7811
      %v7813 = vadd.f32 %v7767, %v7768
      %v7814 = vrot.slane %v7813, 4
      %v7815 = vadd.f32 %v7813, %v7814
      %v7816 = vrot.slane %v7815, 2
      %v7817 = vadd.f32 %v7815, %v7816
      %v7818 = vrot.slane %v7817, 1
      %v7819 = vadd.f32 %v7817, %v7818
      %v7820 = vadd.f32 %v7769, %v7770
      %v7821 = vrot.slane %v7820, 4
      %v7822 = vadd.f32 %v7820, %v7821
      %v7823 = vrot.slane %v7822, 2
      %v7824 = vadd.f32 %v7822, %v7823
      %v7825 = vrot.slane %v7824, 1
      %v7826 = vadd.f32 %v7824, %v7825
      %v7827 = vmul.f32 %v6359, 0.0
      %v7828 = vmul.f32 %v6360, 0.0
      %v7829 = vmul.f32 %v6361, %v6553
      %v7830 = vmul.f32 %v6362, %v6554
      %v7831 = vmul.f32 %v6363, %v6557
      %v7832 = vmul.f32 %v6364, %v6558
      %v7833 = vmul.f32 %v6365, %v6561
      %v7834 = vmul.f32 %v6366, %v6562
      %v7835 = vmul.f32 %v6367, %v6565
      %v7836 = vmul.f32 %v6368, %v6566
      %v7837 = vmul.f32 %v6369, %v6569
      %v7838 = vmul.f32 %v6370, %v6570
      %v7839 = vmul.f32 %v6371, %v6573
      %v7840 = vmul.f32 %v6372, %v6574
      %v7841 = vmul.f32 %v6373, %v6577
      %v7842 = vmul.f32 %v6374, %v6578
      %v7843 = vadd.f32 %v7827, %v6391
      %v7844 = vadd.f32 %v7828, %v6392
      %v7845 = vadd.f32 %v7829, %v6393
      %v7846 = vadd.f32 %v7830, %v6394
      %v7847 = vadd.f32 %v7831, %v6395
      %v7848 = vadd.f32 %v7832, %v6396
      %v7849 = vadd.f32 %v7833, %v6397
      %v7850 = vadd.f32 %v7834, %v6398
      %v7851 = vadd.f32 %v7835, %v6399
      %v7852 = vadd.f32 %v7836, %v6400
      %v7853 = vadd.f32 %v7837, %v6401
      %v7854 = vadd.f32 %v7838, %v6402
      %v7855 = vadd.f32 %v7839, %v6403
      %v7856 = vadd.f32 %v7840, %v6404
      %v7857 = vadd.f32 %v7841, %v6405
      %v7858 = vadd.f32 %v7842, %v6406
      %v7859 = vmul.f32 %v5763, %v7843
      %v7860 = vmul.f32 %v5764, %v7844
      %v7861 = vmul.f32 %v5779, %v7845
      %v7862 = vmul.f32 %v5780, %v7846
      %v7863 = vmul.f32 %v5795, %v7847
      %v7864 = vmul.f32 %v5796, %v7848
      %v7865 = vmul.f32 %v5811, %v7849
      %v7866 = vmul.f32 %v5812, %v7850
      %v7867 = vmul.f32 %v5827, %v7851
      %v7868 = vmul.f32 %v5828, %v7852
      %v7869 = vmul.f32 %v5843, %v7853
      %v7870 = vmul.f32 %v5844, %v7854
      %v7871 = vmul.f32 %v5859, %v7855
      %v7872 = vmul.f32 %v5860, %v7856
      %v7873 = vmul.f32 %v5875, %v7857
      %v7874 = vmul.f32 %v5876, %v7858
      %v7875 = vadd.f32 %v7859, %v7860
      %v7876 = vrot.slane %v7875, 4
      %v7877 = vadd.f32 %v7875, %v7876
      %v7878 = vrot.slane %v7877, 2
      %v7879 = vadd.f32 %v7877, %v7878
      %v7880 = vrot.slane %v7879, 1
      %v7881 = vadd.f32 %v7879, %v7880
      %v7882 = vadd.f32 %v7861, %v7862
      %v7883 = vrot.slane %v7882, 4
      %v7884 = vadd.f32 %v7882, %v7883
      %v7885 = vrot.slane %v7884, 2
      %v7886 = vadd.f32 %v7884, %v7885
      %v7887 = vrot.slane %v7886, 1
      %v7888 = vadd.f32 %v7886, %v7887
      %v7889 = vadd.f32 %v7863, %v7864
      %v7890 = vrot.slane %v7889, 4
      %v7891 = vadd.f32 %v7889, %v7890
      %v7892 = vrot.slane %v7891, 2
      %v7893 = vadd.f32 %v7891, %v7892
      %v7894 = vrot.slane %v7893, 1
      %v7895 = vadd.f32 %v7893, %v7894
      %v7896 = vadd.f32 %v7865, %v7866
      %v7897 = vrot.slane %v7896, 4
      %v7898 = vadd.f32 %v7896, %v7897
      %v7899 = vrot.slane %v7898, 2
      %v7900 = vadd.f32 %v7898, %v7899
      %v7901 = vrot.slane %v7900, 1
      %v7902 = vadd.f32 %v7900, %v7901
      %v7903 = vadd.f32 %v7867, %v7868
      %v7904 = vrot.slane %v7903, 4
      %v7905 = vadd.f32 %v7903, %v7904
      %v7906 = vrot.slane %v7905, 2
      %v7907 = vadd.f32 %v7905, %v7906
      %v7908 = vrot.slane %v7907, 1
      %v7909 = vadd.f32 %v7907, %v7908
      %v7910 = vadd.f32 %v7869, %v7870
      %v7911 = vrot.slane %v7910, 4
      %v7912 = vadd.f32 %v7910, %v7911
      %v7913 = vrot.slane %v7912, 2
      %v7914 = vadd.f32 %v7912, %v7913
      %v7915 = vrot.slane %v7914, 1
      %v7916 = vadd.f32 %v7914, %v7915
      %v7917 = vadd.f32 %v7871, %v7872
      %v7918 = vrot.slane %v7917, 4
      %v7919 = vadd.f32 %v7917, %v7918
      %v7920 = vrot.slane %v7919, 2
      %v7921 = vadd.f32 %v7919, %v7920
      %v7922 = vrot.slane %v7921, 1
      %v7923 = vadd.f32 %v7921, %v7922
      %v7924 = vadd.f32 %v7873, %v7874
      %v7925 = vrot.slane %v7924, 4
      %v7926 = vadd.f32 %v7924, %v7925
      %v7927 = vrot.slane %v7926, 2
      %v7928 = vadd.f32 %v7926, %v7927
      %v7929 = vrot.slane %v7928, 1
      %v7930 = vadd.f32 %v7928, %v7929
      %v7931 = vmul.f32 %v5927, %v6605
      %v7932 = vmul.f32 %v5928, %v6606
      %v7933 = vmul.f32 %v5929, %v6601
      %v7934 = vmul.f32 %v5930, %v6602
      %v7935 = vmul.f32 %v5931, %v6597
      %v7936 = vmul.f32 %v5932, %v6598
      %v7937 = vmul.f32 %v5933, %v6593
      %v7938 = vmul.f32 %v5934, %v6594
      %v7939 = vmul.f32 %v5935, %v6589
      %v7940 = vmul.f32 %v5936, %v6590
      %v7941 = vmul.f32 %v5937, %v6585
      %v7942 = vmul.f32 %v5938, %v6586
      %v7943 = vmul.f32 %v5939, %v6581
      %v7944 = vmul.f32 %v5940, %v6582
      %v7945 = vmul.f32 %v5941, 0.0
      %v7946 = vmul.f32 %v5942, 0.0
      %v7947 = vadd.f32 %v7931, %v5959
      %v7948 = vadd.f32 %v7932, %v5960
      %v7949 = vadd.f32 %v7933, %v5961
      %v7950 = vadd.f32 %v7934, %v5962
      %v7951 = vadd.f32 %v7935, %v5963
      %v7952 = vadd.f32 %v7936, %v5964
      %v7953 = vadd.f32 %v7937, %v5965
      %v7954 = vadd.f32 %v7938, %v5966
      %v7955 = vadd.f32 %v7939, %v5967
      %v7956 = vadd.f32 %v7940, %v5968
      %v7957 = vadd.f32 %v7941, %v5969
      %v7958 = vadd.f32 %v7942, %v5970
      %v7959 = vadd.f32 %v7943, %v5971
      %v7960 = vadd.f32 %v7944, %v5972
      %v7961 = vadd.f32 %v7945, %v5973
      %v7962 = vadd.f32 %v7946, %v5974
      %v7963 = vmul.f32 %v5763, %v7947
      %v7964 = vmul.f32 %v5764, %v7948
      %v7965 = vmul.f32 %v5779, %v7949
      %v7966 = vmul.f32 %v5780, %v7950
      %v7967 = vmul.f32 %v5795, %v7951
      %v7968 = vmul.f32 %v5796, %v7952
      %v7969 = vmul.f32 %v5811, %v7953
      %v7970 = vmul.f32 %v5812, %v7954
      %v7971 = vmul.f32 %v5827, %v7955
      %v7972 = vmul.f32 %v5828, %v7956
      %v7973 = vmul.f32 %v5843, %v7957
      %v7974 = vmul.f32 %v5844, %v7958
      %v7975 = vmul.f32 %v5859, %v7959
      %v7976 = vmul.f32 %v5860, %v7960
      %v7977 = vmul.f32 %v5875, %v7961
      %v7978 = vmul.f32 %v5876, %v7962
      %v7979 = vadd.f32 %v7963, %v7964
      %v7980 = vrot.slane %v7979, 4
      %v7981 = vadd.f32 %v7979, %v7980
      %v7982 = vrot.slane %v7981, 2
      %v7983 = vadd.f32 %v7981, %v7982
      %v7984 = vrot.slane %v7983, 1
      %v7985 = vadd.f32 %v7983, %v7984
      %v7986 = vadd.f32 %v7965, %v7966
      %v7987 = vrot.slane %v7986, 4
      %v7988 = vadd.f32 %v7986, %v7987
      %v7989 = vrot.slane %v7988, 2
      %v7990 = vadd.f32 %v7988, %v7989
      %v7991 = vrot.slane %v7990, 1
      %v7992 = vadd.f32 %v7990, %v7991
      %v7993 = vadd.f32 %v7967, %v7968
      %v7994 = vrot.slane %v7993, 4
      %v7995 = vadd.f32 %v7993, %v7994
      %v7996 = vrot.slane %v7995, 2
      %v7997 = vadd.f32 %v7995, %v7996
      %v7998 = vrot.slane %v7997, 1
      %v7999 = vadd.f32 %v7997, %v7998
      %v8000 = vadd.f32 %v7969, %v7970
      %v8001 = vrot.slane %v8000, 4
      %v8002 = vadd.f32 %v8000, %v8001
      %v8003 = vrot.slane %v8002, 2
      %v8004 = vadd.f32 %v8002, %v8003
      %v8005 = vrot.slane %v8004, 1
      %v8006 = vadd.f32 %v8004, %v8005
      %v8007 = vadd.f32 %v7971, %v7972
      %v8008 = vrot.slane %v8007, 4
      %v8009 = vadd.f32 %v8007, %v8008
      %v8010 = vrot.slane %v8009, 2
      %v8011 = vadd.f32 %v8009, %v8010
      %v8012 = vrot.slane %v8011, 1
      %v8013 = vadd.f32 %v8011, %v8012
      %v8014 = vadd.f32 %v7973, %v7974
      %v8015 = vrot.slane %v8014, 4
      %v8016 = vadd.f32 %v8014, %v8015
      %v8017 = vrot.slane %v8016, 2
      %v8018 = vadd.f32 %v8016, %v8017
      %v8019 = vrot.slane %v8018, 1
      %v8020 = vadd.f32 %v8018, %v8019
      %v8021 = vadd.f32 %v7975, %v7976
      %v8022 = vrot.slane %v8021, 4
      %v8023 = vadd.f32 %v8021, %v8022
      %v8024 = vrot.slane %v8023, 2
      %v8025 = vadd.f32 %v8023, %v8024
      %v8026 = vrot.slane %v8025, 1
      %v8027 = vadd.f32 %v8025, %v8026
      %v8028 = vadd.f32 %v7977, %v7978
      %v8029 = vrot.slane %v8028, 4
      %v8030 = vadd.f32 %v8028, %v8029
      %v8031 = vrot.slane %v8030, 2
      %v8032 = vadd.f32 %v8030, %v8031
      %v8033 = vrot.slane %v8032, 1
      %v8034 = vadd.f32 %v8032, %v8033
      %v8035 = vmul.f32 %v6469, %v6577
      %v8036 = vmul.f32 %v6470, %v6578
      %v8037 = vadd.f32 %v8035, %v6501
      %v8038 = vadd.f32 %v8036, %v6502
      %v8039 = vmul.f32 %v5765, %v6553
      %v8040 = vmul.f32 %v5766, %v6554
      %v8041 = vmul.f32 %v5781, %v6557
      %v8042 = vmul.f32 %v5782, %v6558
      %v8043 = vmul.f32 %v5797, %v6561
      %v8044 = vmul.f32 %v5798, %v6562
      %v8045 = vmul.f32 %v5813, %v6565
      %v8046 = vmul.f32 %v5814, %v6566
      %v8047 = vmul.f32 %v5829, %v6569
      %v8048 = vmul.f32 %v5830, %v6570
      %v8049 = vmul.f32 %v5845, %v6573
      %v8050 = vmul.f32 %v5846, %v6574
      %v8051 = vmul.f32 %v5861, %v6577
      %v8052 = vmul.f32 %v5862, %v6578
      %v8053 = vmul.f32 %v5877, %v8037
      %v8054 = vmul.f32 %v5878, %v8038
      %v8055 = vadd.f32 %v8039, %v8040
      %v8056 = vrot.slane %v8055, 4
      %v8057 = vadd.f32 %v8055, %v8056
      %v8058 = vrot.slane %v8057, 2
      %v8059 = vadd.f32 %v8057, %v8058
      %v8060 = vrot.slane %v8059, 1
      %v8061 = vadd.f32 %v8059, %v8060
      %v8062 = vadd.f32 %v8041, %v8042
      %v8063 = vrot.slane %v8062, 4
      %v8064 = vadd.f32 %v8062, %v8063
      %v8065 = vrot.slane %v8064, 2
      %v8066 = vadd.f32 %v8064, %v8065
      %v8067 = vrot.slane %v8066, 1
      %v8068 = vadd.f32 %v8066, %v8067
      %v8069 = vadd.f32 %v8043, %v8044
      %v8070 = vrot.slane %v8069, 4
      %v8071 = vadd.f32 %v8069, %v8070
      %v8072 = vrot.slane %v8071, 2
      %v8073 = vadd.f32 %v8071, %v8072
      %v8074 = vrot.slane %v8073, 1
      %v8075 = vadd.f32 %v8073, %v8074
      %v8076 = vadd.f32 %v8045, %v8046
      %v8077 = vrot.slane %v8076, 4
      %v8078 = vadd.f32 %v8076, %v8077
      %v8079 = vrot.slane %v8078, 2
      %v8080 = vadd.f32 %v8078, %v8079
      %v8081 = vrot.slane %v8080, 1
      %v8082 = vadd.f32 %v8080, %v8081
      %v8083 = vadd.f32 %v8047, %v8048
      %v8084 = vrot.slane %v8083, 4
      %v8085 = vadd.f32 %v8083, %v8084
      %v8086 = vrot.slane %v8085, 2
      %v8087 = vadd.f32 %v8085, %v8086
      %v8088 = vrot.slane %v8087, 1
      %v8089 = vadd.f32 %v8087, %v8088
      %v8090 = vadd.f32 %v8049, %v8050
      %v8091 = vrot.slane %v8090, 4
      %v8092 = vadd.f32 %v8090, %v8091
      %v8093 = vrot.slane %v8092, 2
      %v8094 = vadd.f32 %v8092, %v8093
      %v8095 = vrot.slane %v8094, 1
      %v8096 = vadd.f32 %v8094, %v8095
      %v8097 = vadd.f32 %v8051, %v8052
      %v8098 = vrot.slane %v8097, 4
      %v8099 = vadd.f32 %v8097, %v8098
      %v8100 = vrot.slane %v8099, 2
      %v8101 = vadd.f32 %v8099, %v8100
      %v8102 = vrot.slane %v8101, 1
      %v8103 = vadd.f32 %v8101, %v8102
      %v8104 = vadd.f32 %v8053, %v8054
      %v8105 = vrot.slane %v8104, 4
      %v8106 = vadd.f32 %v8104, %v8105
      %v8107 = vrot.slane %v8106, 2
      %v8108 = vadd.f32 %v8106, %v8107
      %v8109 = vrot.slane %v8108, 1
      %v8110 = vadd.f32 %v8108, %v8109
      %v8111 = vmul.f32 %v1868, %v6605
      %v8112 = vmul.f32 %v1870, %v6606
      %v8113 = vmul.f32 %v1900, %v6601
      %v8114 = vmul.f32 %v1902, %v6602
      %v8115 = vmul.f32 %v1932, %v6597
      %v8116 = vmul.f32 %v1934, %v6598
      %v8117 = vmul.f32 %v1964, %v6593
      %v8118 = vmul.f32 %v1966, %v6594
      %v8119 = vmul.f32 %v1996, %v6589
      %v8120 = vmul.f32 %v1998, %v6590
      %v8121 = vmul.f32 %v2028, %v6585
      %v8122 = vmul.f32 %v2030, %v6586
      %v8123 = vmul.f32 %v2060, %v6581
      %v8124 = vmul.f32 %v2062, %v6582
      %v8125 = vmul.f32 %v2092, 0.0
      %v8126 = vmul.f32 %v2094, 0.0
      %v8127 = vadd.f32 %v8111, %v4037
      %v8128 = vadd.f32 %v8112, %v4038
      %v8129 = vadd.f32 %v8113, %v4053
      %v8130 = vadd.f32 %v8114, %v4054
      %v8131 = vadd.f32 %v8115, %v4069
      %v8132 = vadd.f32 %v8116, %v4070
      %v8133 = vadd.f32 %v8117, %v4085
      %v8134 = vadd.f32 %v8118, %v4086
      %v8135 = vadd.f32 %v8119, %v4101
      %v8136 = vadd.f32 %v8120, %v4102
      %v8137 = vadd.f32 %v8121, %v4117
      %v8138 = vadd.f32 %v8122, %v4118
      %v8139 = vadd.f32 %v8123, %v4133
      %v8140 = vadd.f32 %v8124, %v4134
      %v8141 = vadd.f32 %v8125, %v4149
      %v8142 = vadd.f32 %v8126, %v4150
      %v8143 = vmul.f32 %v5765, %v8127
      %v8144 = vmul.f32 %v5766, %v8128
      %v8145 = vmul.f32 %v5781, %v8129
      %v8146 = vmul.f32 %v5782, %v8130
      %v8147 = vmul.f32 %v5797, %v8131
      %v8148 = vmul.f32 %v5798, %v8132
      %v8149 = vmul.f32 %v5813, %v8133
      %v8150 = vmul.f32 %v5814, %v8134
      %v8151 = vmul.f32 %v5829, %v8135
      %v8152 = vmul.f32 %v5830, %v8136
      %v8153 = vmul.f32 %v5845, %v8137
      %v8154 = vmul.f32 %v5846, %v8138
      %v8155 = vmul.f32 %v5861, %v8139
      %v8156 = vmul.f32 %v5862, %v8140
      %v8157 = vmul.f32 %v5877, %v8141
      %v8158 = vmul.f32 %v5878, %v8142
      %v8159 = vadd.f32 %v8143, %v8144
      %v8160 = vrot.slane %v8159, 4
      %v8161 = vadd.f32 %v8159, %v8160
      %v8162 = vrot.slane %v8161, 2
      %v8163 = vadd.f32 %v8161, %v8162
      %v8164 = vrot.slane %v8163, 1
      %v8165 = vadd.f32 %v8163, %v8164
      %v8166 = vadd.f32 %v8145, %v8146
      %v8167 = vrot.slane %v8166, 4
      %v8168 = vadd.f32 %v8166, %v8167
      %v8169 = vrot.slane %v8168, 2
      %v8170 = vadd.f32 %v8168, %v8169
      %v8171 = vrot.slane %v8170, 1
      %v8172 = vadd.f32 %v8170, %v8171
      %v8173 = vadd.f32 %v8147, %v8148
      %v8174 = vrot.slane %v8173, 4
      %v8175 = vadd.f32 %v8173, %v8174
      %v8176 = vrot.slane %v8175, 2
      %v8177 = vadd.f32 %v8175, %v8176
      %v8178 = vrot.slane %v8177, 1
      %v8179 = vadd.f32 %v8177, %v8178
      %v8180 = vadd.f32 %v8149, %v8150
      %v8181 = vrot.slane %v8180, 4
      %v8182 = vadd.f32 %v8180, %v8181
      %v8183 = vrot.slane %v8182, 2
      %v8184 = vadd.f32 %v8182, %v8183
      %v8185 = vrot.slane %v8184, 1
      %v8186 = vadd.f32 %v8184, %v8185
      %v8187 = vadd.f32 %v8151, %v8152
      %v8188 = vrot.slane %v8187, 4
      %v8189 = vadd.f32 %v8187, %v8188
      %v8190 = vrot.slane %v8189, 2
      %v8191 = vadd.f32 %v8189, %v8190
      %v8192 = vrot.slane %v8191, 1
      %v8193 = vadd.f32 %v8191, %v8192
      %v8194 = vadd.f32 %v8153, %v8154
      %v8195 = vrot.slane %v8194, 4
      %v8196 = vadd.f32 %v8194, %v8195
      %v8197 = vrot.slane %v8196, 2
      %v8198 = vadd.f32 %v8196, %v8197
      %v8199 = vrot.slane %v8198, 1
      %v8200 = vadd.f32 %v8198, %v8199
      %v8201 = vadd.f32 %v8155, %v8156
      %v8202 = vrot.slane %v8201, 4
      %v8203 = vadd.f32 %v8201, %v8202
      %v8204 = vrot.slane %v8203, 2
      %v8205 = vadd.f32 %v8203, %v8204
      %v8206 = vrot.slane %v8205, 1
      %v8207 = vadd.f32 %v8205, %v8206
      %v8208 = vadd.f32 %v8157, %v8158
      %v8209 = vrot.slane %v8208, 4
      %v8210 = vadd.f32 %v8208, %v8209
      %v8211 = vrot.slane %v8210, 2
      %v8212 = vadd.f32 %v8210, %v8211
      %v8213 = vrot.slane %v8212, 1
      %v8214 = vadd.f32 %v8212, %v8213
      %vm8215 = vcmask 1040384
      %v8216 = vsel %vm8215, %v6661, %v6841
      %v8217 = vsel %vm8215, %v6668, %v6848
      %v8218 = vsel %vm8215, %v6675, %v6855
      %v8219 = vsel %vm8215, %v6682, %v6862
      %v8220 = vsel %vm8215, %v6689, %v6869
      %v8221 = vsel %vm8215, %v6696, %v6876
      %v8222 = vsel %vm8215, %v6703, %v6883
      %v8223 = vsel %vm8215, %v6710, %v6890
      %v8224 = vsel %vm909, %v8216, %v7049
      %v8225 = vsel %vm909, %v8217, %v7056
      %v8226 = vsel %vm909, %v8218, %v7063
      %v8227 = vsel %vm909, %v8219, %v7070
      %v8228 = vsel %vm909, %v8220, %v7077
      %v8229 = vsel %vm909, %v8221, %v7084
      %v8230 = vsel %vm909, %v8222, %v7091
      %v8231 = vsel %vm909, %v8223, %v7098
      %vm8232 = vcmask 1042432
      %v8233 = vsel %vm8232, %v8224, %v7257
      %v8234 = vsel %vm8232, %v8225, %v7264
      %v8235 = vsel %vm8232, %v8226, %v7271
      %v8236 = vsel %vm8232, %v8227, %v7278
      %v8237 = vsel %vm8232, %v8228, %v7285
      %v8238 = vsel %vm8232, %v8229, %v7292
      %v8239 = vsel %vm8232, %v8230, %v7299
      %v8240 = vsel %vm8232, %v8231, %v7306
      %v8241 = vsel %vm194, %v8233, %v7465
      %v8242 = vsel %vm194, %v8234, %v7472
      %v8243 = vsel %vm194, %v8235, %v7479
      %v8244 = vsel %vm194, %v8236, %v7486
      %v8245 = vsel %vm194, %v8237, %v7493
      %v8246 = vsel %vm194, %v8238, %v7500
      %v8247 = vsel %vm194, %v8239, %v7507
      %v8248 = vsel %vm194, %v8240, %v7514
      %vm8249 = vcmask 1044480
      %v8250 = vsel %vm8249, %v8241, %v7673
      %v8251 = vsel %vm8249, %v8242, %v7680
      %v8252 = vsel %vm8249, %v8243, %v7687
      %v8253 = vsel %vm8249, %v8244, %v7694
      %v8254 = vsel %vm8249, %v8245, %v7701
      %v8255 = vsel %vm8249, %v8246, %v7708
      %v8256 = vsel %vm8249, %v8247, %v7715
      %v8257 = vsel %vm8249, %v8248, %v7722
      %vm8258 = vcmask 1045504
      %v8259 = vsel %vm8258, %v8250, %v7881
      %v8260 = vsel %vm8258, %v8251, %v7888
      %v8261 = vsel %vm8258, %v8252, %v7895
      %v8262 = vsel %vm8258, %v8253, %v7902
      %v8263 = vsel %vm8258, %v8254, %v7909
      %v8264 = vsel %vm8258, %v8255, %v7916
      %v8265 = vsel %vm8258, %v8256, %v7923
      %v8266 = vsel %vm8258, %v8257, %v7930
      %v8267 = vsel %vm963, %v8259, %v8061
      %v8268 = vsel %vm963, %v8260, %v8068
      %v8269 = vsel %vm963, %v8261, %v8075
      %v8270 = vsel %vm963, %v8262, %v8082
      %v8271 = vsel %vm963, %v8263, %v8089
      %v8272 = vsel %vm963, %v8264, %v8096
      %v8273 = vsel %vm963, %v8265, %v8103
      %v8274 = vsel %vm963, %v8266, %v8110
      %v8275 = vsel %vm8215, %v6737, %v6945
      %v8276 = vsel %vm8215, %v6744, %v6952
      %v8277 = vsel %vm8215, %v6751, %v6959
      %v8278 = vsel %vm8215, %v6758, %v6966
      %v8279 = vsel %vm8215, %v6765, %v6973
      %v8280 = vsel %vm8215, %v6772, %v6980
      %v8281 = vsel %vm8215, %v6779, %v6987
      %v8282 = vsel %vm8215, %v6786, %v6994
      %v8283 = vsel %vm909, %v8275, %v7153
      %v8284 = vsel %vm909, %v8276, %v7160
      %v8285 = vsel %vm909, %v8277, %v7167
      %v8286 = vsel %vm909, %v8278, %v7174
      %v8287 = vsel %vm909, %v8279, %v7181
      %v8288 = vsel %vm909, %v8280, %v7188
      %v8289 = vsel %vm909, %v8281, %v7195
      %v8290 = vsel %vm909, %v8282, %v7202
      %v8291 = vsel %vm8232, %v8283, %v7361
      %v8292 = vsel %vm8232, %v8284, %v7368
      %v8293 = vsel %vm8232, %v8285, %v7375
      %v8294 = vsel %vm8232, %v8286, %v7382
      %v8295 = vsel %vm8232, %v8287, %v7389
      %v8296 = vsel %vm8232, %v8288, %v7396
      %v8297 = vsel %vm8232, %v8289, %v7403
      %v8298 = vsel %vm8232, %v8290, %v7410
      %v8299 = vsel %vm194, %v8291, %v7569
      %v8300 = vsel %vm194, %v8292, %v7576
      %v8301 = vsel %vm194, %v8293, %v7583
      %v8302 = vsel %vm194, %v8294, %v7590
      %v8303 = vsel %vm194, %v8295, %v7597
      %v8304 = vsel %vm194, %v8296, %v7604
      %v8305 = vsel %vm194, %v8297, %v7611
      %v8306 = vsel %vm194, %v8298, %v7618
      %v8307 = vsel %vm8249, %v8299, %v7777
      %v8308 = vsel %vm8249, %v8300, %v7784
      %v8309 = vsel %vm8249, %v8301, %v7791
      %v8310 = vsel %vm8249, %v8302, %v7798
      %v8311 = vsel %vm8249, %v8303, %v7805
      %v8312 = vsel %vm8249, %v8304, %v7812
      %v8313 = vsel %vm8249, %v8305, %v7819
      %v8314 = vsel %vm8249, %v8306, %v7826
      %v8315 = vsel %vm8258, %v8307, %v7985
      %v8316 = vsel %vm8258, %v8308, %v7992
      %v8317 = vsel %vm8258, %v8309, %v7999
      %v8318 = vsel %vm8258, %v8310, %v8006
      %v8319 = vsel %vm8258, %v8311, %v8013
      %v8320 = vsel %vm8258, %v8312, %v8020
      %v8321 = vsel %vm8258, %v8313, %v8027
      %v8322 = vsel %vm8258, %v8314, %v8034
      %v8323 = vsel %vm963, %v8315, %v8165
      %v8324 = vsel %vm963, %v8316, %v8172
      %v8325 = vsel %vm963, %v8317, %v8179
      %v8326 = vsel %vm963, %v8318, %v8186
      %v8327 = vsel %vm963, %v8319, %v8193
      %v8328 = vsel %vm963, %v8320, %v8200
      %v8329 = vsel %vm963, %v8321, %v8207
      %v8330 = vsel %vm963, %v8322, %v8214
      %s8331 = scalar_lea.vmem %s37, %s474
      %v8332 = vld [vmem:[%s8331] sm:$0x1]
      %v8334 = vperm.slane %v8332, 0
      %v8336 = vmul.f32 %v8334, %v1177
      %v8337 = vmul.f32 %v8334, %v1178
      %v8338 = vmul.f32 %v8334, %v1179
      %v8339 = vmul.f32 %v8334, %v1180
      %v8340 = vmul.f32 %v8334, %v1181
      %v8341 = vmul.f32 %v8334, %v1182
      %v8342 = vmul.f32 %v8334, %v1183
      %v8343 = vmul.f32 %v8334, %v1184
      %v8344 = vadd.f32 %v8267, %v8336
      %v8345 = vadd.f32 %v8268, %v8337
      %v8346 = vadd.f32 %v8269, %v8338
      %v8347 = vadd.f32 %v8270, %v8339
      %v8348 = vadd.f32 %v8271, %v8340
      %v8349 = vadd.f32 %v8272, %v8341
      %v8350 = vadd.f32 %v8273, %v8342
      %v8351 = vadd.f32 %v8274, %v8343
      %v8352 = vadd.f32 %v8323, %v8336
      %v8353 = vadd.f32 %v8324, %v8337
      %v8354 = vadd.f32 %v8325, %v8338
      %v8355 = vadd.f32 %v8326, %v8339
      %v8356 = vadd.f32 %v8327, %v8340
      %v8357 = vadd.f32 %v8328, %v8341
      %v8358 = vadd.f32 %v8329, %v8342
      %v8359 = vadd.f32 %v8330, %v8343
      %s8360 = scalar_lea.vmem %s41, %s474
      %v8361 = vld [vmem:[%s8360] sm:$0x1]
      %v8363 = vperm.slane %v8361, 0
      %8364 = vset.pattern.permute.xlu0 0
      %8365 = vperm.xlu0 %8364, %v8363
      %v8366 = vpop.permute.xlu0 %8365
      %v8368 = vmul.f32 %v8366, %v8344
      %v8369 = vmul.f32 %v8366, %v8345
      %v8370 = vmul.f32 %v8366, %v8346
      %v8371 = vmul.f32 %v8366, %v8347
      %v8372 = vmul.f32 %v8366, %v8348
      %v8373 = vmul.f32 %v8366, %v8349
      %v8374 = vmul.f32 %v8366, %v8350
      %v8375 = vmul.f32 %v8366, %v8351
      %8376 = vset.pattern.permute.xlu0 1
      %8377 = vperm.xlu0 %8376, %v8363
      %v8378 = vpop.permute.xlu0 %8377
      %v8380 = vmul.f32 %v8378, %v8352
      %v8381 = vmul.f32 %v8378, %v8353
      %v8382 = vmul.f32 %v8378, %v8354
      %v8383 = vmul.f32 %v8378, %v8355
      %v8384 = vmul.f32 %v8378, %v8356
      %v8385 = vmul.f32 %v8378, %v8357
      %v8386 = vmul.f32 %v8378, %v8358
      %v8387 = vmul.f32 %v8378, %v8359
      %v8388 = vadd.f32 %v8368, %v8380
      %v8389 = vadd.f32 %v8369, %v8381
      %v8390 = vadd.f32 %v8370, %v8382
      %v8391 = vadd.f32 %v8371, %v8383
      %v8392 = vadd.f32 %v8372, %v8384
      %v8393 = vadd.f32 %v8373, %v8385
      %v8394 = vadd.f32 %v8374, %v8386
      %v8395 = vadd.f32 %v8375, %v8387
      %v8396 = vxor.u32 %v873, 2147483648
      %v8397 = vxor.u32 %v876, 2147483648
      %v8398 = vxor.u32 %v879, 2147483648
      %v8399 = vxor.u32 %v882, 2147483648
      %v8400 = vxor.u32 %v885, 2147483648
      %v8401 = vxor.u32 %v888, 2147483648
      %v8402 = vxor.u32 %v891, 2147483648
      %v8403 = vxor.u32 %v894, 2147483648
      %v8404 = vmul.f32 %v8396, 1.442695
      %v8405 = vpow.pop %v8404
      %v8406 = vmul.f32 %v8397, 1.442695
      %v8407 = vpow.pop %v8406
      %v8408 = vmul.f32 %v8398, 1.442695
      %v8409 = vpow.pop %v8408
      %v8410 = vmul.f32 %v8399, 1.442695
      %v8411 = vpow.pop %v8410
      %v8412 = vmul.f32 %v8400, 1.442695
      %v8413 = vpow.pop %v8412
      %v8414 = vmul.f32 %v8401, 1.442695
      %v8415 = vpow.pop %v8414
      %v8416 = vmul.f32 %v8402, 1.442695
      %v8417 = vpow.pop %v8416
      %v8418 = vmul.f32 %v8403, 1.442695
      %v8419 = vpow.pop %v8418
      %v8420 = vadd.f32 %v8405, 1.0
      %v8421 = vadd.f32 %v8407, 1.0
      %v8422 = vadd.f32 %v8409, 1.0
      %v8423 = vadd.f32 %v8411, 1.0
      %v8424 = vadd.f32 %v8413, 1.0
      %v8425 = vadd.f32 %v8415, 1.0
      %v8426 = vadd.f32 %v8417, 1.0
      %v8427 = vadd.f32 %v8419, 1.0
      %v8428 = vrcp.pop %v8420
      %v8429 = vmul.f32 %v8420, %v8428
      %v8430 = vsub.f32 1.0, %v8429
      %v8431 = vmul.f32 %v8428, %v8430
      %v8432 = vadd.f32 %v8428, %v8431
      %vm8433 = vweird.f32 %v8420
      %vm8434 = vweird.f32 %v8428
      %vm8435 = vmor %vm8433, %vm8434
      %v8436 = vsel %vm8435, %v8428, %v8432
      %v8437 = vand.u32 2147483647, %v8420
      %vm8438 = vcmp.eq.f32.partialorder %v8437, 8.507059e+37
      %v8439 = vand.u32 %v8420, 2147483648
      %v8440 = vor.u32 1.1754944e-38, %v8439
      %v8441 = vsel %vm8438, %v8440, %v8436
      %v8442 = vmul.f32 1.0, %v8441
      %v8443 = vrcp.pop %v8421
      %v8444 = vmul.f32 %v8421, %v8443
      %v8445 = vsub.f32 1.0, %v8444
      %v8446 = vmul.f32 %v8443, %v8445
      %v8447 = vadd.f32 %v8443, %v8446
      %vm8448 = vweird.f32 %v8421
      %vm8449 = vweird.f32 %v8443
      %vm8450 = vmor %vm8448, %vm8449
      %v8451 = vsel %vm8450, %v8443, %v8447
      %v8452 = vand.u32 2147483647, %v8421
      %vm8453 = vcmp.eq.f32.partialorder %v8452, 8.507059e+37
      %v8454 = vand.u32 %v8421, 2147483648
      %v8455 = vor.u32 1.1754944e-38, %v8454
      %v8456 = vsel %vm8453, %v8455, %v8451
      %v8457 = vmul.f32 1.0, %v8456
      %v8458 = vrcp.pop %v8422
      %v8459 = vmul.f32 %v8422, %v8458
      %v8460 = vsub.f32 1.0, %v8459
      %v8461 = vmul.f32 %v8458, %v8460
      %v8462 = vadd.f32 %v8458, %v8461
      %vm8463 = vweird.f32 %v8422
      %vm8464 = vweird.f32 %v8458
      %vm8465 = vmor %vm8463, %vm8464
      %v8466 = vsel %vm8465, %v8458, %v8462
      %v8467 = vand.u32 2147483647, %v8422
      %vm8468 = vcmp.eq.f32.partialorder %v8467, 8.507059e+37
      %v8469 = vand.u32 %v8422, 2147483648
      %v8470 = vor.u32 1.1754944e-38, %v8469
      %v8471 = vsel %vm8468, %v8470, %v8466
      %v8472 = vmul.f32 1.0, %v8471
      %v8473 = vrcp.pop %v8423
      %v8474 = vmul.f32 %v8423, %v8473
      %v8475 = vsub.f32 1.0, %v8474
      %v8476 = vmul.f32 %v8473, %v8475
      %v8477 = vadd.f32 %v8473, %v8476
      %vm8478 = vweird.f32 %v8423
      %vm8479 = vweird.f32 %v8473
      %vm8480 = vmor %vm8478, %vm8479
      %v8481 = vsel %vm8480, %v8473, %v8477
      %v8482 = vand.u32 2147483647, %v8423
      %vm8483 = vcmp.eq.f32.partialorder %v8482, 8.507059e+37
      %v8484 = vand.u32 %v8423, 2147483648
      %v8485 = vor.u32 1.1754944e-38, %v8484
      %v8486 = vsel %vm8483, %v8485, %v8481
      %v8487 = vmul.f32 1.0, %v8486
      %v8488 = vrcp.pop %v8424
      %v8489 = vmul.f32 %v8424, %v8488
      %v8490 = vsub.f32 1.0, %v8489
      %v8491 = vmul.f32 %v8488, %v8490
      %v8492 = vadd.f32 %v8488, %v8491
      %vm8493 = vweird.f32 %v8424
      %vm8494 = vweird.f32 %v8488
      %vm8495 = vmor %vm8493, %vm8494
      %v8496 = vsel %vm8495, %v8488, %v8492
      %v8497 = vand.u32 2147483647, %v8424
      %vm8498 = vcmp.eq.f32.partialorder %v8497, 8.507059e+37
      %v8499 = vand.u32 %v8424, 2147483648
      %v8500 = vor.u32 1.1754944e-38, %v8499
      %v8501 = vsel %vm8498, %v8500, %v8496
      %v8502 = vmul.f32 1.0, %v8501
      %v8503 = vrcp.pop %v8425
      %v8504 = vmul.f32 %v8425, %v8503
      %v8505 = vsub.f32 1.0, %v8504
      %v8506 = vmul.f32 %v8503, %v8505
      %v8507 = vadd.f32 %v8503, %v8506
      %vm8508 = vweird.f32 %v8425
      %vm8509 = vweird.f32 %v8503
      %vm8510 = vmor %vm8508, %vm8509
      %v8511 = vsel %vm8510, %v8503, %v8507
      %v8512 = vand.u32 2147483647, %v8425
      %vm8513 = vcmp.eq.f32.partialorder %v8512, 8.507059e+37
      %v8514 = vand.u32 %v8425, 2147483648
      %v8515 = vor.u32 1.1754944e-38, %v8514
      %v8516 = vsel %vm8513, %v8515, %v8511
      %v8517 = vmul.f32 1.0, %v8516
      %v8518 = vrcp.pop %v8426
      %v8519 = vmul.f32 %v8426, %v8518
      %v8520 = vsub.f32 1.0, %v8519
      %v8521 = vmul.f32 %v8518, %v8520
      %v8522 = vadd.f32 %v8518, %v8521
      %vm8523 = vweird.f32 %v8426
      %vm8524 = vweird.f32 %v8518
      %vm8525 = vmor %vm8523, %vm8524
      %v8526 = vsel %vm8525, %v8518, %v8522
      %v8527 = vand.u32 2147483647, %v8426
      %vm8528 = vcmp.eq.f32.partialorder %v8527, 8.507059e+37
      %v8529 = vand.u32 %v8426, 2147483648
      %v8530 = vor.u32 1.1754944e-38, %v8529
      %v8531 = vsel %vm8528, %v8530, %v8526
      %v8532 = vmul.f32 1.0, %v8531
      %v8533 = vrcp.pop %v8427
      %v8534 = vmul.f32 %v8427, %v8533
      %v8535 = vsub.f32 1.0, %v8534
      %v8536 = vmul.f32 %v8533, %v8535
      %v8537 = vadd.f32 %v8533, %v8536
      %vm8538 = vweird.f32 %v8427
      %vm8539 = vweird.f32 %v8533
      %vm8540 = vmor %vm8538, %vm8539
      %v8541 = vsel %vm8540, %v8533, %v8537
      %v8542 = vand.u32 2147483647, %v8427
      %vm8543 = vcmp.eq.f32.partialorder %v8542, 8.507059e+37
      %v8544 = vand.u32 %v8427, 2147483648
      %v8545 = vor.u32 1.1754944e-38, %v8544
      %v8546 = vsel %vm8543, %v8545, %v8541
      %v8547 = vmul.f32 1.0, %v8546
      %v8548 = vmul.f32 %v873, %v8442
      %v8549 = vmul.f32 %v876, %v8457
      %v8550 = vmul.f32 %v879, %v8472
      %v8551 = vmul.f32 %v882, %v8487
      %v8552 = vmul.f32 %v885, %v8502
      %v8553 = vmul.f32 %v888, %v8517
      %v8554 = vmul.f32 %v891, %v8532
      %v8555 = vmul.f32 %v894, %v8547
      %v8556 = vmul.f32 %v8388, %v8548
      %v8557 = vmul.f32 %v8389, %v8549
      %v8558 = vmul.f32 %v8390, %v8550
      %v8559 = vmul.f32 %v8391, %v8551
      %v8560 = vmul.f32 %v8392, %v8552
      %v8561 = vmul.f32 %v8393, %v8553
      %v8562 = vmul.f32 %v8394, %v8554
      %v8563 = vmul.f32 %v8395, %v8555
      %s8564 = scalar_lea.vmem %s39, %s1185
      %v8565 = vld [vmem:[%s8564] sm:$0xff]
      %v8566 = vld [vmem:[%s8564 + $0x8] sm:$0xff]
      %v8567 = vld [vmem:[%s8564 + $0x10] sm:$0xff]
      %v8568 = vld [vmem:[%s8564 + $0x18] sm:$0xff]
      %v8569 = vld [vmem:[%s8564 + $0x20] sm:$0xff]
      %v8570 = vld [vmem:[%s8564 + $0x28] sm:$0xff]
      %v8571 = vld [vmem:[%s8564 + $0x30] sm:$0xff]
      %v8572 = vld [vmem:[%s8564 + $0x38] sm:$0xff]
      %v8573 = vld [vmem:[%s8564 + $0x40] sm:$0xff]
      %v8574 = vld [vmem:[%s8564 + $0x48] sm:$0xff]
      %v8575 = vld [vmem:[%s8564 + $0x50] sm:$0xff]
      %v8576 = vld [vmem:[%s8564 + $0x58] sm:$0xff]
      %v8577 = vld [vmem:[%s8564 + $0x60] sm:$0xff]
      %v8578 = vld [vmem:[%s8564 + $0x68] sm:$0xff]
      %v8579 = vld [vmem:[%s8564 + $0x70] sm:$0xff]
      %v8580 = vld [vmem:[%s8564 + $0x78] sm:$0xff]
      %8581 = vmatpush.msra.mxu0 %v8580
      %8582 = vmatpush.msra.mxu0 %v8579
      %8583 = vmatpush.msra.mxu0 %v8578
      %8584 = vmatpush.msra.mxu0 %v8577
      %8585 = vmatpush.msra.mxu0 %v8576
      %8586 = vmatpush.msra.mxu0 %v8575
      %8587 = vmatpush.msra.mxu0 %v8574
      %8588 = vmatpush.msra.mxu0 %v8573
      %8589 = vmatpush.msra.mxu0 %v8572
      %8590 = vmatpush.msra.mxu0 %v8571
      %8591 = vmatpush.msra.mxu0 %v8570
      %8592 = vmatpush.msra.mxu0 %v8569
      %8593 = vmatpush.msra.mxu0 %v8568
      %8594 = vmatpush.msra.mxu0 %v8567
      %8595 = vmatpush.msra.mxu0 %v8566
      %8596 = vmatpush.msra.mxu0 %v8565
      %8597 = vmatmul.f32.gmra.mxu0 %v8556
      %v8598 = vpop.f32.mrf.mxu0
      %v8599 = vadd.f32 0.0, %v8598
      %8600 = vmatmul.f32.gmra.mxu0 %v8557
      %v8601 = vpop.f32.mrf.mxu0
      %v8602 = vadd.f32 0.0, %v8601
      %8603 = vmatmul.f32.gmra.mxu0 %v8558
      %v8604 = vpop.f32.mrf.mxu0
      %v8605 = vadd.f32 0.0, %v8604
      %8606 = vmatmul.f32.gmra.mxu0 %v8559
      %v8607 = vpop.f32.mrf.mxu0
      %v8608 = vadd.f32 0.0, %v8607
      %8609 = vmatmul.f32.gmra.mxu0 %v8560
      %v8610 = vpop.f32.mrf.mxu0
      %v8611 = vadd.f32 0.0, %v8610
      %8612 = vmatmul.f32.gmra.mxu0 %v8561
      %v8613 = vpop.f32.mrf.mxu0
      %v8614 = vadd.f32 0.0, %v8613
      %8615 = vmatmul.f32.gmra.mxu0 %v8562
      %v8616 = vpop.f32.mrf.mxu0
      %v8617 = vadd.f32 0.0, %v8616
      %8618 = vmatmul.f32.gmra.mxu0 %v8563
      %v8619 = vpop.f32.mrf.mxu0
      %v8620 = vadd.f32 0.0, %v8619
      %8621 = vdwg.mxu0
      %v8622 = vadd.f32 %v479, %v8599
      %v8623 = vadd.f32 %v480, %v8602
      %v8624 = vadd.f32 %v481, %v8605
      %v8625 = vadd.f32 %v482, %v8608
      %v8626 = vadd.f32 %v483, %v8611
      %v8627 = vadd.f32 %v484, %v8614
      %v8628 = vadd.f32 %v485, %v8617
      %v8629 = vadd.f32 %v486, %v8620
    $region150: #{spe_fem_forward.1} parent=1 // loop_footer
      %s478 = sadd.s32 1, %s474
    $region151: #{spe_fem_forward.1} parent=1 // loop_footer_branch
      %473 = sbr.rel target = $region147
    $region152: #{spe_fem_forward.1} parent=1 // loop_exit
      _
    %v8630 = vld [vmem:[%s43] sm:$0xff]
    %v8631 = vld [vmem:[%s43 + $0x8] sm:$0xff]
    %v8632 = vld [vmem:[%s43 + $0x10] sm:$0xff]
    %v8633 = vld [vmem:[%s43 + $0x18] sm:$0xff]
    %v8634 = vld [vmem:[%s43 + $0x20] sm:$0xff]
    %v8635 = vld [vmem:[%s43 + $0x28] sm:$0xff]
    %v8636 = vld [vmem:[%s43 + $0x30] sm:$0xff]
    %v8637 = vld [vmem:[%s43 + $0x38] sm:$0xff]
    %v8638 = vld [vmem:[%s45] sm:$0x1]
    %v8640 = vperm.slane %v8638, 0
    %v8643 = vsel %vm290, %v479, 0
    %v8646 = vsel %vm290, %v480, 0
    %v8649 = vsel %vm290, %v481, 0
    %v8652 = vsel %vm290, %v482, 0
    %v8655 = vsel %vm290, %v483, 0
    %v8658 = vsel %vm290, %v484, 0
    %v8661 = vsel %vm290, %v485, 0
    %v8664 = vsel %vm290, %v486, 0
    %8666 = vmatpush.msra.mxu0 0.0
    %8667 = vmatpush.msra.mxu0 0.0
    %8668 = vmatpush.msra.mxu0 0.0
    %8669 = vmatpush.msra.mxu0 0.0
    %8670 = vmatpush.msra.mxu0 0.0
    %8671 = vmatpush.msra.mxu0 0.0
    %8672 = vmatpush.msra.mxu0 0.0
    %8673 = vmatpush.msra.mxu0 0.0
    %8674 = vmatpush.msra.mxu0 %v8637
    %8675 = vmatpush.msra.mxu0 %v8636
    %8676 = vmatpush.msra.mxu0 %v8635
    %8677 = vmatpush.msra.mxu0 %v8634
    %8678 = vmatpush.msra.mxu0 %v8633
    %8679 = vmatpush.msra.mxu0 %v8632
    %8680 = vmatpush.msra.mxu0 %v8631
    %8681 = vmatpush.msra.mxu0 %v8630
    %8682 = vmatmul.f32.gmra.mxu0 %v8643
    %v8683 = vpop.f32.mrf.mxu0
    %v8684 = vadd.f32 %v8640, %v8683
    %8685 = vmatmul.f32.gmra.mxu0 %v8646
    %v8686 = vpop.f32.mrf.mxu0
    %v8687 = vadd.f32 %v8640, %v8686
    %8688 = vmatmul.f32.gmra.mxu0 %v8649
    %v8689 = vpop.f32.mrf.mxu0
    %v8690 = vadd.f32 %v8640, %v8689
    %8691 = vmatmul.f32.gmra.mxu0 %v8652
    %v8692 = vpop.f32.mrf.mxu0
    %v8693 = vadd.f32 %v8640, %v8692
    %8694 = vmatmul.f32.gmra.mxu0 %v8655
    %v8695 = vpop.f32.mrf.mxu0
    %v8696 = vadd.f32 %v8640, %v8695
    %8697 = vmatmul.f32.gmra.mxu0 %v8658
    %v8698 = vpop.f32.mrf.mxu0
    %v8699 = vadd.f32 %v8640, %v8698
    %8700 = vmatmul.f32.gmra.mxu0 %v8661
    %v8701 = vpop.f32.mrf.mxu0
    %v8702 = vadd.f32 %v8640, %v8701
    %8703 = vmatmul.f32.gmra.mxu0 %v8664
    %v8704 = vpop.f32.mrf.mxu0
    %v8705 = vadd.f32 %v8640, %v8704
    %8706 = vdwg.mxu0
    %8707 = vxpose.xlu0.b32.start [1/16] %v8684, 128
    %8708 = vxpose.xlu0.b32.cont [2/16] %v8687, 128
    %8709 = vxpose.xlu0.b32.cont [3/16] %v8690, 128
    %8710 = vxpose.xlu0.b32.cont [4/16] %v8693, 128
    %8711 = vxpose.xlu0.b32.cont [5/16] %v8696, 128
    %8712 = vxpose.xlu0.b32.cont [6/16] %v8699, 128
    %8713 = vxpose.xlu0.b32.cont [7/16] %v8702, 128
    %8714 = vxpose.xlu0.b32.cont [8/16] %v8705, 128
    %8715 = vxpose.xlu0.b32.cont [9/16] 0.0, 128
    %8716 = vxpose.xlu0.b32.cont [10/16] 0.0, 128
    %8717 = vxpose.xlu0.b32.cont [11/16] 0.0, 128
    %8718 = vxpose.xlu0.b32.cont [12/16] 0.0, 128
    %8719 = vxpose.xlu0.b32.cont [13/16] 0.0, 128
    %8720 = vxpose.xlu0.b32.cont [14/16] 0.0, 128
    %8721 = vxpose.xlu0.b32.cont [15/16] 0.0, 128
    %8722 = vxpose.xlu0.b32.end [16/16] 0.0, 128
    %v8723 = vpop.trf.xlu0
    %v8724 = vpop.trf.xlu0
    %v8725 = vpop.trf.xlu0
    %v8726 = vpop.trf.xlu0
    %v8727 = vpop.trf.xlu0
    %v8728 = vpop.trf.xlu0
    %v8729 = vpop.trf.xlu0
    %v8730 = vpop.trf.xlu0
    %v8731 = vpop.trf.xlu0
    %v8732 = vpop.trf.xlu0
    %v8733 = vpop.trf.xlu0
    %v8734 = vpop.trf.xlu0
    %v8735 = vpop.trf.xlu0
    %v8736 = vpop.trf.xlu0
    %v8737 = vpop.trf.xlu0
    %v8738 = vpop.trf.xlu0
    %v8740 = vrot.slane %v8723, 4
    %v8742 = vadd.f32 %v355, %v8723
    %v8743 = vadd.f32 %v356, %v8740
    %v8744 = vsel %vm187, %v8742, 0.0
    %8745 = vadd.xlane.f32.xlu0 %v8744
    %v8746 = vpop.xlane.xlu0 %8745
    %v8747 = vsel %vm187, %v8743, 0.0
    %8748 = vadd.xlane.f32.xlu0 %v8747
    %v8749 = vpop.xlane.xlu0 %8748
    %v8750 = vsel %vm194, %v8746, 0.0
    %v8751 = vsel %vm194, %v8749, 0.0
    %v8752 = vadd.f32 %v8750, %v8751
    %v8753 = vmul.f32 %v8752, %v204
    %v8754 = vsub.f32 %v8742, %v8753
    %v8755 = vsub.f32 %v8743, %v8753
    %v8756 = vmul.f32 %v8754, %v8754
    %v8757 = vmul.f32 %v8755, %v8755
    %v8758 = vsel %vm187, %v8756, 0.0
    %8759 = vadd.xlane.f32.xlu0 %v8758
    %v8760 = vpop.xlane.xlu0 %8759
    %v8761 = vsel %vm187, %v8757, 0.0
    %8762 = vadd.xlane.f32.xlu0 %v8761
    %v8763 = vpop.xlane.xlu0 %8762
    %v8764 = vsel %vm194, %v8760, 0.0
    %v8765 = vsel %vm194, %v8763, 0.0
    %v8766 = vadd.f32 %v8764, %v8765
    %v8767 = vmul.f32 %v8766, %v204
    %v8768 = vadd.f32 %v8767, 1e-05
    %v8769 = vrsqrt.pop %v8768
    %v8770 = vmul.f32 %v8769, %v8768
    %v8771 = vmul.f32 %v8770, %v8769
    %v8772 = vmul.f32 0.5, %v8771
    %v8773 = vsub.f32 1.5, %v8772
    %v8774 = vmul.f32 %v8769, %v8773
    %vm8775 = vweird.f32 %v8768
    %vm8776 = vweird.f32 %v8769
    %vm8777 = vmor %vm8775, %vm8776
    %v8778 = vsel %vm8777, %v8769, %v8774
    %v8779 = vmul.f32 %v8754, %v8778
    %v8780 = vmul.f32 %v8755, %v8778
    %v8781 = vld [vmem:[%s47] sm:$0xf]
    %8783 = vset.pattern.permute.xlu0 0
    %8784 = vperm.xlu0 %8783, %v8781
    %v8785 = vpop.permute.xlu0 %8784
    %v8787 = vmul.f32 %v8779, %v8785
    %v8788 = vmul.f32 %v8780, %v8785
    %v8789 = vld [vmem:[%s49] sm:$0xf]
    %8791 = vset.pattern.permute.xlu0 0
    %8792 = vperm.xlu0 %8791, %v8789
    %v8793 = vpop.permute.xlu0 %8792
    %v8795 = vadd.f32 %v8787, %v8793
    %v8796 = vadd.f32 %v8788, %v8793
    %v8799 = vrot.slane %v8796, 7
    %v8800 = vsel %vm280, %v8799, %v8795
    %v8802 = vrot.slane %v8795, 1
    %v8803 = vsel %vm280, %v8796, %v8802
    %8804 = vrot.lane.b32.xlu0 %v8803, 64
    %v8805 = vpop.permute.xlu0 %8804
    %v8807 = vrot.slane %v8795, 2
    %v8808 = vrot.slane %v8796, 1
    %v8809 = vsel %vm280, %v8808, %v8807
    %v8811 = vrot.slane %v8795, 3
    %v8812 = vrot.slane %v8796, 2
    %v8813 = vsel %vm280, %v8812, %v8811
    %8814 = vrot.lane.b32.xlu0 %v8813, 64
    %v8815 = vpop.permute.xlu0 %8814
    %v8817 = vsel %vm290, %v8800, %v8805
    %v8818 = vsel %vm290, %v8809, %v8815
    %v8821 = vrot.slane %v8743, 7
    %v8822 = vsel %vm280, %v8821, %v8742
    %v8824 = vrot.slane %v8742, 1
    %v8825 = vsel %vm280, %v8743, %v8824
    %8826 = vrot.lane.b32.xlu0 %v8825, 64
    %v8827 = vpop.permute.xlu0 %8826
    %v8829 = vrot.slane %v8742, 2
    %v8830 = vrot.slane %v8743, 1
    %v8831 = vsel %vm280, %v8830, %v8829
    %v8833 = vrot.slane %v8742, 3
    %v8834 = vrot.slane %v8743, 2
    %v8835 = vsel %vm280, %v8834, %v8833
    %8836 = vrot.lane.b32.xlu0 %v8835, 64
    %v8837 = vpop.permute.xlu0 %8836
    %v8839 = vsel %vm290, %v8822, %v8827
    %v8840 = vsel %vm290, %v8831, %v8837
    %v8841 = vld [vmem:[%s51] sm:$0xff]
    %v8842 = vld [vmem:[%s51 + $0x8] sm:$0xff]
    %v8843 = vld [vmem:[%s51 + $0x10] sm:$0xff]
    %v8844 = vld [vmem:[%s51 + $0x18] sm:$0xff]
    %v8845 = vld [vmem:[%s51 + $0x20] sm:$0xff]
    %v8846 = vld [vmem:[%s51 + $0x28] sm:$0xff]
    %v8847 = vld [vmem:[%s51 + $0x30] sm:$0xff]
    %v8848 = vld [vmem:[%s51 + $0x38] sm:$0xff]
    %v8849 = vld [vmem:[%s51 + $0x40] sm:$0xff]
    %v8850 = vld [vmem:[%s51 + $0x48] sm:$0xff]
    %v8851 = vld [vmem:[%s51 + $0x50] sm:$0xff]
    %v8852 = vld [vmem:[%s51 + $0x58] sm:$0xff]
    %v8853 = vld [vmem:[%s51 + $0x60] sm:$0xff]
    %v8854 = vld [vmem:[%s51 + $0x68] sm:$0xff]
    %v8855 = vld [vmem:[%s51 + $0x70] sm:$0xff]
    %v8856 = vld [vmem:[%s51 + $0x78] sm:$0xff]
    %v8857 = vld [vmem:[%s51 + $0x80] sm:$0xff]
    %v8858 = vld [vmem:[%s51 + $0x88] sm:$0xff]
    %v8859 = vld [vmem:[%s51 + $0x90] sm:$0xff]
    %v8860 = vld [vmem:[%s51 + $0x98] sm:$0xff]
    %v8861 = vld [vmem:[%s51 + $0xa0] sm:$0xff]
    %v8862 = vld [vmem:[%s51 + $0xa8] sm:$0xff]
    %v8863 = vld [vmem:[%s51 + $0xb0] sm:$0xff]
    %v8864 = vld [vmem:[%s51 + $0xb8] sm:$0xff]
    %v8865 = vld [vmem:[%s51 + $0xc0] sm:$0xff]
    %v8866 = vld [vmem:[%s51 + $0xc8] sm:$0xff]
    %v8867 = vld [vmem:[%s51 + $0xd0] sm:$0xff]
    %v8868 = vld [vmem:[%s51 + $0xd8] sm:$0xff]
    %v8869 = vld [vmem:[%s51 + $0xe0] sm:$0xff]
    %v8870 = vld [vmem:[%s51 + $0xe8] sm:$0xff]
    %v8871 = vld [vmem:[%s51 + $0xf0] sm:$0xff]
    %v8872 = vld [vmem:[%s51 + $0xf8] sm:$0xff]
    %8873 = vmatpush.msra.mxu0 %v8856
    %8874 = vmatpush.msra.mxu0 %v8855
    %8875 = vmatpush.msra.mxu0 %v8854
    %8876 = vmatpush.msra.mxu0 %v8853
    %8877 = vmatpush.msra.mxu0 %v8852
    %8878 = vmatpush.msra.mxu0 %v8851
    %8879 = vmatpush.msra.mxu0 %v8850
    %8880 = vmatpush.msra.mxu0 %v8849
    %8881 = vmatpush.msra.mxu0 %v8848
    %8882 = vmatpush.msra.mxu0 %v8847
    %8883 = vmatpush.msra.mxu0 %v8846
    %8884 = vmatpush.msra.mxu0 %v8845
    %8885 = vmatpush.msra.mxu0 %v8844
    %8886 = vmatpush.msra.mxu0 %v8843
    %8887 = vmatpush.msra.mxu0 %v8842
    %8888 = vmatpush.msra.mxu0 %v8841
    %8889 = vmatmul.f32.gmra.mxu0 %v8817
    %v8890 = vpop.f32.mrf.mxu0
    %v8891 = vadd.f32 0.0, %v8890
    %8892 = vdwg.mxu0
    %8893 = vmatpush.msra.mxu0 %v8872
    %8894 = vmatpush.msra.mxu0 %v8871
    %8895 = vmatpush.msra.mxu0 %v8870
    %8896 = vmatpush.msra.mxu0 %v8869
    %8897 = vmatpush.msra.mxu0 %v8868
    %8898 = vmatpush.msra.mxu0 %v8867
    %8899 = vmatpush.msra.mxu0 %v8866
    %8900 = vmatpush.msra.mxu0 %v8865
    %8901 = vmatpush.msra.mxu0 %v8864
    %8902 = vmatpush.msra.mxu0 %v8863
    %8903 = vmatpush.msra.mxu0 %v8862
    %8904 = vmatpush.msra.mxu0 %v8861
    %8905 = vmatpush.msra.mxu0 %v8860
    %8906 = vmatpush.msra.mxu0 %v8859
    %8907 = vmatpush.msra.mxu0 %v8858
    %8908 = vmatpush.msra.mxu0 %v8857
    %8909 = vmatmul.f32.gmra.mxu0 %v8818
    %v8910 = vpop.f32.mrf.mxu0
    %v8911 = vadd.f32 %v8891, %v8910
    %8912 = vdwg.mxu0
    %vm8913 = vcmp.ge.f32.partialorder %v8911, 0.0
    %v8914 = vmul.f32 %v8911, 0.2
    %v8915 = vsel %vm8913, %v8911, %v8914
    %v8916 = vld [vmem:[%s53] sm:$0xff]
    %v8917 = vld [vmem:[%s53 + $0x8] sm:$0xff]
    %v8918 = vld [vmem:[%s53 + $0x10] sm:$0xff]
    %v8919 = vld [vmem:[%s53 + $0x18] sm:$0xff]
    %v8920 = vld [vmem:[%s53 + $0x20] sm:$0xff]
    %v8921 = vld [vmem:[%s53 + $0x28] sm:$0xff]
    %v8922 = vld [vmem:[%s53 + $0x30] sm:$0xff]
    %v8923 = vld [vmem:[%s53 + $0x38] sm:$0xff]
    %v8924 = vld [vmem:[%s53 + $0x40] sm:$0xff]
    %v8925 = vld [vmem:[%s53 + $0x48] sm:$0xff]
    %v8926 = vld [vmem:[%s53 + $0x50] sm:$0xff]
    %v8927 = vld [vmem:[%s53 + $0x58] sm:$0xff]
    %v8928 = vld [vmem:[%s53 + $0x60] sm:$0xff]
    %v8929 = vld [vmem:[%s53 + $0x68] sm:$0xff]
    %v8930 = vld [vmem:[%s53 + $0x70] sm:$0xff]
    %v8931 = vld [vmem:[%s53 + $0x78] sm:$0xff]
    %v8932 = vld [vmem:[%s53 + $0x80] sm:$0xff]
    %v8933 = vld [vmem:[%s53 + $0x88] sm:$0xff]
    %v8934 = vld [vmem:[%s53 + $0x90] sm:$0xff]
    %v8935 = vld [vmem:[%s53 + $0x98] sm:$0xff]
    %v8936 = vld [vmem:[%s53 + $0xa0] sm:$0xff]
    %v8937 = vld [vmem:[%s53 + $0xa8] sm:$0xff]
    %v8938 = vld [vmem:[%s53 + $0xb0] sm:$0xff]
    %v8939 = vld [vmem:[%s53 + $0xb8] sm:$0xff]
    %v8940 = vld [vmem:[%s53 + $0xc0] sm:$0xff]
    %v8941 = vld [vmem:[%s53 + $0xc8] sm:$0xff]
    %v8942 = vld [vmem:[%s53 + $0xd0] sm:$0xff]
    %v8943 = vld [vmem:[%s53 + $0xd8] sm:$0xff]
    %v8944 = vld [vmem:[%s53 + $0xe0] sm:$0xff]
    %v8945 = vld [vmem:[%s53 + $0xe8] sm:$0xff]
    %v8946 = vld [vmem:[%s53 + $0xf0] sm:$0xff]
    %v8947 = vld [vmem:[%s53 + $0xf8] sm:$0xff]
    %8948 = vmatpush.msra.mxu0 %v8931
    %8949 = vmatpush.msra.mxu0 %v8930
    %8950 = vmatpush.msra.mxu0 %v8929
    %8951 = vmatpush.msra.mxu0 %v8928
    %8952 = vmatpush.msra.mxu0 %v8927
    %8953 = vmatpush.msra.mxu0 %v8926
    %8954 = vmatpush.msra.mxu0 %v8925
    %8955 = vmatpush.msra.mxu0 %v8924
    %8956 = vmatpush.msra.mxu0 %v8923
    %8957 = vmatpush.msra.mxu0 %v8922
    %8958 = vmatpush.msra.mxu0 %v8921
    %8959 = vmatpush.msra.mxu0 %v8920
    %8960 = vmatpush.msra.mxu0 %v8919
    %8961 = vmatpush.msra.mxu0 %v8918
    %8962 = vmatpush.msra.mxu0 %v8917
    %8963 = vmatpush.msra.mxu0 %v8916
    %8964 = vmatmul.f32.gmra.mxu0 %v8817
    %v8965 = vpop.f32.mrf.mxu0
    %v8966 = vadd.f32 0.0, %v8965
    %8967 = vdwg.mxu0
    %8968 = vmatpush.msra.mxu0 %v8947
    %8969 = vmatpush.msra.mxu0 %v8946
    %8970 = vmatpush.msra.mxu0 %v8945
    %8971 = vmatpush.msra.mxu0 %v8944
    %8972 = vmatpush.msra.mxu0 %v8943
    %8973 = vmatpush.msra.mxu0 %v8942
    %8974 = vmatpush.msra.mxu0 %v8941
    %8975 = vmatpush.msra.mxu0 %v8940
    %8976 = vmatpush.msra.mxu0 %v8939
    %8977 = vmatpush.msra.mxu0 %v8938
    %8978 = vmatpush.msra.mxu0 %v8937
    %8979 = vmatpush.msra.mxu0 %v8936
    %8980 = vmatpush.msra.mxu0 %v8935
    %8981 = vmatpush.msra.mxu0 %v8934
    %8982 = vmatpush.msra.mxu0 %v8933
    %8983 = vmatpush.msra.mxu0 %v8932
    %8984 = vmatmul.f32.gmra.mxu0 %v8818
    %v8985 = vpop.f32.mrf.mxu0
    %v8986 = vadd.f32 %v8966, %v8985
    %8987 = vdwg.mxu0
    %vm8988 = vcmp.ge.f32.partialorder %v8986, 0.0
    %v8989 = vmul.f32 %v8986, 0.2
    %v8990 = vsel %vm8988, %v8986, %v8989
    %v8991 = vld [vmem:[%s55] sm:$0xff]
    %v8992 = vld [vmem:[%s55 + $0x8] sm:$0xff]
    %v8993 = vld [vmem:[%s55 + $0x10] sm:$0xff]
    %v8994 = vld [vmem:[%s55 + $0x18] sm:$0xff]
    %v8995 = vld [vmem:[%s55 + $0x20] sm:$0xff]
    %v8996 = vld [vmem:[%s55 + $0x28] sm:$0xff]
    %v8997 = vld [vmem:[%s55 + $0x30] sm:$0xff]
    %v8998 = vld [vmem:[%s55 + $0x38] sm:$0xff]
    %v8999 = vld [vmem:[%s55 + $0x40] sm:$0xff]
    %v9000 = vld [vmem:[%s55 + $0x48] sm:$0xff]
    %v9001 = vld [vmem:[%s55 + $0x50] sm:$0xff]
    %v9002 = vld [vmem:[%s55 + $0x58] sm:$0xff]
    %v9003 = vld [vmem:[%s55 + $0x60] sm:$0xff]
    %v9004 = vld [vmem:[%s55 + $0x68] sm:$0xff]
    %v9005 = vld [vmem:[%s55 + $0x70] sm:$0xff]
    %v9006 = vld [vmem:[%s55 + $0x78] sm:$0xff]
    %9007 = vmatpush.msra.mxu0 %v9006
    %9008 = vmatpush.msra.mxu0 %v9005
    %9009 = vmatpush.msra.mxu0 %v9004
    %9010 = vmatpush.msra.mxu0 %v9003
    %9011 = vmatpush.msra.mxu0 %v9002
    %9012 = vmatpush.msra.mxu0 %v9001
    %9013 = vmatpush.msra.mxu0 %v9000
    %9014 = vmatpush.msra.mxu0 %v8999
    %9015 = vmatpush.msra.mxu0 %v8998
    %9016 = vmatpush.msra.mxu0 %v8997
    %9017 = vmatpush.msra.mxu0 %v8996
    %9018 = vmatpush.msra.mxu0 %v8995
    %9019 = vmatpush.msra.mxu0 %v8994
    %9020 = vmatpush.msra.mxu0 %v8993
    %9021 = vmatpush.msra.mxu0 %v8992
    %9022 = vmatpush.msra.mxu0 %v8991
    %9023 = vmatmul.f32.gmra.mxu0 %v8915
    %v9024 = vpop.f32.mrf.mxu0
    %v9025 = vadd.f32 0.0, %v9024
    %9026 = vdwg.mxu0
    %vm9027 = vcmp.ge.f32.partialorder %v9025, 0.0
    %v9028 = vmul.f32 %v9025, 0.2
    %v9029 = vsel %vm9027, %v9025, %v9028
    %v9030 = vld [vmem:[%s57] sm:$0xff]
    %v9031 = vld [vmem:[%s57 + $0x8] sm:$0xff]
    %v9032 = vld [vmem:[%s57 + $0x10] sm:$0xff]
    %v9033 = vld [vmem:[%s57 + $0x18] sm:$0xff]
    %v9034 = vld [vmem:[%s57 + $0x20] sm:$0xff]
    %v9035 = vld [vmem:[%s57 + $0x28] sm:$0xff]
    %v9036 = vld [vmem:[%s57 + $0x30] sm:$0xff]
    %v9037 = vld [vmem:[%s57 + $0x38] sm:$0xff]
    %v9038 = vld [vmem:[%s57 + $0x40] sm:$0xff]
    %v9039 = vld [vmem:[%s57 + $0x48] sm:$0xff]
    %v9040 = vld [vmem:[%s57 + $0x50] sm:$0xff]
    %v9041 = vld [vmem:[%s57 + $0x58] sm:$0xff]
    %v9042 = vld [vmem:[%s57 + $0x60] sm:$0xff]
    %v9043 = vld [vmem:[%s57 + $0x68] sm:$0xff]
    %v9044 = vld [vmem:[%s57 + $0x70] sm:$0xff]
    %v9045 = vld [vmem:[%s57 + $0x78] sm:$0xff]
    %v9046 = vld [vmem:[%s59] sm:$0x1]
    %v9048 = vperm.slane %v9046, 0
    %9050 = vmatpush.msra.mxu0 %v9045
    %9051 = vmatpush.msra.mxu0 %v9044
    %9052 = vmatpush.msra.mxu0 %v9043
    %9053 = vmatpush.msra.mxu0 %v9042
    %9054 = vmatpush.msra.mxu0 %v9041
    %9055 = vmatpush.msra.mxu0 %v9040
    %9056 = vmatpush.msra.mxu0 %v9039
    %9057 = vmatpush.msra.mxu0 %v9038
    %9058 = vmatpush.msra.mxu0 %v9037
    %9059 = vmatpush.msra.mxu0 %v9036
    %9060 = vmatpush.msra.mxu0 %v9035
    %9061 = vmatpush.msra.mxu0 %v9034
    %9062 = vmatpush.msra.mxu0 %v9033
    %9063 = vmatpush.msra.mxu0 %v9032
    %9064 = vmatpush.msra.mxu0 %v9031
    %9065 = vmatpush.msra.mxu0 %v9030
    %9066 = vmatmul.f32.gmra.mxu0 %v8990
    %v9067 = vpop.f32.mrf.mxu0
    %v9068 = vadd.f32 %v9048, %v9067
    %9069 = vdwg.mxu0
    %v9070 = vxor.u32 %v9068, 2147483648
    %v9071 = vmul.f32 %v9070, 1.442695
    %v9072 = vpow.pop %v9071
    %v9073 = vadd.f32 %v9072, 1.0
    %v9074 = vrcp.pop %v9073
    %v9075 = vmul.f32 %v9073, %v9074
    %v9076 = vsub.f32 1.0, %v9075
    %v9077 = vmul.f32 %v9074, %v9076
    %v9078 = vadd.f32 %v9074, %v9077
    %vm9079 = vweird.f32 %v9073
    %vm9080 = vweird.f32 %v9074
    %vm9081 = vmor %vm9079, %vm9080
    %v9082 = vsel %vm9081, %v9074, %v9078
    %v9083 = vand.u32 2147483647, %v9073
    %vm9084 = vcmp.eq.f32.partialorder %v9083, 8.507059e+37
    %v9085 = vand.u32 %v9073, 2147483648
    %v9086 = vor.u32 1.1754944e-38, %v9085
    %v9087 = vsel %vm9084, %v9086, %v9082
    %v9088 = vmul.f32 1.0, %v9087
    %v9089 = vld [vmem:[#allocation4] sm:$0xff]
    %v9090 = vld [vmem:[#allocation4 + $0x8] sm:$0xff]
    %v9091 = vld [vmem:[#allocation4 + $0x10] sm:$0xff]
    %v9092 = vld [vmem:[#allocation4 + $0x18] sm:$0xff]
    %v9093 = vld [vmem:[#allocation4 + $0x20] sm:$0xff]
    %v9094 = vld [vmem:[#allocation4 + $0x28] sm:$0xff]
    %v9095 = vld [vmem:[#allocation4 + $0x30] sm:$0xff]
    %v9096 = vld [vmem:[#allocation4 + $0x38] sm:$0xff]
    %v9097 = vld [vmem:[#allocation4 + $0x40] sm:$0xff]
    %v9098 = vld [vmem:[#allocation4 + $0x48] sm:$0xff]
    %v9099 = vld [vmem:[#allocation4 + $0x50] sm:$0xff]
    %v9100 = vld [vmem:[#allocation4 + $0x58] sm:$0xff]
    %v9101 = vld [vmem:[#allocation4 + $0x60] sm:$0xff]
    %v9102 = vld [vmem:[#allocation4 + $0x68] sm:$0xff]
    %v9103 = vld [vmem:[#allocation4 + $0x70] sm:$0xff]
    %v9104 = vld [vmem:[#allocation4 + $0x78] sm:$0xff]
    %9105 = vmatpush.msra.mxu0 %v9104
    %9106 = vmatpush.msra.mxu0 %v9103
    %9107 = vmatpush.msra.mxu0 %v9102
    %9108 = vmatpush.msra.mxu0 %v9101
    %9109 = vmatpush.msra.mxu0 %v9100
    %9110 = vmatpush.msra.mxu0 %v9099
    %9111 = vmatpush.msra.mxu0 %v9098
    %9112 = vmatpush.msra.mxu0 %v9097
    %9113 = vmatpush.msra.mxu0 %v9096
    %9114 = vmatpush.msra.mxu0 %v9095
    %9115 = vmatpush.msra.mxu0 %v9094
    %9116 = vmatpush.msra.mxu0 %v9093
    %9117 = vmatpush.msra.mxu0 %v9092
    %9118 = vmatpush.msra.mxu0 %v9091
    %9119 = vmatpush.msra.mxu0 %v9090
    %9120 = vmatpush.msra.mxu0 %v9089
    %9121 = vmatmul.f32.gmra.mxu0 %v8990
    %v9122 = vpop.f32.mrf.mxu0
    %v9123 = vadd.f32 0.0, %v9122
    %9124 = vdwg.mxu0
    %v9125 = vmul.f32 %v9123, %v9088
    %v9126 = vld [vmem:[#allocation6] sm:$0xff]
    %v9127 = vld [vmem:[#allocation6 + $0x8] sm:$0xff]
    %v9128 = vld [vmem:[#allocation6 + $0x10] sm:$0xff]
    %v9129 = vld [vmem:[#allocation6 + $0x18] sm:$0xff]
    %v9130 = vld [vmem:[#allocation6 + $0x20] sm:$0xff]
    %v9131 = vld [vmem:[#allocation6 + $0x28] sm:$0xff]
    %v9132 = vld [vmem:[#allocation6 + $0x30] sm:$0xff]
    %v9133 = vld [vmem:[#allocation6 + $0x38] sm:$0xff]
    %v9134 = vld [vmem:[#allocation6 + $0x40] sm:$0xff]
    %v9135 = vld [vmem:[#allocation6 + $0x48] sm:$0xff]
    %v9136 = vld [vmem:[#allocation6 + $0x50] sm:$0xff]
    %v9137 = vld [vmem:[#allocation6 + $0x58] sm:$0xff]
    %v9138 = vld [vmem:[#allocation6 + $0x60] sm:$0xff]
    %v9139 = vld [vmem:[#allocation6 + $0x68] sm:$0xff]
    %v9140 = vld [vmem:[#allocation6 + $0x70] sm:$0xff]
    %v9141 = vld [vmem:[#allocation6 + $0x78] sm:$0xff]
    %9142 = vmatpush.msra.mxu0 %v9141
    %9143 = vmatpush.msra.mxu0 %v9140
    %9144 = vmatpush.msra.mxu0 %v9139
    %9145 = vmatpush.msra.mxu0 %v9138
    %9146 = vmatpush.msra.mxu0 %v9137
    %9147 = vmatpush.msra.mxu0 %v9136
    %9148 = vmatpush.msra.mxu0 %v9135
    %9149 = vmatpush.msra.mxu0 %v9134
    %9150 = vmatpush.msra.mxu0 %v9133
    %9151 = vmatpush.msra.mxu0 %v9132
    %9152 = vmatpush.msra.mxu0 %v9131
    %9153 = vmatpush.msra.mxu0 %v9130
    %9154 = vmatpush.msra.mxu0 %v9129
    %9155 = vmatpush.msra.mxu0 %v9128
    %9156 = vmatpush.msra.mxu0 %v9127
    %9157 = vmatpush.msra.mxu0 %v9126
    %9158 = vmatmul.f32.gmra.mxu0 %v9125
    %v9159 = vpop.f32.mrf.mxu0
    %v9160 = vadd.f32 0.0, %v9159
    %9161 = vdwg.mxu0
    %vm9162 = vcmp.ge.f32.partialorder %v9160, 0.0
    %v9163 = vmul.f32 %v9160, 0.2
    %v9164 = vsel %vm9162, %v9160, %v9163
    %v9165 = vld [vmem:[%s65] sm:$0xff]
    %v9166 = vld [vmem:[%s65 + $0x8] sm:$0xff]
    %v9167 = vld [vmem:[%s65 + $0x10] sm:$0xff]
    %v9168 = vld [vmem:[%s65 + $0x18] sm:$0xff]
    %v9169 = vld [vmem:[%s65 + $0x20] sm:$0xff]
    %v9170 = vld [vmem:[%s65 + $0x28] sm:$0xff]
    %v9171 = vld [vmem:[%s65 + $0x30] sm:$0xff]
    %v9172 = vld [vmem:[%s65 + $0x38] sm:$0xff]
    %v9173 = vld [vmem:[%s65 + $0x40] sm:$0xff]
    %v9174 = vld [vmem:[%s65 + $0x48] sm:$0xff]
    %v9175 = vld [vmem:[%s65 + $0x50] sm:$0xff]
    %v9176 = vld [vmem:[%s65 + $0x58] sm:$0xff]
    %v9177 = vld [vmem:[%s65 + $0x60] sm:$0xff]
    %v9178 = vld [vmem:[%s65 + $0x68] sm:$0xff]
    %v9179 = vld [vmem:[%s65 + $0x70] sm:$0xff]
    %v9180 = vld [vmem:[%s65 + $0x78] sm:$0xff]
    %v9181 = vld [vmem:[%s65 + $0x80] sm:$0xff]
    %v9182 = vld [vmem:[%s65 + $0x88] sm:$0xff]
    %v9183 = vld [vmem:[%s65 + $0x90] sm:$0xff]
    %v9184 = vld [vmem:[%s65 + $0x98] sm:$0xff]
    %v9185 = vld [vmem:[%s65 + $0xa0] sm:$0xff]
    %v9186 = vld [vmem:[%s65 + $0xa8] sm:$0xff]
    %v9187 = vld [vmem:[%s65 + $0xb0] sm:$0xff]
    %v9188 = vld [vmem:[%s65 + $0xb8] sm:$0xff]
    %v9189 = vld [vmem:[%s65 + $0xc0] sm:$0xff]
    %v9190 = vld [vmem:[%s65 + $0xc8] sm:$0xff]
    %v9191 = vld [vmem:[%s65 + $0xd0] sm:$0xff]
    %v9192 = vld [vmem:[%s65 + $0xd8] sm:$0xff]
    %v9193 = vld [vmem:[%s65 + $0xe0] sm:$0xff]
    %v9194 = vld [vmem:[%s65 + $0xe8] sm:$0xff]
    %v9195 = vld [vmem:[%s65 + $0xf0] sm:$0xff]
    %v9196 = vld [vmem:[%s65 + $0xf8] sm:$0xff]
    %v9197 = vld [vmem:[%s65 + $0x100] sm:$0xff]
    %v9198 = vld [vmem:[%s65 + $0x108] sm:$0xff]
    %v9199 = vld [vmem:[%s65 + $0x110] sm:$0xff]
    %v9200 = vld [vmem:[%s65 + $0x118] sm:$0xff]
    %v9201 = vld [vmem:[%s65 + $0x120] sm:$0xff]
    %v9202 = vld [vmem:[%s65 + $0x128] sm:$0xff]
    %v9203 = vld [vmem:[%s65 + $0x130] sm:$0xff]
    %v9204 = vld [vmem:[%s65 + $0x138] sm:$0xff]
    %v9205 = vld [vmem:[%s65 + $0x140] sm:$0xff]
    %v9206 = vld [vmem:[%s65 + $0x148] sm:$0xff]
    %v9207 = vld [vmem:[%s65 + $0x150] sm:$0xff]
    %v9208 = vld [vmem:[%s65 + $0x158] sm:$0xff]
    %v9209 = vld [vmem:[%s65 + $0x160] sm:$0xff]
    %v9210 = vld [vmem:[%s65 + $0x168] sm:$0xff]
    %v9211 = vld [vmem:[%s65 + $0x170] sm:$0xff]
    %v9212 = vld [vmem:[%s65 + $0x178] sm:$0xff]
    %v9213 = vld [vmem:[%s65 + $0x180] sm:$0xff]
    %v9214 = vld [vmem:[%s65 + $0x188] sm:$0xff]
    %v9215 = vld [vmem:[%s65 + $0x190] sm:$0xff]
    %v9216 = vld [vmem:[%s65 + $0x198] sm:$0xff]
    %v9217 = vld [vmem:[%s65 + $0x1a0] sm:$0xff]
    %v9218 = vld [vmem:[%s65 + $0x1a8] sm:$0xff]
    %v9219 = vld [vmem:[%s65 + $0x1b0] sm:$0xff]
    %v9220 = vld [vmem:[%s65 + $0x1b8] sm:$0xff]
    %v9221 = vld [vmem:[%s65 + $0x1c0] sm:$0xff]
    %v9222 = vld [vmem:[%s65 + $0x1c8] sm:$0xff]
    %v9223 = vld [vmem:[%s65 + $0x1d0] sm:$0xff]
    %v9224 = vld [vmem:[%s65 + $0x1d8] sm:$0xff]
    %v9225 = vld [vmem:[%s65 + $0x1e0] sm:$0xff]
    %v9226 = vld [vmem:[%s65 + $0x1e8] sm:$0xff]
    %v9227 = vld [vmem:[%s65 + $0x1f0] sm:$0xff]
    %v9228 = vld [vmem:[%s65 + $0x1f8] sm:$0xff]
    %9229 = vmatpush.msra.mxu0 %v9195
    %9230 = vmatpush.msra.mxu0 %v9193
    %9231 = vmatpush.msra.mxu0 %v9191
    %9232 = vmatpush.msra.mxu0 %v9189
    %9233 = vmatpush.msra.mxu0 %v9187
    %9234 = vmatpush.msra.mxu0 %v9185
    %9235 = vmatpush.msra.mxu0 %v9183
    %9236 = vmatpush.msra.mxu0 %v9181
    %9237 = vmatpush.msra.mxu0 %v9179
    %9238 = vmatpush.msra.mxu0 %v9177
    %9239 = vmatpush.msra.mxu0 %v9175
    %9240 = vmatpush.msra.mxu0 %v9173
    %9241 = vmatpush.msra.mxu0 %v9171
    %9242 = vmatpush.msra.mxu0 %v9169
    %9243 = vmatpush.msra.mxu0 %v9167
    %9244 = vmatpush.msra.mxu0 %v9165
    %9245 = vmatmul.f32.gmra.mxu0 %v9029
    %v9246 = vpop.f32.mrf.mxu0
    %v9247 = vadd.f32 %v8817, %v9246
    %9248 = vdwg.mxu0
    %9249 = vmatpush.msra.mxu0 %v9227
    %9250 = vmatpush.msra.mxu0 %v9225
    %9251 = vmatpush.msra.mxu0 %v9223
    %9252 = vmatpush.msra.mxu0 %v9221
    %9253 = vmatpush.msra.mxu0 %v9219
    %9254 = vmatpush.msra.mxu0 %v9217
    %9255 = vmatpush.msra.mxu0 %v9215
    %9256 = vmatpush.msra.mxu0 %v9213
    %9257 = vmatpush.msra.mxu0 %v9211
    %9258 = vmatpush.msra.mxu0 %v9209
    %9259 = vmatpush.msra.mxu0 %v9207
    %9260 = vmatpush.msra.mxu0 %v9205
    %9261 = vmatpush.msra.mxu0 %v9203
    %9262 = vmatpush.msra.mxu0 %v9201
    %9263 = vmatpush.msra.mxu0 %v9199
    %9264 = vmatpush.msra.mxu0 %v9197
    %9265 = vmatmul.f32.gmra.mxu0 %v9164
    %v9266 = vpop.f32.mrf.mxu0
    %v9267 = vadd.f32 %v9247, %v9266
    %9268 = vdwg.mxu0
    %9269 = vmatpush.msra.mxu0 %v9196
    %9270 = vmatpush.msra.mxu0 %v9194
    %9271 = vmatpush.msra.mxu0 %v9192
    %9272 = vmatpush.msra.mxu0 %v9190
    %9273 = vmatpush.msra.mxu0 %v9188
    %9274 = vmatpush.msra.mxu0 %v9186
    %9275 = vmatpush.msra.mxu0 %v9184
    %9276 = vmatpush.msra.mxu0 %v9182
    %9277 = vmatpush.msra.mxu0 %v9180
    %9278 = vmatpush.msra.mxu0 %v9178
    %9279 = vmatpush.msra.mxu0 %v9176
    %9280 = vmatpush.msra.mxu0 %v9174
    %9281 = vmatpush.msra.mxu0 %v9172
    %9282 = vmatpush.msra.mxu0 %v9170
    %9283 = vmatpush.msra.mxu0 %v9168
    %9284 = vmatpush.msra.mxu0 %v9166
    %9285 = vmatmul.f32.gmra.mxu0 %v9029
    %v9286 = vpop.f32.mrf.mxu0
    %v9287 = vadd.f32 %v8818, %v9286
    %9288 = vdwg.mxu0
    %9289 = vmatpush.msra.mxu0 %v9228
    %9290 = vmatpush.msra.mxu0 %v9226
    %9291 = vmatpush.msra.mxu0 %v9224
    %9292 = vmatpush.msra.mxu0 %v9222
    %9293 = vmatpush.msra.mxu0 %v9220
    %9294 = vmatpush.msra.mxu0 %v9218
    %9295 = vmatpush.msra.mxu0 %v9216
    %9296 = vmatpush.msra.mxu0 %v9214
    %9297 = vmatpush.msra.mxu0 %v9212
    %9298 = vmatpush.msra.mxu0 %v9210
    %9299 = vmatpush.msra.mxu0 %v9208
    %9300 = vmatpush.msra.mxu0 %v9206
    %9301 = vmatpush.msra.mxu0 %v9204
    %9302 = vmatpush.msra.mxu0 %v9202
    %9303 = vmatpush.msra.mxu0 %v9200
    %9304 = vmatpush.msra.mxu0 %v9198
    %9305 = vmatmul.f32.gmra.mxu0 %v9164
    %v9306 = vpop.f32.mrf.mxu0
    %v9307 = vadd.f32 %v9287, %v9306
    %9308 = vdwg.mxu0
    %v9309 = vadd.f32 %v9267, %v8839
    %v9310 = vadd.f32 %v9307, %v8840
    %v9313 = vrot.slane %v9310, 6
    %vm9314 = vcmask 1041408
    %v9315 = vsel %vm9314, %v9309, %v9313
    %9317 = vst [vmem:[%s67] sm:$0xf] %v9315
    // Predicated region
    $region153: #{spe_fem_forward.1} parent=1 // pred_check
      _
    $region154: #{spe_fem_forward.1} parent=1 // pred_check_branch
      %9319 = sbr.rel (0) target = $region156
    $region155: #{spe_fem_forward.1} parent=1 // pred_region
      _
    $region156: #{spe_fem_forward.1} parent=1 // pred_fallthru
      _
    // Predicated region
    $region157: #{spe_fem_forward.1} parent=1 // pred_check
      _
    $region158: #{spe_fem_forward.1} parent=1 // pred_check_branch
      %9321 = sbr.rel (0) target = $region160
    $region159: #{spe_fem_forward.1} parent=1 // pred_region
      _
    $region160: #{spe_fem_forward.1} parent=1 // pred_fallthru
      _
    %9322 = vsyncpa [#allocation3], 1
    %9323 = vsyncpa [#allocation5], 1

</llo_original>
